<compile_context>
chip_gen: v6e
topology: v6e:2x2x1
jax: 0.10.0
libtpu: 0.0.40
codegen_flags: <defaults>
</compile_context>

<pallas_src>
import functools

import jax
import jax.numpy as jnp
from jax.experimental import pallas as pl
from jax.experimental.pallas import tpu as pltpu

C1, C2, C3, F1, F2 = 64, 128, 1024, 512, 256   # channel sizes of the module


def _stnkd_kernel(
    x_ref,                                  # (k, TILE_N) f32   (batch squeezed)
    w1t_ref, s1_ref, t1_ref,                # (64,k) f32,    (64,1), (64,1)
    w2t_ref, s2_ref, t2_ref,                # (128,64) bf16, (128,1), (128,1)
    w3t_ref, s3_ref, t3_ref,                # (1024,128) bf16, (1024,1), (1024,1)
    wf1t_ref, sf1_ref, tf1_ref,             # (512,1024) bf16, (512,1), (512,1)
    wf2t_ref, sf2_ref, tf2_ref,             # (256,512) bf16, (256,1), (256,1)
    wf3t_ref, bf3_ref, eye_ref,             # (kk,256) bf16, (kk,1), (kk,1)
    out_ref,                                # (kk, 1) f32       (batch squeezed)
    gmax_ref,                               # scratch (1024, 1) f32
):
    n = pl.program_id(1)
    last_n = pl.num_programs(1) - 1

    x = x_ref[...]                          # [k, TILE_N], points on lanes
    k_in = x.shape[0]

    # --- conv1 (k -> 64).
    w1t = w1t_ref[...]
    if k_in >= 8:
        # Contraction dim big enough to be worth the MXU; keep f32 (matches
        # the reference's f32 first-layer matmul numerics).
        h = jnp.dot(w1t, x, preferred_element_type=jnp.float32)
    else:
        # Tiny contraction dim: k unrolled broadcast multiply-adds on the VPU.
        h = w1t[:, 0:1] * x[0:1, :]
        for c in range(1, k_in):
            h = h + w1t[:, c:c + 1] * x[c:c + 1, :]
    h = jnp.maximum(h * s1_ref[...] + t1_ref[...], 0.0)          # [64, T]

    # --- conv2 (64 -> 128): bf16 MXU matmul, f32 accumulation.
    h = jnp.dot(w2t_ref[...], h.astype(jnp.bfloat16),
                preferred_element_type=jnp.float32)
    h = jnp.maximum(h * s2_ref[...] + t2_ref[...], 0.0)          # [128, T]

    # --- conv3 (128 -> 1024)
    h = jnp.dot(w3t_ref[...], h.astype(jnp.bfloat16),
                preferred_element_type=jnp.float32)
    h = jnp.maximum(h * s3_ref[...] + t3_ref[...], 0.0)          # [1024, T]

    # --- running channel-wise max over point tiles (torch.max(x, 2)[0]).
    #     Cross-lane reduce goes to the XLU slot, hidden under the MXU pushes.
    @pl.when(n == 0)
    def _():
        gmax_ref[...] = jnp.full_like(gmax_ref, -jnp.inf)

    gmax_ref[...] = jnp.maximum(gmax_ref[...],
                                jnp.max(h, axis=1, keepdims=True))

    # --- regression head: run once per batch element, on the last point tile.
    @pl.when(n == last_n)
    def _():
        g = gmax_ref[...]                                         # [1024, 1]
        f = jnp.dot(wf1t_ref[...], g.astype(jnp.bfloat16),
                    preferred_element_type=jnp.float32)
        f = jnp.maximum(f * sf1_ref[...] + tf1_ref[...], 0.0)     # [512, 1]
        f = jnp.dot(wf2t_ref[...], f.astype(jnp.bfloat16),
                    preferred_element_type=jnp.float32)
        f = jnp.maximum(f * sf2_ref[...] + tf2_ref[...], 0.0)     # [256, 1]
        o = jnp.dot(wf3t_ref[...], f.astype(jnp.bfloat16),
                    preferred_element_type=jnp.float32)
        o = o + bf3_ref[...] + eye_ref[...]                       # [kk, 1]
        out_ref[...] = o.astype(out_ref.dtype)


def _pick_tile_n(n_points):
    # Biggest convenient lane-aligned tile that still fits comfortably in VMEM
    # on v7x (64 MiB physical / 32 MiB default scoped): h3 is 4 KiB per point
    # in f32, so 1024 points -> 4 MiB of live activation.
    for cand in (1024, 512, 256, 128):
        if n_points % cand == 0:
            return cand
    return n_points   # tiny / odd N: single full tile


@functools.partial(jax.jit, static_argnums=(2, 3))
def stnkd_forward(x_bkn, params, k, tile_n=None):
    """STNKd forward. x_bkn: [B, k, N] float32 (PyTorch layout) -> [B, k, k]."""
    B, k_in, N = x_bkn.shape
    assert k_in == k
    kk = k * k
    if tile_n is None:
        tile_n = _pick_tile_n(N)
    assert N % tile_n == 0
    num_n = N // tile_n

    f32, bf16 = jnp.float32, jnp.bfloat16
    col = lambda v: v.reshape(-1, 1).astype(f32)   # per-channel column [C, 1]

    # Kernel layouts: weights transposed to [C_out, C_in]; matmul weights in
    # bf16 for the MXU; conv1 weight stays f32 (VPU / f32-MXU path); BN
    # scale/shift f32.
    flat = [
        params["w1"].T.astype(f32),   col(params["s1"]),  col(params["t1"]),
        params["w2"].T.astype(bf16),  col(params["s2"]),  col(params["t2"]),
        params["w3"].T.astype(bf16),  col(params["s3"]),  col(params["t3"]),
        params["wf1"].T.astype(bf16), col(params["sf1"]), col(params["tf1"]),
        params["wf2"].T.astype(bf16), col(params["sf2"]), col(params["tf2"]),
        params["wf3"].T.astype(bf16), col(params["bf3"]), col(params["eye"]),
    ]

    def const_spec(a):   # full-shape block, constant index -> resident in VMEM
        return pl.BlockSpec(a.shape, lambda b, n: (0,) * a.ndim)

    x_spec = pl.BlockSpec((None, k, tile_n), lambda b, n: (b, 0, n))
    out_spec = pl.BlockSpec((None, kk, 1), lambda b, n: (b, 0, 0))

    # Rough VMEM budget: resident weights (double-buffered by the pipeline) +
    # per-tile activations (64+128+1024 channels, f32) + x tile + gmax scratch.
    weight_bytes = sum(2 * a.size * a.dtype.itemsize for a in flat)
    act_bytes = 2 * tile_n * (C1 + C2 + C3) * 4 + 4 * k * tile_n + C3 * 128 * 4
    vmem_limit = int(min(max(32 * 2**20, 2 * (weight_bytes + act_bytes)),
                         56 * 2**20))

    flops = (2 * B * N * (k * C1 + C1 * C2 + C2 * C3)
             + 2 * B * (C3 * F1 + F1 * F2 + F2 * kk))
    bytes_accessed = (x_bkn.size * 4
                      + sum(a.size * a.dtype.itemsize for a in flat)
                      + B * kk * 4)

    out = pl.pallas_call(
        _stnkd_kernel,
        out_shape=jax.ShapeDtypeStruct((B, kk, 1), f32),
        grid_spec=pltpu.PrefetchScalarGridSpec(
            num_scalar_prefetch=0,
            grid=(B, num_n),                       # reduction (N-tile) axis last
            in_specs=[x_spec] + [const_spec(a) for a in flat],
            out_specs=out_spec,
            scratch_shapes=[pltpu.VMEM((C3, 1), f32)],   # running max over points
        ),
        compiler_params=pltpu.CompilerParams(
            dimension_semantics=("parallel", "arbitrary"),
            vmem_limit_bytes=vmem_limit,
        ),
        cost_estimate=pl.CostEstimate(
            flops=flops, transcendentals=0, bytes_accessed=bytes_accessed),
    )(x_bkn.astype(f32), *flat)

    return out.reshape(B, k, k)


# -------------------- deterministic synthetic parameters --------------------

def _fold_bn_layer(keys, c_in, c_out, eps=1e-5):
    """Conv1d(c_in,c_out,1)+BN or Linear(c_in,c_out)+BN folded to (W, scale, shift)."""
    kw, kb, kg, kbeta, km, kv = keys
    w = 0.1 * jax.random.normal(kw, (c_in, c_out), jnp.float32)
    b = 0.1 * jax.random.normal(kb, (c_out,), jnp.float32)
    gamma = 1.0 + 0.1 * jax.random.normal(kg, (c_out,), jnp.float32)
    beta = 0.1 * jax.random.normal(kbeta, (c_out,), jnp.float32)
    mean = 0.1 * jax.random.normal(km, (c_out,), jnp.float32)
    var = jnp.abs(jax.random.normal(kv, (c_out,), jnp.float32)) + 0.5
    scale = gamma / jnp.sqrt(var + eps)
    shift = (b - mean) * scale + beta
    return w, scale.reshape(1, c_out), shift.reshape(1, c_out)


def init_params(key, k):
    dims = [(k, C1), (C1, C2), (C2, C3), (C3, F1), (F1, F2)]
    names = [("w1", "s1", "t1"), ("w2", "s2", "t2"), ("w3", "s3", "t3"),
             ("wf1", "sf1", "tf1"), ("wf2", "sf2", "tf2")]
    params = {}
    keys = jax.random.split(key, 6 * len(dims) + 2)
    for i, ((ci, co), (wn, sn, tn)) in enumerate(zip(dims, names)):
        w, s, t = _fold_bn_layer(keys[6 * i:6 * i + 6], ci, co)
        params[wn], params[sn], params[tn] = w, s, t
    # final Linear(256, k*k): bias only, no BN, no ReLU
    params["wf3"] = 0.1 * jax.random.normal(keys[-2], (F2, k * k), jnp.float32)
    params["bf3"] = (0.1 * jax.random.normal(keys[-1], (k * k,), jnp.float32)
                     ).reshape(1, k * k)
    params["eye"] = jnp.eye(k, dtype=jnp.float32).reshape(1, k * k)
    return params


# ----------------------------- pure-JAX reference ----------------------------

def reference(x_bkn, p, k):
    """Reference with the same precision policy as the kernel
    (bf16 MXU inputs, f32 accumulation / elementwise)."""
    bdot = lambda a, b: jnp.dot(a.astype(jnp.bfloat16), b.astype(jnp.bfloat16),
                                preferred_element_type=jnp.float32)
    x = jnp.transpose(x_bkn, (0, 2, 1)).astype(jnp.float32)     # [B, N, k]
    h = jnp.maximum(jnp.dot(x, p["w1"]) * p["s1"] + p["t1"], 0.0)
    h = jnp.maximum(bdot(h, p["w2"]) * p["s2"] + p["t2"], 0.0)
    h = jnp.maximum(bdot(h, p["w3"]) * p["s3"] + p["t3"], 0.0)
    g = jnp.max(h, axis=1)
    f = jnp.maximum(bdot(g, p["wf1"]) * p["sf1"] + p["tf1"], 0.0)
    f = jnp.maximum(bdot(f, p["wf2"]) * p["sf2"] + p["tf2"], 0.0)
    o = bdot(f, p["wf3"]) + p["bf3"] + p["eye"]
    return o.reshape(-1, k, k)


if __name__ == "__main__":
    k = 4        # STNKd(k=4)
    B = 2        # batch
    N = 256      # points: small, but gives two 128-point tiles so the
                 # running-max accumulator + pl.when-gated head are exercised

    key = jax.random.PRNGKey(0)
    kx, kp = jax.random.split(key)
    x = jax.random.normal(kx, (B, k, N), jnp.float32)    # PyTorch layout [B, k, N]
    params = init_params(kp, k)

    out = stnkd_forward(x, params, k)
    out = jax.block_until_ready(out)

    ref = reference(x, params, k)
    assert out.shape == (B, k, k)
    max_err = float(jnp.max(jnp.abs(out - ref)))
    assert jnp.allclose(out, ref, atol=2e-2, rtol=2e-2), (
        f"mismatch vs reference: max abs diff {max_err:.3e}")

    print("KERNEL_OK")
</pallas_src>

<mosaic_0001>
module attributes {stable_mosaic.version = 11 : i64} {
  func.func @_stnkd_kernel(%arg0: i32, %arg1: i32, %arg2: memref<1x4x256xf32, #tpu.memory_space<vmem>>, %arg3: memref<64x4xf32, #tpu.memory_space<vmem>>, %arg4: memref<64x1xf32, #tpu.memory_space<vmem>>, %arg5: memref<64x1xf32, #tpu.memory_space<vmem>>, %arg6: memref<128x64xbf16, #tpu.memory_space<vmem>>, %arg7: memref<128x1xf32, #tpu.memory_space<vmem>>, %arg8: memref<128x1xf32, #tpu.memory_space<vmem>>, %arg9: memref<1024x128xbf16, #tpu.memory_space<vmem>>, %arg10: memref<1024x1xf32, #tpu.memory_space<vmem>>, %arg11: memref<1024x1xf32, #tpu.memory_space<vmem>>, %arg12: memref<512x1024xbf16, #tpu.memory_space<vmem>>, %arg13: memref<512x1xf32, #tpu.memory_space<vmem>>, %arg14: memref<512x1xf32, #tpu.memory_space<vmem>>, %arg15: memref<256x512xbf16, #tpu.memory_space<vmem>>, %arg16: memref<256x1xf32, #tpu.memory_space<vmem>>, %arg17: memref<256x1xf32, #tpu.memory_space<vmem>>, %arg18: memref<16x256xbf16, #tpu.memory_space<vmem>>, %arg19: memref<16x1xf32, #tpu.memory_space<vmem>>, %arg20: memref<16x1xf32, #tpu.memory_space<vmem>>, %arg21: memref<1x16x1xf32, #tpu.memory_space<vmem>>, %arg22: memref<1024x1xf32, #tpu.memory_space<vmem>>) attributes {dimension_semantics = [#tpu.dimension_semantics<parallel>, #tpu.dimension_semantics<arbitrary>], iteration_bounds = array<i64: 2, 1>, scalar_prefetch = 0 : i64, scratch_operands = 1 : i64, tpu.core_type = #tpu.core_type<tc>, window_params = [{transform_indices = @transform_0, window_bounds = array<i64: 1, 4, 256>}, {pipeline_mode = #tpu.pipeline_mode<synchronous>, transform_indices = @transform_1, window_bounds = array<i64: 64, 4>}, {pipeline_mode = #tpu.pipeline_mode<synchronous>, transform_indices = @transform_2, window_bounds = array<i64: 64, 1>}, {pipeline_mode = #tpu.pipeline_mode<synchronous>, transform_indices = @transform_3, window_bounds = array<i64: 64, 1>}, {pipeline_mode = #tpu.pipeline_mode<synchronous>, transform_indices = @transform_4, window_bounds = array<i64: 128, 64>}, {pipeline_mode = #tpu.pipeline_mode<synchronous>, transform_indices = @transform_5, window_bounds = array<i64: 128, 1>}, {pipeline_mode = #tpu.pipeline_mode<synchronous>, transform_indices = @transform_6, window_bounds = array<i64: 128, 1>}, {pipeline_mode = #tpu.pipeline_mode<synchronous>, transform_indices = @transform_7, window_bounds = array<i64: 1024, 128>}, {pipeline_mode = #tpu.pipeline_mode<synchronous>, transform_indices = @transform_8, window_bounds = array<i64: 1024, 1>}, {pipeline_mode = #tpu.pipeline_mode<synchronous>, transform_indices = @transform_9, window_bounds = array<i64: 1024, 1>}, {pipeline_mode = #tpu.pipeline_mode<synchronous>, transform_indices = @transform_10, window_bounds = array<i64: 512, 1024>}, {pipeline_mode = #tpu.pipeline_mode<synchronous>, transform_indices = @transform_11, window_bounds = array<i64: 512, 1>}, {pipeline_mode = #tpu.pipeline_mode<synchronous>, transform_indices = @transform_12, window_bounds = array<i64: 512, 1>}, {pipeline_mode = #tpu.pipeline_mode<synchronous>, transform_indices = @transform_13, window_bounds = array<i64: 256, 512>}, {pipeline_mode = #tpu.pipeline_mode<synchronous>, transform_indices = @transform_14, window_bounds = array<i64: 256, 1>}, {pipeline_mode = #tpu.pipeline_mode<synchronous>, transform_indices = @transform_15, window_bounds = array<i64: 256, 1>}, {pipeline_mode = #tpu.pipeline_mode<synchronous>, transform_indices = @transform_16, window_bounds = array<i64: 16, 256>}, {pipeline_mode = #tpu.pipeline_mode<synchronous>, transform_indices = @transform_17, window_bounds = array<i64: 16, 1>}, {pipeline_mode = #tpu.pipeline_mode<synchronous>, transform_indices = @transform_18, window_bounds = array<i64: 16, 1>}, {transform_indices = @transform_19, window_bounds = array<i64: 1, 16, 1>}]} {
    %c0 = arith.constant 0 : index
    %c0_0 = arith.constant 0 : index
    %c0_1 = arith.constant 0 : index
    %0 = vector.load %arg2[%c0, %c0_0, %c0_1] : memref<1x4x256xf32, #tpu.memory_space<vmem>>, vector<1x4x256xf32>
    %1 = vector.shape_cast %0 : vector<1x4x256xf32> to vector<4x256xf32>
    %c0_2 = arith.constant 0 : index
    %c0_3 = arith.constant 0 : index
    %2 = vector.load %arg3[%c0_2, %c0_3] : memref<64x4xf32, #tpu.memory_space<vmem>>, vector<64x4xf32>
    %3 = vector.extract_strided_slice %2 {offsets = [0, 0], sizes = [64, 1], strides = [1, 1]} : vector<64x4xf32> to vector<64x1xf32>
    %4 = vector.extract_strided_slice %1 {offsets = [0, 0], sizes = [1, 256], strides = [1, 1]} : vector<4x256xf32> to vector<1x256xf32>
    %5 = vector.broadcast %3 : vector<64x1xf32> to vector<64x256xf32>
    %6 = vector.broadcast %4 : vector<1x256xf32> to vector<64x256xf32>
    %7 = arith.mulf %5, %6 : vector<64x256xf32>
    %8 = vector.extract_strided_slice %2 {offsets = [0, 1], sizes = [64, 1], strides = [1, 1]} : vector<64x4xf32> to vector<64x1xf32>
    %9 = vector.extract_strided_slice %1 {offsets = [1, 0], sizes = [1, 256], strides = [1, 1]} : vector<4x256xf32> to vector<1x256xf32>
    %10 = vector.broadcast %8 : vector<64x1xf32> to vector<64x256xf32>
    %11 = vector.broadcast %9 : vector<1x256xf32> to vector<64x256xf32>
    %12 = arith.mulf %10, %11 : vector<64x256xf32>
    %13 = arith.addf %7, %12 : vector<64x256xf32>
    %14 = vector.extract_strided_slice %2 {offsets = [0, 2], sizes = [64, 1], strides = [1, 1]} : vector<64x4xf32> to vector<64x1xf32>
    %15 = vector.extract_strided_slice %1 {offsets = [2, 0], sizes = [1, 256], strides = [1, 1]} : vector<4x256xf32> to vector<1x256xf32>
    %16 = vector.broadcast %14 : vector<64x1xf32> to vector<64x256xf32>
    %17 = vector.broadcast %15 : vector<1x256xf32> to vector<64x256xf32>
    %18 = arith.mulf %16, %17 : vector<64x256xf32>
    %19 = arith.addf %13, %18 : vector<64x256xf32>
    %20 = vector.extract_strided_slice %2 {offsets = [0, 3], sizes = [64, 1], strides = [1, 1]} : vector<64x4xf32> to vector<64x1xf32>
    %21 = vector.extract_strided_slice %1 {offsets = [3, 0], sizes = [1, 256], strides = [1, 1]} : vector<4x256xf32> to vector<1x256xf32>
    %22 = vector.broadcast %20 : vector<64x1xf32> to vector<64x256xf32>
    %23 = vector.broadcast %21 : vector<1x256xf32> to vector<64x256xf32>
    %24 = arith.mulf %22, %23 : vector<64x256xf32>
    %25 = arith.addf %19, %24 : vector<64x256xf32>
    %c0_4 = arith.constant 0 : index
    %c0_5 = arith.constant 0 : index
    %26 = vector.load %arg4[%c0_4, %c0_5] : memref<64x1xf32, #tpu.memory_space<vmem>>, vector<64x1xf32>
    %27 = vector.broadcast %26 : vector<64x1xf32> to vector<64x256xf32>
    %28 = arith.mulf %25, %27 : vector<64x256xf32>
    %c0_6 = arith.constant 0 : index
    %c0_7 = arith.constant 0 : index
    %29 = vector.load %arg5[%c0_6, %c0_7] : memref<64x1xf32, #tpu.memory_space<vmem>>, vector<64x1xf32>
    %30 = vector.broadcast %29 : vector<64x1xf32> to vector<64x256xf32>
    %31 = arith.addf %28, %30 : vector<64x256xf32>
    %cst = arith.constant 0.000000e+00 : f32
    %32 = vector.broadcast %cst : f32 to vector<64x256xf32>
    %33 = arith.maximumf %31, %32 : vector<64x256xf32>
    %c0_8 = arith.constant 0 : index
    %c0_9 = arith.constant 0 : index
    %34 = vector.load %arg6[%c0_8, %c0_9] : memref<128x64xbf16, #tpu.memory_space<vmem>>, vector<128x64xbf16>
    %35 = arith.truncf %33 : vector<64x256xf32> to vector<64x256xbf16>
    %cst_10 = arith.constant dense<0.000000e+00> : vector<128x256xf32>
    %36 = tpu.matmul %34, %35, %cst_10 {dimension_numbers = #tpu.dot_dimension_numbers<[1], [0], [0], [1], [0, 0, 1, 1], [], []>} : vector<128x64xbf16>, vector<64x256xbf16>, vector<128x256xf32> -> vector<128x256xf32>
    %c0_11 = arith.constant 0 : index
    %c0_12 = arith.constant 0 : index
    %37 = vector.load %arg7[%c0_11, %c0_12] : memref<128x1xf32, #tpu.memory_space<vmem>>, vector<128x1xf32>
    %38 = vector.broadcast %37 : vector<128x1xf32> to vector<128x256xf32>
    %39 = arith.mulf %36, %38 : vector<128x256xf32>
    %c0_13 = arith.constant 0 : index
    %c0_14 = arith.constant 0 : index
    %40 = vector.load %arg8[%c0_13, %c0_14] : memref<128x1xf32, #tpu.memory_space<vmem>>, vector<128x1xf32>
    %41 = vector.broadcast %40 : vector<128x1xf32> to vector<128x256xf32>
    %42 = arith.addf %39, %41 : vector<128x256xf32>
    %cst_15 = arith.constant 0.000000e+00 : f32
    %43 = vector.broadcast %cst_15 : f32 to vector<128x256xf32>
    %44 = arith.maximumf %42, %43 : vector<128x256xf32>
    %c0_16 = arith.constant 0 : index
    %c0_17 = arith.constant 0 : index
    %45 = vector.load %arg9[%c0_16, %c0_17] : memref<1024x128xbf16, #tpu.memory_space<vmem>>, vector<1024x128xbf16>
    %46 = arith.truncf %44 : vector<128x256xf32> to vector<128x256xbf16>
    %cst_18 = arith.constant dense<0.000000e+00> : vector<1024x256xf32>
    %47 = tpu.matmul %45, %46, %cst_18 {dimension_numbers = #tpu.dot_dimension_numbers<[1], [0], [0], [1], [0, 0, 1, 1], [], []>} : vector<1024x128xbf16>, vector<128x256xbf16>, vector<1024x256xf32> -> vector<1024x256xf32>
    %c0_19 = arith.constant 0 : index
    %c0_20 = arith.constant 0 : index
    %48 = vector.load %arg10[%c0_19, %c0_20] : memref<1024x1xf32, #tpu.memory_space<vmem>>, vector<1024x1xf32>
    %49 = vector.broadcast %48 : vector<1024x1xf32> to vector<1024x256xf32>
    %50 = arith.mulf %47, %49 : vector<1024x256xf32>
    %c0_21 = arith.constant 0 : index
    %c0_22 = arith.constant 0 : index
    %51 = vector.load %arg11[%c0_21, %c0_22] : memref<1024x1xf32, #tpu.memory_space<vmem>>, vector<1024x1xf32>
    %52 = vector.broadcast %51 : vector<1024x1xf32> to vector<1024x256xf32>
    %53 = arith.addf %50, %52 : vector<1024x256xf32>
    %cst_23 = arith.constant 0.000000e+00 : f32
    %54 = vector.broadcast %cst_23 : f32 to vector<1024x256xf32>
    %55 = arith.maximumf %53, %54 : vector<1024x256xf32>
    %c0_i32 = arith.constant 0 : i32
    %56 = arith.cmpi eq, %arg1, %c0_i32 : i32
    %57 = arith.extui %56 : i1 to i32
    %c0_i32_24 = arith.constant 0 : i32
    %58 = arith.cmpi ne, %57, %c0_i32_24 : i32
    scf.if %58 {
      %cst_32 = arith.constant 0xFF800000 : f32
      %67 = vector.broadcast %cst_32 : f32 to vector<1024x1xf32>
      %c0_33 = arith.constant 0 : index
      %c0_34 = arith.constant 0 : index
      %68 = vector.load %arg22[%c0_33, %c0_34] : memref<1024x1xf32, #tpu.memory_space<vmem>>, vector<1024x1xf32>
      tpu.vector_store %arg22[%c0_33, %c0_34], %67 {strides = array<i32>} : memref<1024x1xf32, #tpu.memory_space<vmem>>, vector<1024x1xf32>,
    } else {
    }
    %c0_25 = arith.constant 0 : index
    %c0_26 = arith.constant 0 : index
    %59 = vector.load %arg22[%c0_25, %c0_26] : memref<1024x1xf32, #tpu.memory_space<vmem>>, vector<1024x1xf32>
    %cst_27 = arith.constant dense<0xFF800000> : vector<1024xf32>
    %60 = vector.multi_reduction <maximumf>, %55, %cst_27 [1] : vector<1024x256xf32> to vector<1024xf32>
    %61 = vector.shape_cast %60 : vector<1024xf32> to vector<1024x1xf32>
    %62 = arith.maximumf %59, %61 : vector<1024x1xf32>
    %c0_28 = arith.constant 0 : index
    %c0_29 = arith.constant 0 : index
    %63 = vector.load %arg22[%c0_28, %c0_29] : memref<1024x1xf32, #tpu.memory_space<vmem>>, vector<1024x1xf32>
    tpu.vector_store %arg22[%c0_28, %c0_29], %62 {strides = array<i32>} : memref<1024x1xf32, #tpu.memory_space<vmem>>, vector<1024x1xf32>,
    %c0_i32_30 = arith.constant 0 : i32
    %64 = arith.cmpi eq, %arg1, %c0_i32_30 : i32
    %65 = arith.extui %64 : i1 to i32
    %c0_i32_31 = arith.constant 0 : i32
    %66 = arith.cmpi ne, %65, %c0_i32_31 : i32
    scf.if %66 {
      %c0_32 = arith.constant 0 : index
      %c0_33 = arith.constant 0 : index
      %67 = vector.load %arg22[%c0_32, %c0_33] : memref<1024x1xf32, #tpu.memory_space<vmem>>, vector<1024x1xf32>
      %c0_34 = arith.constant 0 : index
      %c0_35 = arith.constant 0 : index
      %68 = vector.load %arg12[%c0_34, %c0_35] : memref<512x1024xbf16, #tpu.memory_space<vmem>>, vector<512x1024xbf16>
      %69 = arith.truncf %67 : vector<1024x1xf32> to vector<1024x1xbf16>
      %cst_36 = arith.constant dense<0.000000e+00> : vector<512x1xf32>
      %70 = tpu.matmul %68, %69, %cst_36 {dimension_numbers = #tpu.dot_dimension_numbers<[1], [0], [0], [1], [0, 0, 1, 1], [], []>} : vector<512x1024xbf16>, vector<1024x1xbf16>, vector<512x1xf32> -> vector<512x1xf32>
      %c0_37 = arith.constant 0 : index
      %c0_38 = arith.constant 0 : index
      %71 = vector.load %arg13[%c0_37, %c0_38] : memref<512x1xf32, #tpu.memory_space<vmem>>, vector<512x1xf32>
      %72 = arith.mulf %70, %71 : vector<512x1xf32>
      %c0_39 = arith.constant 0 : index
      %c0_40 = arith.constant 0 : index
      %73 = vector.load %arg14[%c0_39, %c0_40] : memref<512x1xf32, #tpu.memory_space<vmem>>, vector<512x1xf32>
      %74 = arith.addf %72, %73 : vector<512x1xf32>
      %cst_41 = arith.constant 0.000000e+00 : f32
      %75 = vector.broadcast %cst_41 : f32 to vector<512x1xf32>
      %76 = arith.maximumf %74, %75 : vector<512x1xf32>
      %c0_42 = arith.constant 0 : index
      %c0_43 = arith.constant 0 : index
      %77 = vector.load %arg15[%c0_42, %c0_43] : memref<256x512xbf16, #tpu.memory_space<vmem>>, vector<256x512xbf16>
      %78 = arith.truncf %76 : vector<512x1xf32> to vector<512x1xbf16>
      %cst_44 = arith.constant dense<0.000000e+00> : vector<256x1xf32>
      %79 = tpu.matmul %77, %78, %cst_44 {dimension_numbers = #tpu.dot_dimension_numbers<[1], [0], [0], [1], [0, 0, 1, 1], [], []>} : vector<256x512xbf16>, vector<512x1xbf16>, vector<256x1xf32> -> vector<256x1xf32>
      %c0_45 = arith.constant 0 : index
      %c0_46 = arith.constant 0 : index
      %80 = vector.load %arg16[%c0_45, %c0_46] : memref<256x1xf32, #tpu.memory_space<vmem>>, vector<256x1xf32>
      %81 = arith.mulf %79, %80 : vector<256x1xf32>
      %c0_47 = arith.constant 0 : index
      %c0_48 = arith.constant 0 : index
      %82 = vector.load %arg17[%c0_47, %c0_48] : memref<256x1xf32, #tpu.memory_space<vmem>>, vector<256x1xf32>
      %83 = arith.addf %81, %82 : vector<256x1xf32>
      %cst_49 = arith.constant 0.000000e+00 : f32
      %84 = vector.broadcast %cst_49 : f32 to vector<256x1xf32>
      %85 = arith.maximumf %83, %84 : vector<256x1xf32>
      %c0_50 = arith.constant 0 : index
      %c0_51 = arith.constant 0 : index
      %86 = vector.load %arg18[%c0_50, %c0_51] : memref<16x256xbf16, #tpu.memory_space<vmem>>, vector<16x256xbf16>
      %87 = arith.truncf %85 : vector<256x1xf32> to vector<256x1xbf16>
      %cst_52 = arith.constant dense<0.000000e+00> : vector<16x1xf32>
      %88 = tpu.matmul %86, %87, %cst_52 {dimension_numbers = #tpu.dot_dimension_numbers<[1], [0], [0], [1], [0, 0, 1, 1], [], []>} : vector<16x256xbf16>, vector<256x1xbf16>, vector<16x1xf32> -> vector<16x1xf32>
      %c0_53 = arith.constant 0 : index
      %c0_54 = arith.constant 0 : index
      %89 = vector.load %arg19[%c0_53, %c0_54] : memref<16x1xf32, #tpu.memory_space<vmem>>, vector<16x1xf32>
      %90 = arith.addf %88, %89 : vector<16x1xf32>
      %c0_55 = arith.constant 0 : index
      %c0_56 = arith.constant 0 : index
      %91 = vector.load %arg20[%c0_55, %c0_56] : memref<16x1xf32, #tpu.memory_space<vmem>>, vector<16x1xf32>
      %92 = arith.addf %90, %91 : vector<16x1xf32>
      %c0_57 = arith.constant 0 : index
      %c0_58 = arith.constant 0 : index
      %c0_59 = arith.constant 0 : index
      %93 = vector.load %arg21[%c0_57, %c0_58, %c0_59] : memref<1x16x1xf32, #tpu.memory_space<vmem>>, vector<1x16x1xf32>
      %94 = vector.shape_cast %93 : vector<1x16x1xf32> to vector<16x1xf32>
      %95 = vector.shape_cast %92 : vector<16x1xf32> to vector<1x16x1xf32>
      tpu.vector_store %arg21[%c0_57, %c0_58, %c0_59], %95 {strides = array<i32>} : memref<1x16x1xf32, #tpu.memory_space<vmem>>, vector<1x16x1xf32>,
    } else {
    }
    return
  }
  func.func @transform_0(%arg0: i32, %arg1: i32) -> (i32, i32, i32) {
    %c0_i32 = arith.constant 0 : i32
    %c0_i32_0 = arith.constant 0 : i32
    return %arg0, %c0_i32, %arg1 : i32, i32, i32
  }
  func.func @transform_1(%arg0: i32, %arg1: i32) -> (i32, i32) {
    %c0_i32 = arith.constant 0 : i32
    %c0_i32_0 = arith.constant 0 : i32
    %c0_i32_1 = arith.constant 0 : i32
    return %c0_i32, %c0_i32_0 : i32, i32
  }
  func.func @transform_2(%arg0: i32, %arg1: i32) -> (i32, i32) {
    %c0_i32 = arith.constant 0 : i32
    %c0_i32_0 = arith.constant 0 : i32
    %c0_i32_1 = arith.constant 0 : i32
    return %c0_i32, %c0_i32_0 : i32, i32
  }
  func.func @transform_3(%arg0: i32, %arg1: i32) -> (i32, i32) {
    %c0_i32 = arith.constant 0 : i32
    %c0_i32_0 = arith.constant 0 : i32
    %c0_i32_1 = arith.constant 0 : i32
    return %c0_i32, %c0_i32_0 : i32, i32
  }
  func.func @transform_4(%arg0: i32, %arg1: i32) -> (i32, i32) {
    %c0_i32 = arith.constant 0 : i32
    %c0_i32_0 = arith.constant 0 : i32
    %c0_i32_1 = arith.constant 0 : i32
    return %c0_i32, %c0_i32_0 : i32, i32
  }
  func.func @transform_5(%arg0: i32, %arg1: i32) -> (i32, i32) {
    %c0_i32 = arith.constant 0 : i32
    %c0_i32_0 = arith.constant 0 : i32
    %c0_i32_1 = arith.constant 0 : i32
    return %c0_i32, %c0_i32_0 : i32, i32
  }
  func.func @transform_6(%arg0: i32, %arg1: i32) -> (i32, i32) {
    %c0_i32 = arith.constant 0 : i32
    %c0_i32_0 = arith.constant 0 : i32
    %c0_i32_1 = arith.constant 0 : i32
    return %c0_i32, %c0_i32_0 : i32, i32
  }
  func.func @transform_7(%arg0: i32, %arg1: i32) -> (i32, i32) {
    %c0_i32 = arith.constant 0 : i32
    %c0_i32_0 = arith.constant 0 : i32
    %c0_i32_1 = arith.constant 0 : i32
    return %c0_i32, %c0_i32_0 : i32, i32
  }
  func.func @transform_8(%arg0: i32, %arg1: i32) -> (i32, i32) {
    %c0_i32 = arith.constant 0 : i32
    %c0_i32_0 = arith.constant 0 : i32
    %c0_i32_1 = arith.constant 0 : i32
    return %c0_i32, %c0_i32_0 : i32, i32
  }
  func.func @transform_9(%arg0: i32, %arg1: i32) -> (i32, i32) {
    %c0_i32 = arith.constant 0 : i32
    %c0_i32_0 = arith.constant 0 : i32
    %c0_i32_1 = arith.constant 0 : i32
    return %c0_i32, %c0_i32_0 : i32, i32
  }
  func.func @transform_10(%arg0: i32, %arg1: i32) -> (i32, i32) {
    %c0_i32 = arith.constant 0 : i32
    %c0_i32_0 = arith.constant 0 : i32
    %c0_i32_1 = arith.constant 0 : i32
    return %c0_i32, %c0_i32_0 : i32, i32
  }
  func.func @transform_11(%arg0: i32, %arg1: i32) -> (i32, i32) {
    %c0_i32 = arith.constant 0 : i32
    %c0_i32_0 = arith.constant 0 : i32
    %c0_i32_1 = arith.constant 0 : i32
    return %c0_i32, %c0_i32_0 : i32, i32
  }
  func.func @transform_12(%arg0: i32, %arg1: i32) -> (i32, i32) {
    %c0_i32 = arith.constant 0 : i32
    %c0_i32_0 = arith.constant 0 : i32
    %c0_i32_1 = arith.constant 0 : i32
    return %c0_i32, %c0_i32_0 : i32, i32
  }
  func.func @transform_13(%arg0: i32, %arg1: i32) -> (i32, i32) {
    %c0_i32 = arith.constant 0 : i32
    %c0_i32_0 = arith.constant 0 : i32
    %c0_i32_1 = arith.constant 0 : i32
    return %c0_i32, %c0_i32_0 : i32, i32
  }
  func.func @transform_14(%arg0: i32, %arg1: i32) -> (i32, i32) {
    %c0_i32 = arith.constant 0 : i32
    %c0_i32_0 = arith.constant 0 : i32
    %c0_i32_1 = arith.constant 0 : i32
    return %c0_i32, %c0_i32_0 : i32, i32
  }
  func.func @transform_15(%arg0: i32, %arg1: i32) -> (i32, i32) {
    %c0_i32 = arith.constant 0 : i32
    %c0_i32_0 = arith.constant 0 : i32
    %c0_i32_1 = arith.constant 0 : i32
    return %c0_i32, %c0_i32_0 : i32, i32
  }
  func.func @transform_16(%arg0: i32, %arg1: i32) -> (i32, i32) {
    %c0_i32 = arith.constant 0 : i32
    %c0_i32_0 = arith.constant 0 : i32
    %c0_i32_1 = arith.constant 0 : i32
    return %c0_i32, %c0_i32_0 : i32, i32
  }
  func.func @transform_17(%arg0: i32, %arg1: i32) -> (i32, i32) {
    %c0_i32 = arith.constant 0 : i32
    %c0_i32_0 = arith.constant 0 : i32
    %c0_i32_1 = arith.constant 0 : i32
    return %c0_i32, %c0_i32_0 : i32, i32
  }
  func.func @transform_18(%arg0: i32, %arg1: i32) -> (i32, i32) {
    %c0_i32 = arith.constant 0 : i32
    %c0_i32_0 = arith.constant 0 : i32
    %c0_i32_1 = arith.constant 0 : i32
    return %c0_i32, %c0_i32_0 : i32, i32
  }
  func.func @transform_19(%arg0: i32, %arg1: i32) -> (i32, i32, i32) {
    %c0_i32 = arith.constant 0 : i32
    %c0_i32_0 = arith.constant 0 : i32
    %c0_i32_1 = arith.constant 0 : i32
    return %arg0, %c0_i32, %c0_i32_0 : i32, i32, i32
  }
}

</mosaic_0001>

<llo_original>
// kernel: stnkd_forward.1
$region0: #{stnkd_forward.1}
  #allocation0 [shape = 'u32[]', space=smem, size = 0x4, offset = 0x4, fixed_abs, tag = 'smem constant byte address 0x4 - core index']
  #allocation1 [shape = 'u32[144,128]{1,0:T(1,128)}', space=vmem, size = 0x12000, scoped, tag = 'internal scratch']
  #allocation2 [shape = 'f32[1024,1]{1,0:T(8,128)}', space=vmem, size = 0x80000, scoped, tag = 'scratch operand']
  %s0 = inlined_call_operand.vmem [shape: f32[2,4,256], index: 0, kind: input, shape index: {}]
  %s1 = inlined_call_operand.vmem [shape: f32[64,4], index: 1, kind: input, shape index: {}]
  %s2 = inlined_call_operand.vmem [shape: f32[64,1], index: 2, kind: input, shape index: {}]
  %s3 = inlined_call_operand.vmem [shape: f32[64,1], index: 3, kind: input, shape index: {}]
  %s4 = inlined_call_operand.vmem [shape: bf16[128,64], index: 4, kind: input, shape index: {}]
  %s5 = inlined_call_operand.vmem [shape: f32[128,1], index: 5, kind: input, shape index: {}]
  %s6 = inlined_call_operand.vmem [shape: f32[128,1], index: 6, kind: input, shape index: {}]
  %s7 = inlined_call_operand.vmem [shape: bf16[1024,128], index: 7, kind: input, shape index: {}]
  %s8 = inlined_call_operand.vmem [shape: f32[1024,1], index: 8, kind: input, shape index: {}]
  %s9 = inlined_call_operand.vmem [shape: f32[1024,1], index: 9, kind: input, shape index: {}]
  %s10 = inlined_call_operand.vmem [shape: bf16[512,1024], index: 10, kind: input, shape index: {}]
  %s11 = inlined_call_operand.vmem [shape: f32[512,1], index: 11, kind: input, shape index: {}]
  %s12 = inlined_call_operand.vmem [shape: f32[512,1], index: 12, kind: input, shape index: {}]
  %s13 = inlined_call_operand.vmem [shape: bf16[256,512], index: 13, kind: input, shape index: {}]
  %s14 = inlined_call_operand.vmem [shape: f32[256,1], index: 14, kind: input, shape index: {}]
  %s15 = inlined_call_operand.vmem [shape: f32[256,1], index: 15, kind: input, shape index: {}]
  %s16 = inlined_call_operand.vmem [shape: bf16[16,256], index: 16, kind: input, shape index: {}]
  %s17 = inlined_call_operand.vmem [shape: f32[16,1], index: 17, kind: input, shape index: {}]
  %s18 = inlined_call_operand.vmem [shape: f32[16,1], index: 18, kind: input, shape index: {}]
  %s19 = inlined_call_operand.vmem [shape: f32[2,16,1], index: 19, kind: output, shape index: {}]
  %s20 = sld [smem:[#allocation0]]
  $region117: #{stnkd_forward.1} parent=0
    _
  %s22 = ssub.s32 1, %s20
  %s23 = scalar_select 0, %s22, %s20
  loop: start=0, step=1, limit=4
  $region2: #{stnkd_forward.1} parent=0 // loop_pre_header
    _
  $region3: #{stnkd_forward.1} parent=0 // loop_header
    %s25 = sphi 0, %s29
    %p26 = scmp.ge.s32.totalorder %s25, 4
    %s32 = sphi 0, %s44
    %s33 = sphi 0, %s40
    %s34 = sphi 0, %s32
    %s35 = sphi 0, %s33
    %s36 = sphi 0, %s34
    %s37 = sphi 0, %s35
    %s49 = sphi 0, %s51
    %s52 = sphi 0, %s49
    %s53 = sphi 0, %s52
    %s69 = sphi 0, %s53
    %s73 = sphi 0, %s73
    %s75 = sphi 0, %s73
    %s76 = sphi 0, %s75
    %s90 = sphi 0, %s76
    %s94 = sphi 0, %s94
    %s96 = sphi 0, %s94
    %s97 = sphi 0, %s96
    %s111 = sphi 0, %s97
    %s115 = sphi 0, %s115
    %s117 = sphi 0, %s115
    %s118 = sphi 0, %s117
    %s132 = sphi 0, %s118
    %s136 = sphi 0, %s136
    %s138 = sphi 0, %s136
    %s139 = sphi 0, %s138
    %s153 = sphi 0, %s139
    %s157 = sphi 0, %s157
    %s159 = sphi 0, %s157
    %s160 = sphi 0, %s159
    %s174 = sphi 0, %s160
    %s178 = sphi 0, %s178
    %s180 = sphi 0, %s178
    %s181 = sphi 0, %s180
    %s195 = sphi 0, %s181
    %s199 = sphi 0, %s199
    %s201 = sphi 0, %s199
    %s202 = sphi 0, %s201
    %s216 = sphi 0, %s202
    %s220 = sphi 0, %s220
    %s222 = sphi 0, %s220
    %s223 = sphi 0, %s222
    %s237 = sphi 0, %s223
    %s241 = sphi 0, %s241
    %s243 = sphi 0, %s241
    %s244 = sphi 0, %s243
    %s258 = sphi 0, %s244
    %s262 = sphi 0, %s262
    %s264 = sphi 0, %s262
    %s265 = sphi 0, %s264
    %s279 = sphi 0, %s265
    %s283 = sphi 0, %s283
    %s285 = sphi 0, %s283
    %s286 = sphi 0, %s285
    %s300 = sphi 0, %s286
    %s304 = sphi 0, %s304
    %s306 = sphi 0, %s304
    %s307 = sphi 0, %s306
    %s321 = sphi 0, %s307
    %s325 = sphi 0, %s325
    %s327 = sphi 0, %s325
    %s328 = sphi 0, %s327
    %s342 = sphi 0, %s328
    %s346 = sphi 0, %s346
    %s348 = sphi 0, %s346
    %s349 = sphi 0, %s348
    %s363 = sphi 0, %s349
    %s367 = sphi 0, %s367
    %s369 = sphi 0, %s367
    %s370 = sphi 0, %s369
    %s384 = sphi 0, %s370
    %s388 = sphi 0, %s388
    %s390 = sphi 0, %s388
    %s391 = sphi 0, %s390
    %s405 = sphi 0, %s391
    %s409 = sphi 0, %s409
    %s411 = sphi 0, %s409
    %s412 = sphi 0, %s411
    %s426 = sphi 0, %s412
    %s430 = sphi 0, %s430
    %s432 = sphi 0, %s430
    %s433 = sphi 0, %s432
    %s447 = sphi 0, %s433
    %s453 = sphi 0, %s455
    %s456 = sphi 0, %s453
    %s457 = sphi 0, %s456
    %s473 = sphi 0, %s457
  $region4: #{stnkd_forward.1} parent=0 // loop_header_branch
    %28 = sbr.rel (%p26) target = $region8
  $region5: #{stnkd_forward.1} parent=0 // loop_body
    %s30 = ssub.s32 %s25, 1
    %s31 = ssub.s32 %s25, 2
    %s38 = sadd.s32 1, %s33
    %p39 = scmp.ge.s32.totalorder %s38, 1
    %s40 = scalar_select %p39, 0, %s38
    %s41 = sadd.s32 1, %s32
    %s42 = scalar_select %p39, %s41, %s32
    %p43 = scmp.ge.s32.totalorder %s42, 2
    %s44 = scalar_select %p43, 0, %s42
    %s45 = ssub.s32 %s32, %s44
    %s46 = ssub.s32 %s33, %s40
    %s47 = sor.u32 %s45, %s46
    %p48 = scmp.eq.s32.totalorder %s47, 0
    %s50 = sadd.s32 %s49, 1
    %s51 = scalar_select %p48, %s49, %s50
    %p54 = pneg %p48
    %p55 = scmp.eq.s32.totalorder %s25, 1
    %p56 = por %p54, %p55
    %p57 = scmp.ne.s32.totalorder %s49, %s52
    %p58 = scmp.eq.s32.totalorder %s25, 0
    %p59 = por %p57, %p58
    %p60 = scmp.ne.s32.totalorder %s49, %s52
    %p61 = scmp.eq.s32.totalorder %s30, 1
    %p62 = por %p60, %p61
    %p63 = scmp.ne.s32.totalorder %s52, %s53
    %p64 = scmp.eq.s32.totalorder %s30, 0
    %p65 = por %p63, %p64
    %p66 = scmp.ne.s32.totalorder %s52, %s53
    %p67 = scmp.eq.s32.totalorder %s31, 1
    %p68 = por %p66, %p67
    %p70 = scmp.ne.s32.totalorder %s53, %s69
    %p71 = scmp.eq.s32.totalorder %s31, 0
    %p72 = por %p70, %p71
    %s74 = sadd.s32 %s73, 1
    %p77 = scmp.eq.s32.totalorder %s25, 1
    %p78 = scmp.ne.s32.totalorder %s73, %s75
    %p79 = scmp.eq.s32.totalorder %s25, 0
    %p80 = por %p78, %p79
    %p81 = scmp.ne.s32.totalorder %s73, %s75
    %p82 = scmp.eq.s32.totalorder %s30, 1
    %p83 = por %p81, %p82
    %p84 = scmp.ne.s32.totalorder %s75, %s76
    %p85 = scmp.eq.s32.totalorder %s30, 0
    %p86 = por %p84, %p85
    %p87 = scmp.ne.s32.totalorder %s75, %s76
    %p88 = scmp.eq.s32.totalorder %s31, 1
    %p89 = por %p87, %p88
    %p91 = scmp.ne.s32.totalorder %s76, %s90
    %p92 = scmp.eq.s32.totalorder %s31, 0
    %p93 = por %p91, %p92
    %s95 = sadd.s32 %s94, 1
    %p98 = scmp.eq.s32.totalorder %s25, 1
    %p99 = scmp.ne.s32.totalorder %s94, %s96
    %p100 = scmp.eq.s32.totalorder %s25, 0
    %p101 = por %p99, %p100
    %p102 = scmp.ne.s32.totalorder %s94, %s96
    %p103 = scmp.eq.s32.totalorder %s30, 1
    %p104 = por %p102, %p103
    %p105 = scmp.ne.s32.totalorder %s96, %s97
    %p106 = scmp.eq.s32.totalorder %s30, 0
    %p107 = por %p105, %p106
    %p108 = scmp.ne.s32.totalorder %s96, %s97
    %p109 = scmp.eq.s32.totalorder %s31, 1
    %p110 = por %p108, %p109
    %p112 = scmp.ne.s32.totalorder %s97, %s111
    %p113 = scmp.eq.s32.totalorder %s31, 0
    %p114 = por %p112, %p113
    %s116 = sadd.s32 %s115, 1
    %p119 = scmp.eq.s32.totalorder %s25, 1
    %p120 = scmp.ne.s32.totalorder %s115, %s117
    %p121 = scmp.eq.s32.totalorder %s25, 0
    %p122 = por %p120, %p121
    %p123 = scmp.ne.s32.totalorder %s115, %s117
    %p124 = scmp.eq.s32.totalorder %s30, 1
    %p125 = por %p123, %p124
    %p126 = scmp.ne.s32.totalorder %s117, %s118
    %p127 = scmp.eq.s32.totalorder %s30, 0
    %p128 = por %p126, %p127
    %p129 = scmp.ne.s32.totalorder %s117, %s118
    %p130 = scmp.eq.s32.totalorder %s31, 1
    %p131 = por %p129, %p130
    %p133 = scmp.ne.s32.totalorder %s118, %s132
    %p134 = scmp.eq.s32.totalorder %s31, 0
    %p135 = por %p133, %p134
    %s137 = sadd.s32 %s136, 1
    %p140 = scmp.eq.s32.totalorder %s25, 1
    %p141 = scmp.ne.s32.totalorder %s136, %s138
    %p142 = scmp.eq.s32.totalorder %s25, 0
    %p143 = por %p141, %p142
    %p144 = scmp.ne.s32.totalorder %s136, %s138
    %p145 = scmp.eq.s32.totalorder %s30, 1
    %p146 = por %p144, %p145
    %p147 = scmp.ne.s32.totalorder %s138, %s139
    %p148 = scmp.eq.s32.totalorder %s30, 0
    %p149 = por %p147, %p148
    %p150 = scmp.ne.s32.totalorder %s138, %s139
    %p151 = scmp.eq.s32.totalorder %s31, 1
    %p152 = por %p150, %p151
    %p154 = scmp.ne.s32.totalorder %s139, %s153
    %p155 = scmp.eq.s32.totalorder %s31, 0
    %p156 = por %p154, %p155
    %s158 = sadd.s32 %s157, 1
    %p161 = scmp.eq.s32.totalorder %s25, 1
    %p162 = scmp.ne.s32.totalorder %s157, %s159
    %p163 = scmp.eq.s32.totalorder %s25, 0
    %p164 = por %p162, %p163
    %p165 = scmp.ne.s32.totalorder %s157, %s159
    %p166 = scmp.eq.s32.totalorder %s30, 1
    %p167 = por %p165, %p166
    %p168 = scmp.ne.s32.totalorder %s159, %s160
    %p169 = scmp.eq.s32.totalorder %s30, 0
    %p170 = por %p168, %p169
    %p171 = scmp.ne.s32.totalorder %s159, %s160
    %p172 = scmp.eq.s32.totalorder %s31, 1
    %p173 = por %p171, %p172
    %p175 = scmp.ne.s32.totalorder %s160, %s174
    %p176 = scmp.eq.s32.totalorder %s31, 0
    %p177 = por %p175, %p176
    %s179 = sadd.s32 %s178, 1
    %p182 = scmp.eq.s32.totalorder %s25, 1
    %p183 = scmp.ne.s32.totalorder %s178, %s180
    %p184 = scmp.eq.s32.totalorder %s25, 0
    %p185 = por %p183, %p184
    %p186 = scmp.ne.s32.totalorder %s178, %s180
    %p187 = scmp.eq.s32.totalorder %s30, 1
    %p188 = por %p186, %p187
    %p189 = scmp.ne.s32.totalorder %s180, %s181
    %p190 = scmp.eq.s32.totalorder %s30, 0
    %p191 = por %p189, %p190
    %p192 = scmp.ne.s32.totalorder %s180, %s181
    %p193 = scmp.eq.s32.totalorder %s31, 1
    %p194 = por %p192, %p193
    %p196 = scmp.ne.s32.totalorder %s181, %s195
    %p197 = scmp.eq.s32.totalorder %s31, 0
    %p198 = por %p196, %p197
    %s200 = sadd.s32 %s199, 1
    %p203 = scmp.eq.s32.totalorder %s25, 1
    %p204 = scmp.ne.s32.totalorder %s199, %s201
    %p205 = scmp.eq.s32.totalorder %s25, 0
    %p206 = por %p204, %p205
    %p207 = scmp.ne.s32.totalorder %s199, %s201
    %p208 = scmp.eq.s32.totalorder %s30, 1
    %p209 = por %p207, %p208
    %p210 = scmp.ne.s32.totalorder %s201, %s202
    %p211 = scmp.eq.s32.totalorder %s30, 0
    %p212 = por %p210, %p211
    %p213 = scmp.ne.s32.totalorder %s201, %s202
    %p214 = scmp.eq.s32.totalorder %s31, 1
    %p215 = por %p213, %p214
    %p217 = scmp.ne.s32.totalorder %s202, %s216
    %p218 = scmp.eq.s32.totalorder %s31, 0
    %p219 = por %p217, %p218
    %s221 = sadd.s32 %s220, 1
    %p224 = scmp.eq.s32.totalorder %s25, 1
    %p225 = scmp.ne.s32.totalorder %s220, %s222
    %p226 = scmp.eq.s32.totalorder %s25, 0
    %p227 = por %p225, %p226
    %p228 = scmp.ne.s32.totalorder %s220, %s222
    %p229 = scmp.eq.s32.totalorder %s30, 1
    %p230 = por %p228, %p229
    %p231 = scmp.ne.s32.totalorder %s222, %s223
    %p232 = scmp.eq.s32.totalorder %s30, 0
    %p233 = por %p231, %p232
    %p234 = scmp.ne.s32.totalorder %s222, %s223
    %p235 = scmp.eq.s32.totalorder %s31, 1
    %p236 = por %p234, %p235
    %p238 = scmp.ne.s32.totalorder %s223, %s237
    %p239 = scmp.eq.s32.totalorder %s31, 0
    %p240 = por %p238, %p239
    %s242 = sadd.s32 %s241, 1
    %p245 = scmp.eq.s32.totalorder %s25, 1
    %p246 = scmp.ne.s32.totalorder %s241, %s243
    %p247 = scmp.eq.s32.totalorder %s25, 0
    %p248 = por %p246, %p247
    %p249 = scmp.ne.s32.totalorder %s241, %s243
    %p250 = scmp.eq.s32.totalorder %s30, 1
    %p251 = por %p249, %p250
    %p252 = scmp.ne.s32.totalorder %s243, %s244
    %p253 = scmp.eq.s32.totalorder %s30, 0
    %p254 = por %p252, %p253
    %p255 = scmp.ne.s32.totalorder %s243, %s244
    %p256 = scmp.eq.s32.totalorder %s31, 1
    %p257 = por %p255, %p256
    %p259 = scmp.ne.s32.totalorder %s244, %s258
    %p260 = scmp.eq.s32.totalorder %s31, 0
    %p261 = por %p259, %p260
    %s263 = sadd.s32 %s262, 1
    %p266 = scmp.eq.s32.totalorder %s25, 1
    %p267 = scmp.ne.s32.totalorder %s262, %s264
    %p268 = scmp.eq.s32.totalorder %s25, 0
    %p269 = por %p267, %p268
    %p270 = scmp.ne.s32.totalorder %s262, %s264
    %p271 = scmp.eq.s32.totalorder %s30, 1
    %p272 = por %p270, %p271
    %p273 = scmp.ne.s32.totalorder %s264, %s265
    %p274 = scmp.eq.s32.totalorder %s30, 0
    %p275 = por %p273, %p274
    %p276 = scmp.ne.s32.totalorder %s264, %s265
    %p277 = scmp.eq.s32.totalorder %s31, 1
    %p278 = por %p276, %p277
    %p280 = scmp.ne.s32.totalorder %s265, %s279
    %p281 = scmp.eq.s32.totalorder %s31, 0
    %p282 = por %p280, %p281
    %s284 = sadd.s32 %s283, 1
    %p287 = scmp.eq.s32.totalorder %s25, 1
    %p288 = scmp.ne.s32.totalorder %s283, %s285
    %p289 = scmp.eq.s32.totalorder %s25, 0
    %p290 = por %p288, %p289
    %p291 = scmp.ne.s32.totalorder %s283, %s285
    %p292 = scmp.eq.s32.totalorder %s30, 1
    %p293 = por %p291, %p292
    %p294 = scmp.ne.s32.totalorder %s285, %s286
    %p295 = scmp.eq.s32.totalorder %s30, 0
    %p296 = por %p294, %p295
    %p297 = scmp.ne.s32.totalorder %s285, %s286
    %p298 = scmp.eq.s32.totalorder %s31, 1
    %p299 = por %p297, %p298
    %p301 = scmp.ne.s32.totalorder %s286, %s300
    %p302 = scmp.eq.s32.totalorder %s31, 0
    %p303 = por %p301, %p302
    %s305 = sadd.s32 %s304, 1
    %p308 = scmp.eq.s32.totalorder %s25, 1
    %p309 = scmp.ne.s32.totalorder %s304, %s306
    %p310 = scmp.eq.s32.totalorder %s25, 0
    %p311 = por %p309, %p310
    %p312 = scmp.ne.s32.totalorder %s304, %s306
    %p313 = scmp.eq.s32.totalorder %s30, 1
    %p314 = por %p312, %p313
    %p315 = scmp.ne.s32.totalorder %s306, %s307
    %p316 = scmp.eq.s32.totalorder %s30, 0
    %p317 = por %p315, %p316
    %p318 = scmp.ne.s32.totalorder %s306, %s307
    %p319 = scmp.eq.s32.totalorder %s31, 1
    %p320 = por %p318, %p319
    %p322 = scmp.ne.s32.totalorder %s307, %s321
    %p323 = scmp.eq.s32.totalorder %s31, 0
    %p324 = por %p322, %p323
    %s326 = sadd.s32 %s325, 1
    %p329 = scmp.eq.s32.totalorder %s25, 1
    %p330 = scmp.ne.s32.totalorder %s325, %s327
    %p331 = scmp.eq.s32.totalorder %s25, 0
    %p332 = por %p330, %p331
    %p333 = scmp.ne.s32.totalorder %s325, %s327
    %p334 = scmp.eq.s32.totalorder %s30, 1
    %p335 = por %p333, %p334
    %p336 = scmp.ne.s32.totalorder %s327, %s328
    %p337 = scmp.eq.s32.totalorder %s30, 0
    %p338 = por %p336, %p337
    %p339 = scmp.ne.s32.totalorder %s327, %s328
    %p340 = scmp.eq.s32.totalorder %s31, 1
    %p341 = por %p339, %p340
    %p343 = scmp.ne.s32.totalorder %s328, %s342
    %p344 = scmp.eq.s32.totalorder %s31, 0
    %p345 = por %p343, %p344
    %s347 = sadd.s32 %s346, 1
    %p350 = scmp.eq.s32.totalorder %s25, 1
    %p351 = scmp.ne.s32.totalorder %s346, %s348
    %p352 = scmp.eq.s32.totalorder %s25, 0
    %p353 = por %p351, %p352
    %p354 = scmp.ne.s32.totalorder %s346, %s348
    %p355 = scmp.eq.s32.totalorder %s30, 1
    %p356 = por %p354, %p355
    %p357 = scmp.ne.s32.totalorder %s348, %s349
    %p358 = scmp.eq.s32.totalorder %s30, 0
    %p359 = por %p357, %p358
    %p360 = scmp.ne.s32.totalorder %s348, %s349
    %p361 = scmp.eq.s32.totalorder %s31, 1
    %p362 = por %p360, %p361
    %p364 = scmp.ne.s32.totalorder %s349, %s363
    %p365 = scmp.eq.s32.totalorder %s31, 0
    %p366 = por %p364, %p365
    %s368 = sadd.s32 %s367, 1
    %p371 = scmp.eq.s32.totalorder %s25, 1
    %p372 = scmp.ne.s32.totalorder %s367, %s369
    %p373 = scmp.eq.s32.totalorder %s25, 0
    %p374 = por %p372, %p373
    %p375 = scmp.ne.s32.totalorder %s367, %s369
    %p376 = scmp.eq.s32.totalorder %s30, 1
    %p377 = por %p375, %p376
    %p378 = scmp.ne.s32.totalorder %s369, %s370
    %p379 = scmp.eq.s32.totalorder %s30, 0
    %p380 = por %p378, %p379
    %p381 = scmp.ne.s32.totalorder %s369, %s370
    %p382 = scmp.eq.s32.totalorder %s31, 1
    %p383 = por %p381, %p382
    %p385 = scmp.ne.s32.totalorder %s370, %s384
    %p386 = scmp.eq.s32.totalorder %s31, 0
    %p387 = por %p385, %p386
    %s389 = sadd.s32 %s388, 1
    %p392 = scmp.eq.s32.totalorder %s25, 1
    %p393 = scmp.ne.s32.totalorder %s388, %s390
    %p394 = scmp.eq.s32.totalorder %s25, 0
    %p395 = por %p393, %p394
    %p396 = scmp.ne.s32.totalorder %s388, %s390
    %p397 = scmp.eq.s32.totalorder %s30, 1
    %p398 = por %p396, %p397
    %p399 = scmp.ne.s32.totalorder %s390, %s391
    %p400 = scmp.eq.s32.totalorder %s30, 0
    %p401 = por %p399, %p400
    %p402 = scmp.ne.s32.totalorder %s390, %s391
    %p403 = scmp.eq.s32.totalorder %s31, 1
    %p404 = por %p402, %p403
    %p406 = scmp.ne.s32.totalorder %s391, %s405
    %p407 = scmp.eq.s32.totalorder %s31, 0
    %p408 = por %p406, %p407
    %s410 = sadd.s32 %s409, 1
    %p413 = scmp.eq.s32.totalorder %s25, 1
    %p414 = scmp.ne.s32.totalorder %s409, %s411
    %p415 = scmp.eq.s32.totalorder %s25, 0
    %p416 = por %p414, %p415
    %p417 = scmp.ne.s32.totalorder %s409, %s411
    %p418 = scmp.eq.s32.totalorder %s30, 1
    %p419 = por %p417, %p418
    %p420 = scmp.ne.s32.totalorder %s411, %s412
    %p421 = scmp.eq.s32.totalorder %s30, 0
    %p422 = por %p420, %p421
    %p423 = scmp.ne.s32.totalorder %s411, %s412
    %p424 = scmp.eq.s32.totalorder %s31, 1
    %p425 = por %p423, %p424
    %p427 = scmp.ne.s32.totalorder %s412, %s426
    %p428 = scmp.eq.s32.totalorder %s31, 0
    %p429 = por %p427, %p428
    %s431 = sadd.s32 %s430, 1
    %p434 = scmp.eq.s32.totalorder %s25, 1
    %p435 = scmp.ne.s32.totalorder %s430, %s432
    %p436 = scmp.eq.s32.totalorder %s25, 0
    %p437 = por %p435, %p436
    %p438 = scmp.ne.s32.totalorder %s430, %s432
    %p439 = scmp.eq.s32.totalorder %s30, 1
    %p440 = por %p438, %p439
    %p441 = scmp.ne.s32.totalorder %s432, %s433
    %p442 = scmp.eq.s32.totalorder %s30, 0
    %p443 = por %p441, %p442
    %p444 = scmp.ne.s32.totalorder %s432, %s433
    %p445 = scmp.eq.s32.totalorder %s31, 1
    %p446 = por %p444, %p445
    %p448 = scmp.ne.s32.totalorder %s433, %s447
    %p449 = scmp.eq.s32.totalorder %s31, 0
    %p450 = por %p448, %p449
    %s451 = ssub.s32 %s32, %s44
    %p452 = scmp.eq.s32.totalorder %s451, 0
    %s454 = sadd.s32 %s453, 1
    %s455 = scalar_select %p452, %s453, %s454
    %p458 = pneg %p452
    %p459 = scmp.eq.s32.totalorder %s25, 1
    %p460 = por %p458, %p459
    %p461 = scmp.ne.s32.totalorder %s453, %s456
    %p462 = scmp.eq.s32.totalorder %s25, 0
    %p463 = por %p461, %p462
    %p464 = scmp.ne.s32.totalorder %s453, %s456
    %p465 = scmp.eq.s32.totalorder %s30, 1
    %p466 = por %p464, %p465
    %p467 = scmp.ne.s32.totalorder %s456, %s457
    %p468 = scmp.eq.s32.totalorder %s30, 0
    %p469 = por %p467, %p468
    %p470 = scmp.ne.s32.totalorder %s456, %s457
    %p471 = scmp.eq.s32.totalorder %s31, 1
    %p472 = por %p470, %p471
    %p474 = scmp.ne.s32.totalorder %s457, %s473
    %p475 = scmp.eq.s32.totalorder %s31, 0
    %p476 = por %p474, %p475
    %p477 = scmp.le.s32.totalorder 1, %s25
    %p478 = scmp.lt.s32.totalorder %s25, 3
    %p479 = pnand %p477, %p478
    %p480 = pneg %p479
    // Predicated region
    $region9: #{stnkd_forward.1} parent=5 // pred_check
      _
    $region10: #{stnkd_forward.1} parent=5 // pred_check_branch
      %482 = sbr.rel (%p479) target = $region12
    $region11: #{stnkd_forward.1} parent=5 // pred_region
      %s483 = ssub.s32 %s25, 1
      // Predicated region
      $region13: #{stnkd_forward.1} parent=11 // pred_check
        %p484 = pneg %p86
      $region14: #{stnkd_forward.1} parent=11 // pred_check_branch
        %486 = sbr.rel (%p484) target = $region16
      $region15: #{stnkd_forward.1} parent=11 // pred_region
        _
      $region16: #{stnkd_forward.1} parent=11 // pred_fallthru
        _
      // Predicated region
      $region17: #{stnkd_forward.1} parent=11 // pred_check
        %p487 = pneg %p107
      $region18: #{stnkd_forward.1} parent=11 // pred_check_branch
        %489 = sbr.rel (%p487) target = $region20
      $region19: #{stnkd_forward.1} parent=11 // pred_region
        _
      $region20: #{stnkd_forward.1} parent=11 // pred_fallthru
        _
      // Predicated region
      $region21: #{stnkd_forward.1} parent=11 // pred_check
        %p490 = pneg %p128
      $region22: #{stnkd_forward.1} parent=11 // pred_check_branch
        %492 = sbr.rel (%p490) target = $region24
      $region23: #{stnkd_forward.1} parent=11 // pred_region
        _
      $region24: #{stnkd_forward.1} parent=11 // pred_fallthru
        _
      // Predicated region
      $region25: #{stnkd_forward.1} parent=11 // pred_check
        %p493 = pneg %p149
      $region26: #{stnkd_forward.1} parent=11 // pred_check_branch
        %495 = sbr.rel (%p493) target = $region28
      $region27: #{stnkd_forward.1} parent=11 // pred_region
        _
      $region28: #{stnkd_forward.1} parent=11 // pred_fallthru
        _
      // Predicated region
      $region29: #{stnkd_forward.1} parent=11 // pred_check
        %p496 = pneg %p170
      $region30: #{stnkd_forward.1} parent=11 // pred_check_branch
        %498 = sbr.rel (%p496) target = $region32
      $region31: #{stnkd_forward.1} parent=11 // pred_region
        _
      $region32: #{stnkd_forward.1} parent=11 // pred_fallthru
        _
      // Predicated region
      $region33: #{stnkd_forward.1} parent=11 // pred_check
        %p499 = pneg %p191
      $region34: #{stnkd_forward.1} parent=11 // pred_check_branch
        %501 = sbr.rel (%p499) target = $region36
      $region35: #{stnkd_forward.1} parent=11 // pred_region
        _
      $region36: #{stnkd_forward.1} parent=11 // pred_fallthru
        _
      // Predicated region
      $region37: #{stnkd_forward.1} parent=11 // pred_check
        %p502 = pneg %p212
      $region38: #{stnkd_forward.1} parent=11 // pred_check_branch
        %504 = sbr.rel (%p502) target = $region40
      $region39: #{stnkd_forward.1} parent=11 // pred_region
        _
      $region40: #{stnkd_forward.1} parent=11 // pred_fallthru
        _
      // Predicated region
      $region41: #{stnkd_forward.1} parent=11 // pred_check
        %p505 = pneg %p233
      $region42: #{stnkd_forward.1} parent=11 // pred_check_branch
        %507 = sbr.rel (%p505) target = $region44
      $region43: #{stnkd_forward.1} parent=11 // pred_region
        _
      $region44: #{stnkd_forward.1} parent=11 // pred_fallthru
        _
      // Predicated region
      $region45: #{stnkd_forward.1} parent=11 // pred_check
        %p508 = pneg %p254
      $region46: #{stnkd_forward.1} parent=11 // pred_check_branch
        %510 = sbr.rel (%p508) target = $region48
      $region47: #{stnkd_forward.1} parent=11 // pred_region
        _
      $region48: #{stnkd_forward.1} parent=11 // pred_fallthru
        _
      // Predicated region
      $region49: #{stnkd_forward.1} parent=11 // pred_check
        %p511 = pneg %p275
      $region50: #{stnkd_forward.1} parent=11 // pred_check_branch
        %513 = sbr.rel (%p511) target = $region52
      $region51: #{stnkd_forward.1} parent=11 // pred_region
        _
      $region52: #{stnkd_forward.1} parent=11 // pred_fallthru
        _
      // Predicated region
      $region53: #{stnkd_forward.1} parent=11 // pred_check
        %p514 = pneg %p296
      $region54: #{stnkd_forward.1} parent=11 // pred_check_branch
        %516 = sbr.rel (%p514) target = $region56
      $region55: #{stnkd_forward.1} parent=11 // pred_region
        _
      $region56: #{stnkd_forward.1} parent=11 // pred_fallthru
        _
      // Predicated region
      $region57: #{stnkd_forward.1} parent=11 // pred_check
        %p517 = pneg %p317
      $region58: #{stnkd_forward.1} parent=11 // pred_check_branch
        %519 = sbr.rel (%p517) target = $region60
      $region59: #{stnkd_forward.1} parent=11 // pred_region
        _
      $region60: #{stnkd_forward.1} parent=11 // pred_fallthru
        _
      // Predicated region
      $region61: #{stnkd_forward.1} parent=11 // pred_check
        %p520 = pneg %p338
      $region62: #{stnkd_forward.1} parent=11 // pred_check_branch
        %522 = sbr.rel (%p520) target = $region64
      $region63: #{stnkd_forward.1} parent=11 // pred_region
        _
      $region64: #{stnkd_forward.1} parent=11 // pred_fallthru
        _
      // Predicated region
      $region65: #{stnkd_forward.1} parent=11 // pred_check
        %p523 = pneg %p359
      $region66: #{stnkd_forward.1} parent=11 // pred_check_branch
        %525 = sbr.rel (%p523) target = $region68
      $region67: #{stnkd_forward.1} parent=11 // pred_region
        _
      $region68: #{stnkd_forward.1} parent=11 // pred_fallthru
        _
      // Predicated region
      $region69: #{stnkd_forward.1} parent=11 // pred_check
        %p526 = pneg %p380
      $region70: #{stnkd_forward.1} parent=11 // pred_check_branch
        %528 = sbr.rel (%p526) target = $region72
      $region71: #{stnkd_forward.1} parent=11 // pred_region
        _
      $region72: #{stnkd_forward.1} parent=11 // pred_fallthru
        _
      // Predicated region
      $region73: #{stnkd_forward.1} parent=11 // pred_check
        %p529 = pneg %p401
      $region74: #{stnkd_forward.1} parent=11 // pred_check_branch
        %531 = sbr.rel (%p529) target = $region76
      $region75: #{stnkd_forward.1} parent=11 // pred_region
        _
      $region76: #{stnkd_forward.1} parent=11 // pred_fallthru
        _
      // Predicated region
      $region77: #{stnkd_forward.1} parent=11 // pred_check
        %p532 = pneg %p422
      $region78: #{stnkd_forward.1} parent=11 // pred_check_branch
        %534 = sbr.rel (%p532) target = $region80
      $region79: #{stnkd_forward.1} parent=11 // pred_region
        _
      $region80: #{stnkd_forward.1} parent=11 // pred_fallthru
        _
      // Predicated region
      $region81: #{stnkd_forward.1} parent=11 // pred_check
        %p535 = pneg %p443
      $region82: #{stnkd_forward.1} parent=11 // pred_check_branch
        %537 = sbr.rel (%p535) target = $region84
      $region83: #{stnkd_forward.1} parent=11 // pred_region
        _
      $region84: #{stnkd_forward.1} parent=11 // pred_fallthru
        _
    $region12: #{stnkd_forward.1} parent=5 // pred_fallthru
      _
    %p538 = scmp.lt.s32.totalorder %s25, 2
    // Predicated region
    $region85: #{stnkd_forward.1} parent=5 // pred_check
      %p539 = pneg %p538
    $region86: #{stnkd_forward.1} parent=5 // pred_check_branch
      %541 = sbr.rel (%p539) target = $region88
    $region87: #{stnkd_forward.1} parent=5 // pred_region
      // Predicated region
      $region89: #{stnkd_forward.1} parent=87 // pred_check
        %p542 = pneg %p59
      $region90: #{stnkd_forward.1} parent=87 // pred_check_branch
        %544 = sbr.rel (%p542) target = $region92
      $region91: #{stnkd_forward.1} parent=87 // pred_region
        %s545 = smul.u32 2, %s33
        %p546 = scmp.lt.s32.totalorder %s32, 1
        %s547 = scalar_select %p546, %s32, 1
        %p548 = scmp.lt.s32.totalorder %s545, 1
        %s549 = scalar_select %p548, %s545, 1
        %s550 = smul.addr %s547, 2
        %s551 = sadd.s32 %s549, %s550
        %s552 = smul.addr %s551, 4
        %s553 = scalar_lea.vmem %s0, %s552
        %s554 = smul.u32 2, %s33
      $region92: #{stnkd_forward.1} parent=87 // pred_fallthru
        _
    $region88: #{stnkd_forward.1} parent=5 // pred_fallthru
      _
    %p555 = scmp.le.s32.totalorder 1, %s25
    %p556 = scmp.lt.s32.totalorder %s25, 3
    %p557 = pnand %p555, %p556
    %p558 = pneg %p557
    // Predicated region
    $region93: #{stnkd_forward.1} parent=5 // pred_check
      _
    $region94: #{stnkd_forward.1} parent=5 // pred_check_branch
      %560 = sbr.rel (%p557) target = $region96
    $region95: #{stnkd_forward.1} parent=5 // pred_region
      %s561 = ssub.s32 %s25, 1
      %s562 = smul.u32 2, %s35
      %p563 = scmp.lt.s32.totalorder %s34, 1
      %s564 = scalar_select %p563, %s34, 1
      %p565 = scmp.lt.s32.totalorder %s562, 1
      %s566 = scalar_select %p565, %s562, 1
      %s567 = smul.addr %s564, 2
      %s568 = sadd.s32 %s566, %s567
      %s569 = smul.addr %s568, 4
      %s570 = scalar_lea.vmem %s0, %s569
      %p571 = pneg %p65
      %p572 = pneg %p62
      %p573 = pneg %p86
      %p574 = pneg %p83
      %p575 = pneg %p107
      %p576 = pneg %p104
      %p577 = pneg %p128
      %p578 = pneg %p125
      %p579 = pneg %p149
      %p580 = pneg %p146
      %p581 = pneg %p170
      %p582 = pneg %p167
      %p583 = pneg %p191
      %p584 = pneg %p188
      %p585 = pneg %p212
      %p586 = pneg %p209
      %p587 = pneg %p233
      %p588 = pneg %p230
      %p589 = pneg %p254
      %p590 = pneg %p251
      %p591 = pneg %p275
      %p592 = pneg %p272
      %p593 = pneg %p296
      %p594 = pneg %p293
      %p595 = pneg %p317
      %p596 = pneg %p314
      %p597 = pneg %p338
      %p598 = pneg %p335
      %p599 = pneg %p359
      %p600 = pneg %p356
      %p601 = pneg %p380
      %p602 = pneg %p377
      %p603 = pneg %p401
      %p604 = pneg %p398
      %p605 = pneg %p422
      %p606 = pneg %p419
      %p607 = pneg %p443
      %p608 = pneg %p440
      %p609 = pneg %p469
      %p610 = pneg %p466
      %p611 = scmp.lt.s32.totalorder %s34, 1
      %s612 = scalar_select %p611, %s34, 1
      %s613 = smul.addr %s612, 2
      %s614 = smul.addr %s613, 8
      %s615 = scalar_lea.vmem %s19, %s614
      %s616 = smul.u32 2, %s35
      %p617 = scmp.lt.s32.totalorder %s34, 1
      %s618 = scalar_select %p617, %s34, 1
      %p619 = scmp.lt.s32.totalorder %s616, 1
      %s620 = scalar_select %p619, %s616, 1
      %s621 = smul.addr %s618, 2
      %s622 = sadd.s32 %s620, %s621
      %s623 = smul.addr %s622, 4
      %s624 = scalar_lea.vmem %s0, %s623
      %s625 = smul.u32 2, %s35
      %p626 = scmp.lt.s32.totalorder %s34, 1
      %s627 = scalar_select %p626, %s34, 1
      %s628 = smul.addr %s627, 2
      %s629 = smul.addr %s628, 8
      %s630 = scalar_lea.vmem %s19, %s629
      %v632 = vld [vmem:[%s624] sm:$0xff]
      %v633 = vld [vmem:[%s1] sm:$0xff]
      %v634 = vld [vmem:[%s1 + $0x8] sm:$0xff]
      %v635 = vld [vmem:[%s1 + $0x10] sm:$0xff]
      %v636 = vld [vmem:[%s1 + $0x18] sm:$0xff]
      %v637 = vld [vmem:[%s1 + $0x20] sm:$0xff]
      %v638 = vld [vmem:[%s1 + $0x28] sm:$0xff]
      %v639 = vld [vmem:[%s1 + $0x30] sm:$0xff]
      %v640 = vld [vmem:[%s1 + $0x38] sm:$0xff]
      %642 = vset.pattern.permute.xlu0 0
      %643 = vperm.xlu0 %642, %v633
      %v644 = vpop.permute.xlu0 %643
      %647 = vset.pattern.permute.xlu0 0
      %648 = vperm.xlu0 %647, %v634
      %v649 = vpop.permute.xlu0 %648
      %652 = vset.pattern.permute.xlu0 0
      %653 = vperm.xlu0 %652, %v635
      %v654 = vpop.permute.xlu0 %653
      %657 = vset.pattern.permute.xlu0 0
      %658 = vperm.xlu0 %657, %v636
      %v659 = vpop.permute.xlu0 %658
      %662 = vset.pattern.permute.xlu0 0
      %663 = vperm.xlu0 %662, %v637
      %v664 = vpop.permute.xlu0 %663
      %667 = vset.pattern.permute.xlu0 0
      %668 = vperm.xlu0 %667, %v638
      %v669 = vpop.permute.xlu0 %668
      %672 = vset.pattern.permute.xlu0 0
      %673 = vperm.xlu0 %672, %v639
      %v674 = vpop.permute.xlu0 %673
      %677 = vset.pattern.permute.xlu0 0
      %678 = vperm.xlu0 %677, %v640
      %v679 = vpop.permute.xlu0 %678
      %v682 = vlaneseq
      %v683 = vshrl.u32 %v682, 7
      %v684 = vsub.s32 0, %v683
      %v685 = vrot.slane %v632, %v684
      %v686 = vlaneseq
      %v687 = vshrl.u32 %v686, 7
      %v688 = vsub.s32 4, %v687
      %v689 = vrot.slane %v632, %v688
      %v692 = vlaneseq
      %v693 = vshrl.u32 %v692, 7
      %v694 = vsub.s32 0, %v693
      %v695 = vrot.slane %v685, %v694
      %v696 = vlaneseq
      %v697 = vshrl.u32 %v696, 7
      %v698 = vsub.s32 0, %v697
      %v699 = vrot.slane %v689, %v698
      %v700 = vmul.f32 %v644, %v695
      %v701 = vmul.f32 %v644, %v699
      %v702 = vmul.f32 %v649, %v695
      %v703 = vmul.f32 %v649, %v699
      %v704 = vmul.f32 %v654, %v695
      %v705 = vmul.f32 %v654, %v699
      %v706 = vmul.f32 %v659, %v695
      %v707 = vmul.f32 %v659, %v699
      %v708 = vmul.f32 %v664, %v695
      %v709 = vmul.f32 %v664, %v699
      %v710 = vmul.f32 %v669, %v695
      %v711 = vmul.f32 %v669, %v699
      %v712 = vmul.f32 %v674, %v695
      %v713 = vmul.f32 %v674, %v699
      %v714 = vmul.f32 %v679, %v695
      %v715 = vmul.f32 %v679, %v699
      %716 = vset.pattern.permute.xlu0 1
      %717 = vperm.xlu0 %716, %v633
      %v718 = vpop.permute.xlu0 %717
      %720 = vset.pattern.permute.xlu0 1
      %721 = vperm.xlu0 %720, %v634
      %v722 = vpop.permute.xlu0 %721
      %724 = vset.pattern.permute.xlu0 1
      %725 = vperm.xlu0 %724, %v635
      %v726 = vpop.permute.xlu0 %725
      %728 = vset.pattern.permute.xlu0 1
      %729 = vperm.xlu0 %728, %v636
      %v730 = vpop.permute.xlu0 %729
      %732 = vset.pattern.permute.xlu0 1
      %733 = vperm.xlu0 %732, %v637
      %v734 = vpop.permute.xlu0 %733
      %736 = vset.pattern.permute.xlu0 1
      %737 = vperm.xlu0 %736, %v638
      %v738 = vpop.permute.xlu0 %737
      %740 = vset.pattern.permute.xlu0 1
      %741 = vperm.xlu0 %740, %v639
      %v742 = vpop.permute.xlu0 %741
      %744 = vset.pattern.permute.xlu0 1
      %745 = vperm.xlu0 %744, %v640
      %v746 = vpop.permute.xlu0 %745
      %v748 = vlaneseq
      %v749 = vshrl.u32 %v748, 7
      %v750 = vsub.s32 1, %v749
      %v751 = vrot.slane %v632, %v750
      %v752 = vlaneseq
      %v753 = vshrl.u32 %v752, 7
      %v754 = vsub.s32 5, %v753
      %v755 = vrot.slane %v632, %v754
      %v758 = vlaneseq
      %v759 = vshrl.u32 %v758, 7
      %v760 = vsub.s32 1, %v759
      %v761 = vrot.slane %v751, %v760
      %v762 = vlaneseq
      %v763 = vshrl.u32 %v762, 7
      %v764 = vsub.s32 1, %v763
      %v765 = vrot.slane %v755, %v764
      %v766 = vmul.f32 %v718, %v761
      %v767 = vmul.f32 %v718, %v765
      %v768 = vmul.f32 %v722, %v761
      %v769 = vmul.f32 %v722, %v765
      %v770 = vmul.f32 %v726, %v761
      %v771 = vmul.f32 %v726, %v765
      %v772 = vmul.f32 %v730, %v761
      %v773 = vmul.f32 %v730, %v765
      %v774 = vmul.f32 %v734, %v761
      %v775 = vmul.f32 %v734, %v765
      %v776 = vmul.f32 %v738, %v761
      %v777 = vmul.f32 %v738, %v765
      %v778 = vmul.f32 %v742, %v761
      %v779 = vmul.f32 %v742, %v765
      %v780 = vmul.f32 %v746, %v761
      %v781 = vmul.f32 %v746, %v765
      %v782 = vadd.f32 %v700, %v766
      %v783 = vadd.f32 %v701, %v767
      %v784 = vadd.f32 %v702, %v768
      %v785 = vadd.f32 %v703, %v769
      %v786 = vadd.f32 %v704, %v770
      %v787 = vadd.f32 %v705, %v771
      %v788 = vadd.f32 %v706, %v772
      %v789 = vadd.f32 %v707, %v773
      %v790 = vadd.f32 %v708, %v774
      %v791 = vadd.f32 %v709, %v775
      %v792 = vadd.f32 %v710, %v776
      %v793 = vadd.f32 %v711, %v777
      %v794 = vadd.f32 %v712, %v778
      %v795 = vadd.f32 %v713, %v779
      %v796 = vadd.f32 %v714, %v780
      %v797 = vadd.f32 %v715, %v781
      %798 = vset.pattern.permute.xlu0 2
      %799 = vperm.xlu0 %798, %v633
      %v800 = vpop.permute.xlu0 %799
      %802 = vset.pattern.permute.xlu0 2
      %803 = vperm.xlu0 %802, %v634
      %v804 = vpop.permute.xlu0 %803
      %806 = vset.pattern.permute.xlu0 2
      %807 = vperm.xlu0 %806, %v635
      %v808 = vpop.permute.xlu0 %807
      %810 = vset.pattern.permute.xlu0 2
      %811 = vperm.xlu0 %810, %v636
      %v812 = vpop.permute.xlu0 %811
      %814 = vset.pattern.permute.xlu0 2
      %815 = vperm.xlu0 %814, %v637
      %v816 = vpop.permute.xlu0 %815
      %818 = vset.pattern.permute.xlu0 2
      %819 = vperm.xlu0 %818, %v638
      %v820 = vpop.permute.xlu0 %819
      %822 = vset.pattern.permute.xlu0 2
      %823 = vperm.xlu0 %822, %v639
      %v824 = vpop.permute.xlu0 %823
      %826 = vset.pattern.permute.xlu0 2
      %827 = vperm.xlu0 %826, %v640
      %v828 = vpop.permute.xlu0 %827
      %v830 = vlaneseq
      %v831 = vshrl.u32 %v830, 7
      %v832 = vsub.s32 2, %v831
      %v833 = vrot.slane %v632, %v832
      %v834 = vlaneseq
      %v835 = vshrl.u32 %v834, 7
      %v836 = vsub.s32 6, %v835
      %v837 = vrot.slane %v632, %v836
      %v840 = vlaneseq
      %v841 = vshrl.u32 %v840, 7
      %v842 = vsub.s32 2, %v841
      %v843 = vrot.slane %v833, %v842
      %v844 = vlaneseq
      %v845 = vshrl.u32 %v844, 7
      %v846 = vsub.s32 2, %v845
      %v847 = vrot.slane %v837, %v846
      %v848 = vmul.f32 %v800, %v843
      %v849 = vmul.f32 %v800, %v847
      %v850 = vmul.f32 %v804, %v843
      %v851 = vmul.f32 %v804, %v847
      %v852 = vmul.f32 %v808, %v843
      %v853 = vmul.f32 %v808, %v847
      %v854 = vmul.f32 %v812, %v843
      %v855 = vmul.f32 %v812, %v847
      %v856 = vmul.f32 %v816, %v843
      %v857 = vmul.f32 %v816, %v847
      %v858 = vmul.f32 %v820, %v843
      %v859 = vmul.f32 %v820, %v847
      %v860 = vmul.f32 %v824, %v843
      %v861 = vmul.f32 %v824, %v847
      %v862 = vmul.f32 %v828, %v843
      %v863 = vmul.f32 %v828, %v847
      %v864 = vadd.f32 %v782, %v848
      %v865 = vadd.f32 %v783, %v849
      %v866 = vadd.f32 %v784, %v850
      %v867 = vadd.f32 %v785, %v851
      %v868 = vadd.f32 %v786, %v852
      %v869 = vadd.f32 %v787, %v853
      %v870 = vadd.f32 %v788, %v854
      %v871 = vadd.f32 %v789, %v855
      %v872 = vadd.f32 %v790, %v856
      %v873 = vadd.f32 %v791, %v857
      %v874 = vadd.f32 %v792, %v858
      %v875 = vadd.f32 %v793, %v859
      %v876 = vadd.f32 %v794, %v860
      %v877 = vadd.f32 %v795, %v861
      %v878 = vadd.f32 %v796, %v862
      %v879 = vadd.f32 %v797, %v863
      %880 = vset.pattern.permute.xlu0 3
      %881 = vperm.xlu0 %880, %v633
      %v882 = vpop.permute.xlu0 %881
      %884 = vset.pattern.permute.xlu0 3
      %885 = vperm.xlu0 %884, %v634
      %v886 = vpop.permute.xlu0 %885
      %888 = vset.pattern.permute.xlu0 3
      %889 = vperm.xlu0 %888, %v635
      %v890 = vpop.permute.xlu0 %889
      %892 = vset.pattern.permute.xlu0 3
      %893 = vperm.xlu0 %892, %v636
      %v894 = vpop.permute.xlu0 %893
      %896 = vset.pattern.permute.xlu0 3
      %897 = vperm.xlu0 %896, %v637
      %v898 = vpop.permute.xlu0 %897
      %900 = vset.pattern.permute.xlu0 3
      %901 = vperm.xlu0 %900, %v638
      %v902 = vpop.permute.xlu0 %901
      %904 = vset.pattern.permute.xlu0 3
      %905 = vperm.xlu0 %904, %v639
      %v906 = vpop.permute.xlu0 %905
      %908 = vset.pattern.permute.xlu0 3
      %909 = vperm.xlu0 %908, %v640
      %v910 = vpop.permute.xlu0 %909
      %v912 = vlaneseq
      %v913 = vshrl.u32 %v912, 7
      %v914 = vsub.s32 3, %v913
      %v915 = vrot.slane %v632, %v914
      %v916 = vlaneseq
      %v917 = vshrl.u32 %v916, 7
      %v918 = vsub.s32 7, %v917
      %v919 = vrot.slane %v632, %v918
      %v922 = vlaneseq
      %v923 = vshrl.u32 %v922, 7
      %v924 = vsub.s32 3, %v923
      %v925 = vrot.slane %v915, %v924
      %v926 = vlaneseq
      %v927 = vshrl.u32 %v926, 7
      %v928 = vsub.s32 3, %v927
      %v929 = vrot.slane %v919, %v928
      %v930 = vmul.f32 %v882, %v925
      %v931 = vmul.f32 %v882, %v929
      %v932 = vmul.f32 %v886, %v925
      %v933 = vmul.f32 %v886, %v929
      %v934 = vmul.f32 %v890, %v925
      %v935 = vmul.f32 %v890, %v929
      %v936 = vmul.f32 %v894, %v925
      %v937 = vmul.f32 %v894, %v929
      %v938 = vmul.f32 %v898, %v925
      %v939 = vmul.f32 %v898, %v929
      %v940 = vmul.f32 %v902, %v925
      %v941 = vmul.f32 %v902, %v929
      %v942 = vmul.f32 %v906, %v925
      %v943 = vmul.f32 %v906, %v929
      %v944 = vmul.f32 %v910, %v925
      %v945 = vmul.f32 %v910, %v929
      %v946 = vadd.f32 %v864, %v930
      %v947 = vadd.f32 %v865, %v931
      %v948 = vadd.f32 %v866, %v932
      %v949 = vadd.f32 %v867, %v933
      %v950 = vadd.f32 %v868, %v934
      %v951 = vadd.f32 %v869, %v935
      %v952 = vadd.f32 %v870, %v936
      %v953 = vadd.f32 %v871, %v937
      %v954 = vadd.f32 %v872, %v938
      %v955 = vadd.f32 %v873, %v939
      %v956 = vadd.f32 %v874, %v940
      %v957 = vadd.f32 %v875, %v941
      %v958 = vadd.f32 %v876, %v942
      %v959 = vadd.f32 %v877, %v943
      %v960 = vadd.f32 %v878, %v944
      %v961 = vadd.f32 %v879, %v945
      %v962 = vld [vmem:[%s2] sm:$0xff]
      %v963 = vld [vmem:[%s2 + $0x8] sm:$0xff]
      %v964 = vld [vmem:[%s2 + $0x10] sm:$0xff]
      %v965 = vld [vmem:[%s2 + $0x18] sm:$0xff]
      %v966 = vld [vmem:[%s2 + $0x20] sm:$0xff]
      %v967 = vld [vmem:[%s2 + $0x28] sm:$0xff]
      %v968 = vld [vmem:[%s2 + $0x30] sm:$0xff]
      %v969 = vld [vmem:[%s2 + $0x38] sm:$0xff]
      %971 = vset.pattern.permute.xlu0 0
      %972 = vperm.xlu0 %971, %v962
      %v973 = vpop.permute.xlu0 %972
      %976 = vset.pattern.permute.xlu0 0
      %977 = vperm.xlu0 %976, %v963
      %v978 = vpop.permute.xlu0 %977
      %981 = vset.pattern.permute.xlu0 0
      %982 = vperm.xlu0 %981, %v964
      %v983 = vpop.permute.xlu0 %982
      %986 = vset.pattern.permute.xlu0 0
      %987 = vperm.xlu0 %986, %v965
      %v988 = vpop.permute.xlu0 %987
      %991 = vset.pattern.permute.xlu0 0
      %992 = vperm.xlu0 %991, %v966
      %v993 = vpop.permute.xlu0 %992
      %996 = vset.pattern.permute.xlu0 0
      %997 = vperm.xlu0 %996, %v967
      %v998 = vpop.permute.xlu0 %997
      %1001 = vset.pattern.permute.xlu0 0
      %1002 = vperm.xlu0 %1001, %v968
      %v1003 = vpop.permute.xlu0 %1002
      %1006 = vset.pattern.permute.xlu0 0
      %1007 = vperm.xlu0 %1006, %v969
      %v1008 = vpop.permute.xlu0 %1007
      %v1010 = vmul.f32 %v946, %v973
      %v1011 = vmul.f32 %v947, %v973
      %v1012 = vmul.f32 %v948, %v978
      %v1013 = vmul.f32 %v949, %v978
      %v1014 = vmul.f32 %v950, %v983
      %v1015 = vmul.f32 %v951, %v983
      %v1016 = vmul.f32 %v952, %v988
      %v1017 = vmul.f32 %v953, %v988
      %v1018 = vmul.f32 %v954, %v993
      %v1019 = vmul.f32 %v955, %v993
      %v1020 = vmul.f32 %v956, %v998
      %v1021 = vmul.f32 %v957, %v998
      %v1022 = vmul.f32 %v958, %v1003
      %v1023 = vmul.f32 %v959, %v1003
      %v1024 = vmul.f32 %v960, %v1008
      %v1025 = vmul.f32 %v961, %v1008
      %v1026 = vld [vmem:[%s3] sm:$0xff]
      %v1027 = vld [vmem:[%s3 + $0x8] sm:$0xff]
      %v1028 = vld [vmem:[%s3 + $0x10] sm:$0xff]
      %v1029 = vld [vmem:[%s3 + $0x18] sm:$0xff]
      %v1030 = vld [vmem:[%s3 + $0x20] sm:$0xff]
      %v1031 = vld [vmem:[%s3 + $0x28] sm:$0xff]
      %v1032 = vld [vmem:[%s3 + $0x30] sm:$0xff]
      %v1033 = vld [vmem:[%s3 + $0x38] sm:$0xff]
      %1035 = vset.pattern.permute.xlu0 0
      %1036 = vperm.xlu0 %1035, %v1026
      %v1037 = vpop.permute.xlu0 %1036
      %1040 = vset.pattern.permute.xlu0 0
      %1041 = vperm.xlu0 %1040, %v1027
      %v1042 = vpop.permute.xlu0 %1041
      %1045 = vset.pattern.permute.xlu0 0
      %1046 = vperm.xlu0 %1045, %v1028
      %v1047 = vpop.permute.xlu0 %1046
      %1050 = vset.pattern.permute.xlu0 0
      %1051 = vperm.xlu0 %1050, %v1029
      %v1052 = vpop.permute.xlu0 %1051
      %1055 = vset.pattern.permute.xlu0 0
      %1056 = vperm.xlu0 %1055, %v1030
      %v1057 = vpop.permute.xlu0 %1056
      %1060 = vset.pattern.permute.xlu0 0
      %1061 = vperm.xlu0 %1060, %v1031
      %v1062 = vpop.permute.xlu0 %1061
      %1065 = vset.pattern.permute.xlu0 0
      %1066 = vperm.xlu0 %1065, %v1032
      %v1067 = vpop.permute.xlu0 %1066
      %1070 = vset.pattern.permute.xlu0 0
      %1071 = vperm.xlu0 %1070, %v1033
      %v1072 = vpop.permute.xlu0 %1071
      %v1074 = vadd.f32 %v1010, %v1037
      %v1075 = vadd.f32 %v1011, %v1037
      %v1076 = vadd.f32 %v1012, %v1042
      %v1077 = vadd.f32 %v1013, %v1042
      %v1078 = vadd.f32 %v1014, %v1047
      %v1079 = vadd.f32 %v1015, %v1047
      %v1080 = vadd.f32 %v1016, %v1052
      %v1081 = vadd.f32 %v1017, %v1052
      %v1082 = vadd.f32 %v1018, %v1057
      %v1083 = vadd.f32 %v1019, %v1057
      %v1084 = vadd.f32 %v1020, %v1062
      %v1085 = vadd.f32 %v1021, %v1062
      %v1086 = vadd.f32 %v1022, %v1067
      %v1087 = vadd.f32 %v1023, %v1067
      %v1088 = vadd.f32 %v1024, %v1072
      %v1089 = vadd.f32 %v1025, %v1072
      %v1090 = vmax.f32 %v1074, 0.0
      %v1091 = vmax.f32 %v1075, 0.0
      %v1092 = vmax.f32 %v1076, 0.0
      %v1093 = vmax.f32 %v1077, 0.0
      %v1094 = vmax.f32 %v1078, 0.0
      %v1095 = vmax.f32 %v1079, 0.0
      %v1096 = vmax.f32 %v1080, 0.0
      %v1097 = vmax.f32 %v1081, 0.0
      %v1098 = vmax.f32 %v1082, 0.0
      %v1099 = vmax.f32 %v1083, 0.0
      %v1100 = vmax.f32 %v1084, 0.0
      %v1101 = vmax.f32 %v1085, 0.0
      %v1102 = vmax.f32 %v1086, 0.0
      %v1103 = vmax.f32 %v1087, 0.0
      %v1104 = vmax.f32 %v1088, 0.0
      %v1105 = vmax.f32 %v1089, 0.0
      %v1106 = vld [vmem:[%s4] sm:$0xf]
      %v1107 = vld [vmem:[%s4 + $0x4] sm:$0xf]
      %v1108 = vld [vmem:[%s4 + $0x8] sm:$0xf]
      %v1109 = vld [vmem:[%s4 + $0xc] sm:$0xf]
      %v1110 = vld [vmem:[%s4 + $0x10] sm:$0xf]
      %v1111 = vld [vmem:[%s4 + $0x14] sm:$0xf]
      %v1112 = vld [vmem:[%s4 + $0x18] sm:$0xf]
      %v1113 = vld [vmem:[%s4 + $0x1c] sm:$0xf]
      %v1114 = vld [vmem:[%s4 + $0x20] sm:$0xf]
      %v1115 = vld [vmem:[%s4 + $0x24] sm:$0xf]
      %v1116 = vld [vmem:[%s4 + $0x28] sm:$0xf]
      %v1117 = vld [vmem:[%s4 + $0x2c] sm:$0xf]
      %v1118 = vld [vmem:[%s4 + $0x30] sm:$0xf]
      %v1119 = vld [vmem:[%s4 + $0x34] sm:$0xf]
      %v1120 = vld [vmem:[%s4 + $0x38] sm:$0xf]
      %v1121 = vld [vmem:[%s4 + $0x3c] sm:$0xf]
      %v1122 = vpack.c.bf16 %v1092, %v1090
      %v1123 = vpack.c.bf16 %v1093, %v1091
      %v1124 = vpack.c.bf16 %v1096, %v1094
      %v1125 = vpack.c.bf16 %v1097, %v1095
      %v1126 = vpack.c.bf16 %v1100, %v1098
      %v1127 = vpack.c.bf16 %v1101, %v1099
      %v1128 = vpack.c.bf16 %v1104, %v1102
      %v1129 = vpack.c.bf16 %v1105, %v1103
      %v1146 = vunpack.c.l.b16 %v1106
      %v1147 = vunpack.c.l.b16 %v1107
      %v1148 = vunpack.c.l.b16 %v1108
      %v1149 = vunpack.c.l.b16 %v1109
      %v1150 = vunpack.c.l.b16 %v1110
      %v1151 = vunpack.c.l.b16 %v1111
      %v1152 = vunpack.c.l.b16 %v1112
      %v1153 = vunpack.c.l.b16 %v1113
      %v1154 = vunpack.c.l.b16 %v1114
      %v1155 = vunpack.c.l.b16 %v1115
      %v1156 = vunpack.c.l.b16 %v1116
      %v1157 = vunpack.c.l.b16 %v1117
      %v1158 = vunpack.c.l.b16 %v1118
      %v1159 = vunpack.c.l.b16 %v1119
      %v1160 = vunpack.c.l.b16 %v1120
      %v1161 = vunpack.c.l.b16 %v1121
      %v1162 = vpack.c.b16 %v1147, %v1146
      %v1163 = vpack.c.b16 %v1149, %v1148
      %v1164 = vpack.c.b16 %v1151, %v1150
      %v1165 = vpack.c.b16 %v1153, %v1152
      %v1166 = vpack.c.b16 %v1155, %v1154
      %v1167 = vpack.c.b16 %v1157, %v1156
      %v1168 = vpack.c.b16 %v1159, %v1158
      %v1169 = vpack.c.b16 %v1161, %v1160
      %vm1170 = vcmask 523264
      %v1172 = vsel %vm1170, %v1162, 0
      %v1175 = vsel %vm1170, %v1163, 0
      %v1178 = vsel %vm1170, %v1164, 0
      %v1181 = vsel %vm1170, %v1165, 0
      %v1184 = vsel %vm1170, %v1166, 0
      %v1187 = vsel %vm1170, %v1167, 0
      %v1190 = vsel %vm1170, %v1168, 0
      %v1193 = vsel %vm1170, %v1169, 0
      %1195 = vmatprep.subr.bf16.mxu0 0
      %1196 = vmatpush1.bf16.msra.mxu0 0
      %1197 = vmatprep.subr.bf16.mxu0 0
      %1198 = vmatpush1.bf16.msra.mxu0 0
      %1199 = vmatprep.subr.bf16.mxu0 0
      %1200 = vmatpush1.bf16.msra.mxu0 0
      %1201 = vmatprep.subr.bf16.mxu0 0
      %1202 = vmatpush1.bf16.msra.mxu0 0
      %1203 = vmatprep.subr.bf16.mxu0 %v1129
      %1204 = vmatpush1.bf16.msra.mxu0 %v1128
      %1205 = vmatprep.subr.bf16.mxu0 %v1127
      %1206 = vmatpush1.bf16.msra.mxu0 %v1126
      %1207 = vmatprep.subr.bf16.mxu0 %v1125
      %1208 = vmatpush1.bf16.msra.mxu0 %v1124
      %1209 = vmatprep.subr.bf16.mxu0 %v1123
      %1210 = vmatpush1.bf16.msra.mxu0 %v1122
      %1211 = vmatprep.subr.bf16.mxu0 0
      %1212 = vmatpush2.bf16.msra.mxu0 0
      %1213 = vmatprep.subr.bf16.mxu0 0
      %1214 = vmatpush2.bf16.msra.mxu0 0
      %1215 = vmatprep.subr.bf16.mxu0 0
      %1216 = vmatpush2.bf16.msra.mxu0 0
      %1217 = vmatprep.subr.bf16.mxu0 0
      %1218 = vmatpush2.bf16.msra.mxu0 0
      %1219 = vmatprep.subr.bf16.mxu0 0
      %1220 = vmatpush2.bf16.msra.mxu0 0
      %1221 = vmatprep.subr.bf16.mxu0 0
      %1222 = vmatpush2.bf16.msra.mxu0 0
      %1223 = vmatprep.subr.bf16.mxu0 0
      %1224 = vmatpush2.bf16.msra.mxu0 0
      %1225 = vmatprep.subr.bf16.mxu0 0
      %1226 = vmatpush2.bf16.msra.mxu0 0
      %1227 = vmatprep.mubr.bf16.mxu0 0
      %1228 = vmatmul.mubr.bf16.gmra.mxu0 %v1172
      %v1229 = vpop.f32.mrf.mxu0
      %v1230 = vadd.f32 0.0, %v1229
      %v1231 = vpop.f32.mrf.mxu0
      %v1232 = vadd.f32 0.0, %v1231
      %v1233 = vpop.f32.mrf.mxu0
      %v1234 = vadd.f32 0.0, %v1233
      %v1235 = vpop.f32.mrf.mxu0
      %v1236 = vadd.f32 0.0, %v1235
      %1237 = vmatprep.mubr.bf16.mxu0 0
      %1238 = vmatmul.mubr.bf16.gmra.mxu0 %v1175
      %v1239 = vpop.f32.mrf.mxu0
      %v1240 = vadd.f32 0.0, %v1239
      %v1241 = vpop.f32.mrf.mxu0
      %v1242 = vadd.f32 0.0, %v1241
      %v1243 = vpop.f32.mrf.mxu0
      %v1244 = vadd.f32 0.0, %v1243
      %v1245 = vpop.f32.mrf.mxu0
      %v1246 = vadd.f32 0.0, %v1245
      %1247 = vmatprep.mubr.bf16.mxu0 0
      %1248 = vmatmul.mubr.bf16.gmra.mxu0 %v1178
      %v1249 = vpop.f32.mrf.mxu0
      %v1250 = vadd.f32 0.0, %v1249
      %v1251 = vpop.f32.mrf.mxu0
      %v1252 = vadd.f32 0.0, %v1251
      %v1253 = vpop.f32.mrf.mxu0
      %v1254 = vadd.f32 0.0, %v1253
      %v1255 = vpop.f32.mrf.mxu0
      %v1256 = vadd.f32 0.0, %v1255
      %1257 = vmatprep.mubr.bf16.mxu0 0
      %1258 = vmatmul.mubr.bf16.gmra.mxu0 %v1181
      %v1259 = vpop.f32.mrf.mxu0
      %v1260 = vadd.f32 0.0, %v1259
      %v1261 = vpop.f32.mrf.mxu0
      %v1262 = vadd.f32 0.0, %v1261
      %v1263 = vpop.f32.mrf.mxu0
      %v1264 = vadd.f32 0.0, %v1263
      %v1265 = vpop.f32.mrf.mxu0
      %v1266 = vadd.f32 0.0, %v1265
      %1267 = vmatprep.mubr.bf16.mxu0 0
      %1268 = vmatmul.mubr.bf16.gmra.mxu0 %v1184
      %v1269 = vpop.f32.mrf.mxu0
      %v1270 = vadd.f32 0.0, %v1269
      %v1271 = vpop.f32.mrf.mxu0
      %v1272 = vadd.f32 0.0, %v1271
      %v1273 = vpop.f32.mrf.mxu0
      %v1274 = vadd.f32 0.0, %v1273
      %v1275 = vpop.f32.mrf.mxu0
      %v1276 = vadd.f32 0.0, %v1275
      %1277 = vmatprep.mubr.bf16.mxu0 0
      %1278 = vmatmul.mubr.bf16.gmra.mxu0 %v1187
      %v1279 = vpop.f32.mrf.mxu0
      %v1280 = vadd.f32 0.0, %v1279
      %v1281 = vpop.f32.mrf.mxu0
      %v1282 = vadd.f32 0.0, %v1281
      %v1283 = vpop.f32.mrf.mxu0
      %v1284 = vadd.f32 0.0, %v1283
      %v1285 = vpop.f32.mrf.mxu0
      %v1286 = vadd.f32 0.0, %v1285
      %1287 = vmatprep.mubr.bf16.mxu0 0
      %1288 = vmatmul.mubr.bf16.gmra.mxu0 %v1190
      %v1289 = vpop.f32.mrf.mxu0
      %v1290 = vadd.f32 0.0, %v1289
      %v1291 = vpop.f32.mrf.mxu0
      %v1292 = vadd.f32 0.0, %v1291
      %v1293 = vpop.f32.mrf.mxu0
      %v1294 = vadd.f32 0.0, %v1293
      %v1295 = vpop.f32.mrf.mxu0
      %v1296 = vadd.f32 0.0, %v1295
      %1297 = vmatprep.mubr.bf16.mxu0 0
      %1298 = vmatmul.mubr.bf16.gmra.mxu0 %v1193
      %v1299 = vpop.f32.mrf.mxu0
      %v1300 = vadd.f32 0.0, %v1299
      %v1301 = vpop.f32.mrf.mxu0
      %v1302 = vadd.f32 0.0, %v1301
      %v1303 = vpop.f32.mrf.mxu0
      %v1304 = vadd.f32 0.0, %v1303
      %v1305 = vpop.f32.mrf.mxu0
      %v1306 = vadd.f32 0.0, %v1305
      %1307 = vdwg.mxu0
      %v1308 = vld [vmem:[%s5] sm:$0xff]
      %v1309 = vld [vmem:[%s5 + $0x8] sm:$0xff]
      %v1310 = vld [vmem:[%s5 + $0x10] sm:$0xff]
      %v1311 = vld [vmem:[%s5 + $0x18] sm:$0xff]
      %v1312 = vld [vmem:[%s5 + $0x20] sm:$0xff]
      %v1313 = vld [vmem:[%s5 + $0x28] sm:$0xff]
      %v1314 = vld [vmem:[%s5 + $0x30] sm:$0xff]
      %v1315 = vld [vmem:[%s5 + $0x38] sm:$0xff]
      %v1316 = vld [vmem:[%s5 + $0x40] sm:$0xff]
      %v1317 = vld [vmem:[%s5 + $0x48] sm:$0xff]
      %v1318 = vld [vmem:[%s5 + $0x50] sm:$0xff]
      %v1319 = vld [vmem:[%s5 + $0x58] sm:$0xff]
      %v1320 = vld [vmem:[%s5 + $0x60] sm:$0xff]
      %v1321 = vld [vmem:[%s5 + $0x68] sm:$0xff]
      %v1322 = vld [vmem:[%s5 + $0x70] sm:$0xff]
      %v1323 = vld [vmem:[%s5 + $0x78] sm:$0xff]
      %1325 = vset.pattern.permute.xlu0 0
      %1326 = vperm.xlu0 %1325, %v1308
      %v1327 = vpop.permute.xlu0 %1326
      %1330 = vset.pattern.permute.xlu0 0
      %1331 = vperm.xlu0 %1330, %v1309
      %v1332 = vpop.permute.xlu0 %1331
      %1335 = vset.pattern.permute.xlu0 0
      %1336 = vperm.xlu0 %1335, %v1310
      %v1337 = vpop.permute.xlu0 %1336
      %1340 = vset.pattern.permute.xlu0 0
      %1341 = vperm.xlu0 %1340, %v1311
      %v1342 = vpop.permute.xlu0 %1341
      %1345 = vset.pattern.permute.xlu0 0
      %1346 = vperm.xlu0 %1345, %v1312
      %v1347 = vpop.permute.xlu0 %1346
      %1350 = vset.pattern.permute.xlu0 0
      %1351 = vperm.xlu0 %1350, %v1313
      %v1352 = vpop.permute.xlu0 %1351
      %1355 = vset.pattern.permute.xlu0 0
      %1356 = vperm.xlu0 %1355, %v1314
      %v1357 = vpop.permute.xlu0 %1356
      %1360 = vset.pattern.permute.xlu0 0
      %1361 = vperm.xlu0 %1360, %v1315
      %v1362 = vpop.permute.xlu0 %1361
      %1365 = vset.pattern.permute.xlu0 0
      %1366 = vperm.xlu0 %1365, %v1316
      %v1367 = vpop.permute.xlu0 %1366
      %1370 = vset.pattern.permute.xlu0 0
      %1371 = vperm.xlu0 %1370, %v1317
      %v1372 = vpop.permute.xlu0 %1371
      %1375 = vset.pattern.permute.xlu0 0
      %1376 = vperm.xlu0 %1375, %v1318
      %v1377 = vpop.permute.xlu0 %1376
      %1380 = vset.pattern.permute.xlu0 0
      %1381 = vperm.xlu0 %1380, %v1319
      %v1382 = vpop.permute.xlu0 %1381
      %1385 = vset.pattern.permute.xlu0 0
      %1386 = vperm.xlu0 %1385, %v1320
      %v1387 = vpop.permute.xlu0 %1386
      %1390 = vset.pattern.permute.xlu0 0
      %1391 = vperm.xlu0 %1390, %v1321
      %v1392 = vpop.permute.xlu0 %1391
      %1395 = vset.pattern.permute.xlu0 0
      %1396 = vperm.xlu0 %1395, %v1322
      %v1397 = vpop.permute.xlu0 %1396
      %1400 = vset.pattern.permute.xlu0 0
      %1401 = vperm.xlu0 %1400, %v1323
      %v1402 = vpop.permute.xlu0 %1401
      %v1404 = vmul.f32 %v1230, %v1327
      %v1405 = vmul.f32 %v1232, %v1327
      %v1406 = vmul.f32 %v1234, %v1332
      %v1407 = vmul.f32 %v1236, %v1332
      %v1408 = vmul.f32 %v1240, %v1337
      %v1409 = vmul.f32 %v1242, %v1337
      %v1410 = vmul.f32 %v1244, %v1342
      %v1411 = vmul.f32 %v1246, %v1342
      %v1412 = vmul.f32 %v1250, %v1347
      %v1413 = vmul.f32 %v1252, %v1347
      %v1414 = vmul.f32 %v1254, %v1352
      %v1415 = vmul.f32 %v1256, %v1352
      %v1416 = vmul.f32 %v1260, %v1357
      %v1417 = vmul.f32 %v1262, %v1357
      %v1418 = vmul.f32 %v1264, %v1362
      %v1419 = vmul.f32 %v1266, %v1362
      %v1420 = vmul.f32 %v1270, %v1367
      %v1421 = vmul.f32 %v1272, %v1367
      %v1422 = vmul.f32 %v1274, %v1372
      %v1423 = vmul.f32 %v1276, %v1372
      %v1424 = vmul.f32 %v1280, %v1377
      %v1425 = vmul.f32 %v1282, %v1377
      %v1426 = vmul.f32 %v1284, %v1382
      %v1427 = vmul.f32 %v1286, %v1382
      %v1428 = vmul.f32 %v1290, %v1387
      %v1429 = vmul.f32 %v1292, %v1387
      %v1430 = vmul.f32 %v1294, %v1392
      %v1431 = vmul.f32 %v1296, %v1392
      %v1432 = vmul.f32 %v1300, %v1397
      %v1433 = vmul.f32 %v1302, %v1397
      %v1434 = vmul.f32 %v1304, %v1402
      %v1435 = vmul.f32 %v1306, %v1402
      %v1436 = vld [vmem:[%s6] sm:$0xff]
      %v1437 = vld [vmem:[%s6 + $0x8] sm:$0xff]
      %v1438 = vld [vmem:[%s6 + $0x10] sm:$0xff]
      %v1439 = vld [vmem:[%s6 + $0x18] sm:$0xff]
      %v1440 = vld [vmem:[%s6 + $0x20] sm:$0xff]
      %v1441 = vld [vmem:[%s6 + $0x28] sm:$0xff]
      %v1442 = vld [vmem:[%s6 + $0x30] sm:$0xff]
      %v1443 = vld [vmem:[%s6 + $0x38] sm:$0xff]
      %v1444 = vld [vmem:[%s6 + $0x40] sm:$0xff]
      %v1445 = vld [vmem:[%s6 + $0x48] sm:$0xff]
      %v1446 = vld [vmem:[%s6 + $0x50] sm:$0xff]
      %v1447 = vld [vmem:[%s6 + $0x58] sm:$0xff]
      %v1448 = vld [vmem:[%s6 + $0x60] sm:$0xff]
      %v1449 = vld [vmem:[%s6 + $0x68] sm:$0xff]
      %v1450 = vld [vmem:[%s6 + $0x70] sm:$0xff]
      %v1451 = vld [vmem:[%s6 + $0x78] sm:$0xff]
      %1453 = vset.pattern.permute.xlu0 0
      %1454 = vperm.xlu0 %1453, %v1436
      %v1455 = vpop.permute.xlu0 %1454
      %1458 = vset.pattern.permute.xlu0 0
      %1459 = vperm.xlu0 %1458, %v1437
      %v1460 = vpop.permute.xlu0 %1459
      %1463 = vset.pattern.permute.xlu0 0
      %1464 = vperm.xlu0 %1463, %v1438
      %v1465 = vpop.permute.xlu0 %1464
      %1468 = vset.pattern.permute.xlu0 0
      %1469 = vperm.xlu0 %1468, %v1439
      %v1470 = vpop.permute.xlu0 %1469
      %1473 = vset.pattern.permute.xlu0 0
      %1474 = vperm.xlu0 %1473, %v1440
      %v1475 = vpop.permute.xlu0 %1474
      %1478 = vset.pattern.permute.xlu0 0
      %1479 = vperm.xlu0 %1478, %v1441
      %v1480 = vpop.permute.xlu0 %1479
      %1483 = vset.pattern.permute.xlu0 0
      %1484 = vperm.xlu0 %1483, %v1442
      %v1485 = vpop.permute.xlu0 %1484
      %1488 = vset.pattern.permute.xlu0 0
      %1489 = vperm.xlu0 %1488, %v1443
      %v1490 = vpop.permute.xlu0 %1489
      %1493 = vset.pattern.permute.xlu0 0
      %1494 = vperm.xlu0 %1493, %v1444
      %v1495 = vpop.permute.xlu0 %1494
      %1498 = vset.pattern.permute.xlu0 0
      %1499 = vperm.xlu0 %1498, %v1445
      %v1500 = vpop.permute.xlu0 %1499
      %1503 = vset.pattern.permute.xlu0 0
      %1504 = vperm.xlu0 %1503, %v1446
      %v1505 = vpop.permute.xlu0 %1504
      %1508 = vset.pattern.permute.xlu0 0
      %1509 = vperm.xlu0 %1508, %v1447
      %v1510 = vpop.permute.xlu0 %1509
      %1513 = vset.pattern.permute.xlu0 0
      %1514 = vperm.xlu0 %1513, %v1448
      %v1515 = vpop.permute.xlu0 %1514
      %1518 = vset.pattern.permute.xlu0 0
      %1519 = vperm.xlu0 %1518, %v1449
      %v1520 = vpop.permute.xlu0 %1519
      %1523 = vset.pattern.permute.xlu0 0
      %1524 = vperm.xlu0 %1523, %v1450
      %v1525 = vpop.permute.xlu0 %1524
      %1528 = vset.pattern.permute.xlu0 0
      %1529 = vperm.xlu0 %1528, %v1451
      %v1530 = vpop.permute.xlu0 %1529
      %v1532 = vadd.f32 %v1404, %v1455
      %v1533 = vadd.f32 %v1405, %v1455
      %v1534 = vadd.f32 %v1406, %v1460
      %v1535 = vadd.f32 %v1407, %v1460
      %v1536 = vadd.f32 %v1408, %v1465
      %v1537 = vadd.f32 %v1409, %v1465
      %v1538 = vadd.f32 %v1410, %v1470
      %v1539 = vadd.f32 %v1411, %v1470
      %v1540 = vadd.f32 %v1412, %v1475
      %v1541 = vadd.f32 %v1413, %v1475
      %v1542 = vadd.f32 %v1414, %v1480
      %v1543 = vadd.f32 %v1415, %v1480
      %v1544 = vadd.f32 %v1416, %v1485
      %v1545 = vadd.f32 %v1417, %v1485
      %v1546 = vadd.f32 %v1418, %v1490
      %v1547 = vadd.f32 %v1419, %v1490
      %v1548 = vadd.f32 %v1420, %v1495
      %v1549 = vadd.f32 %v1421, %v1495
      %v1550 = vadd.f32 %v1422, %v1500
      %v1551 = vadd.f32 %v1423, %v1500
      %v1552 = vadd.f32 %v1424, %v1505
      %v1553 = vadd.f32 %v1425, %v1505
      %v1554 = vadd.f32 %v1426, %v1510
      %v1555 = vadd.f32 %v1427, %v1510
      %v1556 = vadd.f32 %v1428, %v1515
      %v1557 = vadd.f32 %v1429, %v1515
      %v1558 = vadd.f32 %v1430, %v1520
      %v1559 = vadd.f32 %v1431, %v1520
      %v1560 = vadd.f32 %v1432, %v1525
      %v1561 = vadd.f32 %v1433, %v1525
      %v1562 = vadd.f32 %v1434, %v1530
      %v1563 = vadd.f32 %v1435, %v1530
      %v1564 = vmax.f32 %v1532, 0.0
      %v1565 = vmax.f32 %v1533, 0.0
      %v1566 = vmax.f32 %v1534, 0.0
      %v1567 = vmax.f32 %v1535, 0.0
      %v1568 = vmax.f32 %v1536, 0.0
      %v1569 = vmax.f32 %v1537, 0.0
      %v1570 = vmax.f32 %v1538, 0.0
      %v1571 = vmax.f32 %v1539, 0.0
      %v1572 = vmax.f32 %v1540, 0.0
      %v1573 = vmax.f32 %v1541, 0.0
      %v1574 = vmax.f32 %v1542, 0.0
      %v1575 = vmax.f32 %v1543, 0.0
      %v1576 = vmax.f32 %v1544, 0.0
      %v1577 = vmax.f32 %v1545, 0.0
      %v1578 = vmax.f32 %v1546, 0.0
      %v1579 = vmax.f32 %v1547, 0.0
      %v1580 = vmax.f32 %v1548, 0.0
      %v1581 = vmax.f32 %v1549, 0.0
      %v1582 = vmax.f32 %v1550, 0.0
      %v1583 = vmax.f32 %v1551, 0.0
      %v1584 = vmax.f32 %v1552, 0.0
      %v1585 = vmax.f32 %v1553, 0.0
      %v1586 = vmax.f32 %v1554, 0.0
      %v1587 = vmax.f32 %v1555, 0.0
      %v1588 = vmax.f32 %v1556, 0.0
      %v1589 = vmax.f32 %v1557, 0.0
      %v1590 = vmax.f32 %v1558, 0.0
      %v1591 = vmax.f32 %v1559, 0.0
      %v1592 = vmax.f32 %v1560, 0.0
      %v1593 = vmax.f32 %v1561, 0.0
      %v1594 = vmax.f32 %v1562, 0.0
      %v1595 = vmax.f32 %v1563, 0.0
      %v1596 = vld [vmem:[%s7] sm:$0xf]
      %v1597 = vld [vmem:[%s7 + $0x4] sm:$0xf]
      %v1598 = vld [vmem:[%s7 + $0x8] sm:$0xf]
      %v1599 = vld [vmem:[%s7 + $0xc] sm:$0xf]
      %v1600 = vld [vmem:[%s7 + $0x10] sm:$0xf]
      %v1601 = vld [vmem:[%s7 + $0x14] sm:$0xf]
      %v1602 = vld [vmem:[%s7 + $0x18] sm:$0xf]
      %v1603 = vld [vmem:[%s7 + $0x1c] sm:$0xf]
      %v1604 = vld [vmem:[%s7 + $0x20] sm:$0xf]
      %v1605 = vld [vmem:[%s7 + $0x24] sm:$0xf]
      %v1606 = vld [vmem:[%s7 + $0x28] sm:$0xf]
      %v1607 = vld [vmem:[%s7 + $0x2c] sm:$0xf]
      %v1608 = vld [vmem:[%s7 + $0x30] sm:$0xf]
      %v1609 = vld [vmem:[%s7 + $0x34] sm:$0xf]
      %v1610 = vld [vmem:[%s7 + $0x38] sm:$0xf]
      %v1611 = vld [vmem:[%s7 + $0x3c] sm:$0xf]
      %v1612 = vld [vmem:[%s7 + $0x40] sm:$0xf]
      %v1613 = vld [vmem:[%s7 + $0x44] sm:$0xf]
      %v1614 = vld [vmem:[%s7 + $0x48] sm:$0xf]
      %v1615 = vld [vmem:[%s7 + $0x4c] sm:$0xf]
      %v1616 = vld [vmem:[%s7 + $0x50] sm:$0xf]
      %v1617 = vld [vmem:[%s7 + $0x54] sm:$0xf]
      %v1618 = vld [vmem:[%s7 + $0x58] sm:$0xf]
      %v1619 = vld [vmem:[%s7 + $0x5c] sm:$0xf]
      %v1620 = vld [vmem:[%s7 + $0x60] sm:$0xf]
      %v1621 = vld [vmem:[%s7 + $0x64] sm:$0xf]
      %v1622 = vld [vmem:[%s7 + $0x68] sm:$0xf]
      %v1623 = vld [vmem:[%s7 + $0x6c] sm:$0xf]
      %v1624 = vld [vmem:[%s7 + $0x70] sm:$0xf]
      %v1625 = vld [vmem:[%s7 + $0x74] sm:$0xf]
      %v1626 = vld [vmem:[%s7 + $0x78] sm:$0xf]
      %v1627 = vld [vmem:[%s7 + $0x7c] sm:$0xf]
      %v1628 = vld [vmem:[%s7 + $0x80] sm:$0xf]
      %v1629 = vld [vmem:[%s7 + $0x84] sm:$0xf]
      %v1630 = vld [vmem:[%s7 + $0x88] sm:$0xf]
      %v1631 = vld [vmem:[%s7 + $0x8c] sm:$0xf]
      %v1632 = vld [vmem:[%s7 + $0x90] sm:$0xf]
      %v1633 = vld [vmem:[%s7 + $0x94] sm:$0xf]
      %v1634 = vld [vmem:[%s7 + $0x98] sm:$0xf]
      %v1635 = vld [vmem:[%s7 + $0x9c] sm:$0xf]
      %v1636 = vld [vmem:[%s7 + $0xa0] sm:$0xf]
      %v1637 = vld [vmem:[%s7 + $0xa4] sm:$0xf]
      %v1638 = vld [vmem:[%s7 + $0xa8] sm:$0xf]
      %v1639 = vld [vmem:[%s7 + $0xac] sm:$0xf]
      %v1640 = vld [vmem:[%s7 + $0xb0] sm:$0xf]
      %v1641 = vld [vmem:[%s7 + $0xb4] sm:$0xf]
      %v1642 = vld [vmem:[%s7 + $0xb8] sm:$0xf]
      %v1643 = vld [vmem:[%s7 + $0xbc] sm:$0xf]
      %v1644 = vld [vmem:[%s7 + $0xc0] sm:$0xf]
      %v1645 = vld [vmem:[%s7 + $0xc4] sm:$0xf]
      %v1646 = vld [vmem:[%s7 + $0xc8] sm:$0xf]
      %v1647 = vld [vmem:[%s7 + $0xcc] sm:$0xf]
      %v1648 = vld [vmem:[%s7 + $0xd0] sm:$0xf]
      %v1649 = vld [vmem:[%s7 + $0xd4] sm:$0xf]
      %v1650 = vld [vmem:[%s7 + $0xd8] sm:$0xf]
      %v1651 = vld [vmem:[%s7 + $0xdc] sm:$0xf]
      %v1652 = vld [vmem:[%s7 + $0xe0] sm:$0xf]
      %v1653 = vld [vmem:[%s7 + $0xe4] sm:$0xf]
      %v1654 = vld [vmem:[%s7 + $0xe8] sm:$0xf]
      %v1655 = vld [vmem:[%s7 + $0xec] sm:$0xf]
      %v1656 = vld [vmem:[%s7 + $0xf0] sm:$0xf]
      %v1657 = vld [vmem:[%s7 + $0xf4] sm:$0xf]
      %v1658 = vld [vmem:[%s7 + $0xf8] sm:$0xf]
      %v1659 = vld [vmem:[%s7 + $0xfc] sm:$0xf]
      %v1660 = vld [vmem:[%s7 + $0x100] sm:$0xf]
      %v1661 = vld [vmem:[%s7 + $0x104] sm:$0xf]
      %v1662 = vld [vmem:[%s7 + $0x108] sm:$0xf]
      %v1663 = vld [vmem:[%s7 + $0x10c] sm:$0xf]
      %v1664 = vld [vmem:[%s7 + $0x110] sm:$0xf]
      %v1665 = vld [vmem:[%s7 + $0x114] sm:$0xf]
      %v1666 = vld [vmem:[%s7 + $0x118] sm:$0xf]
      %v1667 = vld [vmem:[%s7 + $0x11c] sm:$0xf]
      %v1668 = vld [vmem:[%s7 + $0x120] sm:$0xf]
      %v1669 = vld [vmem:[%s7 + $0x124] sm:$0xf]
      %v1670 = vld [vmem:[%s7 + $0x128] sm:$0xf]
      %v1671 = vld [vmem:[%s7 + $0x12c] sm:$0xf]
      %v1672 = vld [vmem:[%s7 + $0x130] sm:$0xf]
      %v1673 = vld [vmem:[%s7 + $0x134] sm:$0xf]
      %v1674 = vld [vmem:[%s7 + $0x138] sm:$0xf]
      %v1675 = vld [vmem:[%s7 + $0x13c] sm:$0xf]
      %v1676 = vld [vmem:[%s7 + $0x140] sm:$0xf]
      %v1677 = vld [vmem:[%s7 + $0x144] sm:$0xf]
      %v1678 = vld [vmem:[%s7 + $0x148] sm:$0xf]
      %v1679 = vld [vmem:[%s7 + $0x14c] sm:$0xf]
      %v1680 = vld [vmem:[%s7 + $0x150] sm:$0xf]
      %v1681 = vld [vmem:[%s7 + $0x154] sm:$0xf]
      %v1682 = vld [vmem:[%s7 + $0x158] sm:$0xf]
      %v1683 = vld [vmem:[%s7 + $0x15c] sm:$0xf]
      %v1684 = vld [vmem:[%s7 + $0x160] sm:$0xf]
      %v1685 = vld [vmem:[%s7 + $0x164] sm:$0xf]
      %v1686 = vld [vmem:[%s7 + $0x168] sm:$0xf]
      %v1687 = vld [vmem:[%s7 + $0x16c] sm:$0xf]
      %v1688 = vld [vmem:[%s7 + $0x170] sm:$0xf]
      %v1689 = vld [vmem:[%s7 + $0x174] sm:$0xf]
      %v1690 = vld [vmem:[%s7 + $0x178] sm:$0xf]
      %v1691 = vld [vmem:[%s7 + $0x17c] sm:$0xf]
      %v1692 = vld [vmem:[%s7 + $0x180] sm:$0xf]
      %v1693 = vld [vmem:[%s7 + $0x184] sm:$0xf]
      %v1694 = vld [vmem:[%s7 + $0x188] sm:$0xf]
      %v1695 = vld [vmem:[%s7 + $0x18c] sm:$0xf]
      %v1696 = vld [vmem:[%s7 + $0x190] sm:$0xf]
      %v1697 = vld [vmem:[%s7 + $0x194] sm:$0xf]
      %v1698 = vld [vmem:[%s7 + $0x198] sm:$0xf]
      %v1699 = vld [vmem:[%s7 + $0x19c] sm:$0xf]
      %v1700 = vld [vmem:[%s7 + $0x1a0] sm:$0xf]
      %v1701 = vld [vmem:[%s7 + $0x1a4] sm:$0xf]
      %v1702 = vld [vmem:[%s7 + $0x1a8] sm:$0xf]
      %v1703 = vld [vmem:[%s7 + $0x1ac] sm:$0xf]
      %v1704 = vld [vmem:[%s7 + $0x1b0] sm:$0xf]
      %v1705 = vld [vmem:[%s7 + $0x1b4] sm:$0xf]
      %v1706 = vld [vmem:[%s7 + $0x1b8] sm:$0xf]
      %v1707 = vld [vmem:[%s7 + $0x1bc] sm:$0xf]
      %v1708 = vld [vmem:[%s7 + $0x1c0] sm:$0xf]
      %v1709 = vld [vmem:[%s7 + $0x1c4] sm:$0xf]
      %v1710 = vld [vmem:[%s7 + $0x1c8] sm:$0xf]
      %v1711 = vld [vmem:[%s7 + $0x1cc] sm:$0xf]
      %v1712 = vld [vmem:[%s7 + $0x1d0] sm:$0xf]
      %v1713 = vld [vmem:[%s7 + $0x1d4] sm:$0xf]
      %v1714 = vld [vmem:[%s7 + $0x1d8] sm:$0xf]
      %v1715 = vld [vmem:[%s7 + $0x1dc] sm:$0xf]
      %v1716 = vld [vmem:[%s7 + $0x1e0] sm:$0xf]
      %v1717 = vld [vmem:[%s7 + $0x1e4] sm:$0xf]
      %v1718 = vld [vmem:[%s7 + $0x1e8] sm:$0xf]
      %v1719 = vld [vmem:[%s7 + $0x1ec] sm:$0xf]
      %v1720 = vld [vmem:[%s7 + $0x1f0] sm:$0xf]
      %v1721 = vld [vmem:[%s7 + $0x1f4] sm:$0xf]
      %v1722 = vld [vmem:[%s7 + $0x1f8] sm:$0xf]
      %v1723 = vld [vmem:[%s7 + $0x1fc] sm:$0xf]
      %v1724 = vpack.c.bf16 %v1566, %v1564
      %v1725 = vpack.c.bf16 %v1567, %v1565
      %v1726 = vpack.c.bf16 %v1570, %v1568
      %v1727 = vpack.c.bf16 %v1571, %v1569
      %v1728 = vpack.c.bf16 %v1574, %v1572
      %v1729 = vpack.c.bf16 %v1575, %v1573
      %v1730 = vpack.c.bf16 %v1578, %v1576
      %v1731 = vpack.c.bf16 %v1579, %v1577
      %v1732 = vpack.c.bf16 %v1582, %v1580
      %v1733 = vpack.c.bf16 %v1583, %v1581
      %v1734 = vpack.c.bf16 %v1586, %v1584
      %v1735 = vpack.c.bf16 %v1587, %v1585
      %v1736 = vpack.c.bf16 %v1590, %v1588
      %v1737 = vpack.c.bf16 %v1591, %v1589
      %v1738 = vpack.c.bf16 %v1594, %v1592
      %v1739 = vpack.c.bf16 %v1595, %v1593
      %v1868 = vunpack.c.l.b16 %v1596
      %v1869 = vunpack.c.l.b16 %v1597
      %v1870 = vunpack.c.l.b16 %v1598
      %v1871 = vunpack.c.l.b16 %v1599
      %v1872 = vunpack.c.l.b16 %v1600
      %v1873 = vunpack.c.l.b16 %v1601
      %v1874 = vunpack.c.l.b16 %v1602
      %v1875 = vunpack.c.l.b16 %v1603
      %v1876 = vunpack.c.l.b16 %v1604
      %v1877 = vunpack.c.l.b16 %v1605
      %v1878 = vunpack.c.l.b16 %v1606
      %v1879 = vunpack.c.l.b16 %v1607
      %v1880 = vunpack.c.l.b16 %v1608
      %v1881 = vunpack.c.l.b16 %v1609
      %v1882 = vunpack.c.l.b16 %v1610
      %v1883 = vunpack.c.l.b16 %v1611
      %v1884 = vunpack.c.l.b16 %v1612
      %v1885 = vunpack.c.l.b16 %v1613
      %v1886 = vunpack.c.l.b16 %v1614
      %v1887 = vunpack.c.l.b16 %v1615
      %v1888 = vunpack.c.l.b16 %v1616
      %v1889 = vunpack.c.l.b16 %v1617
      %v1890 = vunpack.c.l.b16 %v1618
      %v1891 = vunpack.c.l.b16 %v1619
      %v1892 = vunpack.c.l.b16 %v1620
      %v1893 = vunpack.c.l.b16 %v1621
      %v1894 = vunpack.c.l.b16 %v1622
      %v1895 = vunpack.c.l.b16 %v1623
      %v1896 = vunpack.c.l.b16 %v1624
      %v1897 = vunpack.c.l.b16 %v1625
      %v1898 = vunpack.c.l.b16 %v1626
      %v1899 = vunpack.c.l.b16 %v1627
      %v1900 = vunpack.c.l.b16 %v1628
      %v1901 = vunpack.c.l.b16 %v1629
      %v1902 = vunpack.c.l.b16 %v1630
      %v1903 = vunpack.c.l.b16 %v1631
      %v1904 = vunpack.c.l.b16 %v1632
      %v1905 = vunpack.c.l.b16 %v1633
      %v1906 = vunpack.c.l.b16 %v1634
      %v1907 = vunpack.c.l.b16 %v1635
      %v1908 = vunpack.c.l.b16 %v1636
      %v1909 = vunpack.c.l.b16 %v1637
      %v1910 = vunpack.c.l.b16 %v1638
      %v1911 = vunpack.c.l.b16 %v1639
      %v1912 = vunpack.c.l.b16 %v1640
      %v1913 = vunpack.c.l.b16 %v1641
      %v1914 = vunpack.c.l.b16 %v1642
      %v1915 = vunpack.c.l.b16 %v1643
      %v1916 = vunpack.c.l.b16 %v1644
      %v1917 = vunpack.c.l.b16 %v1645
      %v1918 = vunpack.c.l.b16 %v1646
      %v1919 = vunpack.c.l.b16 %v1647
      %v1920 = vunpack.c.l.b16 %v1648
      %v1921 = vunpack.c.l.b16 %v1649
      %v1922 = vunpack.c.l.b16 %v1650
      %v1923 = vunpack.c.l.b16 %v1651
      %v1924 = vunpack.c.l.b16 %v1652
      %v1925 = vunpack.c.l.b16 %v1653
      %v1926 = vunpack.c.l.b16 %v1654
      %v1927 = vunpack.c.l.b16 %v1655
      %v1928 = vunpack.c.l.b16 %v1656
      %v1929 = vunpack.c.l.b16 %v1657
      %v1930 = vunpack.c.l.b16 %v1658
      %v1931 = vunpack.c.l.b16 %v1659
      %v1932 = vunpack.c.l.b16 %v1660
      %v1933 = vunpack.c.l.b16 %v1661
      %v1934 = vunpack.c.l.b16 %v1662
      %v1935 = vunpack.c.l.b16 %v1663
      %v1936 = vunpack.c.l.b16 %v1664
      %v1937 = vunpack.c.l.b16 %v1665
      %v1938 = vunpack.c.l.b16 %v1666
      %v1939 = vunpack.c.l.b16 %v1667
      %v1940 = vunpack.c.l.b16 %v1668
      %v1941 = vunpack.c.l.b16 %v1669
      %v1942 = vunpack.c.l.b16 %v1670
      %v1943 = vunpack.c.l.b16 %v1671
      %v1944 = vunpack.c.l.b16 %v1672
      %v1945 = vunpack.c.l.b16 %v1673
      %v1946 = vunpack.c.l.b16 %v1674
      %v1947 = vunpack.c.l.b16 %v1675
      %v1948 = vunpack.c.l.b16 %v1676
      %v1949 = vunpack.c.l.b16 %v1677
      %v1950 = vunpack.c.l.b16 %v1678
      %v1951 = vunpack.c.l.b16 %v1679
      %v1952 = vunpack.c.l.b16 %v1680
      %v1953 = vunpack.c.l.b16 %v1681
      %v1954 = vunpack.c.l.b16 %v1682
      %v1955 = vunpack.c.l.b16 %v1683
      %v1956 = vunpack.c.l.b16 %v1684
      %v1957 = vunpack.c.l.b16 %v1685
      %v1958 = vunpack.c.l.b16 %v1686
      %v1959 = vunpack.c.l.b16 %v1687
      %v1960 = vunpack.c.l.b16 %v1688
      %v1961 = vunpack.c.l.b16 %v1689
      %v1962 = vunpack.c.l.b16 %v1690
      %v1963 = vunpack.c.l.b16 %v1691
      %v1964 = vunpack.c.l.b16 %v1692
      %v1965 = vunpack.c.l.b16 %v1693
      %v1966 = vunpack.c.l.b16 %v1694
      %v1967 = vunpack.c.l.b16 %v1695
      %v1968 = vunpack.c.l.b16 %v1696
      %v1969 = vunpack.c.l.b16 %v1697
      %v1970 = vunpack.c.l.b16 %v1698
      %v1971 = vunpack.c.l.b16 %v1699
      %v1972 = vunpack.c.l.b16 %v1700
      %v1973 = vunpack.c.l.b16 %v1701
      %v1974 = vunpack.c.l.b16 %v1702
      %v1975 = vunpack.c.l.b16 %v1703
      %v1976 = vunpack.c.l.b16 %v1704
      %v1977 = vunpack.c.l.b16 %v1705
      %v1978 = vunpack.c.l.b16 %v1706
      %v1979 = vunpack.c.l.b16 %v1707
      %v1980 = vunpack.c.l.b16 %v1708
      %v1981 = vunpack.c.l.b16 %v1709
      %v1982 = vunpack.c.l.b16 %v1710
      %v1983 = vunpack.c.l.b16 %v1711
      %v1984 = vunpack.c.l.b16 %v1712
      %v1985 = vunpack.c.l.b16 %v1713
      %v1986 = vunpack.c.l.b16 %v1714
      %v1987 = vunpack.c.l.b16 %v1715
      %v1988 = vunpack.c.l.b16 %v1716
      %v1989 = vunpack.c.l.b16 %v1717
      %v1990 = vunpack.c.l.b16 %v1718
      %v1991 = vunpack.c.l.b16 %v1719
      %v1992 = vunpack.c.l.b16 %v1720
      %v1993 = vunpack.c.l.b16 %v1721
      %v1994 = vunpack.c.l.b16 %v1722
      %v1995 = vunpack.c.l.b16 %v1723
      %v1996 = vpack.c.b16 %v1869, %v1868
      %v1997 = vpack.c.b16 %v1871, %v1870
      %v1998 = vpack.c.b16 %v1873, %v1872
      %v1999 = vpack.c.b16 %v1875, %v1874
      %v2000 = vpack.c.b16 %v1877, %v1876
      %v2001 = vpack.c.b16 %v1879, %v1878
      %v2002 = vpack.c.b16 %v1881, %v1880
      %v2003 = vpack.c.b16 %v1883, %v1882
      %v2004 = vpack.c.b16 %v1885, %v1884
      %v2005 = vpack.c.b16 %v1887, %v1886
      %v2006 = vpack.c.b16 %v1889, %v1888
      %v2007 = vpack.c.b16 %v1891, %v1890
      %v2008 = vpack.c.b16 %v1893, %v1892
      %v2009 = vpack.c.b16 %v1895, %v1894
      %v2010 = vpack.c.b16 %v1897, %v1896
      %v2011 = vpack.c.b16 %v1899, %v1898
      %v2012 = vpack.c.b16 %v1901, %v1900
      %v2013 = vpack.c.b16 %v1903, %v1902
      %v2014 = vpack.c.b16 %v1905, %v1904
      %v2015 = vpack.c.b16 %v1907, %v1906
      %v2016 = vpack.c.b16 %v1909, %v1908
      %v2017 = vpack.c.b16 %v1911, %v1910
      %v2018 = vpack.c.b16 %v1913, %v1912
      %v2019 = vpack.c.b16 %v1915, %v1914
      %v2020 = vpack.c.b16 %v1917, %v1916
      %v2021 = vpack.c.b16 %v1919, %v1918
      %v2022 = vpack.c.b16 %v1921, %v1920
      %v2023 = vpack.c.b16 %v1923, %v1922
      %v2024 = vpack.c.b16 %v1925, %v1924
      %v2025 = vpack.c.b16 %v1927, %v1926
      %v2026 = vpack.c.b16 %v1929, %v1928
      %v2027 = vpack.c.b16 %v1931, %v1930
      %v2028 = vpack.c.b16 %v1933, %v1932
      %v2029 = vpack.c.b16 %v1935, %v1934
      %v2030 = vpack.c.b16 %v1937, %v1936
      %v2031 = vpack.c.b16 %v1939, %v1938
      %v2032 = vpack.c.b16 %v1941, %v1940
      %v2033 = vpack.c.b16 %v1943, %v1942
      %v2034 = vpack.c.b16 %v1945, %v1944
      %v2035 = vpack.c.b16 %v1947, %v1946
      %v2036 = vpack.c.b16 %v1949, %v1948
      %v2037 = vpack.c.b16 %v1951, %v1950
      %v2038 = vpack.c.b16 %v1953, %v1952
      %v2039 = vpack.c.b16 %v1955, %v1954
      %v2040 = vpack.c.b16 %v1957, %v1956
      %v2041 = vpack.c.b16 %v1959, %v1958
      %v2042 = vpack.c.b16 %v1961, %v1960
      %v2043 = vpack.c.b16 %v1963, %v1962
      %v2044 = vpack.c.b16 %v1965, %v1964
      %v2045 = vpack.c.b16 %v1967, %v1966
      %v2046 = vpack.c.b16 %v1969, %v1968
      %v2047 = vpack.c.b16 %v1971, %v1970
      %v2048 = vpack.c.b16 %v1973, %v1972
      %v2049 = vpack.c.b16 %v1975, %v1974
      %v2050 = vpack.c.b16 %v1977, %v1976
      %v2051 = vpack.c.b16 %v1979, %v1978
      %v2052 = vpack.c.b16 %v1981, %v1980
      %v2053 = vpack.c.b16 %v1983, %v1982
      %v2054 = vpack.c.b16 %v1985, %v1984
      %v2055 = vpack.c.b16 %v1987, %v1986
      %v2056 = vpack.c.b16 %v1989, %v1988
      %v2057 = vpack.c.b16 %v1991, %v1990
      %v2058 = vpack.c.b16 %v1993, %v1992
      %v2059 = vpack.c.b16 %v1995, %v1994
      %2124 = vmatprep.subr.bf16.mxu0 %v1739
      %2125 = vmatpush1.bf16.msra.mxu0 %v1738
      %2126 = vmatprep.subr.bf16.mxu0 %v1737
      %2127 = vmatpush1.bf16.msra.mxu0 %v1736
      %2128 = vmatprep.subr.bf16.mxu0 %v1735
      %2129 = vmatpush1.bf16.msra.mxu0 %v1734
      %2130 = vmatprep.subr.bf16.mxu0 %v1733
      %2131 = vmatpush1.bf16.msra.mxu0 %v1732
      %2132 = vmatprep.subr.bf16.mxu0 %v1731
      %2133 = vmatpush1.bf16.msra.mxu0 %v1730
      %2134 = vmatprep.subr.bf16.mxu0 %v1729
      %2135 = vmatpush1.bf16.msra.mxu0 %v1728
      %2136 = vmatprep.subr.bf16.mxu0 %v1727
      %2137 = vmatpush1.bf16.msra.mxu0 %v1726
      %2138 = vmatprep.subr.bf16.mxu0 %v1725
      %2139 = vmatpush1.bf16.msra.mxu0 %v1724
      %2140 = vmatprep.subr.bf16.mxu0 0
      %2141 = vmatpush2.bf16.msra.mxu0 0
      %2142 = vmatprep.subr.bf16.mxu0 0
      %2143 = vmatpush2.bf16.msra.mxu0 0
      %2144 = vmatprep.subr.bf16.mxu0 0
      %2145 = vmatpush2.bf16.msra.mxu0 0
      %2146 = vmatprep.subr.bf16.mxu0 0
      %2147 = vmatpush2.bf16.msra.mxu0 0
      %2148 = vmatprep.subr.bf16.mxu0 0
      %2149 = vmatpush2.bf16.msra.mxu0 0
      %2150 = vmatprep.subr.bf16.mxu0 0
      %2151 = vmatpush2.bf16.msra.mxu0 0
      %2152 = vmatprep.subr.bf16.mxu0 0
      %2153 = vmatpush2.bf16.msra.mxu0 0
      %2154 = vmatprep.subr.bf16.mxu0 0
      %2155 = vmatpush2.bf16.msra.mxu0 0
      %2156 = vmatprep.mubr.bf16.mxu0 0
      %2157 = vmatmul.mubr.bf16.gmra.mxu0 %v1996
      %v2158 = vpop.f32.mrf.mxu0
      %v2159 = vadd.f32 0.0, %v2158
      %v2160 = vpop.f32.mrf.mxu0
      %v2161 = vadd.f32 0.0, %v2160
      %v2162 = vpop.f32.mrf.mxu0
      %v2163 = vadd.f32 0.0, %v2162
      %v2164 = vpop.f32.mrf.mxu0
      %v2165 = vadd.f32 0.0, %v2164
      %2166 = vmatprep.mubr.bf16.mxu0 0
      %2167 = vmatmul.mubr.bf16.gmra.mxu0 %v1997
      %v2168 = vpop.f32.mrf.mxu0
      %v2169 = vadd.f32 0.0, %v2168
      %v2170 = vpop.f32.mrf.mxu0
      %v2171 = vadd.f32 0.0, %v2170
      %v2172 = vpop.f32.mrf.mxu0
      %v2173 = vadd.f32 0.0, %v2172
      %v2174 = vpop.f32.mrf.mxu0
      %v2175 = vadd.f32 0.0, %v2174
      %2176 = vmatprep.mubr.bf16.mxu0 0
      %2177 = vmatmul.mubr.bf16.gmra.mxu0 %v1998
      %v2178 = vpop.f32.mrf.mxu0
      %v2179 = vadd.f32 0.0, %v2178
      %v2180 = vpop.f32.mrf.mxu0
      %v2181 = vadd.f32 0.0, %v2180
      %v2182 = vpop.f32.mrf.mxu0
      %v2183 = vadd.f32 0.0, %v2182
      %v2184 = vpop.f32.mrf.mxu0
      %v2185 = vadd.f32 0.0, %v2184
      %2186 = vmatprep.mubr.bf16.mxu0 0
      %2187 = vmatmul.mubr.bf16.gmra.mxu0 %v1999
      %v2188 = vpop.f32.mrf.mxu0
      %v2189 = vadd.f32 0.0, %v2188
      %v2190 = vpop.f32.mrf.mxu0
      %v2191 = vadd.f32 0.0, %v2190
      %v2192 = vpop.f32.mrf.mxu0
      %v2193 = vadd.f32 0.0, %v2192
      %v2194 = vpop.f32.mrf.mxu0
      %v2195 = vadd.f32 0.0, %v2194
      %2196 = vmatprep.mubr.bf16.mxu0 0
      %2197 = vmatmul.mubr.bf16.gmra.mxu0 %v2000
      %v2198 = vpop.f32.mrf.mxu0
      %v2199 = vadd.f32 0.0, %v2198
      %v2200 = vpop.f32.mrf.mxu0
      %v2201 = vadd.f32 0.0, %v2200
      %v2202 = vpop.f32.mrf.mxu0
      %v2203 = vadd.f32 0.0, %v2202
      %v2204 = vpop.f32.mrf.mxu0
      %v2205 = vadd.f32 0.0, %v2204
      %2206 = vmatprep.mubr.bf16.mxu0 0
      %2207 = vmatmul.mubr.bf16.gmra.mxu0 %v2001
      %v2208 = vpop.f32.mrf.mxu0
      %v2209 = vadd.f32 0.0, %v2208
      %v2210 = vpop.f32.mrf.mxu0
      %v2211 = vadd.f32 0.0, %v2210
      %v2212 = vpop.f32.mrf.mxu0
      %v2213 = vadd.f32 0.0, %v2212
      %v2214 = vpop.f32.mrf.mxu0
      %v2215 = vadd.f32 0.0, %v2214
      %2216 = vmatprep.mubr.bf16.mxu0 0
      %2217 = vmatmul.mubr.bf16.gmra.mxu0 %v2002
      %v2218 = vpop.f32.mrf.mxu0
      %v2219 = vadd.f32 0.0, %v2218
      %v2220 = vpop.f32.mrf.mxu0
      %v2221 = vadd.f32 0.0, %v2220
      %v2222 = vpop.f32.mrf.mxu0
      %v2223 = vadd.f32 0.0, %v2222
      %v2224 = vpop.f32.mrf.mxu0
      %v2225 = vadd.f32 0.0, %v2224
      %2226 = vmatprep.mubr.bf16.mxu0 0
      %2227 = vmatmul.mubr.bf16.gmra.mxu0 %v2003
      %v2228 = vpop.f32.mrf.mxu0
      %v2229 = vadd.f32 0.0, %v2228
      %v2230 = vpop.f32.mrf.mxu0
      %v2231 = vadd.f32 0.0, %v2230
      %v2232 = vpop.f32.mrf.mxu0
      %v2233 = vadd.f32 0.0, %v2232
      %v2234 = vpop.f32.mrf.mxu0
      %v2235 = vadd.f32 0.0, %v2234
      %2236 = vmatprep.mubr.bf16.mxu0 0
      %2237 = vmatmul.mubr.bf16.gmra.mxu0 %v2004
      %v2238 = vpop.f32.mrf.mxu0
      %v2239 = vadd.f32 0.0, %v2238
      %v2240 = vpop.f32.mrf.mxu0
      %v2241 = vadd.f32 0.0, %v2240
      %v2242 = vpop.f32.mrf.mxu0
      %v2243 = vadd.f32 0.0, %v2242
      %v2244 = vpop.f32.mrf.mxu0
      %v2245 = vadd.f32 0.0, %v2244
      %2246 = vmatprep.mubr.bf16.mxu0 0
      %2247 = vmatmul.mubr.bf16.gmra.mxu0 %v2005
      %v2248 = vpop.f32.mrf.mxu0
      %v2249 = vadd.f32 0.0, %v2248
      %v2250 = vpop.f32.mrf.mxu0
      %v2251 = vadd.f32 0.0, %v2250
      %v2252 = vpop.f32.mrf.mxu0
      %v2253 = vadd.f32 0.0, %v2252
      %v2254 = vpop.f32.mrf.mxu0
      %v2255 = vadd.f32 0.0, %v2254
      %2256 = vmatprep.mubr.bf16.mxu0 0
      %2257 = vmatmul.mubr.bf16.gmra.mxu0 %v2006
      %v2258 = vpop.f32.mrf.mxu0
      %v2259 = vadd.f32 0.0, %v2258
      %v2260 = vpop.f32.mrf.mxu0
      %v2261 = vadd.f32 0.0, %v2260
      %v2262 = vpop.f32.mrf.mxu0
      %v2263 = vadd.f32 0.0, %v2262
      %v2264 = vpop.f32.mrf.mxu0
      %v2265 = vadd.f32 0.0, %v2264
      %2266 = vmatprep.mubr.bf16.mxu0 0
      %2267 = vmatmul.mubr.bf16.gmra.mxu0 %v2007
      %v2268 = vpop.f32.mrf.mxu0
      %v2269 = vadd.f32 0.0, %v2268
      %v2270 = vpop.f32.mrf.mxu0
      %v2271 = vadd.f32 0.0, %v2270
      %v2272 = vpop.f32.mrf.mxu0
      %v2273 = vadd.f32 0.0, %v2272
      %v2274 = vpop.f32.mrf.mxu0
      %v2275 = vadd.f32 0.0, %v2274
      %2276 = vmatprep.mubr.bf16.mxu0 0
      %2277 = vmatmul.mubr.bf16.gmra.mxu0 %v2008
      %v2278 = vpop.f32.mrf.mxu0
      %v2279 = vadd.f32 0.0, %v2278
      %v2280 = vpop.f32.mrf.mxu0
      %v2281 = vadd.f32 0.0, %v2280
      %v2282 = vpop.f32.mrf.mxu0
      %v2283 = vadd.f32 0.0, %v2282
      %v2284 = vpop.f32.mrf.mxu0
      %v2285 = vadd.f32 0.0, %v2284
      %2286 = vmatprep.mubr.bf16.mxu0 0
      %2287 = vmatmul.mubr.bf16.gmra.mxu0 %v2009
      %v2288 = vpop.f32.mrf.mxu0
      %v2289 = vadd.f32 0.0, %v2288
      %v2290 = vpop.f32.mrf.mxu0
      %v2291 = vadd.f32 0.0, %v2290
      %v2292 = vpop.f32.mrf.mxu0
      %v2293 = vadd.f32 0.0, %v2292
      %v2294 = vpop.f32.mrf.mxu0
      %v2295 = vadd.f32 0.0, %v2294
      %2296 = vmatprep.mubr.bf16.mxu0 0
      %2297 = vmatmul.mubr.bf16.gmra.mxu0 %v2010
      %v2298 = vpop.f32.mrf.mxu0
      %v2299 = vadd.f32 0.0, %v2298
      %v2300 = vpop.f32.mrf.mxu0
      %v2301 = vadd.f32 0.0, %v2300
      %v2302 = vpop.f32.mrf.mxu0
      %v2303 = vadd.f32 0.0, %v2302
      %v2304 = vpop.f32.mrf.mxu0
      %v2305 = vadd.f32 0.0, %v2304
      %2306 = vmatprep.mubr.bf16.mxu0 0
      %2307 = vmatmul.mubr.bf16.gmra.mxu0 %v2011
      %v2308 = vpop.f32.mrf.mxu0
      %v2309 = vadd.f32 0.0, %v2308
      %v2310 = vpop.f32.mrf.mxu0
      %v2311 = vadd.f32 0.0, %v2310
      %v2312 = vpop.f32.mrf.mxu0
      %v2313 = vadd.f32 0.0, %v2312
      %v2314 = vpop.f32.mrf.mxu0
      %v2315 = vadd.f32 0.0, %v2314
      %2316 = vmatprep.mubr.bf16.mxu0 0
      %2317 = vmatmul.mubr.bf16.gmra.mxu0 %v2012
      %v2318 = vpop.f32.mrf.mxu0
      %v2319 = vadd.f32 0.0, %v2318
      %v2320 = vpop.f32.mrf.mxu0
      %v2321 = vadd.f32 0.0, %v2320
      %v2322 = vpop.f32.mrf.mxu0
      %v2323 = vadd.f32 0.0, %v2322
      %v2324 = vpop.f32.mrf.mxu0
      %v2325 = vadd.f32 0.0, %v2324
      %2326 = vmatprep.mubr.bf16.mxu0 0
      %2327 = vmatmul.mubr.bf16.gmra.mxu0 %v2013
      %v2328 = vpop.f32.mrf.mxu0
      %v2329 = vadd.f32 0.0, %v2328
      %v2330 = vpop.f32.mrf.mxu0
      %v2331 = vadd.f32 0.0, %v2330
      %v2332 = vpop.f32.mrf.mxu0
      %v2333 = vadd.f32 0.0, %v2332
      %v2334 = vpop.f32.mrf.mxu0
      %v2335 = vadd.f32 0.0, %v2334
      %2336 = vmatprep.mubr.bf16.mxu0 0
      %2337 = vmatmul.mubr.bf16.gmra.mxu0 %v2014
      %v2338 = vpop.f32.mrf.mxu0
      %v2339 = vadd.f32 0.0, %v2338
      %v2340 = vpop.f32.mrf.mxu0
      %v2341 = vadd.f32 0.0, %v2340
      %v2342 = vpop.f32.mrf.mxu0
      %v2343 = vadd.f32 0.0, %v2342
      %v2344 = vpop.f32.mrf.mxu0
      %v2345 = vadd.f32 0.0, %v2344
      %2346 = vmatprep.mubr.bf16.mxu0 0
      %2347 = vmatmul.mubr.bf16.gmra.mxu0 %v2015
      %v2348 = vpop.f32.mrf.mxu0
      %v2349 = vadd.f32 0.0, %v2348
      %v2350 = vpop.f32.mrf.mxu0
      %v2351 = vadd.f32 0.0, %v2350
      %v2352 = vpop.f32.mrf.mxu0
      %v2353 = vadd.f32 0.0, %v2352
      %v2354 = vpop.f32.mrf.mxu0
      %v2355 = vadd.f32 0.0, %v2354
      %2356 = vmatprep.mubr.bf16.mxu0 0
      %2357 = vmatmul.mubr.bf16.gmra.mxu0 %v2016
      %v2358 = vpop.f32.mrf.mxu0
      %v2359 = vadd.f32 0.0, %v2358
      %v2360 = vpop.f32.mrf.mxu0
      %v2361 = vadd.f32 0.0, %v2360
      %v2362 = vpop.f32.mrf.mxu0
      %v2363 = vadd.f32 0.0, %v2362
      %v2364 = vpop.f32.mrf.mxu0
      %v2365 = vadd.f32 0.0, %v2364
      %2366 = vmatprep.mubr.bf16.mxu0 0
      %2367 = vmatmul.mubr.bf16.gmra.mxu0 %v2017
      %v2368 = vpop.f32.mrf.mxu0
      %v2369 = vadd.f32 0.0, %v2368
      %v2370 = vpop.f32.mrf.mxu0
      %v2371 = vadd.f32 0.0, %v2370
      %v2372 = vpop.f32.mrf.mxu0
      %v2373 = vadd.f32 0.0, %v2372
      %v2374 = vpop.f32.mrf.mxu0
      %v2375 = vadd.f32 0.0, %v2374
      %2376 = vmatprep.mubr.bf16.mxu0 0
      %2377 = vmatmul.mubr.bf16.gmra.mxu0 %v2018
      %v2378 = vpop.f32.mrf.mxu0
      %v2379 = vadd.f32 0.0, %v2378
      %v2380 = vpop.f32.mrf.mxu0
      %v2381 = vadd.f32 0.0, %v2380
      %v2382 = vpop.f32.mrf.mxu0
      %v2383 = vadd.f32 0.0, %v2382
      %v2384 = vpop.f32.mrf.mxu0
      %v2385 = vadd.f32 0.0, %v2384
      %2386 = vmatprep.mubr.bf16.mxu0 0
      %2387 = vmatmul.mubr.bf16.gmra.mxu0 %v2019
      %v2388 = vpop.f32.mrf.mxu0
      %v2389 = vadd.f32 0.0, %v2388
      %v2390 = vpop.f32.mrf.mxu0
      %v2391 = vadd.f32 0.0, %v2390
      %v2392 = vpop.f32.mrf.mxu0
      %v2393 = vadd.f32 0.0, %v2392
      %v2394 = vpop.f32.mrf.mxu0
      %v2395 = vadd.f32 0.0, %v2394
      %2396 = vmatprep.mubr.bf16.mxu0 0
      %2397 = vmatmul.mubr.bf16.gmra.mxu0 %v2020
      %v2398 = vpop.f32.mrf.mxu0
      %v2399 = vadd.f32 0.0, %v2398
      %v2400 = vpop.f32.mrf.mxu0
      %v2401 = vadd.f32 0.0, %v2400
      %v2402 = vpop.f32.mrf.mxu0
      %v2403 = vadd.f32 0.0, %v2402
      %v2404 = vpop.f32.mrf.mxu0
      %v2405 = vadd.f32 0.0, %v2404
      %2406 = vmatprep.mubr.bf16.mxu0 0
      %2407 = vmatmul.mubr.bf16.gmra.mxu0 %v2021
      %v2408 = vpop.f32.mrf.mxu0
      %v2409 = vadd.f32 0.0, %v2408
      %v2410 = vpop.f32.mrf.mxu0
      %v2411 = vadd.f32 0.0, %v2410
      %v2412 = vpop.f32.mrf.mxu0
      %v2413 = vadd.f32 0.0, %v2412
      %v2414 = vpop.f32.mrf.mxu0
      %v2415 = vadd.f32 0.0, %v2414
      %2416 = vmatprep.mubr.bf16.mxu0 0
      %2417 = vmatmul.mubr.bf16.gmra.mxu0 %v2022
      %v2418 = vpop.f32.mrf.mxu0
      %v2419 = vadd.f32 0.0, %v2418
      %v2420 = vpop.f32.mrf.mxu0
      %v2421 = vadd.f32 0.0, %v2420
      %v2422 = vpop.f32.mrf.mxu0
      %v2423 = vadd.f32 0.0, %v2422
      %v2424 = vpop.f32.mrf.mxu0
      %v2425 = vadd.f32 0.0, %v2424
      %2426 = vmatprep.mubr.bf16.mxu0 0
      %2427 = vmatmul.mubr.bf16.gmra.mxu0 %v2023
      %v2428 = vpop.f32.mrf.mxu0
      %v2429 = vadd.f32 0.0, %v2428
      %v2430 = vpop.f32.mrf.mxu0
      %v2431 = vadd.f32 0.0, %v2430
      %v2432 = vpop.f32.mrf.mxu0
      %v2433 = vadd.f32 0.0, %v2432
      %v2434 = vpop.f32.mrf.mxu0
      %v2435 = vadd.f32 0.0, %v2434
      %2436 = vmatprep.mubr.bf16.mxu0 0
      %2437 = vmatmul.mubr.bf16.gmra.mxu0 %v2024
      %v2438 = vpop.f32.mrf.mxu0
      %v2439 = vadd.f32 0.0, %v2438
      %v2440 = vpop.f32.mrf.mxu0
      %v2441 = vadd.f32 0.0, %v2440
      %v2442 = vpop.f32.mrf.mxu0
      %v2443 = vadd.f32 0.0, %v2442
      %v2444 = vpop.f32.mrf.mxu0
      %v2445 = vadd.f32 0.0, %v2444
      %2446 = vmatprep.mubr.bf16.mxu0 0
      %2447 = vmatmul.mubr.bf16.gmra.mxu0 %v2025
      %v2448 = vpop.f32.mrf.mxu0
      %v2449 = vadd.f32 0.0, %v2448
      %v2450 = vpop.f32.mrf.mxu0
      %v2451 = vadd.f32 0.0, %v2450
      %v2452 = vpop.f32.mrf.mxu0
      %v2453 = vadd.f32 0.0, %v2452
      %v2454 = vpop.f32.mrf.mxu0
      %v2455 = vadd.f32 0.0, %v2454
      %2456 = vmatprep.mubr.bf16.mxu0 0
      %2457 = vmatmul.mubr.bf16.gmra.mxu0 %v2026
      %v2458 = vpop.f32.mrf.mxu0
      %v2459 = vadd.f32 0.0, %v2458
      %v2460 = vpop.f32.mrf.mxu0
      %v2461 = vadd.f32 0.0, %v2460
      %v2462 = vpop.f32.mrf.mxu0
      %v2463 = vadd.f32 0.0, %v2462
      %v2464 = vpop.f32.mrf.mxu0
      %v2465 = vadd.f32 0.0, %v2464
      %2466 = vmatprep.mubr.bf16.mxu0 0
      %2467 = vmatmul.mubr.bf16.gmra.mxu0 %v2027
      %v2468 = vpop.f32.mrf.mxu0
      %v2469 = vadd.f32 0.0, %v2468
      %v2470 = vpop.f32.mrf.mxu0
      %v2471 = vadd.f32 0.0, %v2470
      %v2472 = vpop.f32.mrf.mxu0
      %v2473 = vadd.f32 0.0, %v2472
      %v2474 = vpop.f32.mrf.mxu0
      %v2475 = vadd.f32 0.0, %v2474
      %2476 = vmatprep.mubr.bf16.mxu0 0
      %2477 = vmatmul.mubr.bf16.gmra.mxu0 %v2028
      %v2478 = vpop.f32.mrf.mxu0
      %v2479 = vadd.f32 0.0, %v2478
      %v2480 = vpop.f32.mrf.mxu0
      %v2481 = vadd.f32 0.0, %v2480
      %v2482 = vpop.f32.mrf.mxu0
      %v2483 = vadd.f32 0.0, %v2482
      %v2484 = vpop.f32.mrf.mxu0
      %v2485 = vadd.f32 0.0, %v2484
      %2486 = vmatprep.mubr.bf16.mxu0 0
      %2487 = vmatmul.mubr.bf16.gmra.mxu0 %v2029
      %v2488 = vpop.f32.mrf.mxu0
      %v2489 = vadd.f32 0.0, %v2488
      %v2490 = vpop.f32.mrf.mxu0
      %v2491 = vadd.f32 0.0, %v2490
      %v2492 = vpop.f32.mrf.mxu0
      %v2493 = vadd.f32 0.0, %v2492
      %v2494 = vpop.f32.mrf.mxu0
      %v2495 = vadd.f32 0.0, %v2494
      %2496 = vmatprep.mubr.bf16.mxu0 0
      %2497 = vmatmul.mubr.bf16.gmra.mxu0 %v2030
      %v2498 = vpop.f32.mrf.mxu0
      %v2499 = vadd.f32 0.0, %v2498
      %v2500 = vpop.f32.mrf.mxu0
      %v2501 = vadd.f32 0.0, %v2500
      %v2502 = vpop.f32.mrf.mxu0
      %v2503 = vadd.f32 0.0, %v2502
      %v2504 = vpop.f32.mrf.mxu0
      %v2505 = vadd.f32 0.0, %v2504
      %2506 = vmatprep.mubr.bf16.mxu0 0
      %2507 = vmatmul.mubr.bf16.gmra.mxu0 %v2031
      %v2508 = vpop.f32.mrf.mxu0
      %v2509 = vadd.f32 0.0, %v2508
      %v2510 = vpop.f32.mrf.mxu0
      %v2511 = vadd.f32 0.0, %v2510
      %v2512 = vpop.f32.mrf.mxu0
      %v2513 = vadd.f32 0.0, %v2512
      %v2514 = vpop.f32.mrf.mxu0
      %v2515 = vadd.f32 0.0, %v2514
      %2516 = vmatprep.mubr.bf16.mxu0 0
      %2517 = vmatmul.mubr.bf16.gmra.mxu0 %v2032
      %v2518 = vpop.f32.mrf.mxu0
      %v2519 = vadd.f32 0.0, %v2518
      %v2520 = vpop.f32.mrf.mxu0
      %v2521 = vadd.f32 0.0, %v2520
      %v2522 = vpop.f32.mrf.mxu0
      %v2523 = vadd.f32 0.0, %v2522
      %v2524 = vpop.f32.mrf.mxu0
      %v2525 = vadd.f32 0.0, %v2524
      %2526 = vmatprep.mubr.bf16.mxu0 0
      %2527 = vmatmul.mubr.bf16.gmra.mxu0 %v2033
      %v2528 = vpop.f32.mrf.mxu0
      %v2529 = vadd.f32 0.0, %v2528
      %v2530 = vpop.f32.mrf.mxu0
      %v2531 = vadd.f32 0.0, %v2530
      %v2532 = vpop.f32.mrf.mxu0
      %v2533 = vadd.f32 0.0, %v2532
      %v2534 = vpop.f32.mrf.mxu0
      %v2535 = vadd.f32 0.0, %v2534
      %2536 = vmatprep.mubr.bf16.mxu0 0
      %2537 = vmatmul.mubr.bf16.gmra.mxu0 %v2034
      %v2538 = vpop.f32.mrf.mxu0
      %v2539 = vadd.f32 0.0, %v2538
      %v2540 = vpop.f32.mrf.mxu0
      %v2541 = vadd.f32 0.0, %v2540
      %v2542 = vpop.f32.mrf.mxu0
      %v2543 = vadd.f32 0.0, %v2542
      %v2544 = vpop.f32.mrf.mxu0
      %v2545 = vadd.f32 0.0, %v2544
      %2546 = vmatprep.mubr.bf16.mxu0 0
      %2547 = vmatmul.mubr.bf16.gmra.mxu0 %v2035
      %v2548 = vpop.f32.mrf.mxu0
      %v2549 = vadd.f32 0.0, %v2548
      %v2550 = vpop.f32.mrf.mxu0
      %v2551 = vadd.f32 0.0, %v2550
      %v2552 = vpop.f32.mrf.mxu0
      %v2553 = vadd.f32 0.0, %v2552
      %v2554 = vpop.f32.mrf.mxu0
      %v2555 = vadd.f32 0.0, %v2554
      %2556 = vmatprep.mubr.bf16.mxu0 0
      %2557 = vmatmul.mubr.bf16.gmra.mxu0 %v2036
      %v2558 = vpop.f32.mrf.mxu0
      %v2559 = vadd.f32 0.0, %v2558
      %v2560 = vpop.f32.mrf.mxu0
      %v2561 = vadd.f32 0.0, %v2560
      %v2562 = vpop.f32.mrf.mxu0
      %v2563 = vadd.f32 0.0, %v2562
      %v2564 = vpop.f32.mrf.mxu0
      %v2565 = vadd.f32 0.0, %v2564
      %2566 = vmatprep.mubr.bf16.mxu0 0
      %2567 = vmatmul.mubr.bf16.gmra.mxu0 %v2037
      %v2568 = vpop.f32.mrf.mxu0
      %v2569 = vadd.f32 0.0, %v2568
      %v2570 = vpop.f32.mrf.mxu0
      %v2571 = vadd.f32 0.0, %v2570
      %v2572 = vpop.f32.mrf.mxu0
      %v2573 = vadd.f32 0.0, %v2572
      %v2574 = vpop.f32.mrf.mxu0
      %v2575 = vadd.f32 0.0, %v2574
      %2576 = vmatprep.mubr.bf16.mxu0 0
      %2577 = vmatmul.mubr.bf16.gmra.mxu0 %v2038
      %v2578 = vpop.f32.mrf.mxu0
      %v2579 = vadd.f32 0.0, %v2578
      %v2580 = vpop.f32.mrf.mxu0
      %v2581 = vadd.f32 0.0, %v2580
      %v2582 = vpop.f32.mrf.mxu0
      %v2583 = vadd.f32 0.0, %v2582
      %v2584 = vpop.f32.mrf.mxu0
      %v2585 = vadd.f32 0.0, %v2584
      %2586 = vmatprep.mubr.bf16.mxu0 0
      %2587 = vmatmul.mubr.bf16.gmra.mxu0 %v2039
      %v2588 = vpop.f32.mrf.mxu0
      %v2589 = vadd.f32 0.0, %v2588
      %v2590 = vpop.f32.mrf.mxu0
      %v2591 = vadd.f32 0.0, %v2590
      %v2592 = vpop.f32.mrf.mxu0
      %v2593 = vadd.f32 0.0, %v2592
      %v2594 = vpop.f32.mrf.mxu0
      %v2595 = vadd.f32 0.0, %v2594
      %2596 = vmatprep.mubr.bf16.mxu0 0
      %2597 = vmatmul.mubr.bf16.gmra.mxu0 %v2040
      %v2598 = vpop.f32.mrf.mxu0
      %v2599 = vadd.f32 0.0, %v2598
      %v2600 = vpop.f32.mrf.mxu0
      %v2601 = vadd.f32 0.0, %v2600
      %v2602 = vpop.f32.mrf.mxu0
      %v2603 = vadd.f32 0.0, %v2602
      %v2604 = vpop.f32.mrf.mxu0
      %v2605 = vadd.f32 0.0, %v2604
      %2606 = vmatprep.mubr.bf16.mxu0 0
      %2607 = vmatmul.mubr.bf16.gmra.mxu0 %v2041
      %v2608 = vpop.f32.mrf.mxu0
      %v2609 = vadd.f32 0.0, %v2608
      %v2610 = vpop.f32.mrf.mxu0
      %v2611 = vadd.f32 0.0, %v2610
      %v2612 = vpop.f32.mrf.mxu0
      %v2613 = vadd.f32 0.0, %v2612
      %v2614 = vpop.f32.mrf.mxu0
      %v2615 = vadd.f32 0.0, %v2614
      %2616 = vmatprep.mubr.bf16.mxu0 0
      %2617 = vmatmul.mubr.bf16.gmra.mxu0 %v2042
      %v2618 = vpop.f32.mrf.mxu0
      %v2619 = vadd.f32 0.0, %v2618
      %v2620 = vpop.f32.mrf.mxu0
      %v2621 = vadd.f32 0.0, %v2620
      %v2622 = vpop.f32.mrf.mxu0
      %v2623 = vadd.f32 0.0, %v2622
      %v2624 = vpop.f32.mrf.mxu0
      %v2625 = vadd.f32 0.0, %v2624
      %2626 = vmatprep.mubr.bf16.mxu0 0
      %2627 = vmatmul.mubr.bf16.gmra.mxu0 %v2043
      %v2628 = vpop.f32.mrf.mxu0
      %v2629 = vadd.f32 0.0, %v2628
      %v2630 = vpop.f32.mrf.mxu0
      %v2631 = vadd.f32 0.0, %v2630
      %v2632 = vpop.f32.mrf.mxu0
      %v2633 = vadd.f32 0.0, %v2632
      %v2634 = vpop.f32.mrf.mxu0
      %v2635 = vadd.f32 0.0, %v2634
      %2636 = vmatprep.mubr.bf16.mxu0 0
      %2637 = vmatmul.mubr.bf16.gmra.mxu0 %v2044
      %v2638 = vpop.f32.mrf.mxu0
      %v2639 = vadd.f32 0.0, %v2638
      %v2640 = vpop.f32.mrf.mxu0
      %v2641 = vadd.f32 0.0, %v2640
      %v2642 = vpop.f32.mrf.mxu0
      %v2643 = vadd.f32 0.0, %v2642
      %v2644 = vpop.f32.mrf.mxu0
      %v2645 = vadd.f32 0.0, %v2644
      %2646 = vmatprep.mubr.bf16.mxu0 0
      %2647 = vmatmul.mubr.bf16.gmra.mxu0 %v2045
      %v2648 = vpop.f32.mrf.mxu0
      %v2649 = vadd.f32 0.0, %v2648
      %v2650 = vpop.f32.mrf.mxu0
      %v2651 = vadd.f32 0.0, %v2650
      %v2652 = vpop.f32.mrf.mxu0
      %v2653 = vadd.f32 0.0, %v2652
      %v2654 = vpop.f32.mrf.mxu0
      %v2655 = vadd.f32 0.0, %v2654
      %2656 = vmatprep.mubr.bf16.mxu0 0
      %2657 = vmatmul.mubr.bf16.gmra.mxu0 %v2046
      %v2658 = vpop.f32.mrf.mxu0
      %v2659 = vadd.f32 0.0, %v2658
      %v2660 = vpop.f32.mrf.mxu0
      %v2661 = vadd.f32 0.0, %v2660
      %v2662 = vpop.f32.mrf.mxu0
      %v2663 = vadd.f32 0.0, %v2662
      %v2664 = vpop.f32.mrf.mxu0
      %v2665 = vadd.f32 0.0, %v2664
      %2666 = vmatprep.mubr.bf16.mxu0 0
      %2667 = vmatmul.mubr.bf16.gmra.mxu0 %v2047
      %v2668 = vpop.f32.mrf.mxu0
      %v2669 = vadd.f32 0.0, %v2668
      %v2670 = vpop.f32.mrf.mxu0
      %v2671 = vadd.f32 0.0, %v2670
      %v2672 = vpop.f32.mrf.mxu0
      %v2673 = vadd.f32 0.0, %v2672
      %v2674 = vpop.f32.mrf.mxu0
      %v2675 = vadd.f32 0.0, %v2674
      %2676 = vmatprep.mubr.bf16.mxu0 0
      %2677 = vmatmul.mubr.bf16.gmra.mxu0 %v2048
      %v2678 = vpop.f32.mrf.mxu0
      %v2679 = vadd.f32 0.0, %v2678
      %v2680 = vpop.f32.mrf.mxu0
      %v2681 = vadd.f32 0.0, %v2680
      %v2682 = vpop.f32.mrf.mxu0
      %v2683 = vadd.f32 0.0, %v2682
      %v2684 = vpop.f32.mrf.mxu0
      %v2685 = vadd.f32 0.0, %v2684
      %2686 = vmatprep.mubr.bf16.mxu0 0
      %2687 = vmatmul.mubr.bf16.gmra.mxu0 %v2049
      %v2688 = vpop.f32.mrf.mxu0
      %v2689 = vadd.f32 0.0, %v2688
      %v2690 = vpop.f32.mrf.mxu0
      %v2691 = vadd.f32 0.0, %v2690
      %v2692 = vpop.f32.mrf.mxu0
      %v2693 = vadd.f32 0.0, %v2692
      %v2694 = vpop.f32.mrf.mxu0
      %v2695 = vadd.f32 0.0, %v2694
      %2696 = vmatprep.mubr.bf16.mxu0 0
      %2697 = vmatmul.mubr.bf16.gmra.mxu0 %v2050
      %v2698 = vpop.f32.mrf.mxu0
      %v2699 = vadd.f32 0.0, %v2698
      %v2700 = vpop.f32.mrf.mxu0
      %v2701 = vadd.f32 0.0, %v2700
      %v2702 = vpop.f32.mrf.mxu0
      %v2703 = vadd.f32 0.0, %v2702
      %v2704 = vpop.f32.mrf.mxu0
      %v2705 = vadd.f32 0.0, %v2704
      %2706 = vmatprep.mubr.bf16.mxu0 0
      %2707 = vmatmul.mubr.bf16.gmra.mxu0 %v2051
      %v2708 = vpop.f32.mrf.mxu0
      %v2709 = vadd.f32 0.0, %v2708
      %v2710 = vpop.f32.mrf.mxu0
      %v2711 = vadd.f32 0.0, %v2710
      %v2712 = vpop.f32.mrf.mxu0
      %v2713 = vadd.f32 0.0, %v2712
      %v2714 = vpop.f32.mrf.mxu0
      %v2715 = vadd.f32 0.0, %v2714
      %2716 = vmatprep.mubr.bf16.mxu0 0
      %2717 = vmatmul.mubr.bf16.gmra.mxu0 %v2052
      %v2718 = vpop.f32.mrf.mxu0
      %v2719 = vadd.f32 0.0, %v2718
      %v2720 = vpop.f32.mrf.mxu0
      %v2721 = vadd.f32 0.0, %v2720
      %v2722 = vpop.f32.mrf.mxu0
      %v2723 = vadd.f32 0.0, %v2722
      %v2724 = vpop.f32.mrf.mxu0
      %v2725 = vadd.f32 0.0, %v2724
      %2726 = vmatprep.mubr.bf16.mxu0 0
      %2727 = vmatmul.mubr.bf16.gmra.mxu0 %v2053
      %v2728 = vpop.f32.mrf.mxu0
      %v2729 = vadd.f32 0.0, %v2728
      %v2730 = vpop.f32.mrf.mxu0
      %v2731 = vadd.f32 0.0, %v2730
      %v2732 = vpop.f32.mrf.mxu0
      %v2733 = vadd.f32 0.0, %v2732
      %v2734 = vpop.f32.mrf.mxu0
      %v2735 = vadd.f32 0.0, %v2734
      %2736 = vmatprep.mubr.bf16.mxu0 0
      %2737 = vmatmul.mubr.bf16.gmra.mxu0 %v2054
      %v2738 = vpop.f32.mrf.mxu0
      %v2739 = vadd.f32 0.0, %v2738
      %v2740 = vpop.f32.mrf.mxu0
      %v2741 = vadd.f32 0.0, %v2740
      %v2742 = vpop.f32.mrf.mxu0
      %v2743 = vadd.f32 0.0, %v2742
      %v2744 = vpop.f32.mrf.mxu0
      %v2745 = vadd.f32 0.0, %v2744
      %2746 = vmatprep.mubr.bf16.mxu0 0
      %2747 = vmatmul.mubr.bf16.gmra.mxu0 %v2055
      %v2748 = vpop.f32.mrf.mxu0
      %v2749 = vadd.f32 0.0, %v2748
      %v2750 = vpop.f32.mrf.mxu0
      %v2751 = vadd.f32 0.0, %v2750
      %v2752 = vpop.f32.mrf.mxu0
      %v2753 = vadd.f32 0.0, %v2752
      %v2754 = vpop.f32.mrf.mxu0
      %v2755 = vadd.f32 0.0, %v2754
      %2756 = vmatprep.mubr.bf16.mxu0 0
      %2757 = vmatmul.mubr.bf16.gmra.mxu0 %v2056
      %v2758 = vpop.f32.mrf.mxu0
      %v2759 = vadd.f32 0.0, %v2758
      %v2760 = vpop.f32.mrf.mxu0
      %v2761 = vadd.f32 0.0, %v2760
      %v2762 = vpop.f32.mrf.mxu0
      %v2763 = vadd.f32 0.0, %v2762
      %v2764 = vpop.f32.mrf.mxu0
      %v2765 = vadd.f32 0.0, %v2764
      %2766 = vmatprep.mubr.bf16.mxu0 0
      %2767 = vmatmul.mubr.bf16.gmra.mxu0 %v2057
      %v2768 = vpop.f32.mrf.mxu0
      %v2769 = vadd.f32 0.0, %v2768
      %v2770 = vpop.f32.mrf.mxu0
      %v2771 = vadd.f32 0.0, %v2770
      %v2772 = vpop.f32.mrf.mxu0
      %v2773 = vadd.f32 0.0, %v2772
      %v2774 = vpop.f32.mrf.mxu0
      %v2775 = vadd.f32 0.0, %v2774
      %2776 = vmatprep.mubr.bf16.mxu0 0
      %2777 = vmatmul.mubr.bf16.gmra.mxu0 %v2058
      %v2778 = vpop.f32.mrf.mxu0
      %v2779 = vadd.f32 0.0, %v2778
      %v2780 = vpop.f32.mrf.mxu0
      %v2781 = vadd.f32 0.0, %v2780
      %v2782 = vpop.f32.mrf.mxu0
      %v2783 = vadd.f32 0.0, %v2782
      %v2784 = vpop.f32.mrf.mxu0
      %v2785 = vadd.f32 0.0, %v2784
      %2786 = vmatprep.mubr.bf16.mxu0 0
      %2787 = vmatmul.mubr.bf16.gmra.mxu0 %v2059
      %v2788 = vpop.f32.mrf.mxu0
      %v2789 = vadd.f32 0.0, %v2788
      %v2790 = vpop.f32.mrf.mxu0
      %v2791 = vadd.f32 0.0, %v2790
      %v2792 = vpop.f32.mrf.mxu0
      %v2793 = vadd.f32 0.0, %v2792
      %v2794 = vpop.f32.mrf.mxu0
      %v2795 = vadd.f32 0.0, %v2794
      %2796 = vdwg.mxu0
      %v2797 = vld [vmem:[%s8] sm:$0xff]
      %v2798 = vld [vmem:[%s8 + $0x8] sm:$0xff]
      %v2799 = vld [vmem:[%s8 + $0x10] sm:$0xff]
      %v2800 = vld [vmem:[%s8 + $0x18] sm:$0xff]
      %v2801 = vld [vmem:[%s8 + $0x20] sm:$0xff]
      %v2802 = vld [vmem:[%s8 + $0x28] sm:$0xff]
      %v2803 = vld [vmem:[%s8 + $0x30] sm:$0xff]
      %v2804 = vld [vmem:[%s8 + $0x38] sm:$0xff]
      %v2805 = vld [vmem:[%s8 + $0x40] sm:$0xff]
      %v2806 = vld [vmem:[%s8 + $0x48] sm:$0xff]
      %v2807 = vld [vmem:[%s8 + $0x50] sm:$0xff]
      %v2808 = vld [vmem:[%s8 + $0x58] sm:$0xff]
      %v2809 = vld [vmem:[%s8 + $0x60] sm:$0xff]
      %v2810 = vld [vmem:[%s8 + $0x68] sm:$0xff]
      %v2811 = vld [vmem:[%s8 + $0x70] sm:$0xff]
      %v2812 = vld [vmem:[%s8 + $0x78] sm:$0xff]
      %v2813 = vld [vmem:[%s8 + $0x80] sm:$0xff]
      %v2814 = vld [vmem:[%s8 + $0x88] sm:$0xff]
      %v2815 = vld [vmem:[%s8 + $0x90] sm:$0xff]
      %v2816 = vld [vmem:[%s8 + $0x98] sm:$0xff]
      %v2817 = vld [vmem:[%s8 + $0xa0] sm:$0xff]
      %v2818 = vld [vmem:[%s8 + $0xa8] sm:$0xff]
      %v2819 = vld [vmem:[%s8 + $0xb0] sm:$0xff]
      %v2820 = vld [vmem:[%s8 + $0xb8] sm:$0xff]
      %v2821 = vld [vmem:[%s8 + $0xc0] sm:$0xff]
      %v2822 = vld [vmem:[%s8 + $0xc8] sm:$0xff]
      %v2823 = vld [vmem:[%s8 + $0xd0] sm:$0xff]
      %v2824 = vld [vmem:[%s8 + $0xd8] sm:$0xff]
      %v2825 = vld [vmem:[%s8 + $0xe0] sm:$0xff]
      %v2826 = vld [vmem:[%s8 + $0xe8] sm:$0xff]
      %v2827 = vld [vmem:[%s8 + $0xf0] sm:$0xff]
      %v2828 = vld [vmem:[%s8 + $0xf8] sm:$0xff]
      %v2829 = vld [vmem:[%s8 + $0x100] sm:$0xff]
      %v2830 = vld [vmem:[%s8 + $0x108] sm:$0xff]
      %v2831 = vld [vmem:[%s8 + $0x110] sm:$0xff]
      %v2832 = vld [vmem:[%s8 + $0x118] sm:$0xff]
      %v2833 = vld [vmem:[%s8 + $0x120] sm:$0xff]
      %v2834 = vld [vmem:[%s8 + $0x128] sm:$0xff]
      %v2835 = vld [vmem:[%s8 + $0x130] sm:$0xff]
      %v2836 = vld [vmem:[%s8 + $0x138] sm:$0xff]
      %v2837 = vld [vmem:[%s8 + $0x140] sm:$0xff]
      %v2838 = vld [vmem:[%s8 + $0x148] sm:$0xff]
      %v2839 = vld [vmem:[%s8 + $0x150] sm:$0xff]
      %v2840 = vld [vmem:[%s8 + $0x158] sm:$0xff]
      %v2841 = vld [vmem:[%s8 + $0x160] sm:$0xff]
      %v2842 = vld [vmem:[%s8 + $0x168] sm:$0xff]
      %v2843 = vld [vmem:[%s8 + $0x170] sm:$0xff]
      %v2844 = vld [vmem:[%s8 + $0x178] sm:$0xff]
      %v2845 = vld [vmem:[%s8 + $0x180] sm:$0xff]
      %v2846 = vld [vmem:[%s8 + $0x188] sm:$0xff]
      %v2847 = vld [vmem:[%s8 + $0x190] sm:$0xff]
      %v2848 = vld [vmem:[%s8 + $0x198] sm:$0xff]
      %v2849 = vld [vmem:[%s8 + $0x1a0] sm:$0xff]
      %v2850 = vld [vmem:[%s8 + $0x1a8] sm:$0xff]
      %v2851 = vld [vmem:[%s8 + $0x1b0] sm:$0xff]
      %v2852 = vld [vmem:[%s8 + $0x1b8] sm:$0xff]
      %v2853 = vld [vmem:[%s8 + $0x1c0] sm:$0xff]
      %v2854 = vld [vmem:[%s8 + $0x1c8] sm:$0xff]
      %v2855 = vld [vmem:[%s8 + $0x1d0] sm:$0xff]
      %v2856 = vld [vmem:[%s8 + $0x1d8] sm:$0xff]
      %v2857 = vld [vmem:[%s8 + $0x1e0] sm:$0xff]
      %v2858 = vld [vmem:[%s8 + $0x1e8] sm:$0xff]
      %v2859 = vld [vmem:[%s8 + $0x1f0] sm:$0xff]
      %v2860 = vld [vmem:[%s8 + $0x1f8] sm:$0xff]
      %v2861 = vld [vmem:[%s8 + $0x200] sm:$0xff]
      %v2862 = vld [vmem:[%s8 + $0x208] sm:$0xff]
      %v2863 = vld [vmem:[%s8 + $0x210] sm:$0xff]
      %v2864 = vld [vmem:[%s8 + $0x218] sm:$0xff]
      %v2865 = vld [vmem:[%s8 + $0x220] sm:$0xff]
      %v2866 = vld [vmem:[%s8 + $0x228] sm:$0xff]
      %v2867 = vld [vmem:[%s8 + $0x230] sm:$0xff]
      %v2868 = vld [vmem:[%s8 + $0x238] sm:$0xff]
      %v2869 = vld [vmem:[%s8 + $0x240] sm:$0xff]
      %v2870 = vld [vmem:[%s8 + $0x248] sm:$0xff]
      %v2871 = vld [vmem:[%s8 + $0x250] sm:$0xff]
      %v2872 = vld [vmem:[%s8 + $0x258] sm:$0xff]
      %v2873 = vld [vmem:[%s8 + $0x260] sm:$0xff]
      %v2874 = vld [vmem:[%s8 + $0x268] sm:$0xff]
      %v2875 = vld [vmem:[%s8 + $0x270] sm:$0xff]
      %v2876 = vld [vmem:[%s8 + $0x278] sm:$0xff]
      %v2877 = vld [vmem:[%s8 + $0x280] sm:$0xff]
      %v2878 = vld [vmem:[%s8 + $0x288] sm:$0xff]
      %v2879 = vld [vmem:[%s8 + $0x290] sm:$0xff]
      %v2880 = vld [vmem:[%s8 + $0x298] sm:$0xff]
      %v2881 = vld [vmem:[%s8 + $0x2a0] sm:$0xff]
      %v2882 = vld [vmem:[%s8 + $0x2a8] sm:$0xff]
      %v2883 = vld [vmem:[%s8 + $0x2b0] sm:$0xff]
      %v2884 = vld [vmem:[%s8 + $0x2b8] sm:$0xff]
      %v2885 = vld [vmem:[%s8 + $0x2c0] sm:$0xff]
      %v2886 = vld [vmem:[%s8 + $0x2c8] sm:$0xff]
      %v2887 = vld [vmem:[%s8 + $0x2d0] sm:$0xff]
      %v2888 = vld [vmem:[%s8 + $0x2d8] sm:$0xff]
      %v2889 = vld [vmem:[%s8 + $0x2e0] sm:$0xff]
      %v2890 = vld [vmem:[%s8 + $0x2e8] sm:$0xff]
      %v2891 = vld [vmem:[%s8 + $0x2f0] sm:$0xff]
      %v2892 = vld [vmem:[%s8 + $0x2f8] sm:$0xff]
      %v2893 = vld [vmem:[%s8 + $0x300] sm:$0xff]
      %v2894 = vld [vmem:[%s8 + $0x308] sm:$0xff]
      %v2895 = vld [vmem:[%s8 + $0x310] sm:$0xff]
      %v2896 = vld [vmem:[%s8 + $0x318] sm:$0xff]
      %v2897 = vld [vmem:[%s8 + $0x320] sm:$0xff]
      %v2898 = vld [vmem:[%s8 + $0x328] sm:$0xff]
      %v2899 = vld [vmem:[%s8 + $0x330] sm:$0xff]
      %v2900 = vld [vmem:[%s8 + $0x338] sm:$0xff]
      %v2901 = vld [vmem:[%s8 + $0x340] sm:$0xff]
      %v2902 = vld [vmem:[%s8 + $0x348] sm:$0xff]
      %v2903 = vld [vmem:[%s8 + $0x350] sm:$0xff]
      %v2904 = vld [vmem:[%s8 + $0x358] sm:$0xff]
      %v2905 = vld [vmem:[%s8 + $0x360] sm:$0xff]
      %v2906 = vld [vmem:[%s8 + $0x368] sm:$0xff]
      %v2907 = vld [vmem:[%s8 + $0x370] sm:$0xff]
      %v2908 = vld [vmem:[%s8 + $0x378] sm:$0xff]
      %v2909 = vld [vmem:[%s8 + $0x380] sm:$0xff]
      %v2910 = vld [vmem:[%s8 + $0x388] sm:$0xff]
      %v2911 = vld [vmem:[%s8 + $0x390] sm:$0xff]
      %v2912 = vld [vmem:[%s8 + $0x398] sm:$0xff]
      %v2913 = vld [vmem:[%s8 + $0x3a0] sm:$0xff]
      %v2914 = vld [vmem:[%s8 + $0x3a8] sm:$0xff]
      %v2915 = vld [vmem:[%s8 + $0x3b0] sm:$0xff]
      %v2916 = vld [vmem:[%s8 + $0x3b8] sm:$0xff]
      %v2917 = vld [vmem:[%s8 + $0x3c0] sm:$0xff]
      %v2918 = vld [vmem:[%s8 + $0x3c8] sm:$0xff]
      %v2919 = vld [vmem:[%s8 + $0x3d0] sm:$0xff]
      %v2920 = vld [vmem:[%s8 + $0x3d8] sm:$0xff]
      %v2921 = vld [vmem:[%s8 + $0x3e0] sm:$0xff]
      %v2922 = vld [vmem:[%s8 + $0x3e8] sm:$0xff]
      %v2923 = vld [vmem:[%s8 + $0x3f0] sm:$0xff]
      %v2924 = vld [vmem:[%s8 + $0x3f8] sm:$0xff]
      %2926 = vset.pattern.permute.xlu0 0
      %2927 = vperm.xlu0 %2926, %v2797
      %v2928 = vpop.permute.xlu0 %2927
      %2931 = vset.pattern.permute.xlu0 0
      %2932 = vperm.xlu0 %2931, %v2798
      %v2933 = vpop.permute.xlu0 %2932
      %2936 = vset.pattern.permute.xlu0 0
      %2937 = vperm.xlu0 %2936, %v2799
      %v2938 = vpop.permute.xlu0 %2937
      %2941 = vset.pattern.permute.xlu0 0
      %2942 = vperm.xlu0 %2941, %v2800
      %v2943 = vpop.permute.xlu0 %2942
      %2946 = vset.pattern.permute.xlu0 0
      %2947 = vperm.xlu0 %2946, %v2801
      %v2948 = vpop.permute.xlu0 %2947
      %2951 = vset.pattern.permute.xlu0 0
      %2952 = vperm.xlu0 %2951, %v2802
      %v2953 = vpop.permute.xlu0 %2952
      %2956 = vset.pattern.permute.xlu0 0
      %2957 = vperm.xlu0 %2956, %v2803
      %v2958 = vpop.permute.xlu0 %2957
      %2961 = vset.pattern.permute.xlu0 0
      %2962 = vperm.xlu0 %2961, %v2804
      %v2963 = vpop.permute.xlu0 %2962
      %2966 = vset.pattern.permute.xlu0 0
      %2967 = vperm.xlu0 %2966, %v2805
      %v2968 = vpop.permute.xlu0 %2967
      %2971 = vset.pattern.permute.xlu0 0
      %2972 = vperm.xlu0 %2971, %v2806
      %v2973 = vpop.permute.xlu0 %2972
      %2976 = vset.pattern.permute.xlu0 0
      %2977 = vperm.xlu0 %2976, %v2807
      %v2978 = vpop.permute.xlu0 %2977
      %2981 = vset.pattern.permute.xlu0 0
      %2982 = vperm.xlu0 %2981, %v2808
      %v2983 = vpop.permute.xlu0 %2982
      %2986 = vset.pattern.permute.xlu0 0
      %2987 = vperm.xlu0 %2986, %v2809
      %v2988 = vpop.permute.xlu0 %2987
      %2991 = vset.pattern.permute.xlu0 0
      %2992 = vperm.xlu0 %2991, %v2810
      %v2993 = vpop.permute.xlu0 %2992
      %2996 = vset.pattern.permute.xlu0 0
      %2997 = vperm.xlu0 %2996, %v2811
      %v2998 = vpop.permute.xlu0 %2997
      %3001 = vset.pattern.permute.xlu0 0
      %3002 = vperm.xlu0 %3001, %v2812
      %v3003 = vpop.permute.xlu0 %3002
      %3006 = vset.pattern.permute.xlu0 0
      %3007 = vperm.xlu0 %3006, %v2813
      %v3008 = vpop.permute.xlu0 %3007
      %3011 = vset.pattern.permute.xlu0 0
      %3012 = vperm.xlu0 %3011, %v2814
      %v3013 = vpop.permute.xlu0 %3012
      %3016 = vset.pattern.permute.xlu0 0
      %3017 = vperm.xlu0 %3016, %v2815
      %v3018 = vpop.permute.xlu0 %3017
      %3021 = vset.pattern.permute.xlu0 0
      %3022 = vperm.xlu0 %3021, %v2816
      %v3023 = vpop.permute.xlu0 %3022
      %3026 = vset.pattern.permute.xlu0 0
      %3027 = vperm.xlu0 %3026, %v2817
      %v3028 = vpop.permute.xlu0 %3027
      %3031 = vset.pattern.permute.xlu0 0
      %3032 = vperm.xlu0 %3031, %v2818
      %v3033 = vpop.permute.xlu0 %3032
      %3036 = vset.pattern.permute.xlu0 0
      %3037 = vperm.xlu0 %3036, %v2819
      %v3038 = vpop.permute.xlu0 %3037
      %3041 = vset.pattern.permute.xlu0 0
      %3042 = vperm.xlu0 %3041, %v2820
      %v3043 = vpop.permute.xlu0 %3042
      %3046 = vset.pattern.permute.xlu0 0
      %3047 = vperm.xlu0 %3046, %v2821
      %v3048 = vpop.permute.xlu0 %3047
      %3051 = vset.pattern.permute.xlu0 0
      %3052 = vperm.xlu0 %3051, %v2822
      %v3053 = vpop.permute.xlu0 %3052
      %3056 = vset.pattern.permute.xlu0 0
      %3057 = vperm.xlu0 %3056, %v2823
      %v3058 = vpop.permute.xlu0 %3057
      %3061 = vset.pattern.permute.xlu0 0
      %3062 = vperm.xlu0 %3061, %v2824
      %v3063 = vpop.permute.xlu0 %3062
      %3066 = vset.pattern.permute.xlu0 0
      %3067 = vperm.xlu0 %3066, %v2825
      %v3068 = vpop.permute.xlu0 %3067
      %3071 = vset.pattern.permute.xlu0 0
      %3072 = vperm.xlu0 %3071, %v2826
      %v3073 = vpop.permute.xlu0 %3072
      %3076 = vset.pattern.permute.xlu0 0
      %3077 = vperm.xlu0 %3076, %v2827
      %v3078 = vpop.permute.xlu0 %3077
      %3081 = vset.pattern.permute.xlu0 0
      %3082 = vperm.xlu0 %3081, %v2828
      %v3083 = vpop.permute.xlu0 %3082
      %3086 = vset.pattern.permute.xlu0 0
      %3087 = vperm.xlu0 %3086, %v2829
      %v3088 = vpop.permute.xlu0 %3087
      %3091 = vset.pattern.permute.xlu0 0
      %3092 = vperm.xlu0 %3091, %v2830
      %v3093 = vpop.permute.xlu0 %3092
      %3096 = vset.pattern.permute.xlu0 0
      %3097 = vperm.xlu0 %3096, %v2831
      %v3098 = vpop.permute.xlu0 %3097
      %3101 = vset.pattern.permute.xlu0 0
      %3102 = vperm.xlu0 %3101, %v2832
      %v3103 = vpop.permute.xlu0 %3102
      %3106 = vset.pattern.permute.xlu0 0
      %3107 = vperm.xlu0 %3106, %v2833
      %v3108 = vpop.permute.xlu0 %3107
      %3111 = vset.pattern.permute.xlu0 0
      %3112 = vperm.xlu0 %3111, %v2834
      %v3113 = vpop.permute.xlu0 %3112
      %3116 = vset.pattern.permute.xlu0 0
      %3117 = vperm.xlu0 %3116, %v2835
      %v3118 = vpop.permute.xlu0 %3117
      %3121 = vset.pattern.permute.xlu0 0
      %3122 = vperm.xlu0 %3121, %v2836
      %v3123 = vpop.permute.xlu0 %3122
      %3126 = vset.pattern.permute.xlu0 0
      %3127 = vperm.xlu0 %3126, %v2837
      %v3128 = vpop.permute.xlu0 %3127
      %3131 = vset.pattern.permute.xlu0 0
      %3132 = vperm.xlu0 %3131, %v2838
      %v3133 = vpop.permute.xlu0 %3132
      %3136 = vset.pattern.permute.xlu0 0
      %3137 = vperm.xlu0 %3136, %v2839
      %v3138 = vpop.permute.xlu0 %3137
      %3141 = vset.pattern.permute.xlu0 0
      %3142 = vperm.xlu0 %3141, %v2840
      %v3143 = vpop.permute.xlu0 %3142
      %3146 = vset.pattern.permute.xlu0 0
      %3147 = vperm.xlu0 %3146, %v2841
      %v3148 = vpop.permute.xlu0 %3147
      %3151 = vset.pattern.permute.xlu0 0
      %3152 = vperm.xlu0 %3151, %v2842
      %v3153 = vpop.permute.xlu0 %3152
      %3156 = vset.pattern.permute.xlu0 0
      %3157 = vperm.xlu0 %3156, %v2843
      %v3158 = vpop.permute.xlu0 %3157
      %3161 = vset.pattern.permute.xlu0 0
      %3162 = vperm.xlu0 %3161, %v2844
      %v3163 = vpop.permute.xlu0 %3162
      %3166 = vset.pattern.permute.xlu0 0
      %3167 = vperm.xlu0 %3166, %v2845
      %v3168 = vpop.permute.xlu0 %3167
      %3171 = vset.pattern.permute.xlu0 0
      %3172 = vperm.xlu0 %3171, %v2846
      %v3173 = vpop.permute.xlu0 %3172
      %3176 = vset.pattern.permute.xlu0 0
      %3177 = vperm.xlu0 %3176, %v2847
      %v3178 = vpop.permute.xlu0 %3177
      %3181 = vset.pattern.permute.xlu0 0
      %3182 = vperm.xlu0 %3181, %v2848
      %v3183 = vpop.permute.xlu0 %3182
      %3186 = vset.pattern.permute.xlu0 0
      %3187 = vperm.xlu0 %3186, %v2849
      %v3188 = vpop.permute.xlu0 %3187
      %3191 = vset.pattern.permute.xlu0 0
      %3192 = vperm.xlu0 %3191, %v2850
      %v3193 = vpop.permute.xlu0 %3192
      %3196 = vset.pattern.permute.xlu0 0
      %3197 = vperm.xlu0 %3196, %v2851
      %v3198 = vpop.permute.xlu0 %3197
      %3201 = vset.pattern.permute.xlu0 0
      %3202 = vperm.xlu0 %3201, %v2852
      %v3203 = vpop.permute.xlu0 %3202
      %3206 = vset.pattern.permute.xlu0 0
      %3207 = vperm.xlu0 %3206, %v2853
      %v3208 = vpop.permute.xlu0 %3207
      %3211 = vset.pattern.permute.xlu0 0
      %3212 = vperm.xlu0 %3211, %v2854
      %v3213 = vpop.permute.xlu0 %3212
      %3216 = vset.pattern.permute.xlu0 0
      %3217 = vperm.xlu0 %3216, %v2855
      %v3218 = vpop.permute.xlu0 %3217
      %3221 = vset.pattern.permute.xlu0 0
      %3222 = vperm.xlu0 %3221, %v2856
      %v3223 = vpop.permute.xlu0 %3222
      %3226 = vset.pattern.permute.xlu0 0
      %3227 = vperm.xlu0 %3226, %v2857
      %v3228 = vpop.permute.xlu0 %3227
      %3231 = vset.pattern.permute.xlu0 0
      %3232 = vperm.xlu0 %3231, %v2858
      %v3233 = vpop.permute.xlu0 %3232
      %3236 = vset.pattern.permute.xlu0 0
      %3237 = vperm.xlu0 %3236, %v2859
      %v3238 = vpop.permute.xlu0 %3237
      %3241 = vset.pattern.permute.xlu0 0
      %3242 = vperm.xlu0 %3241, %v2860
      %v3243 = vpop.permute.xlu0 %3242
      %3246 = vset.pattern.permute.xlu0 0
      %3247 = vperm.xlu0 %3246, %v2861
      %v3248 = vpop.permute.xlu0 %3247
      %3251 = vset.pattern.permute.xlu0 0
      %3252 = vperm.xlu0 %3251, %v2862
      %v3253 = vpop.permute.xlu0 %3252
      %3256 = vset.pattern.permute.xlu0 0
      %3257 = vperm.xlu0 %3256, %v2863
      %v3258 = vpop.permute.xlu0 %3257
      %3261 = vset.pattern.permute.xlu0 0
      %3262 = vperm.xlu0 %3261, %v2864
      %v3263 = vpop.permute.xlu0 %3262
      %3266 = vset.pattern.permute.xlu0 0
      %3267 = vperm.xlu0 %3266, %v2865
      %v3268 = vpop.permute.xlu0 %3267
      %3271 = vset.pattern.permute.xlu0 0
      %3272 = vperm.xlu0 %3271, %v2866
      %v3273 = vpop.permute.xlu0 %3272
      %3276 = vset.pattern.permute.xlu0 0
      %3277 = vperm.xlu0 %3276, %v2867
      %v3278 = vpop.permute.xlu0 %3277
      %3281 = vset.pattern.permute.xlu0 0
      %3282 = vperm.xlu0 %3281, %v2868
      %v3283 = vpop.permute.xlu0 %3282
      %3286 = vset.pattern.permute.xlu0 0
      %3287 = vperm.xlu0 %3286, %v2869
      %v3288 = vpop.permute.xlu0 %3287
      %3291 = vset.pattern.permute.xlu0 0
      %3292 = vperm.xlu0 %3291, %v2870
      %v3293 = vpop.permute.xlu0 %3292
      %3296 = vset.pattern.permute.xlu0 0
      %3297 = vperm.xlu0 %3296, %v2871
      %v3298 = vpop.permute.xlu0 %3297
      %3301 = vset.pattern.permute.xlu0 0
      %3302 = vperm.xlu0 %3301, %v2872
      %v3303 = vpop.permute.xlu0 %3302
      %3306 = vset.pattern.permute.xlu0 0
      %3307 = vperm.xlu0 %3306, %v2873
      %v3308 = vpop.permute.xlu0 %3307
      %3311 = vset.pattern.permute.xlu0 0
      %3312 = vperm.xlu0 %3311, %v2874
      %v3313 = vpop.permute.xlu0 %3312
      %3316 = vset.pattern.permute.xlu0 0
      %3317 = vperm.xlu0 %3316, %v2875
      %v3318 = vpop.permute.xlu0 %3317
      %3321 = vset.pattern.permute.xlu0 0
      %3322 = vperm.xlu0 %3321, %v2876
      %v3323 = vpop.permute.xlu0 %3322
      %3326 = vset.pattern.permute.xlu0 0
      %3327 = vperm.xlu0 %3326, %v2877
      %v3328 = vpop.permute.xlu0 %3327
      %3331 = vset.pattern.permute.xlu0 0
      %3332 = vperm.xlu0 %3331, %v2878
      %v3333 = vpop.permute.xlu0 %3332
      %3336 = vset.pattern.permute.xlu0 0
      %3337 = vperm.xlu0 %3336, %v2879
      %v3338 = vpop.permute.xlu0 %3337
      %3341 = vset.pattern.permute.xlu0 0
      %3342 = vperm.xlu0 %3341, %v2880
      %v3343 = vpop.permute.xlu0 %3342
      %3346 = vset.pattern.permute.xlu0 0
      %3347 = vperm.xlu0 %3346, %v2881
      %v3348 = vpop.permute.xlu0 %3347
      %3351 = vset.pattern.permute.xlu0 0
      %3352 = vperm.xlu0 %3351, %v2882
      %v3353 = vpop.permute.xlu0 %3352
      %3356 = vset.pattern.permute.xlu0 0
      %3357 = vperm.xlu0 %3356, %v2883
      %v3358 = vpop.permute.xlu0 %3357
      %3361 = vset.pattern.permute.xlu0 0
      %3362 = vperm.xlu0 %3361, %v2884
      %v3363 = vpop.permute.xlu0 %3362
      %3366 = vset.pattern.permute.xlu0 0
      %3367 = vperm.xlu0 %3366, %v2885
      %v3368 = vpop.permute.xlu0 %3367
      %3371 = vset.pattern.permute.xlu0 0
      %3372 = vperm.xlu0 %3371, %v2886
      %v3373 = vpop.permute.xlu0 %3372
      %3376 = vset.pattern.permute.xlu0 0
      %3377 = vperm.xlu0 %3376, %v2887
      %v3378 = vpop.permute.xlu0 %3377
      %3381 = vset.pattern.permute.xlu0 0
      %3382 = vperm.xlu0 %3381, %v2888
      %v3383 = vpop.permute.xlu0 %3382
      %3386 = vset.pattern.permute.xlu0 0
      %3387 = vperm.xlu0 %3386, %v2889
      %v3388 = vpop.permute.xlu0 %3387
      %3391 = vset.pattern.permute.xlu0 0
      %3392 = vperm.xlu0 %3391, %v2890
      %v3393 = vpop.permute.xlu0 %3392
      %3396 = vset.pattern.permute.xlu0 0
      %3397 = vperm.xlu0 %3396, %v2891
      %v3398 = vpop.permute.xlu0 %3397
      %3401 = vset.pattern.permute.xlu0 0
      %3402 = vperm.xlu0 %3401, %v2892
      %v3403 = vpop.permute.xlu0 %3402
      %3406 = vset.pattern.permute.xlu0 0
      %3407 = vperm.xlu0 %3406, %v2893
      %v3408 = vpop.permute.xlu0 %3407
      %3411 = vset.pattern.permute.xlu0 0
      %3412 = vperm.xlu0 %3411, %v2894
      %v3413 = vpop.permute.xlu0 %3412
      %3416 = vset.pattern.permute.xlu0 0
      %3417 = vperm.xlu0 %3416, %v2895
      %v3418 = vpop.permute.xlu0 %3417
      %3421 = vset.pattern.permute.xlu0 0
      %3422 = vperm.xlu0 %3421, %v2896
      %v3423 = vpop.permute.xlu0 %3422
      %3426 = vset.pattern.permute.xlu0 0
      %3427 = vperm.xlu0 %3426, %v2897
      %v3428 = vpop.permute.xlu0 %3427
      %3431 = vset.pattern.permute.xlu0 0
      %3432 = vperm.xlu0 %3431, %v2898
      %v3433 = vpop.permute.xlu0 %3432
      %3436 = vset.pattern.permute.xlu0 0
      %3437 = vperm.xlu0 %3436, %v2899
      %v3438 = vpop.permute.xlu0 %3437
      %3441 = vset.pattern.permute.xlu0 0
      %3442 = vperm.xlu0 %3441, %v2900
      %v3443 = vpop.permute.xlu0 %3442
      %3446 = vset.pattern.permute.xlu0 0
      %3447 = vperm.xlu0 %3446, %v2901
      %v3448 = vpop.permute.xlu0 %3447
      %3451 = vset.pattern.permute.xlu0 0
      %3452 = vperm.xlu0 %3451, %v2902
      %v3453 = vpop.permute.xlu0 %3452
      %3456 = vset.pattern.permute.xlu0 0
      %3457 = vperm.xlu0 %3456, %v2903
      %v3458 = vpop.permute.xlu0 %3457
      %3461 = vset.pattern.permute.xlu0 0
      %3462 = vperm.xlu0 %3461, %v2904
      %v3463 = vpop.permute.xlu0 %3462
      %3466 = vset.pattern.permute.xlu0 0
      %3467 = vperm.xlu0 %3466, %v2905
      %v3468 = vpop.permute.xlu0 %3467
      %3471 = vset.pattern.permute.xlu0 0
      %3472 = vperm.xlu0 %3471, %v2906
      %v3473 = vpop.permute.xlu0 %3472
      %3476 = vset.pattern.permute.xlu0 0
      %3477 = vperm.xlu0 %3476, %v2907
      %v3478 = vpop.permute.xlu0 %3477
      %3481 = vset.pattern.permute.xlu0 0
      %3482 = vperm.xlu0 %3481, %v2908
      %v3483 = vpop.permute.xlu0 %3482
      %3486 = vset.pattern.permute.xlu0 0
      %3487 = vperm.xlu0 %3486, %v2909
      %v3488 = vpop.permute.xlu0 %3487
      %3491 = vset.pattern.permute.xlu0 0
      %3492 = vperm.xlu0 %3491, %v2910
      %v3493 = vpop.permute.xlu0 %3492
      %3496 = vset.pattern.permute.xlu0 0
      %3497 = vperm.xlu0 %3496, %v2911
      %v3498 = vpop.permute.xlu0 %3497
      %3501 = vset.pattern.permute.xlu0 0
      %3502 = vperm.xlu0 %3501, %v2912
      %v3503 = vpop.permute.xlu0 %3502
      %3506 = vset.pattern.permute.xlu0 0
      %3507 = vperm.xlu0 %3506, %v2913
      %v3508 = vpop.permute.xlu0 %3507
      %3511 = vset.pattern.permute.xlu0 0
      %3512 = vperm.xlu0 %3511, %v2914
      %v3513 = vpop.permute.xlu0 %3512
      %3516 = vset.pattern.permute.xlu0 0
      %3517 = vperm.xlu0 %3516, %v2915
      %v3518 = vpop.permute.xlu0 %3517
      %3521 = vset.pattern.permute.xlu0 0
      %3522 = vperm.xlu0 %3521, %v2916
      %v3523 = vpop.permute.xlu0 %3522
      %3526 = vset.pattern.permute.xlu0 0
      %3527 = vperm.xlu0 %3526, %v2917
      %v3528 = vpop.permute.xlu0 %3527
      %3531 = vset.pattern.permute.xlu0 0
      %3532 = vperm.xlu0 %3531, %v2918
      %v3533 = vpop.permute.xlu0 %3532
      %3536 = vset.pattern.permute.xlu0 0
      %3537 = vperm.xlu0 %3536, %v2919
      %v3538 = vpop.permute.xlu0 %3537
      %3541 = vset.pattern.permute.xlu0 0
      %3542 = vperm.xlu0 %3541, %v2920
      %v3543 = vpop.permute.xlu0 %3542
      %3546 = vset.pattern.permute.xlu0 0
      %3547 = vperm.xlu0 %3546, %v2921
      %v3548 = vpop.permute.xlu0 %3547
      %3551 = vset.pattern.permute.xlu0 0
      %3552 = vperm.xlu0 %3551, %v2922
      %v3553 = vpop.permute.xlu0 %3552
      %3556 = vset.pattern.permute.xlu0 0
      %3557 = vperm.xlu0 %3556, %v2923
      %v3558 = vpop.permute.xlu0 %3557
      %3561 = vset.pattern.permute.xlu0 0
      %3562 = vperm.xlu0 %3561, %v2924
      %v3563 = vpop.permute.xlu0 %3562
      %v3565 = vmul.f32 %v2159, %v2928
      %v3566 = vmul.f32 %v2161, %v2928
      %v3567 = vmul.f32 %v2163, %v2933
      %v3568 = vmul.f32 %v2165, %v2933
      %v3569 = vmul.f32 %v2169, %v2938
      %v3570 = vmul.f32 %v2171, %v2938
      %v3571 = vmul.f32 %v2173, %v2943
      %v3572 = vmul.f32 %v2175, %v2943
      %v3573 = vmul.f32 %v2179, %v2948
      %v3574 = vmul.f32 %v2181, %v2948
      %v3575 = vmul.f32 %v2183, %v2953
      %v3576 = vmul.f32 %v2185, %v2953
      %v3577 = vmul.f32 %v2189, %v2958
      %v3578 = vmul.f32 %v2191, %v2958
      %v3579 = vmul.f32 %v2193, %v2963
      %v3580 = vmul.f32 %v2195, %v2963
      %v3581 = vmul.f32 %v2199, %v2968
      %v3582 = vmul.f32 %v2201, %v2968
      %v3583 = vmul.f32 %v2203, %v2973
      %v3584 = vmul.f32 %v2205, %v2973
      %v3585 = vmul.f32 %v2209, %v2978
      %v3586 = vmul.f32 %v2211, %v2978
      %v3587 = vmul.f32 %v2213, %v2983
      %v3588 = vmul.f32 %v2215, %v2983
      %v3589 = vmul.f32 %v2219, %v2988
      %v3590 = vmul.f32 %v2221, %v2988
      %v3591 = vmul.f32 %v2223, %v2993
      %v3592 = vmul.f32 %v2225, %v2993
      %v3593 = vmul.f32 %v2229, %v2998
      %v3594 = vmul.f32 %v2231, %v2998
      %v3595 = vmul.f32 %v2233, %v3003
      %v3596 = vmul.f32 %v2235, %v3003
      %v3597 = vmul.f32 %v2239, %v3008
      %v3598 = vmul.f32 %v2241, %v3008
      %v3599 = vmul.f32 %v2243, %v3013
      %v3600 = vmul.f32 %v2245, %v3013
      %v3601 = vmul.f32 %v2249, %v3018
      %v3602 = vmul.f32 %v2251, %v3018
      %v3603 = vmul.f32 %v2253, %v3023
      %v3604 = vmul.f32 %v2255, %v3023
      %v3605 = vmul.f32 %v2259, %v3028
      %v3606 = vmul.f32 %v2261, %v3028
      %v3607 = vmul.f32 %v2263, %v3033
      %v3608 = vmul.f32 %v2265, %v3033
      %v3609 = vmul.f32 %v2269, %v3038
      %v3610 = vmul.f32 %v2271, %v3038
      %v3611 = vmul.f32 %v2273, %v3043
      %v3612 = vmul.f32 %v2275, %v3043
      %v3613 = vmul.f32 %v2279, %v3048
      %v3614 = vmul.f32 %v2281, %v3048
      %v3615 = vmul.f32 %v2283, %v3053
      %v3616 = vmul.f32 %v2285, %v3053
      %v3617 = vmul.f32 %v2289, %v3058
      %v3618 = vmul.f32 %v2291, %v3058
      %v3619 = vmul.f32 %v2293, %v3063
      %v3620 = vmul.f32 %v2295, %v3063
      %v3621 = vmul.f32 %v2299, %v3068
      %v3622 = vmul.f32 %v2301, %v3068
      %v3623 = vmul.f32 %v2303, %v3073
      %v3624 = vmul.f32 %v2305, %v3073
      %v3625 = vmul.f32 %v2309, %v3078
      %v3626 = vmul.f32 %v2311, %v3078
      %v3627 = vmul.f32 %v2313, %v3083
      %v3628 = vmul.f32 %v2315, %v3083
      %v3629 = vmul.f32 %v2319, %v3088
      %v3630 = vmul.f32 %v2321, %v3088
      %v3631 = vmul.f32 %v2323, %v3093
      %v3632 = vmul.f32 %v2325, %v3093
      %v3633 = vmul.f32 %v2329, %v3098
      %v3634 = vmul.f32 %v2331, %v3098
      %v3635 = vmul.f32 %v2333, %v3103
      %v3636 = vmul.f32 %v2335, %v3103
      %v3637 = vmul.f32 %v2339, %v3108
      %v3638 = vmul.f32 %v2341, %v3108
      %v3639 = vmul.f32 %v2343, %v3113
      %v3640 = vmul.f32 %v2345, %v3113
      %v3641 = vmul.f32 %v2349, %v3118
      %v3642 = vmul.f32 %v2351, %v3118
      %v3643 = vmul.f32 %v2353, %v3123
      %v3644 = vmul.f32 %v2355, %v3123
      %v3645 = vmul.f32 %v2359, %v3128
      %v3646 = vmul.f32 %v2361, %v3128
      %v3647 = vmul.f32 %v2363, %v3133
      %v3648 = vmul.f32 %v2365, %v3133
      %v3649 = vmul.f32 %v2369, %v3138
      %v3650 = vmul.f32 %v2371, %v3138
      %v3651 = vmul.f32 %v2373, %v3143
      %v3652 = vmul.f32 %v2375, %v3143
      %v3653 = vmul.f32 %v2379, %v3148
      %v3654 = vmul.f32 %v2381, %v3148
      %v3655 = vmul.f32 %v2383, %v3153
      %v3656 = vmul.f32 %v2385, %v3153
      %v3657 = vmul.f32 %v2389, %v3158
      %v3658 = vmul.f32 %v2391, %v3158
      %v3659 = vmul.f32 %v2393, %v3163
      %v3660 = vmul.f32 %v2395, %v3163
      %v3661 = vmul.f32 %v2399, %v3168
      %v3662 = vmul.f32 %v2401, %v3168
      %v3663 = vmul.f32 %v2403, %v3173
      %v3664 = vmul.f32 %v2405, %v3173
      %v3665 = vmul.f32 %v2409, %v3178
      %v3666 = vmul.f32 %v2411, %v3178
      %v3667 = vmul.f32 %v2413, %v3183
      %v3668 = vmul.f32 %v2415, %v3183
      %v3669 = vmul.f32 %v2419, %v3188
      %v3670 = vmul.f32 %v2421, %v3188
      %v3671 = vmul.f32 %v2423, %v3193
      %v3672 = vmul.f32 %v2425, %v3193
      %v3673 = vmul.f32 %v2429, %v3198
      %v3674 = vmul.f32 %v2431, %v3198
      %v3675 = vmul.f32 %v2433, %v3203
      %v3676 = vmul.f32 %v2435, %v3203
      %v3677 = vmul.f32 %v2439, %v3208
      %v3678 = vmul.f32 %v2441, %v3208
      %v3679 = vmul.f32 %v2443, %v3213
      %v3680 = vmul.f32 %v2445, %v3213
      %v3681 = vmul.f32 %v2449, %v3218
      %v3682 = vmul.f32 %v2451, %v3218
      %v3683 = vmul.f32 %v2453, %v3223
      %v3684 = vmul.f32 %v2455, %v3223
      %v3685 = vmul.f32 %v2459, %v3228
      %v3686 = vmul.f32 %v2461, %v3228
      %v3687 = vmul.f32 %v2463, %v3233
      %v3688 = vmul.f32 %v2465, %v3233
      %v3689 = vmul.f32 %v2469, %v3238
      %v3690 = vmul.f32 %v2471, %v3238
      %v3691 = vmul.f32 %v2473, %v3243
      %v3692 = vmul.f32 %v2475, %v3243
      %v3693 = vmul.f32 %v2479, %v3248
      %v3694 = vmul.f32 %v2481, %v3248
      %v3695 = vmul.f32 %v2483, %v3253
      %v3696 = vmul.f32 %v2485, %v3253
      %v3697 = vmul.f32 %v2489, %v3258
      %v3698 = vmul.f32 %v2491, %v3258
      %v3699 = vmul.f32 %v2493, %v3263
      %v3700 = vmul.f32 %v2495, %v3263
      %v3701 = vmul.f32 %v2499, %v3268
      %v3702 = vmul.f32 %v2501, %v3268
      %v3703 = vmul.f32 %v2503, %v3273
      %v3704 = vmul.f32 %v2505, %v3273
      %v3705 = vmul.f32 %v2509, %v3278
      %v3706 = vmul.f32 %v2511, %v3278
      %v3707 = vmul.f32 %v2513, %v3283
      %v3708 = vmul.f32 %v2515, %v3283
      %v3709 = vmul.f32 %v2519, %v3288
      %v3710 = vmul.f32 %v2521, %v3288
      %v3711 = vmul.f32 %v2523, %v3293
      %v3712 = vmul.f32 %v2525, %v3293
      %v3713 = vmul.f32 %v2529, %v3298
      %v3714 = vmul.f32 %v2531, %v3298
      %v3715 = vmul.f32 %v2533, %v3303
      %v3716 = vmul.f32 %v2535, %v3303
      %v3717 = vmul.f32 %v2539, %v3308
      %v3718 = vmul.f32 %v2541, %v3308
      %v3719 = vmul.f32 %v2543, %v3313
      %v3720 = vmul.f32 %v2545, %v3313
      %v3721 = vmul.f32 %v2549, %v3318
      %v3722 = vmul.f32 %v2551, %v3318
      %v3723 = vmul.f32 %v2553, %v3323
      %v3724 = vmul.f32 %v2555, %v3323
      %v3725 = vmul.f32 %v2559, %v3328
      %v3726 = vmul.f32 %v2561, %v3328
      %v3727 = vmul.f32 %v2563, %v3333
      %v3728 = vmul.f32 %v2565, %v3333
      %v3729 = vmul.f32 %v2569, %v3338
      %v3730 = vmul.f32 %v2571, %v3338
      %v3731 = vmul.f32 %v2573, %v3343
      %v3732 = vmul.f32 %v2575, %v3343
      %v3733 = vmul.f32 %v2579, %v3348
      %v3734 = vmul.f32 %v2581, %v3348
      %v3735 = vmul.f32 %v2583, %v3353
      %v3736 = vmul.f32 %v2585, %v3353
      %v3737 = vmul.f32 %v2589, %v3358
      %v3738 = vmul.f32 %v2591, %v3358
      %v3739 = vmul.f32 %v2593, %v3363
      %v3740 = vmul.f32 %v2595, %v3363
      %v3741 = vmul.f32 %v2599, %v3368
      %v3742 = vmul.f32 %v2601, %v3368
      %v3743 = vmul.f32 %v2603, %v3373
      %v3744 = vmul.f32 %v2605, %v3373
      %v3745 = vmul.f32 %v2609, %v3378
      %v3746 = vmul.f32 %v2611, %v3378
      %v3747 = vmul.f32 %v2613, %v3383
      %v3748 = vmul.f32 %v2615, %v3383
      %v3749 = vmul.f32 %v2619, %v3388
      %v3750 = vmul.f32 %v2621, %v3388
      %v3751 = vmul.f32 %v2623, %v3393
      %v3752 = vmul.f32 %v2625, %v3393
      %v3753 = vmul.f32 %v2629, %v3398
      %v3754 = vmul.f32 %v2631, %v3398
      %v3755 = vmul.f32 %v2633, %v3403
      %v3756 = vmul.f32 %v2635, %v3403
      %v3757 = vmul.f32 %v2639, %v3408
      %v3758 = vmul.f32 %v2641, %v3408
      %v3759 = vmul.f32 %v2643, %v3413
      %v3760 = vmul.f32 %v2645, %v3413
      %v3761 = vmul.f32 %v2649, %v3418
      %v3762 = vmul.f32 %v2651, %v3418
      %v3763 = vmul.f32 %v2653, %v3423
      %v3764 = vmul.f32 %v2655, %v3423
      %v3765 = vmul.f32 %v2659, %v3428
      %v3766 = vmul.f32 %v2661, %v3428
      %v3767 = vmul.f32 %v2663, %v3433
      %v3768 = vmul.f32 %v2665, %v3433
      %v3769 = vmul.f32 %v2669, %v3438
      %v3770 = vmul.f32 %v2671, %v3438
      %v3771 = vmul.f32 %v2673, %v3443
      %v3772 = vmul.f32 %v2675, %v3443
      %v3773 = vmul.f32 %v2679, %v3448
      %v3774 = vmul.f32 %v2681, %v3448
      %v3775 = vmul.f32 %v2683, %v3453
      %v3776 = vmul.f32 %v2685, %v3453
      %v3777 = vmul.f32 %v2689, %v3458
      %v3778 = vmul.f32 %v2691, %v3458
      %v3779 = vmul.f32 %v2693, %v3463
      %v3780 = vmul.f32 %v2695, %v3463
      %v3781 = vmul.f32 %v2699, %v3468
      %v3782 = vmul.f32 %v2701, %v3468
      %v3783 = vmul.f32 %v2703, %v3473
      %v3784 = vmul.f32 %v2705, %v3473
      %v3785 = vmul.f32 %v2709, %v3478
      %v3786 = vmul.f32 %v2711, %v3478
      %v3787 = vmul.f32 %v2713, %v3483
      %v3788 = vmul.f32 %v2715, %v3483
      %v3789 = vmul.f32 %v2719, %v3488
      %v3790 = vmul.f32 %v2721, %v3488
      %v3791 = vmul.f32 %v2723, %v3493
      %v3792 = vmul.f32 %v2725, %v3493
      %v3793 = vmul.f32 %v2729, %v3498
      %v3794 = vmul.f32 %v2731, %v3498
      %v3795 = vmul.f32 %v2733, %v3503
      %v3796 = vmul.f32 %v2735, %v3503
      %v3797 = vmul.f32 %v2739, %v3508
      %v3798 = vmul.f32 %v2741, %v3508
      %v3799 = vmul.f32 %v2743, %v3513
      %v3800 = vmul.f32 %v2745, %v3513
      %v3801 = vmul.f32 %v2749, %v3518
      %v3802 = vmul.f32 %v2751, %v3518
      %v3803 = vmul.f32 %v2753, %v3523
      %v3804 = vmul.f32 %v2755, %v3523
      %v3805 = vmul.f32 %v2759, %v3528
      %v3806 = vmul.f32 %v2761, %v3528
      %v3807 = vmul.f32 %v2763, %v3533
      %v3808 = vmul.f32 %v2765, %v3533
      %v3809 = vmul.f32 %v2769, %v3538
      %v3810 = vmul.f32 %v2771, %v3538
      %v3811 = vmul.f32 %v2773, %v3543
      %v3812 = vmul.f32 %v2775, %v3543
      %v3813 = vmul.f32 %v2779, %v3548
      %v3814 = vmul.f32 %v2781, %v3548
      %v3815 = vmul.f32 %v2783, %v3553
      %v3816 = vmul.f32 %v2785, %v3553
      %v3817 = vmul.f32 %v2789, %v3558
      %v3818 = vmul.f32 %v2791, %v3558
      %v3819 = vmul.f32 %v2793, %v3563
      %v3820 = vmul.f32 %v2795, %v3563
      %v3821 = vld [vmem:[%s9] sm:$0xff]
      %v3822 = vld [vmem:[%s9 + $0x8] sm:$0xff]
      %v3823 = vld [vmem:[%s9 + $0x10] sm:$0xff]
      %v3824 = vld [vmem:[%s9 + $0x18] sm:$0xff]
      %v3825 = vld [vmem:[%s9 + $0x20] sm:$0xff]
      %v3826 = vld [vmem:[%s9 + $0x28] sm:$0xff]
      %v3827 = vld [vmem:[%s9 + $0x30] sm:$0xff]
      %v3828 = vld [vmem:[%s9 + $0x38] sm:$0xff]
      %v3829 = vld [vmem:[%s9 + $0x40] sm:$0xff]
      %v3830 = vld [vmem:[%s9 + $0x48] sm:$0xff]
      %v3831 = vld [vmem:[%s9 + $0x50] sm:$0xff]
      %v3832 = vld [vmem:[%s9 + $0x58] sm:$0xff]
      %v3833 = vld [vmem:[%s9 + $0x60] sm:$0xff]
      %v3834 = vld [vmem:[%s9 + $0x68] sm:$0xff]
      %v3835 = vld [vmem:[%s9 + $0x70] sm:$0xff]
      %v3836 = vld [vmem:[%s9 + $0x78] sm:$0xff]
      %v3837 = vld [vmem:[%s9 + $0x80] sm:$0xff]
      %v3838 = vld [vmem:[%s9 + $0x88] sm:$0xff]
      %v3839 = vld [vmem:[%s9 + $0x90] sm:$0xff]
      %v3840 = vld [vmem:[%s9 + $0x98] sm:$0xff]
      %v3841 = vld [vmem:[%s9 + $0xa0] sm:$0xff]
      %v3842 = vld [vmem:[%s9 + $0xa8] sm:$0xff]
      %v3843 = vld [vmem:[%s9 + $0xb0] sm:$0xff]
      %v3844 = vld [vmem:[%s9 + $0xb8] sm:$0xff]
      %v3845 = vld [vmem:[%s9 + $0xc0] sm:$0xff]
      %v3846 = vld [vmem:[%s9 + $0xc8] sm:$0xff]
      %v3847 = vld [vmem:[%s9 + $0xd0] sm:$0xff]
      %v3848 = vld [vmem:[%s9 + $0xd8] sm:$0xff]
      %v3849 = vld [vmem:[%s9 + $0xe0] sm:$0xff]
      %v3850 = vld [vmem:[%s9 + $0xe8] sm:$0xff]
      %v3851 = vld [vmem:[%s9 + $0xf0] sm:$0xff]
      %v3852 = vld [vmem:[%s9 + $0xf8] sm:$0xff]
      %v3853 = vld [vmem:[%s9 + $0x100] sm:$0xff]
      %v3854 = vld [vmem:[%s9 + $0x108] sm:$0xff]
      %v3855 = vld [vmem:[%s9 + $0x110] sm:$0xff]
      %v3856 = vld [vmem:[%s9 + $0x118] sm:$0xff]
      %v3857 = vld [vmem:[%s9 + $0x120] sm:$0xff]
      %v3858 = vld [vmem:[%s9 + $0x128] sm:$0xff]
      %v3859 = vld [vmem:[%s9 + $0x130] sm:$0xff]
      %v3860 = vld [vmem:[%s9 + $0x138] sm:$0xff]
      %v3861 = vld [vmem:[%s9 + $0x140] sm:$0xff]
      %v3862 = vld [vmem:[%s9 + $0x148] sm:$0xff]
      %v3863 = vld [vmem:[%s9 + $0x150] sm:$0xff]
      %v3864 = vld [vmem:[%s9 + $0x158] sm:$0xff]
      %v3865 = vld [vmem:[%s9 + $0x160] sm:$0xff]
      %v3866 = vld [vmem:[%s9 + $0x168] sm:$0xff]
      %v3867 = vld [vmem:[%s9 + $0x170] sm:$0xff]
      %v3868 = vld [vmem:[%s9 + $0x178] sm:$0xff]
      %v3869 = vld [vmem:[%s9 + $0x180] sm:$0xff]
      %v3870 = vld [vmem:[%s9 + $0x188] sm:$0xff]
      %v3871 = vld [vmem:[%s9 + $0x190] sm:$0xff]
      %v3872 = vld [vmem:[%s9 + $0x198] sm:$0xff]
      %v3873 = vld [vmem:[%s9 + $0x1a0] sm:$0xff]
      %v3874 = vld [vmem:[%s9 + $0x1a8] sm:$0xff]
      %v3875 = vld [vmem:[%s9 + $0x1b0] sm:$0xff]
      %v3876 = vld [vmem:[%s9 + $0x1b8] sm:$0xff]
      %v3877 = vld [vmem:[%s9 + $0x1c0] sm:$0xff]
      %v3878 = vld [vmem:[%s9 + $0x1c8] sm:$0xff]
      %v3879 = vld [vmem:[%s9 + $0x1d0] sm:$0xff]
      %v3880 = vld [vmem:[%s9 + $0x1d8] sm:$0xff]
      %v3881 = vld [vmem:[%s9 + $0x1e0] sm:$0xff]
      %v3882 = vld [vmem:[%s9 + $0x1e8] sm:$0xff]
      %v3883 = vld [vmem:[%s9 + $0x1f0] sm:$0xff]
      %v3884 = vld [vmem:[%s9 + $0x1f8] sm:$0xff]
      %v3885 = vld [vmem:[%s9 + $0x200] sm:$0xff]
      %v3886 = vld [vmem:[%s9 + $0x208] sm:$0xff]
      %v3887 = vld [vmem:[%s9 + $0x210] sm:$0xff]
      %v3888 = vld [vmem:[%s9 + $0x218] sm:$0xff]
      %v3889 = vld [vmem:[%s9 + $0x220] sm:$0xff]
      %v3890 = vld [vmem:[%s9 + $0x228] sm:$0xff]
      %v3891 = vld [vmem:[%s9 + $0x230] sm:$0xff]
      %v3892 = vld [vmem:[%s9 + $0x238] sm:$0xff]
      %v3893 = vld [vmem:[%s9 + $0x240] sm:$0xff]
      %v3894 = vld [vmem:[%s9 + $0x248] sm:$0xff]
      %v3895 = vld [vmem:[%s9 + $0x250] sm:$0xff]
      %v3896 = vld [vmem:[%s9 + $0x258] sm:$0xff]
      %v3897 = vld [vmem:[%s9 + $0x260] sm:$0xff]
      %v3898 = vld [vmem:[%s9 + $0x268] sm:$0xff]
      %v3899 = vld [vmem:[%s9 + $0x270] sm:$0xff]
      %v3900 = vld [vmem:[%s9 + $0x278] sm:$0xff]
      %v3901 = vld [vmem:[%s9 + $0x280] sm:$0xff]
      %v3902 = vld [vmem:[%s9 + $0x288] sm:$0xff]
      %v3903 = vld [vmem:[%s9 + $0x290] sm:$0xff]
      %v3904 = vld [vmem:[%s9 + $0x298] sm:$0xff]
      %v3905 = vld [vmem:[%s9 + $0x2a0] sm:$0xff]
      %v3906 = vld [vmem:[%s9 + $0x2a8] sm:$0xff]
      %v3907 = vld [vmem:[%s9 + $0x2b0] sm:$0xff]
      %v3908 = vld [vmem:[%s9 + $0x2b8] sm:$0xff]
      %v3909 = vld [vmem:[%s9 + $0x2c0] sm:$0xff]
      %v3910 = vld [vmem:[%s9 + $0x2c8] sm:$0xff]
      %v3911 = vld [vmem:[%s9 + $0x2d0] sm:$0xff]
      %v3912 = vld [vmem:[%s9 + $0x2d8] sm:$0xff]
      %v3913 = vld [vmem:[%s9 + $0x2e0] sm:$0xff]
      %v3914 = vld [vmem:[%s9 + $0x2e8] sm:$0xff]
      %v3915 = vld [vmem:[%s9 + $0x2f0] sm:$0xff]
      %v3916 = vld [vmem:[%s9 + $0x2f8] sm:$0xff]
      %v3917 = vld [vmem:[%s9 + $0x300] sm:$0xff]
      %v3918 = vld [vmem:[%s9 + $0x308] sm:$0xff]
      %v3919 = vld [vmem:[%s9 + $0x310] sm:$0xff]
      %v3920 = vld [vmem:[%s9 + $0x318] sm:$0xff]
      %v3921 = vld [vmem:[%s9 + $0x320] sm:$0xff]
      %v3922 = vld [vmem:[%s9 + $0x328] sm:$0xff]
      %v3923 = vld [vmem:[%s9 + $0x330] sm:$0xff]
      %v3924 = vld [vmem:[%s9 + $0x338] sm:$0xff]
      %v3925 = vld [vmem:[%s9 + $0x340] sm:$0xff]
      %v3926 = vld [vmem:[%s9 + $0x348] sm:$0xff]
      %v3927 = vld [vmem:[%s9 + $0x350] sm:$0xff]
      %v3928 = vld [vmem:[%s9 + $0x358] sm:$0xff]
      %v3929 = vld [vmem:[%s9 + $0x360] sm:$0xff]
      %v3930 = vld [vmem:[%s9 + $0x368] sm:$0xff]
      %v3931 = vld [vmem:[%s9 + $0x370] sm:$0xff]
      %v3932 = vld [vmem:[%s9 + $0x378] sm:$0xff]
      %v3933 = vld [vmem:[%s9 + $0x380] sm:$0xff]
      %v3934 = vld [vmem:[%s9 + $0x388] sm:$0xff]
      %v3935 = vld [vmem:[%s9 + $0x390] sm:$0xff]
      %v3936 = vld [vmem:[%s9 + $0x398] sm:$0xff]
      %v3937 = vld [vmem:[%s9 + $0x3a0] sm:$0xff]
      %v3938 = vld [vmem:[%s9 + $0x3a8] sm:$0xff]
      %v3939 = vld [vmem:[%s9 + $0x3b0] sm:$0xff]
      %v3940 = vld [vmem:[%s9 + $0x3b8] sm:$0xff]
      %v3941 = vld [vmem:[%s9 + $0x3c0] sm:$0xff]
      %v3942 = vld [vmem:[%s9 + $0x3c8] sm:$0xff]
      %v3943 = vld [vmem:[%s9 + $0x3d0] sm:$0xff]
      %v3944 = vld [vmem:[%s9 + $0x3d8] sm:$0xff]
      %v3945 = vld [vmem:[%s9 + $0x3e0] sm:$0xff]
      %v3946 = vld [vmem:[%s9 + $0x3e8] sm:$0xff]
      %v3947 = vld [vmem:[%s9 + $0x3f0] sm:$0xff]
      %v3948 = vld [vmem:[%s9 + $0x3f8] sm:$0xff]
      %3950 = vset.pattern.permute.xlu0 0
      %3951 = vperm.xlu0 %3950, %v3821
      %v3952 = vpop.permute.xlu0 %3951
      %3955 = vset.pattern.permute.xlu0 0
      %3956 = vperm.xlu0 %3955, %v3822
      %v3957 = vpop.permute.xlu0 %3956
      %3960 = vset.pattern.permute.xlu0 0
      %3961 = vperm.xlu0 %3960, %v3823
      %v3962 = vpop.permute.xlu0 %3961
      %3965 = vset.pattern.permute.xlu0 0
      %3966 = vperm.xlu0 %3965, %v3824
      %v3967 = vpop.permute.xlu0 %3966
      %3970 = vset.pattern.permute.xlu0 0
      %3971 = vperm.xlu0 %3970, %v3825
      %v3972 = vpop.permute.xlu0 %3971
      %3975 = vset.pattern.permute.xlu0 0
      %3976 = vperm.xlu0 %3975, %v3826
      %v3977 = vpop.permute.xlu0 %3976
      %3980 = vset.pattern.permute.xlu0 0
      %3981 = vperm.xlu0 %3980, %v3827
      %v3982 = vpop.permute.xlu0 %3981
      %3985 = vset.pattern.permute.xlu0 0
      %3986 = vperm.xlu0 %3985, %v3828
      %v3987 = vpop.permute.xlu0 %3986
      %3990 = vset.pattern.permute.xlu0 0
      %3991 = vperm.xlu0 %3990, %v3829
      %v3992 = vpop.permute.xlu0 %3991
      %3995 = vset.pattern.permute.xlu0 0
      %3996 = vperm.xlu0 %3995, %v3830
      %v3997 = vpop.permute.xlu0 %3996
      %4000 = vset.pattern.permute.xlu0 0
      %4001 = vperm.xlu0 %4000, %v3831
      %v4002 = vpop.permute.xlu0 %4001
      %4005 = vset.pattern.permute.xlu0 0
      %4006 = vperm.xlu0 %4005, %v3832
      %v4007 = vpop.permute.xlu0 %4006
      %4010 = vset.pattern.permute.xlu0 0
      %4011 = vperm.xlu0 %4010, %v3833
      %v4012 = vpop.permute.xlu0 %4011
      %4015 = vset.pattern.permute.xlu0 0
      %4016 = vperm.xlu0 %4015, %v3834
      %v4017 = vpop.permute.xlu0 %4016
      %4020 = vset.pattern.permute.xlu0 0
      %4021 = vperm.xlu0 %4020, %v3835
      %v4022 = vpop.permute.xlu0 %4021
      %4025 = vset.pattern.permute.xlu0 0
      %4026 = vperm.xlu0 %4025, %v3836
      %v4027 = vpop.permute.xlu0 %4026
      %4030 = vset.pattern.permute.xlu0 0
      %4031 = vperm.xlu0 %4030, %v3837
      %v4032 = vpop.permute.xlu0 %4031
      %4035 = vset.pattern.permute.xlu0 0
      %4036 = vperm.xlu0 %4035, %v3838
      %v4037 = vpop.permute.xlu0 %4036
      %4040 = vset.pattern.permute.xlu0 0
      %4041 = vperm.xlu0 %4040, %v3839
      %v4042 = vpop.permute.xlu0 %4041
      %4045 = vset.pattern.permute.xlu0 0
      %4046 = vperm.xlu0 %4045, %v3840
      %v4047 = vpop.permute.xlu0 %4046
      %4050 = vset.pattern.permute.xlu0 0
      %4051 = vperm.xlu0 %4050, %v3841
      %v4052 = vpop.permute.xlu0 %4051
      %4055 = vset.pattern.permute.xlu0 0
      %4056 = vperm.xlu0 %4055, %v3842
      %v4057 = vpop.permute.xlu0 %4056
      %4060 = vset.pattern.permute.xlu0 0
      %4061 = vperm.xlu0 %4060, %v3843
      %v4062 = vpop.permute.xlu0 %4061
      %4065 = vset.pattern.permute.xlu0 0
      %4066 = vperm.xlu0 %4065, %v3844
      %v4067 = vpop.permute.xlu0 %4066
      %4070 = vset.pattern.permute.xlu0 0
      %4071 = vperm.xlu0 %4070, %v3845
      %v4072 = vpop.permute.xlu0 %4071
      %4075 = vset.pattern.permute.xlu0 0
      %4076 = vperm.xlu0 %4075, %v3846
      %v4077 = vpop.permute.xlu0 %4076
      %4080 = vset.pattern.permute.xlu0 0
      %4081 = vperm.xlu0 %4080, %v3847
      %v4082 = vpop.permute.xlu0 %4081
      %4085 = vset.pattern.permute.xlu0 0
      %4086 = vperm.xlu0 %4085, %v3848
      %v4087 = vpop.permute.xlu0 %4086
      %4090 = vset.pattern.permute.xlu0 0
      %4091 = vperm.xlu0 %4090, %v3849
      %v4092 = vpop.permute.xlu0 %4091
      %4095 = vset.pattern.permute.xlu0 0
      %4096 = vperm.xlu0 %4095, %v3850
      %v4097 = vpop.permute.xlu0 %4096
      %4100 = vset.pattern.permute.xlu0 0
      %4101 = vperm.xlu0 %4100, %v3851
      %v4102 = vpop.permute.xlu0 %4101
      %4105 = vset.pattern.permute.xlu0 0
      %4106 = vperm.xlu0 %4105, %v3852
      %v4107 = vpop.permute.xlu0 %4106
      %4110 = vset.pattern.permute.xlu0 0
      %4111 = vperm.xlu0 %4110, %v3853
      %v4112 = vpop.permute.xlu0 %4111
      %4115 = vset.pattern.permute.xlu0 0
      %4116 = vperm.xlu0 %4115, %v3854
      %v4117 = vpop.permute.xlu0 %4116
      %4120 = vset.pattern.permute.xlu0 0
      %4121 = vperm.xlu0 %4120, %v3855
      %v4122 = vpop.permute.xlu0 %4121
      %4125 = vset.pattern.permute.xlu0 0
      %4126 = vperm.xlu0 %4125, %v3856
      %v4127 = vpop.permute.xlu0 %4126
      %4130 = vset.pattern.permute.xlu0 0
      %4131 = vperm.xlu0 %4130, %v3857
      %v4132 = vpop.permute.xlu0 %4131
      %4135 = vset.pattern.permute.xlu0 0
      %4136 = vperm.xlu0 %4135, %v3858
      %v4137 = vpop.permute.xlu0 %4136
      %4140 = vset.pattern.permute.xlu0 0
      %4141 = vperm.xlu0 %4140, %v3859
      %v4142 = vpop.permute.xlu0 %4141
      %4145 = vset.pattern.permute.xlu0 0
      %4146 = vperm.xlu0 %4145, %v3860
      %v4147 = vpop.permute.xlu0 %4146
      %4150 = vset.pattern.permute.xlu0 0
      %4151 = vperm.xlu0 %4150, %v3861
      %v4152 = vpop.permute.xlu0 %4151
      %4155 = vset.pattern.permute.xlu0 0
      %4156 = vperm.xlu0 %4155, %v3862
      %v4157 = vpop.permute.xlu0 %4156
      %4160 = vset.pattern.permute.xlu0 0
      %4161 = vperm.xlu0 %4160, %v3863
      %v4162 = vpop.permute.xlu0 %4161
      %4165 = vset.pattern.permute.xlu0 0
      %4166 = vperm.xlu0 %4165, %v3864
      %v4167 = vpop.permute.xlu0 %4166
      %4170 = vset.pattern.permute.xlu0 0
      %4171 = vperm.xlu0 %4170, %v3865
      %v4172 = vpop.permute.xlu0 %4171
      %4175 = vset.pattern.permute.xlu0 0
      %4176 = vperm.xlu0 %4175, %v3866
      %v4177 = vpop.permute.xlu0 %4176
      %4180 = vset.pattern.permute.xlu0 0
      %4181 = vperm.xlu0 %4180, %v3867
      %v4182 = vpop.permute.xlu0 %4181
      %4185 = vset.pattern.permute.xlu0 0
      %4186 = vperm.xlu0 %4185, %v3868
      %v4187 = vpop.permute.xlu0 %4186
      %4190 = vset.pattern.permute.xlu0 0
      %4191 = vperm.xlu0 %4190, %v3869
      %v4192 = vpop.permute.xlu0 %4191
      %4195 = vset.pattern.permute.xlu0 0
      %4196 = vperm.xlu0 %4195, %v3870
      %v4197 = vpop.permute.xlu0 %4196
      %4200 = vset.pattern.permute.xlu0 0
      %4201 = vperm.xlu0 %4200, %v3871
      %v4202 = vpop.permute.xlu0 %4201
      %4205 = vset.pattern.permute.xlu0 0
      %4206 = vperm.xlu0 %4205, %v3872
      %v4207 = vpop.permute.xlu0 %4206
      %4210 = vset.pattern.permute.xlu0 0
      %4211 = vperm.xlu0 %4210, %v3873
      %v4212 = vpop.permute.xlu0 %4211
      %4215 = vset.pattern.permute.xlu0 0
      %4216 = vperm.xlu0 %4215, %v3874
      %v4217 = vpop.permute.xlu0 %4216
      %4220 = vset.pattern.permute.xlu0 0
      %4221 = vperm.xlu0 %4220, %v3875
      %v4222 = vpop.permute.xlu0 %4221
      %4225 = vset.pattern.permute.xlu0 0
      %4226 = vperm.xlu0 %4225, %v3876
      %v4227 = vpop.permute.xlu0 %4226
      %4230 = vset.pattern.permute.xlu0 0
      %4231 = vperm.xlu0 %4230, %v3877
      %v4232 = vpop.permute.xlu0 %4231
      %4235 = vset.pattern.permute.xlu0 0
      %4236 = vperm.xlu0 %4235, %v3878
      %v4237 = vpop.permute.xlu0 %4236
      %4240 = vset.pattern.permute.xlu0 0
      %4241 = vperm.xlu0 %4240, %v3879
      %v4242 = vpop.permute.xlu0 %4241
      %4245 = vset.pattern.permute.xlu0 0
      %4246 = vperm.xlu0 %4245, %v3880
      %v4247 = vpop.permute.xlu0 %4246
      %4250 = vset.pattern.permute.xlu0 0
      %4251 = vperm.xlu0 %4250, %v3881
      %v4252 = vpop.permute.xlu0 %4251
      %4255 = vset.pattern.permute.xlu0 0
      %4256 = vperm.xlu0 %4255, %v3882
      %v4257 = vpop.permute.xlu0 %4256
      %4260 = vset.pattern.permute.xlu0 0
      %4261 = vperm.xlu0 %4260, %v3883
      %v4262 = vpop.permute.xlu0 %4261
      %4265 = vset.pattern.permute.xlu0 0
      %4266 = vperm.xlu0 %4265, %v3884
      %v4267 = vpop.permute.xlu0 %4266
      %4270 = vset.pattern.permute.xlu0 0
      %4271 = vperm.xlu0 %4270, %v3885
      %v4272 = vpop.permute.xlu0 %4271
      %4275 = vset.pattern.permute.xlu0 0
      %4276 = vperm.xlu0 %4275, %v3886
      %v4277 = vpop.permute.xlu0 %4276
      %4280 = vset.pattern.permute.xlu0 0
      %4281 = vperm.xlu0 %4280, %v3887
      %v4282 = vpop.permute.xlu0 %4281
      %4285 = vset.pattern.permute.xlu0 0
      %4286 = vperm.xlu0 %4285, %v3888
      %v4287 = vpop.permute.xlu0 %4286
      %4290 = vset.pattern.permute.xlu0 0
      %4291 = vperm.xlu0 %4290, %v3889
      %v4292 = vpop.permute.xlu0 %4291
      %4295 = vset.pattern.permute.xlu0 0
      %4296 = vperm.xlu0 %4295, %v3890
      %v4297 = vpop.permute.xlu0 %4296
      %4300 = vset.pattern.permute.xlu0 0
      %4301 = vperm.xlu0 %4300, %v3891
      %v4302 = vpop.permute.xlu0 %4301
      %4305 = vset.pattern.permute.xlu0 0
      %4306 = vperm.xlu0 %4305, %v3892
      %v4307 = vpop.permute.xlu0 %4306
      %4310 = vset.pattern.permute.xlu0 0
      %4311 = vperm.xlu0 %4310, %v3893
      %v4312 = vpop.permute.xlu0 %4311
      %4315 = vset.pattern.permute.xlu0 0
      %4316 = vperm.xlu0 %4315, %v3894
      %v4317 = vpop.permute.xlu0 %4316
      %4320 = vset.pattern.permute.xlu0 0
      %4321 = vperm.xlu0 %4320, %v3895
      %v4322 = vpop.permute.xlu0 %4321
      %4325 = vset.pattern.permute.xlu0 0
      %4326 = vperm.xlu0 %4325, %v3896
      %v4327 = vpop.permute.xlu0 %4326
      %4330 = vset.pattern.permute.xlu0 0
      %4331 = vperm.xlu0 %4330, %v3897
      %v4332 = vpop.permute.xlu0 %4331
      %4335 = vset.pattern.permute.xlu0 0
      %4336 = vperm.xlu0 %4335, %v3898
      %v4337 = vpop.permute.xlu0 %4336
      %4340 = vset.pattern.permute.xlu0 0
      %4341 = vperm.xlu0 %4340, %v3899
      %v4342 = vpop.permute.xlu0 %4341
      %4345 = vset.pattern.permute.xlu0 0
      %4346 = vperm.xlu0 %4345, %v3900
      %v4347 = vpop.permute.xlu0 %4346
      %4350 = vset.pattern.permute.xlu0 0
      %4351 = vperm.xlu0 %4350, %v3901
      %v4352 = vpop.permute.xlu0 %4351
      %4355 = vset.pattern.permute.xlu0 0
      %4356 = vperm.xlu0 %4355, %v3902
      %v4357 = vpop.permute.xlu0 %4356
      %4360 = vset.pattern.permute.xlu0 0
      %4361 = vperm.xlu0 %4360, %v3903
      %v4362 = vpop.permute.xlu0 %4361
      %4365 = vset.pattern.permute.xlu0 0
      %4366 = vperm.xlu0 %4365, %v3904
      %v4367 = vpop.permute.xlu0 %4366
      %4370 = vset.pattern.permute.xlu0 0
      %4371 = vperm.xlu0 %4370, %v3905
      %v4372 = vpop.permute.xlu0 %4371
      %4375 = vset.pattern.permute.xlu0 0
      %4376 = vperm.xlu0 %4375, %v3906
      %v4377 = vpop.permute.xlu0 %4376
      %4380 = vset.pattern.permute.xlu0 0
      %4381 = vperm.xlu0 %4380, %v3907
      %v4382 = vpop.permute.xlu0 %4381
      %4385 = vset.pattern.permute.xlu0 0
      %4386 = vperm.xlu0 %4385, %v3908
      %v4387 = vpop.permute.xlu0 %4386
      %4390 = vset.pattern.permute.xlu0 0
      %4391 = vperm.xlu0 %4390, %v3909
      %v4392 = vpop.permute.xlu0 %4391
      %4395 = vset.pattern.permute.xlu0 0
      %4396 = vperm.xlu0 %4395, %v3910
      %v4397 = vpop.permute.xlu0 %4396
      %4400 = vset.pattern.permute.xlu0 0
      %4401 = vperm.xlu0 %4400, %v3911
      %v4402 = vpop.permute.xlu0 %4401
      %4405 = vset.pattern.permute.xlu0 0
      %4406 = vperm.xlu0 %4405, %v3912
      %v4407 = vpop.permute.xlu0 %4406
      %4410 = vset.pattern.permute.xlu0 0
      %4411 = vperm.xlu0 %4410, %v3913
      %v4412 = vpop.permute.xlu0 %4411
      %4415 = vset.pattern.permute.xlu0 0
      %4416 = vperm.xlu0 %4415, %v3914
      %v4417 = vpop.permute.xlu0 %4416
      %4420 = vset.pattern.permute.xlu0 0
      %4421 = vperm.xlu0 %4420, %v3915
      %v4422 = vpop.permute.xlu0 %4421
      %4425 = vset.pattern.permute.xlu0 0
      %4426 = vperm.xlu0 %4425, %v3916
      %v4427 = vpop.permute.xlu0 %4426
      %4430 = vset.pattern.permute.xlu0 0
      %4431 = vperm.xlu0 %4430, %v3917
      %v4432 = vpop.permute.xlu0 %4431
      %4435 = vset.pattern.permute.xlu0 0
      %4436 = vperm.xlu0 %4435, %v3918
      %v4437 = vpop.permute.xlu0 %4436
      %4440 = vset.pattern.permute.xlu0 0
      %4441 = vperm.xlu0 %4440, %v3919
      %v4442 = vpop.permute.xlu0 %4441
      %4445 = vset.pattern.permute.xlu0 0
      %4446 = vperm.xlu0 %4445, %v3920
      %v4447 = vpop.permute.xlu0 %4446
      %4450 = vset.pattern.permute.xlu0 0
      %4451 = vperm.xlu0 %4450, %v3921
      %v4452 = vpop.permute.xlu0 %4451
      %4455 = vset.pattern.permute.xlu0 0
      %4456 = vperm.xlu0 %4455, %v3922
      %v4457 = vpop.permute.xlu0 %4456
      %4460 = vset.pattern.permute.xlu0 0
      %4461 = vperm.xlu0 %4460, %v3923
      %v4462 = vpop.permute.xlu0 %4461
      %4465 = vset.pattern.permute.xlu0 0
      %4466 = vperm.xlu0 %4465, %v3924
      %v4467 = vpop.permute.xlu0 %4466
      %4470 = vset.pattern.permute.xlu0 0
      %4471 = vperm.xlu0 %4470, %v3925
      %v4472 = vpop.permute.xlu0 %4471
      %4475 = vset.pattern.permute.xlu0 0
      %4476 = vperm.xlu0 %4475, %v3926
      %v4477 = vpop.permute.xlu0 %4476
      %4480 = vset.pattern.permute.xlu0 0
      %4481 = vperm.xlu0 %4480, %v3927
      %v4482 = vpop.permute.xlu0 %4481
      %4485 = vset.pattern.permute.xlu0 0
      %4486 = vperm.xlu0 %4485, %v3928
      %v4487 = vpop.permute.xlu0 %4486
      %4490 = vset.pattern.permute.xlu0 0
      %4491 = vperm.xlu0 %4490, %v3929
      %v4492 = vpop.permute.xlu0 %4491
      %4495 = vset.pattern.permute.xlu0 0
      %4496 = vperm.xlu0 %4495, %v3930
      %v4497 = vpop.permute.xlu0 %4496
      %4500 = vset.pattern.permute.xlu0 0
      %4501 = vperm.xlu0 %4500, %v3931
      %v4502 = vpop.permute.xlu0 %4501
      %4505 = vset.pattern.permute.xlu0 0
      %4506 = vperm.xlu0 %4505, %v3932
      %v4507 = vpop.permute.xlu0 %4506
      %4510 = vset.pattern.permute.xlu0 0
      %4511 = vperm.xlu0 %4510, %v3933
      %v4512 = vpop.permute.xlu0 %4511
      %4515 = vset.pattern.permute.xlu0 0
      %4516 = vperm.xlu0 %4515, %v3934
      %v4517 = vpop.permute.xlu0 %4516
      %4520 = vset.pattern.permute.xlu0 0
      %4521 = vperm.xlu0 %4520, %v3935
      %v4522 = vpop.permute.xlu0 %4521
      %4525 = vset.pattern.permute.xlu0 0
      %4526 = vperm.xlu0 %4525, %v3936
      %v4527 = vpop.permute.xlu0 %4526
      %4530 = vset.pattern.permute.xlu0 0
      %4531 = vperm.xlu0 %4530, %v3937
      %v4532 = vpop.permute.xlu0 %4531
      %4535 = vset.pattern.permute.xlu0 0
      %4536 = vperm.xlu0 %4535, %v3938
      %v4537 = vpop.permute.xlu0 %4536
      %4540 = vset.pattern.permute.xlu0 0
      %4541 = vperm.xlu0 %4540, %v3939
      %v4542 = vpop.permute.xlu0 %4541
      %4545 = vset.pattern.permute.xlu0 0
      %4546 = vperm.xlu0 %4545, %v3940
      %v4547 = vpop.permute.xlu0 %4546
      %4550 = vset.pattern.permute.xlu0 0
      %4551 = vperm.xlu0 %4550, %v3941
      %v4552 = vpop.permute.xlu0 %4551
      %4555 = vset.pattern.permute.xlu0 0
      %4556 = vperm.xlu0 %4555, %v3942
      %v4557 = vpop.permute.xlu0 %4556
      %4560 = vset.pattern.permute.xlu0 0
      %4561 = vperm.xlu0 %4560, %v3943
      %v4562 = vpop.permute.xlu0 %4561
      %4565 = vset.pattern.permute.xlu0 0
      %4566 = vperm.xlu0 %4565, %v3944
      %v4567 = vpop.permute.xlu0 %4566
      %4570 = vset.pattern.permute.xlu0 0
      %4571 = vperm.xlu0 %4570, %v3945
      %v4572 = vpop.permute.xlu0 %4571
      %4575 = vset.pattern.permute.xlu0 0
      %4576 = vperm.xlu0 %4575, %v3946
      %v4577 = vpop.permute.xlu0 %4576
      %4580 = vset.pattern.permute.xlu0 0
      %4581 = vperm.xlu0 %4580, %v3947
      %v4582 = vpop.permute.xlu0 %4581
      %4585 = vset.pattern.permute.xlu0 0
      %4586 = vperm.xlu0 %4585, %v3948
      %v4587 = vpop.permute.xlu0 %4586
      %v4589 = vadd.f32 %v3565, %v3952
      %v4590 = vadd.f32 %v3566, %v3952
      %v4591 = vadd.f32 %v3567, %v3957
      %v4592 = vadd.f32 %v3568, %v3957
      %v4593 = vadd.f32 %v3569, %v3962
      %v4594 = vadd.f32 %v3570, %v3962
      %v4595 = vadd.f32 %v3571, %v3967
      %v4596 = vadd.f32 %v3572, %v3967
      %v4597 = vadd.f32 %v3573, %v3972
      %v4598 = vadd.f32 %v3574, %v3972
      %v4599 = vadd.f32 %v3575, %v3977
      %v4600 = vadd.f32 %v3576, %v3977
      %v4601 = vadd.f32 %v3577, %v3982
      %v4602 = vadd.f32 %v3578, %v3982
      %v4603 = vadd.f32 %v3579, %v3987
      %v4604 = vadd.f32 %v3580, %v3987
      %v4605 = vadd.f32 %v3581, %v3992
      %v4606 = vadd.f32 %v3582, %v3992
      %v4607 = vadd.f32 %v3583, %v3997
      %v4608 = vadd.f32 %v3584, %v3997
      %v4609 = vadd.f32 %v3585, %v4002
      %v4610 = vadd.f32 %v3586, %v4002
      %v4611 = vadd.f32 %v3587, %v4007
      %v4612 = vadd.f32 %v3588, %v4007
      %v4613 = vadd.f32 %v3589, %v4012
      %v4614 = vadd.f32 %v3590, %v4012
      %v4615 = vadd.f32 %v3591, %v4017
      %v4616 = vadd.f32 %v3592, %v4017
      %v4617 = vadd.f32 %v3593, %v4022
      %v4618 = vadd.f32 %v3594, %v4022
      %v4619 = vadd.f32 %v3595, %v4027
      %v4620 = vadd.f32 %v3596, %v4027
      %v4621 = vadd.f32 %v3597, %v4032
      %v4622 = vadd.f32 %v3598, %v4032
      %v4623 = vadd.f32 %v3599, %v4037
      %v4624 = vadd.f32 %v3600, %v4037
      %v4625 = vadd.f32 %v3601, %v4042
      %v4626 = vadd.f32 %v3602, %v4042
      %v4627 = vadd.f32 %v3603, %v4047
      %v4628 = vadd.f32 %v3604, %v4047
      %v4629 = vadd.f32 %v3605, %v4052
      %v4630 = vadd.f32 %v3606, %v4052
      %v4631 = vadd.f32 %v3607, %v4057
      %v4632 = vadd.f32 %v3608, %v4057
      %v4633 = vadd.f32 %v3609, %v4062
      %v4634 = vadd.f32 %v3610, %v4062
      %v4635 = vadd.f32 %v3611, %v4067
      %v4636 = vadd.f32 %v3612, %v4067
      %v4637 = vadd.f32 %v3613, %v4072
      %v4638 = vadd.f32 %v3614, %v4072
      %v4639 = vadd.f32 %v3615, %v4077
      %v4640 = vadd.f32 %v3616, %v4077
      %v4641 = vadd.f32 %v3617, %v4082
      %v4642 = vadd.f32 %v3618, %v4082
      %v4643 = vadd.f32 %v3619, %v4087
      %v4644 = vadd.f32 %v3620, %v4087
      %v4645 = vadd.f32 %v3621, %v4092
      %v4646 = vadd.f32 %v3622, %v4092
      %v4647 = vadd.f32 %v3623, %v4097
      %v4648 = vadd.f32 %v3624, %v4097
      %v4649 = vadd.f32 %v3625, %v4102
      %v4650 = vadd.f32 %v3626, %v4102
      %v4651 = vadd.f32 %v3627, %v4107
      %v4652 = vadd.f32 %v3628, %v4107
      %v4653 = vadd.f32 %v3629, %v4112
      %v4654 = vadd.f32 %v3630, %v4112
      %v4655 = vadd.f32 %v3631, %v4117
      %v4656 = vadd.f32 %v3632, %v4117
      %v4657 = vadd.f32 %v3633, %v4122
      %v4658 = vadd.f32 %v3634, %v4122
      %v4659 = vadd.f32 %v3635, %v4127
      %v4660 = vadd.f32 %v3636, %v4127
      %v4661 = vadd.f32 %v3637, %v4132
      %v4662 = vadd.f32 %v3638, %v4132
      %v4663 = vadd.f32 %v3639, %v4137
      %v4664 = vadd.f32 %v3640, %v4137
      %v4665 = vadd.f32 %v3641, %v4142
      %v4666 = vadd.f32 %v3642, %v4142
      %v4667 = vadd.f32 %v3643, %v4147
      %v4668 = vadd.f32 %v3644, %v4147
      %v4669 = vadd.f32 %v3645, %v4152
      %v4670 = vadd.f32 %v3646, %v4152
      %v4671 = vadd.f32 %v3647, %v4157
      %v4672 = vadd.f32 %v3648, %v4157
      %v4673 = vadd.f32 %v3649, %v4162
      %v4674 = vadd.f32 %v3650, %v4162
      %v4675 = vadd.f32 %v3651, %v4167
      %v4676 = vadd.f32 %v3652, %v4167
      %v4677 = vadd.f32 %v3653, %v4172
      %v4678 = vadd.f32 %v3654, %v4172
      %v4679 = vadd.f32 %v3655, %v4177
      %v4680 = vadd.f32 %v3656, %v4177
      %v4681 = vadd.f32 %v3657, %v4182
      %v4682 = vadd.f32 %v3658, %v4182
      %v4683 = vadd.f32 %v3659, %v4187
      %v4684 = vadd.f32 %v3660, %v4187
      %v4685 = vadd.f32 %v3661, %v4192
      %v4686 = vadd.f32 %v3662, %v4192
      %v4687 = vadd.f32 %v3663, %v4197
      %v4688 = vadd.f32 %v3664, %v4197
      %v4689 = vadd.f32 %v3665, %v4202
      %v4690 = vadd.f32 %v3666, %v4202
      %v4691 = vadd.f32 %v3667, %v4207
      %v4692 = vadd.f32 %v3668, %v4207
      %v4693 = vadd.f32 %v3669, %v4212
      %v4694 = vadd.f32 %v3670, %v4212
      %v4695 = vadd.f32 %v3671, %v4217
      %v4696 = vadd.f32 %v3672, %v4217
      %v4697 = vadd.f32 %v3673, %v4222
      %v4698 = vadd.f32 %v3674, %v4222
      %v4699 = vadd.f32 %v3675, %v4227
      %v4700 = vadd.f32 %v3676, %v4227
      %v4701 = vadd.f32 %v3677, %v4232
      %v4702 = vadd.f32 %v3678, %v4232
      %v4703 = vadd.f32 %v3679, %v4237
      %v4704 = vadd.f32 %v3680, %v4237
      %v4705 = vadd.f32 %v3681, %v4242
      %v4706 = vadd.f32 %v3682, %v4242
      %v4707 = vadd.f32 %v3683, %v4247
      %v4708 = vadd.f32 %v3684, %v4247
      %v4709 = vadd.f32 %v3685, %v4252
      %v4710 = vadd.f32 %v3686, %v4252
      %v4711 = vadd.f32 %v3687, %v4257
      %v4712 = vadd.f32 %v3688, %v4257
      %v4713 = vadd.f32 %v3689, %v4262
      %v4714 = vadd.f32 %v3690, %v4262
      %v4715 = vadd.f32 %v3691, %v4267
      %v4716 = vadd.f32 %v3692, %v4267
      %v4717 = vadd.f32 %v3693, %v4272
      %v4718 = vadd.f32 %v3694, %v4272
      %v4719 = vadd.f32 %v3695, %v4277
      %v4720 = vadd.f32 %v3696, %v4277
      %v4721 = vadd.f32 %v3697, %v4282
      %v4722 = vadd.f32 %v3698, %v4282
      %v4723 = vadd.f32 %v3699, %v4287
      %v4724 = vadd.f32 %v3700, %v4287
      %v4725 = vadd.f32 %v3701, %v4292
      %v4726 = vadd.f32 %v3702, %v4292
      %v4727 = vadd.f32 %v3703, %v4297
      %v4728 = vadd.f32 %v3704, %v4297
      %v4729 = vadd.f32 %v3705, %v4302
      %v4730 = vadd.f32 %v3706, %v4302
      %v4731 = vadd.f32 %v3707, %v4307
      %v4732 = vadd.f32 %v3708, %v4307
      %v4733 = vadd.f32 %v3709, %v4312
      %v4734 = vadd.f32 %v3710, %v4312
      %v4735 = vadd.f32 %v3711, %v4317
      %v4736 = vadd.f32 %v3712, %v4317
      %v4737 = vadd.f32 %v3713, %v4322
      %v4738 = vadd.f32 %v3714, %v4322
      %v4739 = vadd.f32 %v3715, %v4327
      %v4740 = vadd.f32 %v3716, %v4327
      %v4741 = vadd.f32 %v3717, %v4332
      %v4742 = vadd.f32 %v3718, %v4332
      %v4743 = vadd.f32 %v3719, %v4337
      %v4744 = vadd.f32 %v3720, %v4337
      %v4745 = vadd.f32 %v3721, %v4342
      %v4746 = vadd.f32 %v3722, %v4342
      %v4747 = vadd.f32 %v3723, %v4347
      %v4748 = vadd.f32 %v3724, %v4347
      %v4749 = vadd.f32 %v3725, %v4352
      %v4750 = vadd.f32 %v3726, %v4352
      %v4751 = vadd.f32 %v3727, %v4357
      %v4752 = vadd.f32 %v3728, %v4357
      %v4753 = vadd.f32 %v3729, %v4362
      %v4754 = vadd.f32 %v3730, %v4362
      %v4755 = vadd.f32 %v3731, %v4367
      %v4756 = vadd.f32 %v3732, %v4367
      %v4757 = vadd.f32 %v3733, %v4372
      %v4758 = vadd.f32 %v3734, %v4372
      %v4759 = vadd.f32 %v3735, %v4377
      %v4760 = vadd.f32 %v3736, %v4377
      %v4761 = vadd.f32 %v3737, %v4382
      %v4762 = vadd.f32 %v3738, %v4382
      %v4763 = vadd.f32 %v3739, %v4387
      %v4764 = vadd.f32 %v3740, %v4387
      %v4765 = vadd.f32 %v3741, %v4392
      %v4766 = vadd.f32 %v3742, %v4392
      %v4767 = vadd.f32 %v3743, %v4397
      %v4768 = vadd.f32 %v3744, %v4397
      %v4769 = vadd.f32 %v3745, %v4402
      %v4770 = vadd.f32 %v3746, %v4402
      %v4771 = vadd.f32 %v3747, %v4407
      %v4772 = vadd.f32 %v3748, %v4407
      %v4773 = vadd.f32 %v3749, %v4412
      %v4774 = vadd.f32 %v3750, %v4412
      %v4775 = vadd.f32 %v3751, %v4417
      %v4776 = vadd.f32 %v3752, %v4417
      %v4777 = vadd.f32 %v3753, %v4422
      %v4778 = vadd.f32 %v3754, %v4422
      %v4779 = vadd.f32 %v3755, %v4427
      %v4780 = vadd.f32 %v3756, %v4427
      %v4781 = vadd.f32 %v3757, %v4432
      %v4782 = vadd.f32 %v3758, %v4432
      %v4783 = vadd.f32 %v3759, %v4437
      %v4784 = vadd.f32 %v3760, %v4437
      %v4785 = vadd.f32 %v3761, %v4442
      %v4786 = vadd.f32 %v3762, %v4442
      %v4787 = vadd.f32 %v3763, %v4447
      %v4788 = vadd.f32 %v3764, %v4447
      %v4789 = vadd.f32 %v3765, %v4452
      %v4790 = vadd.f32 %v3766, %v4452
      %v4791 = vadd.f32 %v3767, %v4457
      %v4792 = vadd.f32 %v3768, %v4457
      %v4793 = vadd.f32 %v3769, %v4462
      %v4794 = vadd.f32 %v3770, %v4462
      %v4795 = vadd.f32 %v3771, %v4467
      %v4796 = vadd.f32 %v3772, %v4467
      %v4797 = vadd.f32 %v3773, %v4472
      %v4798 = vadd.f32 %v3774, %v4472
      %v4799 = vadd.f32 %v3775, %v4477
      %v4800 = vadd.f32 %v3776, %v4477
      %v4801 = vadd.f32 %v3777, %v4482
      %v4802 = vadd.f32 %v3778, %v4482
      %v4803 = vadd.f32 %v3779, %v4487
      %v4804 = vadd.f32 %v3780, %v4487
      %v4805 = vadd.f32 %v3781, %v4492
      %v4806 = vadd.f32 %v3782, %v4492
      %v4807 = vadd.f32 %v3783, %v4497
      %v4808 = vadd.f32 %v3784, %v4497
      %v4809 = vadd.f32 %v3785, %v4502
      %v4810 = vadd.f32 %v3786, %v4502
      %v4811 = vadd.f32 %v3787, %v4507
      %v4812 = vadd.f32 %v3788, %v4507
      %v4813 = vadd.f32 %v3789, %v4512
      %v4814 = vadd.f32 %v3790, %v4512
      %v4815 = vadd.f32 %v3791, %v4517
      %v4816 = vadd.f32 %v3792, %v4517
      %v4817 = vadd.f32 %v3793, %v4522
      %v4818 = vadd.f32 %v3794, %v4522
      %v4819 = vadd.f32 %v3795, %v4527
      %v4820 = vadd.f32 %v3796, %v4527
      %v4821 = vadd.f32 %v3797, %v4532
      %v4822 = vadd.f32 %v3798, %v4532
      %v4823 = vadd.f32 %v3799, %v4537
      %v4824 = vadd.f32 %v3800, %v4537
      %v4825 = vadd.f32 %v3801, %v4542
      %v4826 = vadd.f32 %v3802, %v4542
      %v4827 = vadd.f32 %v3803, %v4547
      %v4828 = vadd.f32 %v3804, %v4547
      %v4829 = vadd.f32 %v3805, %v4552
      %v4830 = vadd.f32 %v3806, %v4552
      %v4831 = vadd.f32 %v3807, %v4557
      %v4832 = vadd.f32 %v3808, %v4557
      %v4833 = vadd.f32 %v3809, %v4562
      %v4834 = vadd.f32 %v3810, %v4562
      %v4835 = vadd.f32 %v3811, %v4567
      %v4836 = vadd.f32 %v3812, %v4567
      %v4837 = vadd.f32 %v3813, %v4572
      %v4838 = vadd.f32 %v3814, %v4572
      %v4839 = vadd.f32 %v3815, %v4577
      %v4840 = vadd.f32 %v3816, %v4577
      %v4841 = vadd.f32 %v3817, %v4582
      %v4842 = vadd.f32 %v3818, %v4582
      %v4843 = vadd.f32 %v3819, %v4587
      %v4844 = vadd.f32 %v3820, %v4587
      %v4845 = vmax.f32 %v4589, 0.0
      %v4846 = vmax.f32 %v4590, 0.0
      %v4847 = vmax.f32 %v4591, 0.0
      %v4848 = vmax.f32 %v4592, 0.0
      %v4849 = vmax.f32 %v4593, 0.0
      %v4850 = vmax.f32 %v4594, 0.0
      %v4851 = vmax.f32 %v4595, 0.0
      %v4852 = vmax.f32 %v4596, 0.0
      %v4853 = vmax.f32 %v4597, 0.0
      %v4854 = vmax.f32 %v4598, 0.0
      %v4855 = vmax.f32 %v4599, 0.0
      %v4856 = vmax.f32 %v4600, 0.0
      %v4857 = vmax.f32 %v4601, 0.0
      %v4858 = vmax.f32 %v4602, 0.0
      %v4859 = vmax.f32 %v4603, 0.0
      %v4860 = vmax.f32 %v4604, 0.0
      %v4861 = vmax.f32 %v4605, 0.0
      %v4862 = vmax.f32 %v4606, 0.0
      %v4863 = vmax.f32 %v4607, 0.0
      %v4864 = vmax.f32 %v4608, 0.0
      %v4865 = vmax.f32 %v4609, 0.0
      %v4866 = vmax.f32 %v4610, 0.0
      %v4867 = vmax.f32 %v4611, 0.0
      %v4868 = vmax.f32 %v4612, 0.0
      %v4869 = vmax.f32 %v4613, 0.0
      %v4870 = vmax.f32 %v4614, 0.0
      %v4871 = vmax.f32 %v4615, 0.0
      %v4872 = vmax.f32 %v4616, 0.0
      %v4873 = vmax.f32 %v4617, 0.0
      %v4874 = vmax.f32 %v4618, 0.0
      %v4875 = vmax.f32 %v4619, 0.0
      %v4876 = vmax.f32 %v4620, 0.0
      %v4877 = vmax.f32 %v4621, 0.0
      %v4878 = vmax.f32 %v4622, 0.0
      %v4879 = vmax.f32 %v4623, 0.0
      %v4880 = vmax.f32 %v4624, 0.0
      %v4881 = vmax.f32 %v4625, 0.0
      %v4882 = vmax.f32 %v4626, 0.0
      %v4883 = vmax.f32 %v4627, 0.0
      %v4884 = vmax.f32 %v4628, 0.0
      %v4885 = vmax.f32 %v4629, 0.0
      %v4886 = vmax.f32 %v4630, 0.0
      %v4887 = vmax.f32 %v4631, 0.0
      %v4888 = vmax.f32 %v4632, 0.0
      %v4889 = vmax.f32 %v4633, 0.0
      %v4890 = vmax.f32 %v4634, 0.0
      %v4891 = vmax.f32 %v4635, 0.0
      %v4892 = vmax.f32 %v4636, 0.0
      %v4893 = vmax.f32 %v4637, 0.0
      %v4894 = vmax.f32 %v4638, 0.0
      %v4895 = vmax.f32 %v4639, 0.0
      %v4896 = vmax.f32 %v4640, 0.0
      %v4897 = vmax.f32 %v4641, 0.0
      %v4898 = vmax.f32 %v4642, 0.0
      %v4899 = vmax.f32 %v4643, 0.0
      %v4900 = vmax.f32 %v4644, 0.0
      %v4901 = vmax.f32 %v4645, 0.0
      %v4902 = vmax.f32 %v4646, 0.0
      %v4903 = vmax.f32 %v4647, 0.0
      %v4904 = vmax.f32 %v4648, 0.0
      %v4905 = vmax.f32 %v4649, 0.0
      %v4906 = vmax.f32 %v4650, 0.0
      %v4907 = vmax.f32 %v4651, 0.0
      %v4908 = vmax.f32 %v4652, 0.0
      %v4909 = vmax.f32 %v4653, 0.0
      %v4910 = vmax.f32 %v4654, 0.0
      %v4911 = vmax.f32 %v4655, 0.0
      %v4912 = vmax.f32 %v4656, 0.0
      %v4913 = vmax.f32 %v4657, 0.0
      %v4914 = vmax.f32 %v4658, 0.0
      %v4915 = vmax.f32 %v4659, 0.0
      %v4916 = vmax.f32 %v4660, 0.0
      %v4917 = vmax.f32 %v4661, 0.0
      %v4918 = vmax.f32 %v4662, 0.0
      %v4919 = vmax.f32 %v4663, 0.0
      %v4920 = vmax.f32 %v4664, 0.0
      %v4921 = vmax.f32 %v4665, 0.0
      %v4922 = vmax.f32 %v4666, 0.0
      %v4923 = vmax.f32 %v4667, 0.0
      %v4924 = vmax.f32 %v4668, 0.0
      %v4925 = vmax.f32 %v4669, 0.0
      %v4926 = vmax.f32 %v4670, 0.0
      %v4927 = vmax.f32 %v4671, 0.0
      %v4928 = vmax.f32 %v4672, 0.0
      %v4929 = vmax.f32 %v4673, 0.0
      %v4930 = vmax.f32 %v4674, 0.0
      %v4931 = vmax.f32 %v4675, 0.0
      %v4932 = vmax.f32 %v4676, 0.0
      %v4933 = vmax.f32 %v4677, 0.0
      %v4934 = vmax.f32 %v4678, 0.0
      %v4935 = vmax.f32 %v4679, 0.0
      %v4936 = vmax.f32 %v4680, 0.0
      %v4937 = vmax.f32 %v4681, 0.0
      %v4938 = vmax.f32 %v4682, 0.0
      %v4939 = vmax.f32 %v4683, 0.0
      %v4940 = vmax.f32 %v4684, 0.0
      %v4941 = vmax.f32 %v4685, 0.0
      %v4942 = vmax.f32 %v4686, 0.0
      %v4943 = vmax.f32 %v4687, 0.0
      %v4944 = vmax.f32 %v4688, 0.0
      %v4945 = vmax.f32 %v4689, 0.0
      %v4946 = vmax.f32 %v4690, 0.0
      %v4947 = vmax.f32 %v4691, 0.0
      %v4948 = vmax.f32 %v4692, 0.0
      %v4949 = vmax.f32 %v4693, 0.0
      %v4950 = vmax.f32 %v4694, 0.0
      %v4951 = vmax.f32 %v4695, 0.0
      %v4952 = vmax.f32 %v4696, 0.0
      %v4953 = vmax.f32 %v4697, 0.0
      %v4954 = vmax.f32 %v4698, 0.0
      %v4955 = vmax.f32 %v4699, 0.0
      %v4956 = vmax.f32 %v4700, 0.0
      %v4957 = vmax.f32 %v4701, 0.0
      %v4958 = vmax.f32 %v4702, 0.0
      %v4959 = vmax.f32 %v4703, 0.0
      %v4960 = vmax.f32 %v4704, 0.0
      %v4961 = vmax.f32 %v4705, 0.0
      %v4962 = vmax.f32 %v4706, 0.0
      %v4963 = vmax.f32 %v4707, 0.0
      %v4964 = vmax.f32 %v4708, 0.0
      %v4965 = vmax.f32 %v4709, 0.0
      %v4966 = vmax.f32 %v4710, 0.0
      %v4967 = vmax.f32 %v4711, 0.0
      %v4968 = vmax.f32 %v4712, 0.0
      %v4969 = vmax.f32 %v4713, 0.0
      %v4970 = vmax.f32 %v4714, 0.0
      %v4971 = vmax.f32 %v4715, 0.0
      %v4972 = vmax.f32 %v4716, 0.0
      %v4973 = vmax.f32 %v4717, 0.0
      %v4974 = vmax.f32 %v4718, 0.0
      %v4975 = vmax.f32 %v4719, 0.0
      %v4976 = vmax.f32 %v4720, 0.0
      %v4977 = vmax.f32 %v4721, 0.0
      %v4978 = vmax.f32 %v4722, 0.0
      %v4979 = vmax.f32 %v4723, 0.0
      %v4980 = vmax.f32 %v4724, 0.0
      %v4981 = vmax.f32 %v4725, 0.0
      %v4982 = vmax.f32 %v4726, 0.0
      %v4983 = vmax.f32 %v4727, 0.0
      %v4984 = vmax.f32 %v4728, 0.0
      %v4985 = vmax.f32 %v4729, 0.0
      %v4986 = vmax.f32 %v4730, 0.0
      %v4987 = vmax.f32 %v4731, 0.0
      %v4988 = vmax.f32 %v4732, 0.0
      %v4989 = vmax.f32 %v4733, 0.0
      %v4990 = vmax.f32 %v4734, 0.0
      %v4991 = vmax.f32 %v4735, 0.0
      %v4992 = vmax.f32 %v4736, 0.0
      %v4993 = vmax.f32 %v4737, 0.0
      %v4994 = vmax.f32 %v4738, 0.0
      %v4995 = vmax.f32 %v4739, 0.0
      %v4996 = vmax.f32 %v4740, 0.0
      %v4997 = vmax.f32 %v4741, 0.0
      %v4998 = vmax.f32 %v4742, 0.0
      %v4999 = vmax.f32 %v4743, 0.0
      %v5000 = vmax.f32 %v4744, 0.0
      %v5001 = vmax.f32 %v4745, 0.0
      %v5002 = vmax.f32 %v4746, 0.0
      %v5003 = vmax.f32 %v4747, 0.0
      %v5004 = vmax.f32 %v4748, 0.0
      %v5005 = vmax.f32 %v4749, 0.0
      %v5006 = vmax.f32 %v4750, 0.0
      %v5007 = vmax.f32 %v4751, 0.0
      %v5008 = vmax.f32 %v4752, 0.0
      %v5009 = vmax.f32 %v4753, 0.0
      %v5010 = vmax.f32 %v4754, 0.0
      %v5011 = vmax.f32 %v4755, 0.0
      %v5012 = vmax.f32 %v4756, 0.0
      %v5013 = vmax.f32 %v4757, 0.0
      %v5014 = vmax.f32 %v4758, 0.0
      %v5015 = vmax.f32 %v4759, 0.0
      %v5016 = vmax.f32 %v4760, 0.0
      %v5017 = vmax.f32 %v4761, 0.0
      %v5018 = vmax.f32 %v4762, 0.0
      %v5019 = vmax.f32 %v4763, 0.0
      %v5020 = vmax.f32 %v4764, 0.0
      %v5021 = vmax.f32 %v4765, 0.0
      %v5022 = vmax.f32 %v4766, 0.0
      %v5023 = vmax.f32 %v4767, 0.0
      %v5024 = vmax.f32 %v4768, 0.0
      %v5025 = vmax.f32 %v4769, 0.0
      %v5026 = vmax.f32 %v4770, 0.0
      %v5027 = vmax.f32 %v4771, 0.0
      %v5028 = vmax.f32 %v4772, 0.0
      %v5029 = vmax.f32 %v4773, 0.0
      %v5030 = vmax.f32 %v4774, 0.0
      %v5031 = vmax.f32 %v4775, 0.0
      %v5032 = vmax.f32 %v4776, 0.0
      %v5033 = vmax.f32 %v4777, 0.0
      %v5034 = vmax.f32 %v4778, 0.0
      %v5035 = vmax.f32 %v4779, 0.0
      %v5036 = vmax.f32 %v4780, 0.0
      %v5037 = vmax.f32 %v4781, 0.0
      %v5038 = vmax.f32 %v4782, 0.0
      %v5039 = vmax.f32 %v4783, 0.0
      %v5040 = vmax.f32 %v4784, 0.0
      %v5041 = vmax.f32 %v4785, 0.0
      %v5042 = vmax.f32 %v4786, 0.0
      %v5043 = vmax.f32 %v4787, 0.0
      %v5044 = vmax.f32 %v4788, 0.0
      %v5045 = vmax.f32 %v4789, 0.0
      %v5046 = vmax.f32 %v4790, 0.0
      %v5047 = vmax.f32 %v4791, 0.0
      %v5048 = vmax.f32 %v4792, 0.0
      %v5049 = vmax.f32 %v4793, 0.0
      %v5050 = vmax.f32 %v4794, 0.0
      %v5051 = vmax.f32 %v4795, 0.0
      %v5052 = vmax.f32 %v4796, 0.0
      %v5053 = vmax.f32 %v4797, 0.0
      %v5054 = vmax.f32 %v4798, 0.0
      %v5055 = vmax.f32 %v4799, 0.0
      %v5056 = vmax.f32 %v4800, 0.0
      %v5057 = vmax.f32 %v4801, 0.0
      %v5058 = vmax.f32 %v4802, 0.0
      %v5059 = vmax.f32 %v4803, 0.0
      %v5060 = vmax.f32 %v4804, 0.0
      %v5061 = vmax.f32 %v4805, 0.0
      %v5062 = vmax.f32 %v4806, 0.0
      %v5063 = vmax.f32 %v4807, 0.0
      %v5064 = vmax.f32 %v4808, 0.0
      %v5065 = vmax.f32 %v4809, 0.0
      %v5066 = vmax.f32 %v4810, 0.0
      %v5067 = vmax.f32 %v4811, 0.0
      %v5068 = vmax.f32 %v4812, 0.0
      %v5069 = vmax.f32 %v4813, 0.0
      %v5070 = vmax.f32 %v4814, 0.0
      %v5071 = vmax.f32 %v4815, 0.0
      %v5072 = vmax.f32 %v4816, 0.0
      %v5073 = vmax.f32 %v4817, 0.0
      %v5074 = vmax.f32 %v4818, 0.0
      %v5075 = vmax.f32 %v4819, 0.0
      %v5076 = vmax.f32 %v4820, 0.0
      %v5077 = vmax.f32 %v4821, 0.0
      %v5078 = vmax.f32 %v4822, 0.0
      %v5079 = vmax.f32 %v4823, 0.0
      %v5080 = vmax.f32 %v4824, 0.0
      %v5081 = vmax.f32 %v4825, 0.0
      %v5082 = vmax.f32 %v4826, 0.0
      %v5083 = vmax.f32 %v4827, 0.0
      %v5084 = vmax.f32 %v4828, 0.0
      %v5085 = vmax.f32 %v4829, 0.0
      %v5086 = vmax.f32 %v4830, 0.0
      %v5087 = vmax.f32 %v4831, 0.0
      %v5088 = vmax.f32 %v4832, 0.0
      %v5089 = vmax.f32 %v4833, 0.0
      %v5090 = vmax.f32 %v4834, 0.0
      %v5091 = vmax.f32 %v4835, 0.0
      %v5092 = vmax.f32 %v4836, 0.0
      %v5093 = vmax.f32 %v4837, 0.0
      %v5094 = vmax.f32 %v4838, 0.0
      %v5095 = vmax.f32 %v4839, 0.0
      %v5096 = vmax.f32 %v4840, 0.0
      %v5097 = vmax.f32 %v4841, 0.0
      %v5098 = vmax.f32 %v4842, 0.0
      %v5099 = vmax.f32 %v4843, 0.0
      %v5100 = vmax.f32 %v4844, 0.0
      %p5101 = scmp.eq.s32.totalorder %s35, 0
      // Predicated region
      $region97: #{stnkd_forward.1} parent=95 // pred_check
        %p5102 = pneg %p5101
      $region98: #{stnkd_forward.1} parent=95 // pred_check_branch
        %5104 = sbr.rel (%p5102) target = $region100
      $region99: #{stnkd_forward.1} parent=95 // pred_region
        %vm5105 = vcmask 7168
        %5106 = vst.msk [vmem:[#allocation2] sm:$0xff] %vm5105, -inf
        %5107 = vst.msk [vmem:[#allocation2 + $0x8] sm:$0xff] %vm5105, -inf
        %5108 = vst.msk [vmem:[#allocation2 + $0x10] sm:$0xff] %vm5105, -inf
        %5109 = vst.msk [vmem:[#allocation2 + $0x18] sm:$0xff] %vm5105, -inf
        %5110 = vst.msk [vmem:[#allocation2 + $0x20] sm:$0xff] %vm5105, -inf
        %5111 = vst.msk [vmem:[#allocation2 + $0x28] sm:$0xff] %vm5105, -inf
        %5112 = vst.msk [vmem:[#allocation2 + $0x30] sm:$0xff] %vm5105, -inf
        %5113 = vst.msk [vmem:[#allocation2 + $0x38] sm:$0xff] %vm5105, -inf
        %5114 = vst.msk [vmem:[#allocation2 + $0x40] sm:$0xff] %vm5105, -inf
        %5115 = vst.msk [vmem:[#allocation2 + $0x48] sm:$0xff] %vm5105, -inf
        %5116 = vst.msk [vmem:[#allocation2 + $0x50] sm:$0xff] %vm5105, -inf
        %5117 = vst.msk [vmem:[#allocation2 + $0x58] sm:$0xff] %vm5105, -inf
        %5118 = vst.msk [vmem:[#allocation2 + $0x60] sm:$0xff] %vm5105, -inf
        %5119 = vst.msk [vmem:[#allocation2 + $0x68] sm:$0xff] %vm5105, -inf
        %5120 = vst.msk [vmem:[#allocation2 + $0x70] sm:$0xff] %vm5105, -inf
        %5121 = vst.msk [vmem:[#allocation2 + $0x78] sm:$0xff] %vm5105, -inf
        %5122 = vst.msk [vmem:[#allocation2 + $0x80] sm:$0xff] %vm5105, -inf
        %5123 = vst.msk [vmem:[#allocation2 + $0x88] sm:$0xff] %vm5105, -inf
        %5124 = vst.msk [vmem:[#allocation2 + $0x90] sm:$0xff] %vm5105, -inf
        %5125 = vst.msk [vmem:[#allocation2 + $0x98] sm:$0xff] %vm5105, -inf
        %5126 = vst.msk [vmem:[#allocation2 + $0xa0] sm:$0xff] %vm5105, -inf
        %5127 = vst.msk [vmem:[#allocation2 + $0xa8] sm:$0xff] %vm5105, -inf
        %5128 = vst.msk [vmem:[#allocation2 + $0xb0] sm:$0xff] %vm5105, -inf
        %5129 = vst.msk [vmem:[#allocation2 + $0xb8] sm:$0xff] %vm5105, -inf
        %5130 = vst.msk [vmem:[#allocation2 + $0xc0] sm:$0xff] %vm5105, -inf
        %5131 = vst.msk [vmem:[#allocation2 + $0xc8] sm:$0xff] %vm5105, -inf
        %5132 = vst.msk [vmem:[#allocation2 + $0xd0] sm:$0xff] %vm5105, -inf
        %5133 = vst.msk [vmem:[#allocation2 + $0xd8] sm:$0xff] %vm5105, -inf
        %5134 = vst.msk [vmem:[#allocation2 + $0xe0] sm:$0xff] %vm5105, -inf
        %5135 = vst.msk [vmem:[#allocation2 + $0xe8] sm:$0xff] %vm5105, -inf
        %5136 = vst.msk [vmem:[#allocation2 + $0xf0] sm:$0xff] %vm5105, -inf
        %5137 = vst.msk [vmem:[#allocation2 + $0xf8] sm:$0xff] %vm5105, -inf
        %5138 = vst.msk [vmem:[#allocation2 + $0x100] sm:$0xff] %vm5105, -inf
        %5139 = vst.msk [vmem:[#allocation2 + $0x108] sm:$0xff] %vm5105, -inf
        %5140 = vst.msk [vmem:[#allocation2 + $0x110] sm:$0xff] %vm5105, -inf
        %5141 = vst.msk [vmem:[#allocation2 + $0x118] sm:$0xff] %vm5105, -inf
        %5142 = vst.msk [vmem:[#allocation2 + $0x120] sm:$0xff] %vm5105, -inf
        %5143 = vst.msk [vmem:[#allocation2 + $0x128] sm:$0xff] %vm5105, -inf
        %5144 = vst.msk [vmem:[#allocation2 + $0x130] sm:$0xff] %vm5105, -inf
        %5145 = vst.msk [vmem:[#allocation2 + $0x138] sm:$0xff] %vm5105, -inf
        %5146 = vst.msk [vmem:[#allocation2 + $0x140] sm:$0xff] %vm5105, -inf
        %5147 = vst.msk [vmem:[#allocation2 + $0x148] sm:$0xff] %vm5105, -inf
        %5148 = vst.msk [vmem:[#allocation2 + $0x150] sm:$0xff] %vm5105, -inf
        %5149 = vst.msk [vmem:[#allocation2 + $0x158] sm:$0xff] %vm5105, -inf
        %5150 = vst.msk [vmem:[#allocation2 + $0x160] sm:$0xff] %vm5105, -inf
        %5151 = vst.msk [vmem:[#allocation2 + $0x168] sm:$0xff] %vm5105, -inf
        %5152 = vst.msk [vmem:[#allocation2 + $0x170] sm:$0xff] %vm5105, -inf
        %5153 = vst.msk [vmem:[#allocation2 + $0x178] sm:$0xff] %vm5105, -inf
        %5154 = vst.msk [vmem:[#allocation2 + $0x180] sm:$0xff] %vm5105, -inf
        %5155 = vst.msk [vmem:[#allocation2 + $0x188] sm:$0xff] %vm5105, -inf
        %5156 = vst.msk [vmem:[#allocation2 + $0x190] sm:$0xff] %vm5105, -inf
        %5157 = vst.msk [vmem:[#allocation2 + $0x198] sm:$0xff] %vm5105, -inf
        %5158 = vst.msk [vmem:[#allocation2 + $0x1a0] sm:$0xff] %vm5105, -inf
        %5159 = vst.msk [vmem:[#allocation2 + $0x1a8] sm:$0xff] %vm5105, -inf
        %5160 = vst.msk [vmem:[#allocation2 + $0x1b0] sm:$0xff] %vm5105, -inf
        %5161 = vst.msk [vmem:[#allocation2 + $0x1b8] sm:$0xff] %vm5105, -inf
        %5162 = vst.msk [vmem:[#allocation2 + $0x1c0] sm:$0xff] %vm5105, -inf
        %5163 = vst.msk [vmem:[#allocation2 + $0x1c8] sm:$0xff] %vm5105, -inf
        %5164 = vst.msk [vmem:[#allocation2 + $0x1d0] sm:$0xff] %vm5105, -inf
        %5165 = vst.msk [vmem:[#allocation2 + $0x1d8] sm:$0xff] %vm5105, -inf
        %5166 = vst.msk [vmem:[#allocation2 + $0x1e0] sm:$0xff] %vm5105, -inf
        %5167 = vst.msk [vmem:[#allocation2 + $0x1e8] sm:$0xff] %vm5105, -inf
        %5168 = vst.msk [vmem:[#allocation2 + $0x1f0] sm:$0xff] %vm5105, -inf
        %5169 = vst.msk [vmem:[#allocation2 + $0x1f8] sm:$0xff] %vm5105, -inf
        %5170 = vst.msk [vmem:[#allocation2 + $0x200] sm:$0xff] %vm5105, -inf
        %5171 = vst.msk [vmem:[#allocation2 + $0x208] sm:$0xff] %vm5105, -inf
        %5172 = vst.msk [vmem:[#allocation2 + $0x210] sm:$0xff] %vm5105, -inf
        %5173 = vst.msk [vmem:[#allocation2 + $0x218] sm:$0xff] %vm5105, -inf
        %5174 = vst.msk [vmem:[#allocation2 + $0x220] sm:$0xff] %vm5105, -inf
        %5175 = vst.msk [vmem:[#allocation2 + $0x228] sm:$0xff] %vm5105, -inf
        %5176 = vst.msk [vmem:[#allocation2 + $0x230] sm:$0xff] %vm5105, -inf
        %5177 = vst.msk [vmem:[#allocation2 + $0x238] sm:$0xff] %vm5105, -inf
        %5178 = vst.msk [vmem:[#allocation2 + $0x240] sm:$0xff] %vm5105, -inf
        %5179 = vst.msk [vmem:[#allocation2 + $0x248] sm:$0xff] %vm5105, -inf
        %5180 = vst.msk [vmem:[#allocation2 + $0x250] sm:$0xff] %vm5105, -inf
        %5181 = vst.msk [vmem:[#allocation2 + $0x258] sm:$0xff] %vm5105, -inf
        %5182 = vst.msk [vmem:[#allocation2 + $0x260] sm:$0xff] %vm5105, -inf
        %5183 = vst.msk [vmem:[#allocation2 + $0x268] sm:$0xff] %vm5105, -inf
        %5184 = vst.msk [vmem:[#allocation2 + $0x270] sm:$0xff] %vm5105, -inf
        %5185 = vst.msk [vmem:[#allocation2 + $0x278] sm:$0xff] %vm5105, -inf
        %5186 = vst.msk [vmem:[#allocation2 + $0x280] sm:$0xff] %vm5105, -inf
        %5187 = vst.msk [vmem:[#allocation2 + $0x288] sm:$0xff] %vm5105, -inf
        %5188 = vst.msk [vmem:[#allocation2 + $0x290] sm:$0xff] %vm5105, -inf
        %5189 = vst.msk [vmem:[#allocation2 + $0x298] sm:$0xff] %vm5105, -inf
        %5190 = vst.msk [vmem:[#allocation2 + $0x2a0] sm:$0xff] %vm5105, -inf
        %5191 = vst.msk [vmem:[#allocation2 + $0x2a8] sm:$0xff] %vm5105, -inf
        %5192 = vst.msk [vmem:[#allocation2 + $0x2b0] sm:$0xff] %vm5105, -inf
        %5193 = vst.msk [vmem:[#allocation2 + $0x2b8] sm:$0xff] %vm5105, -inf
        %5194 = vst.msk [vmem:[#allocation2 + $0x2c0] sm:$0xff] %vm5105, -inf
        %5195 = vst.msk [vmem:[#allocation2 + $0x2c8] sm:$0xff] %vm5105, -inf
        %5196 = vst.msk [vmem:[#allocation2 + $0x2d0] sm:$0xff] %vm5105, -inf
        %5197 = vst.msk [vmem:[#allocation2 + $0x2d8] sm:$0xff] %vm5105, -inf
        %5198 = vst.msk [vmem:[#allocation2 + $0x2e0] sm:$0xff] %vm5105, -inf
        %5199 = vst.msk [vmem:[#allocation2 + $0x2e8] sm:$0xff] %vm5105, -inf
        %5200 = vst.msk [vmem:[#allocation2 + $0x2f0] sm:$0xff] %vm5105, -inf
        %5201 = vst.msk [vmem:[#allocation2 + $0x2f8] sm:$0xff] %vm5105, -inf
        %5202 = vst.msk [vmem:[#allocation2 + $0x300] sm:$0xff] %vm5105, -inf
        %5203 = vst.msk [vmem:[#allocation2 + $0x308] sm:$0xff] %vm5105, -inf
        %5204 = vst.msk [vmem:[#allocation2 + $0x310] sm:$0xff] %vm5105, -inf
        %5205 = vst.msk [vmem:[#allocation2 + $0x318] sm:$0xff] %vm5105, -inf
        %5206 = vst.msk [vmem:[#allocation2 + $0x320] sm:$0xff] %vm5105, -inf
        %5207 = vst.msk [vmem:[#allocation2 + $0x328] sm:$0xff] %vm5105, -inf
        %5208 = vst.msk [vmem:[#allocation2 + $0x330] sm:$0xff] %vm5105, -inf
        %5209 = vst.msk [vmem:[#allocation2 + $0x338] sm:$0xff] %vm5105, -inf
        %5210 = vst.msk [vmem:[#allocation2 + $0x340] sm:$0xff] %vm5105, -inf
        %5211 = vst.msk [vmem:[#allocation2 + $0x348] sm:$0xff] %vm5105, -inf
        %5212 = vst.msk [vmem:[#allocation2 + $0x350] sm:$0xff] %vm5105, -inf
        %5213 = vst.msk [vmem:[#allocation2 + $0x358] sm:$0xff] %vm5105, -inf
        %5214 = vst.msk [vmem:[#allocation2 + $0x360] sm:$0xff] %vm5105, -inf
        %5215 = vst.msk [vmem:[#allocation2 + $0x368] sm:$0xff] %vm5105, -inf
        %5216 = vst.msk [vmem:[#allocation2 + $0x370] sm:$0xff] %vm5105, -inf
        %5217 = vst.msk [vmem:[#allocation2 + $0x378] sm:$0xff] %vm5105, -inf
        %5218 = vst.msk [vmem:[#allocation2 + $0x380] sm:$0xff] %vm5105, -inf
        %5219 = vst.msk [vmem:[#allocation2 + $0x388] sm:$0xff] %vm5105, -inf
        %5220 = vst.msk [vmem:[#allocation2 + $0x390] sm:$0xff] %vm5105, -inf
        %5221 = vst.msk [vmem:[#allocation2 + $0x398] sm:$0xff] %vm5105, -inf
        %5222 = vst.msk [vmem:[#allocation2 + $0x3a0] sm:$0xff] %vm5105, -inf
        %5223 = vst.msk [vmem:[#allocation2 + $0x3a8] sm:$0xff] %vm5105, -inf
        %5224 = vst.msk [vmem:[#allocation2 + $0x3b0] sm:$0xff] %vm5105, -inf
        %5225 = vst.msk [vmem:[#allocation2 + $0x3b8] sm:$0xff] %vm5105, -inf
        %5226 = vst.msk [vmem:[#allocation2 + $0x3c0] sm:$0xff] %vm5105, -inf
        %5227 = vst.msk [vmem:[#allocation2 + $0x3c8] sm:$0xff] %vm5105, -inf
        %5228 = vst.msk [vmem:[#allocation2 + $0x3d0] sm:$0xff] %vm5105, -inf
        %5229 = vst.msk [vmem:[#allocation2 + $0x3d8] sm:$0xff] %vm5105, -inf
        %5230 = vst.msk [vmem:[#allocation2 + $0x3e0] sm:$0xff] %vm5105, -inf
        %5231 = vst.msk [vmem:[#allocation2 + $0x3e8] sm:$0xff] %vm5105, -inf
        %5232 = vst.msk [vmem:[#allocation2 + $0x3f0] sm:$0xff] %vm5105, -inf
        %5233 = vst.msk [vmem:[#allocation2 + $0x3f8] sm:$0xff] %vm5105, -inf
      $region100: #{stnkd_forward.1} parent=95 // pred_fallthru
        _
      %v5234 = vld [vmem:[#allocation2] sm:$0xff]
      %v5235 = vld [vmem:[#allocation2 + $0x8] sm:$0xff]
      %v5236 = vld [vmem:[#allocation2 + $0x10] sm:$0xff]
      %v5237 = vld [vmem:[#allocation2 + $0x18] sm:$0xff]
      %v5238 = vld [vmem:[#allocation2 + $0x20] sm:$0xff]
      %v5239 = vld [vmem:[#allocation2 + $0x28] sm:$0xff]
      %v5240 = vld [vmem:[#allocation2 + $0x30] sm:$0xff]
      %v5241 = vld [vmem:[#allocation2 + $0x38] sm:$0xff]
      %v5242 = vld [vmem:[#allocation2 + $0x40] sm:$0xff]
      %v5243 = vld [vmem:[#allocation2 + $0x48] sm:$0xff]
      %v5244 = vld [vmem:[#allocation2 + $0x50] sm:$0xff]
      %v5245 = vld [vmem:[#allocation2 + $0x58] sm:$0xff]
      %v5246 = vld [vmem:[#allocation2 + $0x60] sm:$0xff]
      %v5247 = vld [vmem:[#allocation2 + $0x68] sm:$0xff]
      %v5248 = vld [vmem:[#allocation2 + $0x70] sm:$0xff]
      %v5249 = vld [vmem:[#allocation2 + $0x78] sm:$0xff]
      %v5250 = vld [vmem:[#allocation2 + $0x80] sm:$0xff]
      %v5251 = vld [vmem:[#allocation2 + $0x88] sm:$0xff]
      %v5252 = vld [vmem:[#allocation2 + $0x90] sm:$0xff]
      %v5253 = vld [vmem:[#allocation2 + $0x98] sm:$0xff]
      %v5254 = vld [vmem:[#allocation2 + $0xa0] sm:$0xff]
      %v5255 = vld [vmem:[#allocation2 + $0xa8] sm:$0xff]
      %v5256 = vld [vmem:[#allocation2 + $0xb0] sm:$0xff]
      %v5257 = vld [vmem:[#allocation2 + $0xb8] sm:$0xff]
      %v5258 = vld [vmem:[#allocation2 + $0xc0] sm:$0xff]
      %v5259 = vld [vmem:[#allocation2 + $0xc8] sm:$0xff]
      %v5260 = vld [vmem:[#allocation2 + $0xd0] sm:$0xff]
      %v5261 = vld [vmem:[#allocation2 + $0xd8] sm:$0xff]
      %v5262 = vld [vmem:[#allocation2 + $0xe0] sm:$0xff]
      %v5263 = vld [vmem:[#allocation2 + $0xe8] sm:$0xff]
      %v5264 = vld [vmem:[#allocation2 + $0xf0] sm:$0xff]
      %v5265 = vld [vmem:[#allocation2 + $0xf8] sm:$0xff]
      %v5266 = vld [vmem:[#allocation2 + $0x100] sm:$0xff]
      %v5267 = vld [vmem:[#allocation2 + $0x108] sm:$0xff]
      %v5268 = vld [vmem:[#allocation2 + $0x110] sm:$0xff]
      %v5269 = vld [vmem:[#allocation2 + $0x118] sm:$0xff]
      %v5270 = vld [vmem:[#allocation2 + $0x120] sm:$0xff]
      %v5271 = vld [vmem:[#allocation2 + $0x128] sm:$0xff]
      %v5272 = vld [vmem:[#allocation2 + $0x130] sm:$0xff]
      %v5273 = vld [vmem:[#allocation2 + $0x138] sm:$0xff]
      %v5274 = vld [vmem:[#allocation2 + $0x140] sm:$0xff]
      %v5275 = vld [vmem:[#allocation2 + $0x148] sm:$0xff]
      %v5276 = vld [vmem:[#allocation2 + $0x150] sm:$0xff]
      %v5277 = vld [vmem:[#allocation2 + $0x158] sm:$0xff]
      %v5278 = vld [vmem:[#allocation2 + $0x160] sm:$0xff]
      %v5279 = vld [vmem:[#allocation2 + $0x168] sm:$0xff]
      %v5280 = vld [vmem:[#allocation2 + $0x170] sm:$0xff]
      %v5281 = vld [vmem:[#allocation2 + $0x178] sm:$0xff]
      %v5282 = vld [vmem:[#allocation2 + $0x180] sm:$0xff]
      %v5283 = vld [vmem:[#allocation2 + $0x188] sm:$0xff]
      %v5284 = vld [vmem:[#allocation2 + $0x190] sm:$0xff]
      %v5285 = vld [vmem:[#allocation2 + $0x198] sm:$0xff]
      %v5286 = vld [vmem:[#allocation2 + $0x1a0] sm:$0xff]
      %v5287 = vld [vmem:[#allocation2 + $0x1a8] sm:$0xff]
      %v5288 = vld [vmem:[#allocation2 + $0x1b0] sm:$0xff]
      %v5289 = vld [vmem:[#allocation2 + $0x1b8] sm:$0xff]
      %v5290 = vld [vmem:[#allocation2 + $0x1c0] sm:$0xff]
      %v5291 = vld [vmem:[#allocation2 + $0x1c8] sm:$0xff]
      %v5292 = vld [vmem:[#allocation2 + $0x1d0] sm:$0xff]
      %v5293 = vld [vmem:[#allocation2 + $0x1d8] sm:$0xff]
      %v5294 = vld [vmem:[#allocation2 + $0x1e0] sm:$0xff]
      %v5295 = vld [vmem:[#allocation2 + $0x1e8] sm:$0xff]
      %v5296 = vld [vmem:[#allocation2 + $0x1f0] sm:$0xff]
      %v5297 = vld [vmem:[#allocation2 + $0x1f8] sm:$0xff]
      %v5298 = vld [vmem:[#allocation2 + $0x200] sm:$0xff]
      %v5299 = vld [vmem:[#allocation2 + $0x208] sm:$0xff]
      %v5300 = vld [vmem:[#allocation2 + $0x210] sm:$0xff]
      %v5301 = vld [vmem:[#allocation2 + $0x218] sm:$0xff]
      %v5302 = vld [vmem:[#allocation2 + $0x220] sm:$0xff]
      %v5303 = vld [vmem:[#allocation2 + $0x228] sm:$0xff]
      %v5304 = vld [vmem:[#allocation2 + $0x230] sm:$0xff]
      %v5305 = vld [vmem:[#allocation2 + $0x238] sm:$0xff]
      %v5306 = vld [vmem:[#allocation2 + $0x240] sm:$0xff]
      %v5307 = vld [vmem:[#allocation2 + $0x248] sm:$0xff]
      %v5308 = vld [vmem:[#allocation2 + $0x250] sm:$0xff]
      %v5309 = vld [vmem:[#allocation2 + $0x258] sm:$0xff]
      %v5310 = vld [vmem:[#allocation2 + $0x260] sm:$0xff]
      %v5311 = vld [vmem:[#allocation2 + $0x268] sm:$0xff]
      %v5312 = vld [vmem:[#allocation2 + $0x270] sm:$0xff]
      %v5313 = vld [vmem:[#allocation2 + $0x278] sm:$0xff]
      %v5314 = vld [vmem:[#allocation2 + $0x280] sm:$0xff]
      %v5315 = vld [vmem:[#allocation2 + $0x288] sm:$0xff]
      %v5316 = vld [vmem:[#allocation2 + $0x290] sm:$0xff]
      %v5317 = vld [vmem:[#allocation2 + $0x298] sm:$0xff]
      %v5318 = vld [vmem:[#allocation2 + $0x2a0] sm:$0xff]
      %v5319 = vld [vmem:[#allocation2 + $0x2a8] sm:$0xff]
      %v5320 = vld [vmem:[#allocation2 + $0x2b0] sm:$0xff]
      %v5321 = vld [vmem:[#allocation2 + $0x2b8] sm:$0xff]
      %v5322 = vld [vmem:[#allocation2 + $0x2c0] sm:$0xff]
      %v5323 = vld [vmem:[#allocation2 + $0x2c8] sm:$0xff]
      %v5324 = vld [vmem:[#allocation2 + $0x2d0] sm:$0xff]
      %v5325 = vld [vmem:[#allocation2 + $0x2d8] sm:$0xff]
      %v5326 = vld [vmem:[#allocation2 + $0x2e0] sm:$0xff]
      %v5327 = vld [vmem:[#allocation2 + $0x2e8] sm:$0xff]
      %v5328 = vld [vmem:[#allocation2 + $0x2f0] sm:$0xff]
      %v5329 = vld [vmem:[#allocation2 + $0x2f8] sm:$0xff]
      %v5330 = vld [vmem:[#allocation2 + $0x300] sm:$0xff]
      %v5331 = vld [vmem:[#allocation2 + $0x308] sm:$0xff]
      %v5332 = vld [vmem:[#allocation2 + $0x310] sm:$0xff]
      %v5333 = vld [vmem:[#allocation2 + $0x318] sm:$0xff]
      %v5334 = vld [vmem:[#allocation2 + $0x320] sm:$0xff]
      %v5335 = vld [vmem:[#allocation2 + $0x328] sm:$0xff]
      %v5336 = vld [vmem:[#allocation2 + $0x330] sm:$0xff]
      %v5337 = vld [vmem:[#allocation2 + $0x338] sm:$0xff]
      %v5338 = vld [vmem:[#allocation2 + $0x340] sm:$0xff]
      %v5339 = vld [vmem:[#allocation2 + $0x348] sm:$0xff]
      %v5340 = vld [vmem:[#allocation2 + $0x350] sm:$0xff]
      %v5341 = vld [vmem:[#allocation2 + $0x358] sm:$0xff]
      %v5342 = vld [vmem:[#allocation2 + $0x360] sm:$0xff]
      %v5343 = vld [vmem:[#allocation2 + $0x368] sm:$0xff]
      %v5344 = vld [vmem:[#allocation2 + $0x370] sm:$0xff]
      %v5345 = vld [vmem:[#allocation2 + $0x378] sm:$0xff]
      %v5346 = vld [vmem:[#allocation2 + $0x380] sm:$0xff]
      %v5347 = vld [vmem:[#allocation2 + $0x388] sm:$0xff]
      %v5348 = vld [vmem:[#allocation2 + $0x390] sm:$0xff]
      %v5349 = vld [vmem:[#allocation2 + $0x398] sm:$0xff]
      %v5350 = vld [vmem:[#allocation2 + $0x3a0] sm:$0xff]
      %v5351 = vld [vmem:[#allocation2 + $0x3a8] sm:$0xff]
      %v5352 = vld [vmem:[#allocation2 + $0x3b0] sm:$0xff]
      %v5353 = vld [vmem:[#allocation2 + $0x3b8] sm:$0xff]
      %v5354 = vld [vmem:[#allocation2 + $0x3c0] sm:$0xff]
      %v5355 = vld [vmem:[#allocation2 + $0x3c8] sm:$0xff]
      %v5356 = vld [vmem:[#allocation2 + $0x3d0] sm:$0xff]
      %v5357 = vld [vmem:[#allocation2 + $0x3d8] sm:$0xff]
      %v5358 = vld [vmem:[#allocation2 + $0x3e0] sm:$0xff]
      %v5359 = vld [vmem:[#allocation2 + $0x3e8] sm:$0xff]
      %v5360 = vld [vmem:[#allocation2 + $0x3f0] sm:$0xff]
      %v5361 = vld [vmem:[#allocation2 + $0x3f8] sm:$0xff]
      %v5362 = vmax.f32 %v4845, %v4846
      %5363 = vmax.xlane.f32.xlu0 %v5362
      %v5364 = vpop.xlane.xlu0 %5363
      %v5365 = vmax.f32 %v4847, %v4848
      %5366 = vmax.xlane.f32.xlu0 %v5365
      %v5367 = vpop.xlane.xlu0 %5366
      %v5368 = vmax.f32 %v4849, %v4850
      %5369 = vmax.xlane.f32.xlu0 %v5368
      %v5370 = vpop.xlane.xlu0 %5369
      %v5371 = vmax.f32 %v4851, %v4852
      %5372 = vmax.xlane.f32.xlu0 %v5371
      %v5373 = vpop.xlane.xlu0 %5372
      %v5374 = vmax.f32 %v4853, %v4854
      %5375 = vmax.xlane.f32.xlu0 %v5374
      %v5376 = vpop.xlane.xlu0 %5375
      %v5377 = vmax.f32 %v4855, %v4856
      %5378 = vmax.xlane.f32.xlu0 %v5377
      %v5379 = vpop.xlane.xlu0 %5378
      %v5380 = vmax.f32 %v4857, %v4858
      %5381 = vmax.xlane.f32.xlu0 %v5380
      %v5382 = vpop.xlane.xlu0 %5381
      %v5383 = vmax.f32 %v4859, %v4860
      %5384 = vmax.xlane.f32.xlu0 %v5383
      %v5385 = vpop.xlane.xlu0 %5384
      %v5386 = vmax.f32 %v4861, %v4862
      %5387 = vmax.xlane.f32.xlu0 %v5386
      %v5388 = vpop.xlane.xlu0 %5387
      %v5389 = vmax.f32 %v4863, %v4864
      %5390 = vmax.xlane.f32.xlu0 %v5389
      %v5391 = vpop.xlane.xlu0 %5390
      %v5392 = vmax.f32 %v4865, %v4866
      %5393 = vmax.xlane.f32.xlu0 %v5392
      %v5394 = vpop.xlane.xlu0 %5393
      %v5395 = vmax.f32 %v4867, %v4868
      %5396 = vmax.xlane.f32.xlu0 %v5395
      %v5397 = vpop.xlane.xlu0 %5396
      %v5398 = vmax.f32 %v4869, %v4870
      %5399 = vmax.xlane.f32.xlu0 %v5398
      %v5400 = vpop.xlane.xlu0 %5399
      %v5401 = vmax.f32 %v4871, %v4872
      %5402 = vmax.xlane.f32.xlu0 %v5401
      %v5403 = vpop.xlane.xlu0 %5402
      %v5404 = vmax.f32 %v4873, %v4874
      %5405 = vmax.xlane.f32.xlu0 %v5404
      %v5406 = vpop.xlane.xlu0 %5405
      %v5407 = vmax.f32 %v4875, %v4876
      %5408 = vmax.xlane.f32.xlu0 %v5407
      %v5409 = vpop.xlane.xlu0 %5408
      %v5410 = vmax.f32 %v4877, %v4878
      %5411 = vmax.xlane.f32.xlu0 %v5410
      %v5412 = vpop.xlane.xlu0 %5411
      %v5413 = vmax.f32 %v4879, %v4880
      %5414 = vmax.xlane.f32.xlu0 %v5413
      %v5415 = vpop.xlane.xlu0 %5414
      %v5416 = vmax.f32 %v4881, %v4882
      %5417 = vmax.xlane.f32.xlu0 %v5416
      %v5418 = vpop.xlane.xlu0 %5417
      %v5419 = vmax.f32 %v4883, %v4884
      %5420 = vmax.xlane.f32.xlu0 %v5419
      %v5421 = vpop.xlane.xlu0 %5420
      %v5422 = vmax.f32 %v4885, %v4886
      %5423 = vmax.xlane.f32.xlu0 %v5422
      %v5424 = vpop.xlane.xlu0 %5423
      %v5425 = vmax.f32 %v4887, %v4888
      %5426 = vmax.xlane.f32.xlu0 %v5425
      %v5427 = vpop.xlane.xlu0 %5426
      %v5428 = vmax.f32 %v4889, %v4890
      %5429 = vmax.xlane.f32.xlu0 %v5428
      %v5430 = vpop.xlane.xlu0 %5429
      %v5431 = vmax.f32 %v4891, %v4892
      %5432 = vmax.xlane.f32.xlu0 %v5431
      %v5433 = vpop.xlane.xlu0 %5432
      %v5434 = vmax.f32 %v4893, %v4894
      %5435 = vmax.xlane.f32.xlu0 %v5434
      %v5436 = vpop.xlane.xlu0 %5435
      %v5437 = vmax.f32 %v4895, %v4896
      %5438 = vmax.xlane.f32.xlu0 %v5437
      %v5439 = vpop.xlane.xlu0 %5438
      %v5440 = vmax.f32 %v4897, %v4898
      %5441 = vmax.xlane.f32.xlu0 %v5440
      %v5442 = vpop.xlane.xlu0 %5441
      %v5443 = vmax.f32 %v4899, %v4900
      %5444 = vmax.xlane.f32.xlu0 %v5443
      %v5445 = vpop.xlane.xlu0 %5444
      %v5446 = vmax.f32 %v4901, %v4902
      %5447 = vmax.xlane.f32.xlu0 %v5446
      %v5448 = vpop.xlane.xlu0 %5447
      %v5449 = vmax.f32 %v4903, %v4904
      %5450 = vmax.xlane.f32.xlu0 %v5449
      %v5451 = vpop.xlane.xlu0 %5450
      %v5452 = vmax.f32 %v4905, %v4906
      %5453 = vmax.xlane.f32.xlu0 %v5452
      %v5454 = vpop.xlane.xlu0 %5453
      %v5455 = vmax.f32 %v4907, %v4908
      %5456 = vmax.xlane.f32.xlu0 %v5455
      %v5457 = vpop.xlane.xlu0 %5456
      %v5458 = vmax.f32 %v4909, %v4910
      %5459 = vmax.xlane.f32.xlu0 %v5458
      %v5460 = vpop.xlane.xlu0 %5459
      %v5461 = vmax.f32 %v4911, %v4912
      %5462 = vmax.xlane.f32.xlu0 %v5461
      %v5463 = vpop.xlane.xlu0 %5462
      %v5464 = vmax.f32 %v4913, %v4914
      %5465 = vmax.xlane.f32.xlu0 %v5464
      %v5466 = vpop.xlane.xlu0 %5465
      %v5467 = vmax.f32 %v4915, %v4916
      %5468 = vmax.xlane.f32.xlu0 %v5467
      %v5469 = vpop.xlane.xlu0 %5468
      %v5470 = vmax.f32 %v4917, %v4918
      %5471 = vmax.xlane.f32.xlu0 %v5470
      %v5472 = vpop.xlane.xlu0 %5471
      %v5473 = vmax.f32 %v4919, %v4920
      %5474 = vmax.xlane.f32.xlu0 %v5473
      %v5475 = vpop.xlane.xlu0 %5474
      %v5476 = vmax.f32 %v4921, %v4922
      %5477 = vmax.xlane.f32.xlu0 %v5476
      %v5478 = vpop.xlane.xlu0 %5477
      %v5479 = vmax.f32 %v4923, %v4924
      %5480 = vmax.xlane.f32.xlu0 %v5479
      %v5481 = vpop.xlane.xlu0 %5480
      %v5482 = vmax.f32 %v4925, %v4926
      %5483 = vmax.xlane.f32.xlu0 %v5482
      %v5484 = vpop.xlane.xlu0 %5483
      %v5485 = vmax.f32 %v4927, %v4928
      %5486 = vmax.xlane.f32.xlu0 %v5485
      %v5487 = vpop.xlane.xlu0 %5486
      %v5488 = vmax.f32 %v4929, %v4930
      %5489 = vmax.xlane.f32.xlu0 %v5488
      %v5490 = vpop.xlane.xlu0 %5489
      %v5491 = vmax.f32 %v4931, %v4932
      %5492 = vmax.xlane.f32.xlu0 %v5491
      %v5493 = vpop.xlane.xlu0 %5492
      %v5494 = vmax.f32 %v4933, %v4934
      %5495 = vmax.xlane.f32.xlu0 %v5494
      %v5496 = vpop.xlane.xlu0 %5495
      %v5497 = vmax.f32 %v4935, %v4936
      %5498 = vmax.xlane.f32.xlu0 %v5497
      %v5499 = vpop.xlane.xlu0 %5498
      %v5500 = vmax.f32 %v4937, %v4938
      %5501 = vmax.xlane.f32.xlu0 %v5500
      %v5502 = vpop.xlane.xlu0 %5501
      %v5503 = vmax.f32 %v4939, %v4940
      %5504 = vmax.xlane.f32.xlu0 %v5503
      %v5505 = vpop.xlane.xlu0 %5504
      %v5506 = vmax.f32 %v4941, %v4942
      %5507 = vmax.xlane.f32.xlu0 %v5506
      %v5508 = vpop.xlane.xlu0 %5507
      %v5509 = vmax.f32 %v4943, %v4944
      %5510 = vmax.xlane.f32.xlu0 %v5509
      %v5511 = vpop.xlane.xlu0 %5510
      %v5512 = vmax.f32 %v4945, %v4946
      %5513 = vmax.xlane.f32.xlu0 %v5512
      %v5514 = vpop.xlane.xlu0 %5513
      %v5515 = vmax.f32 %v4947, %v4948
      %5516 = vmax.xlane.f32.xlu0 %v5515
      %v5517 = vpop.xlane.xlu0 %5516
      %v5518 = vmax.f32 %v4949, %v4950
      %5519 = vmax.xlane.f32.xlu0 %v5518
      %v5520 = vpop.xlane.xlu0 %5519
      %v5521 = vmax.f32 %v4951, %v4952
      %5522 = vmax.xlane.f32.xlu0 %v5521
      %v5523 = vpop.xlane.xlu0 %5522
      %v5524 = vmax.f32 %v4953, %v4954
      %5525 = vmax.xlane.f32.xlu0 %v5524
      %v5526 = vpop.xlane.xlu0 %5525
      %v5527 = vmax.f32 %v4955, %v4956
      %5528 = vmax.xlane.f32.xlu0 %v5527
      %v5529 = vpop.xlane.xlu0 %5528
      %v5530 = vmax.f32 %v4957, %v4958
      %5531 = vmax.xlane.f32.xlu0 %v5530
      %v5532 = vpop.xlane.xlu0 %5531
      %v5533 = vmax.f32 %v4959, %v4960
      %5534 = vmax.xlane.f32.xlu0 %v5533
      %v5535 = vpop.xlane.xlu0 %5534
      %v5536 = vmax.f32 %v4961, %v4962
      %5537 = vmax.xlane.f32.xlu0 %v5536
      %v5538 = vpop.xlane.xlu0 %5537
      %v5539 = vmax.f32 %v4963, %v4964
      %5540 = vmax.xlane.f32.xlu0 %v5539
      %v5541 = vpop.xlane.xlu0 %5540
      %v5542 = vmax.f32 %v4965, %v4966
      %5543 = vmax.xlane.f32.xlu0 %v5542
      %v5544 = vpop.xlane.xlu0 %5543
      %v5545 = vmax.f32 %v4967, %v4968
      %5546 = vmax.xlane.f32.xlu0 %v5545
      %v5547 = vpop.xlane.xlu0 %5546
      %v5548 = vmax.f32 %v4969, %v4970
      %5549 = vmax.xlane.f32.xlu0 %v5548
      %v5550 = vpop.xlane.xlu0 %5549
      %v5551 = vmax.f32 %v4971, %v4972
      %5552 = vmax.xlane.f32.xlu0 %v5551
      %v5553 = vpop.xlane.xlu0 %5552
      %v5554 = vmax.f32 %v4973, %v4974
      %5555 = vmax.xlane.f32.xlu0 %v5554
      %v5556 = vpop.xlane.xlu0 %5555
      %v5557 = vmax.f32 %v4975, %v4976
      %5558 = vmax.xlane.f32.xlu0 %v5557
      %v5559 = vpop.xlane.xlu0 %5558
      %v5560 = vmax.f32 %v4977, %v4978
      %5561 = vmax.xlane.f32.xlu0 %v5560
      %v5562 = vpop.xlane.xlu0 %5561
      %v5563 = vmax.f32 %v4979, %v4980
      %5564 = vmax.xlane.f32.xlu0 %v5563
      %v5565 = vpop.xlane.xlu0 %5564
      %v5566 = vmax.f32 %v4981, %v4982
      %5567 = vmax.xlane.f32.xlu0 %v5566
      %v5568 = vpop.xlane.xlu0 %5567
      %v5569 = vmax.f32 %v4983, %v4984
      %5570 = vmax.xlane.f32.xlu0 %v5569
      %v5571 = vpop.xlane.xlu0 %5570
      %v5572 = vmax.f32 %v4985, %v4986
      %5573 = vmax.xlane.f32.xlu0 %v5572
      %v5574 = vpop.xlane.xlu0 %5573
      %v5575 = vmax.f32 %v4987, %v4988
      %5576 = vmax.xlane.f32.xlu0 %v5575
      %v5577 = vpop.xlane.xlu0 %5576
      %v5578 = vmax.f32 %v4989, %v4990
      %5579 = vmax.xlane.f32.xlu0 %v5578
      %v5580 = vpop.xlane.xlu0 %5579
      %v5581 = vmax.f32 %v4991, %v4992
      %5582 = vmax.xlane.f32.xlu0 %v5581
      %v5583 = vpop.xlane.xlu0 %5582
      %v5584 = vmax.f32 %v4993, %v4994
      %5585 = vmax.xlane.f32.xlu0 %v5584
      %v5586 = vpop.xlane.xlu0 %5585
      %v5587 = vmax.f32 %v4995, %v4996
      %5588 = vmax.xlane.f32.xlu0 %v5587
      %v5589 = vpop.xlane.xlu0 %5588
      %v5590 = vmax.f32 %v4997, %v4998
      %5591 = vmax.xlane.f32.xlu0 %v5590
      %v5592 = vpop.xlane.xlu0 %5591
      %v5593 = vmax.f32 %v4999, %v5000
      %5594 = vmax.xlane.f32.xlu0 %v5593
      %v5595 = vpop.xlane.xlu0 %5594
      %v5596 = vmax.f32 %v5001, %v5002
      %5597 = vmax.xlane.f32.xlu0 %v5596
      %v5598 = vpop.xlane.xlu0 %5597
      %v5599 = vmax.f32 %v5003, %v5004
      %5600 = vmax.xlane.f32.xlu0 %v5599
      %v5601 = vpop.xlane.xlu0 %5600
      %v5602 = vmax.f32 %v5005, %v5006
      %5603 = vmax.xlane.f32.xlu0 %v5602
      %v5604 = vpop.xlane.xlu0 %5603
      %v5605 = vmax.f32 %v5007, %v5008
      %5606 = vmax.xlane.f32.xlu0 %v5605
      %v5607 = vpop.xlane.xlu0 %5606
      %v5608 = vmax.f32 %v5009, %v5010
      %5609 = vmax.xlane.f32.xlu0 %v5608
      %v5610 = vpop.xlane.xlu0 %5609
      %v5611 = vmax.f32 %v5011, %v5012
      %5612 = vmax.xlane.f32.xlu0 %v5611
      %v5613 = vpop.xlane.xlu0 %5612
      %v5614 = vmax.f32 %v5013, %v5014
      %5615 = vmax.xlane.f32.xlu0 %v5614
      %v5616 = vpop.xlane.xlu0 %5615
      %v5617 = vmax.f32 %v5015, %v5016
      %5618 = vmax.xlane.f32.xlu0 %v5617
      %v5619 = vpop.xlane.xlu0 %5618
      %v5620 = vmax.f32 %v5017, %v5018
      %5621 = vmax.xlane.f32.xlu0 %v5620
      %v5622 = vpop.xlane.xlu0 %5621
      %v5623 = vmax.f32 %v5019, %v5020
      %5624 = vmax.xlane.f32.xlu0 %v5623
      %v5625 = vpop.xlane.xlu0 %5624
      %v5626 = vmax.f32 %v5021, %v5022
      %5627 = vmax.xlane.f32.xlu0 %v5626
      %v5628 = vpop.xlane.xlu0 %5627
      %v5629 = vmax.f32 %v5023, %v5024
      %5630 = vmax.xlane.f32.xlu0 %v5629
      %v5631 = vpop.xlane.xlu0 %5630
      %v5632 = vmax.f32 %v5025, %v5026
      %5633 = vmax.xlane.f32.xlu0 %v5632
      %v5634 = vpop.xlane.xlu0 %5633
      %v5635 = vmax.f32 %v5027, %v5028
      %5636 = vmax.xlane.f32.xlu0 %v5635
      %v5637 = vpop.xlane.xlu0 %5636
      %v5638 = vmax.f32 %v5029, %v5030
      %5639 = vmax.xlane.f32.xlu0 %v5638
      %v5640 = vpop.xlane.xlu0 %5639
      %v5641 = vmax.f32 %v5031, %v5032
      %5642 = vmax.xlane.f32.xlu0 %v5641
      %v5643 = vpop.xlane.xlu0 %5642
      %v5644 = vmax.f32 %v5033, %v5034
      %5645 = vmax.xlane.f32.xlu0 %v5644
      %v5646 = vpop.xlane.xlu0 %5645
      %v5647 = vmax.f32 %v5035, %v5036
      %5648 = vmax.xlane.f32.xlu0 %v5647
      %v5649 = vpop.xlane.xlu0 %5648
      %v5650 = vmax.f32 %v5037, %v5038
      %5651 = vmax.xlane.f32.xlu0 %v5650
      %v5652 = vpop.xlane.xlu0 %5651
      %v5653 = vmax.f32 %v5039, %v5040
      %5654 = vmax.xlane.f32.xlu0 %v5653
      %v5655 = vpop.xlane.xlu0 %5654
      %v5656 = vmax.f32 %v5041, %v5042
      %5657 = vmax.xlane.f32.xlu0 %v5656
      %v5658 = vpop.xlane.xlu0 %5657
      %v5659 = vmax.f32 %v5043, %v5044
      %5660 = vmax.xlane.f32.xlu0 %v5659
      %v5661 = vpop.xlane.xlu0 %5660
      %v5662 = vmax.f32 %v5045, %v5046
      %5663 = vmax.xlane.f32.xlu0 %v5662
      %v5664 = vpop.xlane.xlu0 %5663
      %v5665 = vmax.f32 %v5047, %v5048
      %5666 = vmax.xlane.f32.xlu0 %v5665
      %v5667 = vpop.xlane.xlu0 %5666
      %v5668 = vmax.f32 %v5049, %v5050
      %5669 = vmax.xlane.f32.xlu0 %v5668
      %v5670 = vpop.xlane.xlu0 %5669
      %v5671 = vmax.f32 %v5051, %v5052
      %5672 = vmax.xlane.f32.xlu0 %v5671
      %v5673 = vpop.xlane.xlu0 %5672
      %v5674 = vmax.f32 %v5053, %v5054
      %5675 = vmax.xlane.f32.xlu0 %v5674
      %v5676 = vpop.xlane.xlu0 %5675
      %v5677 = vmax.f32 %v5055, %v5056
      %5678 = vmax.xlane.f32.xlu0 %v5677
      %v5679 = vpop.xlane.xlu0 %5678
      %v5680 = vmax.f32 %v5057, %v5058
      %5681 = vmax.xlane.f32.xlu0 %v5680
      %v5682 = vpop.xlane.xlu0 %5681
      %v5683 = vmax.f32 %v5059, %v5060
      %5684 = vmax.xlane.f32.xlu0 %v5683
      %v5685 = vpop.xlane.xlu0 %5684
      %v5686 = vmax.f32 %v5061, %v5062
      %5687 = vmax.xlane.f32.xlu0 %v5686
      %v5688 = vpop.xlane.xlu0 %5687
      %v5689 = vmax.f32 %v5063, %v5064
      %5690 = vmax.xlane.f32.xlu0 %v5689
      %v5691 = vpop.xlane.xlu0 %5690
      %v5692 = vmax.f32 %v5065, %v5066
      %5693 = vmax.xlane.f32.xlu0 %v5692
      %v5694 = vpop.xlane.xlu0 %5693
      %v5695 = vmax.f32 %v5067, %v5068
      %5696 = vmax.xlane.f32.xlu0 %v5695
      %v5697 = vpop.xlane.xlu0 %5696
      %v5698 = vmax.f32 %v5069, %v5070
      %5699 = vmax.xlane.f32.xlu0 %v5698
      %v5700 = vpop.xlane.xlu0 %5699
      %v5701 = vmax.f32 %v5071, %v5072
      %5702 = vmax.xlane.f32.xlu0 %v5701
      %v5703 = vpop.xlane.xlu0 %5702
      %v5704 = vmax.f32 %v5073, %v5074
      %5705 = vmax.xlane.f32.xlu0 %v5704
      %v5706 = vpop.xlane.xlu0 %5705
      %v5707 = vmax.f32 %v5075, %v5076
      %5708 = vmax.xlane.f32.xlu0 %v5707
      %v5709 = vpop.xlane.xlu0 %5708
      %v5710 = vmax.f32 %v5077, %v5078
      %5711 = vmax.xlane.f32.xlu0 %v5710
      %v5712 = vpop.xlane.xlu0 %5711
      %v5713 = vmax.f32 %v5079, %v5080
      %5714 = vmax.xlane.f32.xlu0 %v5713
      %v5715 = vpop.xlane.xlu0 %5714
      %v5716 = vmax.f32 %v5081, %v5082
      %5717 = vmax.xlane.f32.xlu0 %v5716
      %v5718 = vpop.xlane.xlu0 %5717
      %v5719 = vmax.f32 %v5083, %v5084
      %5720 = vmax.xlane.f32.xlu0 %v5719
      %v5721 = vpop.xlane.xlu0 %5720
      %v5722 = vmax.f32 %v5085, %v5086
      %5723 = vmax.xlane.f32.xlu0 %v5722
      %v5724 = vpop.xlane.xlu0 %5723
      %v5725 = vmax.f32 %v5087, %v5088
      %5726 = vmax.xlane.f32.xlu0 %v5725
      %v5727 = vpop.xlane.xlu0 %5726
      %v5728 = vmax.f32 %v5089, %v5090
      %5729 = vmax.xlane.f32.xlu0 %v5728
      %v5730 = vpop.xlane.xlu0 %5729
      %v5731 = vmax.f32 %v5091, %v5092
      %5732 = vmax.xlane.f32.xlu0 %v5731
      %v5733 = vpop.xlane.xlu0 %5732
      %v5734 = vmax.f32 %v5093, %v5094
      %5735 = vmax.xlane.f32.xlu0 %v5734
      %v5736 = vpop.xlane.xlu0 %5735
      %v5737 = vmax.f32 %v5095, %v5096
      %5738 = vmax.xlane.f32.xlu0 %v5737
      %v5739 = vpop.xlane.xlu0 %5738
      %v5740 = vmax.f32 %v5097, %v5098
      %5741 = vmax.xlane.f32.xlu0 %v5740
      %v5742 = vpop.xlane.xlu0 %5741
      %v5743 = vmax.f32 %v5099, %v5100
      %5744 = vmax.xlane.f32.xlu0 %v5743
      %v5745 = vpop.xlane.xlu0 %5744
      %v5746 = vmax.f32 %v5234, %v5364
      %v5747 = vmax.f32 %v5235, %v5367
      %v5748 = vmax.f32 %v5236, %v5370
      %v5749 = vmax.f32 %v5237, %v5373
      %v5750 = vmax.f32 %v5238, %v5376
      %v5751 = vmax.f32 %v5239, %v5379
      %v5752 = vmax.f32 %v5240, %v5382
      %v5753 = vmax.f32 %v5241, %v5385
      %v5754 = vmax.f32 %v5242, %v5388
      %v5755 = vmax.f32 %v5243, %v5391
      %v5756 = vmax.f32 %v5244, %v5394
      %v5757 = vmax.f32 %v5245, %v5397
      %v5758 = vmax.f32 %v5246, %v5400
      %v5759 = vmax.f32 %v5247, %v5403
      %v5760 = vmax.f32 %v5248, %v5406
      %v5761 = vmax.f32 %v5249, %v5409
      %v5762 = vmax.f32 %v5250, %v5412
      %v5763 = vmax.f32 %v5251, %v5415
      %v5764 = vmax.f32 %v5252, %v5418
      %v5765 = vmax.f32 %v5253, %v5421
      %v5766 = vmax.f32 %v5254, %v5424
      %v5767 = vmax.f32 %v5255, %v5427
      %v5768 = vmax.f32 %v5256, %v5430
      %v5769 = vmax.f32 %v5257, %v5433
      %v5770 = vmax.f32 %v5258, %v5436
      %v5771 = vmax.f32 %v5259, %v5439
      %v5772 = vmax.f32 %v5260, %v5442
      %v5773 = vmax.f32 %v5261, %v5445
      %v5774 = vmax.f32 %v5262, %v5448
      %v5775 = vmax.f32 %v5263, %v5451
      %v5776 = vmax.f32 %v5264, %v5454
      %v5777 = vmax.f32 %v5265, %v5457
      %v5778 = vmax.f32 %v5266, %v5460
      %v5779 = vmax.f32 %v5267, %v5463
      %v5780 = vmax.f32 %v5268, %v5466
      %v5781 = vmax.f32 %v5269, %v5469
      %v5782 = vmax.f32 %v5270, %v5472
      %v5783 = vmax.f32 %v5271, %v5475
      %v5784 = vmax.f32 %v5272, %v5478
      %v5785 = vmax.f32 %v5273, %v5481
      %v5786 = vmax.f32 %v5274, %v5484
      %v5787 = vmax.f32 %v5275, %v5487
      %v5788 = vmax.f32 %v5276, %v5490
      %v5789 = vmax.f32 %v5277, %v5493
      %v5790 = vmax.f32 %v5278, %v5496
      %v5791 = vmax.f32 %v5279, %v5499
      %v5792 = vmax.f32 %v5280, %v5502
      %v5793 = vmax.f32 %v5281, %v5505
      %v5794 = vmax.f32 %v5282, %v5508
      %v5795 = vmax.f32 %v5283, %v5511
      %v5796 = vmax.f32 %v5284, %v5514
      %v5797 = vmax.f32 %v5285, %v5517
      %v5798 = vmax.f32 %v5286, %v5520
      %v5799 = vmax.f32 %v5287, %v5523
      %v5800 = vmax.f32 %v5288, %v5526
      %v5801 = vmax.f32 %v5289, %v5529
      %v5802 = vmax.f32 %v5290, %v5532
      %v5803 = vmax.f32 %v5291, %v5535
      %v5804 = vmax.f32 %v5292, %v5538
      %v5805 = vmax.f32 %v5293, %v5541
      %v5806 = vmax.f32 %v5294, %v5544
      %v5807 = vmax.f32 %v5295, %v5547
      %v5808 = vmax.f32 %v5296, %v5550
      %v5809 = vmax.f32 %v5297, %v5553
      %v5810 = vmax.f32 %v5298, %v5556
      %v5811 = vmax.f32 %v5299, %v5559
      %v5812 = vmax.f32 %v5300, %v5562
      %v5813 = vmax.f32 %v5301, %v5565
      %v5814 = vmax.f32 %v5302, %v5568
      %v5815 = vmax.f32 %v5303, %v5571
      %v5816 = vmax.f32 %v5304, %v5574
      %v5817 = vmax.f32 %v5305, %v5577
      %v5818 = vmax.f32 %v5306, %v5580
      %v5819 = vmax.f32 %v5307, %v5583
      %v5820 = vmax.f32 %v5308, %v5586
      %v5821 = vmax.f32 %v5309, %v5589
      %v5822 = vmax.f32 %v5310, %v5592
      %v5823 = vmax.f32 %v5311, %v5595
      %v5824 = vmax.f32 %v5312, %v5598
      %v5825 = vmax.f32 %v5313, %v5601
      %v5826 = vmax.f32 %v5314, %v5604
      %v5827 = vmax.f32 %v5315, %v5607
      %v5828 = vmax.f32 %v5316, %v5610
      %v5829 = vmax.f32 %v5317, %v5613
      %v5830 = vmax.f32 %v5318, %v5616
      %v5831 = vmax.f32 %v5319, %v5619
      %v5832 = vmax.f32 %v5320, %v5622
      %v5833 = vmax.f32 %v5321, %v5625
      %v5834 = vmax.f32 %v5322, %v5628
      %v5835 = vmax.f32 %v5323, %v5631
      %v5836 = vmax.f32 %v5324, %v5634
      %v5837 = vmax.f32 %v5325, %v5637
      %v5838 = vmax.f32 %v5326, %v5640
      %v5839 = vmax.f32 %v5327, %v5643
      %v5840 = vmax.f32 %v5328, %v5646
      %v5841 = vmax.f32 %v5329, %v5649
      %v5842 = vmax.f32 %v5330, %v5652
      %v5843 = vmax.f32 %v5331, %v5655
      %v5844 = vmax.f32 %v5332, %v5658
      %v5845 = vmax.f32 %v5333, %v5661
      %v5846 = vmax.f32 %v5334, %v5664
      %v5847 = vmax.f32 %v5335, %v5667
      %v5848 = vmax.f32 %v5336, %v5670
      %v5849 = vmax.f32 %v5337, %v5673
      %v5850 = vmax.f32 %v5338, %v5676
      %v5851 = vmax.f32 %v5339, %v5679
      %v5852 = vmax.f32 %v5340, %v5682
      %v5853 = vmax.f32 %v5341, %v5685
      %v5854 = vmax.f32 %v5342, %v5688
      %v5855 = vmax.f32 %v5343, %v5691
      %v5856 = vmax.f32 %v5344, %v5694
      %v5857 = vmax.f32 %v5345, %v5697
      %v5858 = vmax.f32 %v5346, %v5700
      %v5859 = vmax.f32 %v5347, %v5703
      %v5860 = vmax.f32 %v5348, %v5706
      %v5861 = vmax.f32 %v5349, %v5709
      %v5862 = vmax.f32 %v5350, %v5712
      %v5863 = vmax.f32 %v5351, %v5715
      %v5864 = vmax.f32 %v5352, %v5718
      %v5865 = vmax.f32 %v5353, %v5721
      %v5866 = vmax.f32 %v5354, %v5724
      %v5867 = vmax.f32 %v5355, %v5727
      %v5868 = vmax.f32 %v5356, %v5730
      %v5869 = vmax.f32 %v5357, %v5733
      %v5870 = vmax.f32 %v5358, %v5736
      %v5871 = vmax.f32 %v5359, %v5739
      %v5872 = vmax.f32 %v5360, %v5742
      %v5873 = vmax.f32 %v5361, %v5745
      %vm5874 = vcmask 7168
      %5875 = vst.msk [vmem:[#allocation2] sm:$0xff] %vm5874, %v5746
      %5876 = vst.msk [vmem:[#allocation2 + $0x8] sm:$0xff] %vm5874, %v5747
      %5877 = vst.msk [vmem:[#allocation2 + $0x10] sm:$0xff] %vm5874, %v5748
      %5878 = vst.msk [vmem:[#allocation2 + $0x18] sm:$0xff] %vm5874, %v5749
      %5879 = vst.msk [vmem:[#allocation2 + $0x20] sm:$0xff] %vm5874, %v5750
      %5880 = vst.msk [vmem:[#allocation2 + $0x28] sm:$0xff] %vm5874, %v5751
      %5881 = vst.msk [vmem:[#allocation2 + $0x30] sm:$0xff] %vm5874, %v5752
      %5882 = vst.msk [vmem:[#allocation2 + $0x38] sm:$0xff] %vm5874, %v5753
      %5883 = vst.msk [vmem:[#allocation2 + $0x40] sm:$0xff] %vm5874, %v5754
      %5884 = vst.msk [vmem:[#allocation2 + $0x48] sm:$0xff] %vm5874, %v5755
      %5885 = vst.msk [vmem:[#allocation2 + $0x50] sm:$0xff] %vm5874, %v5756
      %5886 = vst.msk [vmem:[#allocation2 + $0x58] sm:$0xff] %vm5874, %v5757
      %5887 = vst.msk [vmem:[#allocation2 + $0x60] sm:$0xff] %vm5874, %v5758
      %5888 = vst.msk [vmem:[#allocation2 + $0x68] sm:$0xff] %vm5874, %v5759
      %5889 = vst.msk [vmem:[#allocation2 + $0x70] sm:$0xff] %vm5874, %v5760
      %5890 = vst.msk [vmem:[#allocation2 + $0x78] sm:$0xff] %vm5874, %v5761
      %5891 = vst.msk [vmem:[#allocation2 + $0x80] sm:$0xff] %vm5874, %v5762
      %5892 = vst.msk [vmem:[#allocation2 + $0x88] sm:$0xff] %vm5874, %v5763
      %5893 = vst.msk [vmem:[#allocation2 + $0x90] sm:$0xff] %vm5874, %v5764
      %5894 = vst.msk [vmem:[#allocation2 + $0x98] sm:$0xff] %vm5874, %v5765
      %5895 = vst.msk [vmem:[#allocation2 + $0xa0] sm:$0xff] %vm5874, %v5766
      %5896 = vst.msk [vmem:[#allocation2 + $0xa8] sm:$0xff] %vm5874, %v5767
      %5897 = vst.msk [vmem:[#allocation2 + $0xb0] sm:$0xff] %vm5874, %v5768
      %5898 = vst.msk [vmem:[#allocation2 + $0xb8] sm:$0xff] %vm5874, %v5769
      %5899 = vst.msk [vmem:[#allocation2 + $0xc0] sm:$0xff] %vm5874, %v5770
      %5900 = vst.msk [vmem:[#allocation2 + $0xc8] sm:$0xff] %vm5874, %v5771
      %5901 = vst.msk [vmem:[#allocation2 + $0xd0] sm:$0xff] %vm5874, %v5772
      %5902 = vst.msk [vmem:[#allocation2 + $0xd8] sm:$0xff] %vm5874, %v5773
      %5903 = vst.msk [vmem:[#allocation2 + $0xe0] sm:$0xff] %vm5874, %v5774
      %5904 = vst.msk [vmem:[#allocation2 + $0xe8] sm:$0xff] %vm5874, %v5775
      %5905 = vst.msk [vmem:[#allocation2 + $0xf0] sm:$0xff] %vm5874, %v5776
      %5906 = vst.msk [vmem:[#allocation2 + $0xf8] sm:$0xff] %vm5874, %v5777
      %5907 = vst.msk [vmem:[#allocation2 + $0x100] sm:$0xff] %vm5874, %v5778
      %5908 = vst.msk [vmem:[#allocation2 + $0x108] sm:$0xff] %vm5874, %v5779
      %5909 = vst.msk [vmem:[#allocation2 + $0x110] sm:$0xff] %vm5874, %v5780
      %5910 = vst.msk [vmem:[#allocation2 + $0x118] sm:$0xff] %vm5874, %v5781
      %5911 = vst.msk [vmem:[#allocation2 + $0x120] sm:$0xff] %vm5874, %v5782
      %5912 = vst.msk [vmem:[#allocation2 + $0x128] sm:$0xff] %vm5874, %v5783
      %5913 = vst.msk [vmem:[#allocation2 + $0x130] sm:$0xff] %vm5874, %v5784
      %5914 = vst.msk [vmem:[#allocation2 + $0x138] sm:$0xff] %vm5874, %v5785
      %5915 = vst.msk [vmem:[#allocation2 + $0x140] sm:$0xff] %vm5874, %v5786
      %5916 = vst.msk [vmem:[#allocation2 + $0x148] sm:$0xff] %vm5874, %v5787
      %5917 = vst.msk [vmem:[#allocation2 + $0x150] sm:$0xff] %vm5874, %v5788
      %5918 = vst.msk [vmem:[#allocation2 + $0x158] sm:$0xff] %vm5874, %v5789
      %5919 = vst.msk [vmem:[#allocation2 + $0x160] sm:$0xff] %vm5874, %v5790
      %5920 = vst.msk [vmem:[#allocation2 + $0x168] sm:$0xff] %vm5874, %v5791
      %5921 = vst.msk [vmem:[#allocation2 + $0x170] sm:$0xff] %vm5874, %v5792
      %5922 = vst.msk [vmem:[#allocation2 + $0x178] sm:$0xff] %vm5874, %v5793
      %5923 = vst.msk [vmem:[#allocation2 + $0x180] sm:$0xff] %vm5874, %v5794
      %5924 = vst.msk [vmem:[#allocation2 + $0x188] sm:$0xff] %vm5874, %v5795
      %5925 = vst.msk [vmem:[#allocation2 + $0x190] sm:$0xff] %vm5874, %v5796
      %5926 = vst.msk [vmem:[#allocation2 + $0x198] sm:$0xff] %vm5874, %v5797
      %5927 = vst.msk [vmem:[#allocation2 + $0x1a0] sm:$0xff] %vm5874, %v5798
      %5928 = vst.msk [vmem:[#allocation2 + $0x1a8] sm:$0xff] %vm5874, %v5799
      %5929 = vst.msk [vmem:[#allocation2 + $0x1b0] sm:$0xff] %vm5874, %v5800
      %5930 = vst.msk [vmem:[#allocation2 + $0x1b8] sm:$0xff] %vm5874, %v5801
      %5931 = vst.msk [vmem:[#allocation2 + $0x1c0] sm:$0xff] %vm5874, %v5802
      %5932 = vst.msk [vmem:[#allocation2 + $0x1c8] sm:$0xff] %vm5874, %v5803
      %5933 = vst.msk [vmem:[#allocation2 + $0x1d0] sm:$0xff] %vm5874, %v5804
      %5934 = vst.msk [vmem:[#allocation2 + $0x1d8] sm:$0xff] %vm5874, %v5805
      %5935 = vst.msk [vmem:[#allocation2 + $0x1e0] sm:$0xff] %vm5874, %v5806
      %5936 = vst.msk [vmem:[#allocation2 + $0x1e8] sm:$0xff] %vm5874, %v5807
      %5937 = vst.msk [vmem:[#allocation2 + $0x1f0] sm:$0xff] %vm5874, %v5808
      %5938 = vst.msk [vmem:[#allocation2 + $0x1f8] sm:$0xff] %vm5874, %v5809
      %5939 = vst.msk [vmem:[#allocation2 + $0x200] sm:$0xff] %vm5874, %v5810
      %5940 = vst.msk [vmem:[#allocation2 + $0x208] sm:$0xff] %vm5874, %v5811
      %5941 = vst.msk [vmem:[#allocation2 + $0x210] sm:$0xff] %vm5874, %v5812
      %5942 = vst.msk [vmem:[#allocation2 + $0x218] sm:$0xff] %vm5874, %v5813
      %5943 = vst.msk [vmem:[#allocation2 + $0x220] sm:$0xff] %vm5874, %v5814
      %5944 = vst.msk [vmem:[#allocation2 + $0x228] sm:$0xff] %vm5874, %v5815
      %5945 = vst.msk [vmem:[#allocation2 + $0x230] sm:$0xff] %vm5874, %v5816
      %5946 = vst.msk [vmem:[#allocation2 + $0x238] sm:$0xff] %vm5874, %v5817
      %5947 = vst.msk [vmem:[#allocation2 + $0x240] sm:$0xff] %vm5874, %v5818
      %5948 = vst.msk [vmem:[#allocation2 + $0x248] sm:$0xff] %vm5874, %v5819
      %5949 = vst.msk [vmem:[#allocation2 + $0x250] sm:$0xff] %vm5874, %v5820
      %5950 = vst.msk [vmem:[#allocation2 + $0x258] sm:$0xff] %vm5874, %v5821
      %5951 = vst.msk [vmem:[#allocation2 + $0x260] sm:$0xff] %vm5874, %v5822
      %5952 = vst.msk [vmem:[#allocation2 + $0x268] sm:$0xff] %vm5874, %v5823
      %5953 = vst.msk [vmem:[#allocation2 + $0x270] sm:$0xff] %vm5874, %v5824
      %5954 = vst.msk [vmem:[#allocation2 + $0x278] sm:$0xff] %vm5874, %v5825
      %5955 = vst.msk [vmem:[#allocation2 + $0x280] sm:$0xff] %vm5874, %v5826
      %5956 = vst.msk [vmem:[#allocation2 + $0x288] sm:$0xff] %vm5874, %v5827
      %5957 = vst.msk [vmem:[#allocation2 + $0x290] sm:$0xff] %vm5874, %v5828
      %5958 = vst.msk [vmem:[#allocation2 + $0x298] sm:$0xff] %vm5874, %v5829
      %5959 = vst.msk [vmem:[#allocation2 + $0x2a0] sm:$0xff] %vm5874, %v5830
      %5960 = vst.msk [vmem:[#allocation2 + $0x2a8] sm:$0xff] %vm5874, %v5831
      %5961 = vst.msk [vmem:[#allocation2 + $0x2b0] sm:$0xff] %vm5874, %v5832
      %5962 = vst.msk [vmem:[#allocation2 + $0x2b8] sm:$0xff] %vm5874, %v5833
      %5963 = vst.msk [vmem:[#allocation2 + $0x2c0] sm:$0xff] %vm5874, %v5834
      %5964 = vst.msk [vmem:[#allocation2 + $0x2c8] sm:$0xff] %vm5874, %v5835
      %5965 = vst.msk [vmem:[#allocation2 + $0x2d0] sm:$0xff] %vm5874, %v5836
      %5966 = vst.msk [vmem:[#allocation2 + $0x2d8] sm:$0xff] %vm5874, %v5837
      %5967 = vst.msk [vmem:[#allocation2 + $0x2e0] sm:$0xff] %vm5874, %v5838
      %5968 = vst.msk [vmem:[#allocation2 + $0x2e8] sm:$0xff] %vm5874, %v5839
      %5969 = vst.msk [vmem:[#allocation2 + $0x2f0] sm:$0xff] %vm5874, %v5840
      %5970 = vst.msk [vmem:[#allocation2 + $0x2f8] sm:$0xff] %vm5874, %v5841
      %5971 = vst.msk [vmem:[#allocation2 + $0x300] sm:$0xff] %vm5874, %v5842
      %5972 = vst.msk [vmem:[#allocation2 + $0x308] sm:$0xff] %vm5874, %v5843
      %5973 = vst.msk [vmem:[#allocation2 + $0x310] sm:$0xff] %vm5874, %v5844
      %5974 = vst.msk [vmem:[#allocation2 + $0x318] sm:$0xff] %vm5874, %v5845
      %5975 = vst.msk [vmem:[#allocation2 + $0x320] sm:$0xff] %vm5874, %v5846
      %5976 = vst.msk [vmem:[#allocation2 + $0x328] sm:$0xff] %vm5874, %v5847
      %5977 = vst.msk [vmem:[#allocation2 + $0x330] sm:$0xff] %vm5874, %v5848
      %5978 = vst.msk [vmem:[#allocation2 + $0x338] sm:$0xff] %vm5874, %v5849
      %5979 = vst.msk [vmem:[#allocation2 + $0x340] sm:$0xff] %vm5874, %v5850
      %5980 = vst.msk [vmem:[#allocation2 + $0x348] sm:$0xff] %vm5874, %v5851
      %5981 = vst.msk [vmem:[#allocation2 + $0x350] sm:$0xff] %vm5874, %v5852
      %5982 = vst.msk [vmem:[#allocation2 + $0x358] sm:$0xff] %vm5874, %v5853
      %5983 = vst.msk [vmem:[#allocation2 + $0x360] sm:$0xff] %vm5874, %v5854
      %5984 = vst.msk [vmem:[#allocation2 + $0x368] sm:$0xff] %vm5874, %v5855
      %5985 = vst.msk [vmem:[#allocation2 + $0x370] sm:$0xff] %vm5874, %v5856
      %5986 = vst.msk [vmem:[#allocation2 + $0x378] sm:$0xff] %vm5874, %v5857
      %5987 = vst.msk [vmem:[#allocation2 + $0x380] sm:$0xff] %vm5874, %v5858
      %5988 = vst.msk [vmem:[#allocation2 + $0x388] sm:$0xff] %vm5874, %v5859
      %5989 = vst.msk [vmem:[#allocation2 + $0x390] sm:$0xff] %vm5874, %v5860
      %5990 = vst.msk [vmem:[#allocation2 + $0x398] sm:$0xff] %vm5874, %v5861
      %5991 = vst.msk [vmem:[#allocation2 + $0x3a0] sm:$0xff] %vm5874, %v5862
      %5992 = vst.msk [vmem:[#allocation2 + $0x3a8] sm:$0xff] %vm5874, %v5863
      %5993 = vst.msk [vmem:[#allocation2 + $0x3b0] sm:$0xff] %vm5874, %v5864
      %5994 = vst.msk [vmem:[#allocation2 + $0x3b8] sm:$0xff] %vm5874, %v5865
      %5995 = vst.msk [vmem:[#allocation2 + $0x3c0] sm:$0xff] %vm5874, %v5866
      %5996 = vst.msk [vmem:[#allocation2 + $0x3c8] sm:$0xff] %vm5874, %v5867
      %5997 = vst.msk [vmem:[#allocation2 + $0x3d0] sm:$0xff] %vm5874, %v5868
      %5998 = vst.msk [vmem:[#allocation2 + $0x3d8] sm:$0xff] %vm5874, %v5869
      %5999 = vst.msk [vmem:[#allocation2 + $0x3e0] sm:$0xff] %vm5874, %v5870
      %6000 = vst.msk [vmem:[#allocation2 + $0x3e8] sm:$0xff] %vm5874, %v5871
      %6001 = vst.msk [vmem:[#allocation2 + $0x3f0] sm:$0xff] %vm5874, %v5872
      %6002 = vst.msk [vmem:[#allocation2 + $0x3f8] sm:$0xff] %vm5874, %v5873
      // Predicated region
      $region101: #{stnkd_forward.1} parent=95 // pred_check
        %p6003 = pneg %p5101
      $region102: #{stnkd_forward.1} parent=95 // pred_check_branch
        %6005 = sbr.rel (%p6003) target = $region104
      $region103: #{stnkd_forward.1} parent=95 // pred_region
        %v6006 = vld [vmem:[#allocation2] sm:$0xff]
        %v6007 = vld [vmem:[#allocation2 + $0x8] sm:$0xff]
        %v6008 = vld [vmem:[#allocation2 + $0x10] sm:$0xff]
        %v6009 = vld [vmem:[#allocation2 + $0x18] sm:$0xff]
        %v6010 = vld [vmem:[#allocation2 + $0x20] sm:$0xff]
        %v6011 = vld [vmem:[#allocation2 + $0x28] sm:$0xff]
        %v6012 = vld [vmem:[#allocation2 + $0x30] sm:$0xff]
        %v6013 = vld [vmem:[#allocation2 + $0x38] sm:$0xff]
        %v6014 = vld [vmem:[#allocation2 + $0x40] sm:$0xff]
        %v6015 = vld [vmem:[#allocation2 + $0x48] sm:$0xff]
        %v6016 = vld [vmem:[#allocation2 + $0x50] sm:$0xff]
        %v6017 = vld [vmem:[#allocation2 + $0x58] sm:$0xff]
        %v6018 = vld [vmem:[#allocation2 + $0x60] sm:$0xff]
        %v6019 = vld [vmem:[#allocation2 + $0x68] sm:$0xff]
        %v6020 = vld [vmem:[#allocation2 + $0x70] sm:$0xff]
        %v6021 = vld [vmem:[#allocation2 + $0x78] sm:$0xff]
        %v6022 = vld [vmem:[#allocation2 + $0x80] sm:$0xff]
        %v6023 = vld [vmem:[#allocation2 + $0x88] sm:$0xff]
        %v6024 = vld [vmem:[#allocation2 + $0x90] sm:$0xff]
        %v6025 = vld [vmem:[#allocation2 + $0x98] sm:$0xff]
        %v6026 = vld [vmem:[#allocation2 + $0xa0] sm:$0xff]
        %v6027 = vld [vmem:[#allocation2 + $0xa8] sm:$0xff]
        %v6028 = vld [vmem:[#allocation2 + $0xb0] sm:$0xff]
        %v6029 = vld [vmem:[#allocation2 + $0xb8] sm:$0xff]
        %v6030 = vld [vmem:[#allocation2 + $0xc0] sm:$0xff]
        %v6031 = vld [vmem:[#allocation2 + $0xc8] sm:$0xff]
        %v6032 = vld [vmem:[#allocation2 + $0xd0] sm:$0xff]
        %v6033 = vld [vmem:[#allocation2 + $0xd8] sm:$0xff]
        %v6034 = vld [vmem:[#allocation2 + $0xe0] sm:$0xff]
        %v6035 = vld [vmem:[#allocation2 + $0xe8] sm:$0xff]
        %v6036 = vld [vmem:[#allocation2 + $0xf0] sm:$0xff]
        %v6037 = vld [vmem:[#allocation2 + $0xf8] sm:$0xff]
        %v6038 = vld [vmem:[#allocation2 + $0x100] sm:$0xff]
        %v6039 = vld [vmem:[#allocation2 + $0x108] sm:$0xff]
        %v6040 = vld [vmem:[#allocation2 + $0x110] sm:$0xff]
        %v6041 = vld [vmem:[#allocation2 + $0x118] sm:$0xff]
        %v6042 = vld [vmem:[#allocation2 + $0x120] sm:$0xff]
        %v6043 = vld [vmem:[#allocation2 + $0x128] sm:$0xff]
        %v6044 = vld [vmem:[#allocation2 + $0x130] sm:$0xff]
        %v6045 = vld [vmem:[#allocation2 + $0x138] sm:$0xff]
        %v6046 = vld [vmem:[#allocation2 + $0x140] sm:$0xff]
        %v6047 = vld [vmem:[#allocation2 + $0x148] sm:$0xff]
        %v6048 = vld [vmem:[#allocation2 + $0x150] sm:$0xff]
        %v6049 = vld [vmem:[#allocation2 + $0x158] sm:$0xff]
        %v6050 = vld [vmem:[#allocation2 + $0x160] sm:$0xff]
        %v6051 = vld [vmem:[#allocation2 + $0x168] sm:$0xff]
        %v6052 = vld [vmem:[#allocation2 + $0x170] sm:$0xff]
        %v6053 = vld [vmem:[#allocation2 + $0x178] sm:$0xff]
        %v6054 = vld [vmem:[#allocation2 + $0x180] sm:$0xff]
        %v6055 = vld [vmem:[#allocation2 + $0x188] sm:$0xff]
        %v6056 = vld [vmem:[#allocation2 + $0x190] sm:$0xff]
        %v6057 = vld [vmem:[#allocation2 + $0x198] sm:$0xff]
        %v6058 = vld [vmem:[#allocation2 + $0x1a0] sm:$0xff]
        %v6059 = vld [vmem:[#allocation2 + $0x1a8] sm:$0xff]
        %v6060 = vld [vmem:[#allocation2 + $0x1b0] sm:$0xff]
        %v6061 = vld [vmem:[#allocation2 + $0x1b8] sm:$0xff]
        %v6062 = vld [vmem:[#allocation2 + $0x1c0] sm:$0xff]
        %v6063 = vld [vmem:[#allocation2 + $0x1c8] sm:$0xff]
        %v6064 = vld [vmem:[#allocation2 + $0x1d0] sm:$0xff]
        %v6065 = vld [vmem:[#allocation2 + $0x1d8] sm:$0xff]
        %v6066 = vld [vmem:[#allocation2 + $0x1e0] sm:$0xff]
        %v6067 = vld [vmem:[#allocation2 + $0x1e8] sm:$0xff]
        %v6068 = vld [vmem:[#allocation2 + $0x1f0] sm:$0xff]
        %v6069 = vld [vmem:[#allocation2 + $0x1f8] sm:$0xff]
        %v6070 = vld [vmem:[#allocation2 + $0x200] sm:$0xff]
        %v6071 = vld [vmem:[#allocation2 + $0x208] sm:$0xff]
        %v6072 = vld [vmem:[#allocation2 + $0x210] sm:$0xff]
        %v6073 = vld [vmem:[#allocation2 + $0x218] sm:$0xff]
        %v6074 = vld [vmem:[#allocation2 + $0x220] sm:$0xff]
        %v6075 = vld [vmem:[#allocation2 + $0x228] sm:$0xff]
        %v6076 = vld [vmem:[#allocation2 + $0x230] sm:$0xff]
        %v6077 = vld [vmem:[#allocation2 + $0x238] sm:$0xff]
        %v6078 = vld [vmem:[#allocation2 + $0x240] sm:$0xff]
        %v6079 = vld [vmem:[#allocation2 + $0x248] sm:$0xff]
        %v6080 = vld [vmem:[#allocation2 + $0x250] sm:$0xff]
        %v6081 = vld [vmem:[#allocation2 + $0x258] sm:$0xff]
        %v6082 = vld [vmem:[#allocation2 + $0x260] sm:$0xff]
        %v6083 = vld [vmem:[#allocation2 + $0x268] sm:$0xff]
        %v6084 = vld [vmem:[#allocation2 + $0x270] sm:$0xff]
        %v6085 = vld [vmem:[#allocation2 + $0x278] sm:$0xff]
        %v6086 = vld [vmem:[#allocation2 + $0x280] sm:$0xff]
        %v6087 = vld [vmem:[#allocation2 + $0x288] sm:$0xff]
        %v6088 = vld [vmem:[#allocation2 + $0x290] sm:$0xff]
        %v6089 = vld [vmem:[#allocation2 + $0x298] sm:$0xff]
        %v6090 = vld [vmem:[#allocation2 + $0x2a0] sm:$0xff]
        %v6091 = vld [vmem:[#allocation2 + $0x2a8] sm:$0xff]
        %v6092 = vld [vmem:[#allocation2 + $0x2b0] sm:$0xff]
        %v6093 = vld [vmem:[#allocation2 + $0x2b8] sm:$0xff]
        %v6094 = vld [vmem:[#allocation2 + $0x2c0] sm:$0xff]
        %v6095 = vld [vmem:[#allocation2 + $0x2c8] sm:$0xff]
        %v6096 = vld [vmem:[#allocation2 + $0x2d0] sm:$0xff]
        %v6097 = vld [vmem:[#allocation2 + $0x2d8] sm:$0xff]
        %v6098 = vld [vmem:[#allocation2 + $0x2e0] sm:$0xff]
        %v6099 = vld [vmem:[#allocation2 + $0x2e8] sm:$0xff]
        %v6100 = vld [vmem:[#allocation2 + $0x2f0] sm:$0xff]
        %v6101 = vld [vmem:[#allocation2 + $0x2f8] sm:$0xff]
        %v6102 = vld [vmem:[#allocation2 + $0x300] sm:$0xff]
        %v6103 = vld [vmem:[#allocation2 + $0x308] sm:$0xff]
        %v6104 = vld [vmem:[#allocation2 + $0x310] sm:$0xff]
        %v6105 = vld [vmem:[#allocation2 + $0x318] sm:$0xff]
        %v6106 = vld [vmem:[#allocation2 + $0x320] sm:$0xff]
        %v6107 = vld [vmem:[#allocation2 + $0x328] sm:$0xff]
        %v6108 = vld [vmem:[#allocation2 + $0x330] sm:$0xff]
        %v6109 = vld [vmem:[#allocation2 + $0x338] sm:$0xff]
        %v6110 = vld [vmem:[#allocation2 + $0x340] sm:$0xff]
        %v6111 = vld [vmem:[#allocation2 + $0x348] sm:$0xff]
        %v6112 = vld [vmem:[#allocation2 + $0x350] sm:$0xff]
        %v6113 = vld [vmem:[#allocation2 + $0x358] sm:$0xff]
        %v6114 = vld [vmem:[#allocation2 + $0x360] sm:$0xff]
        %v6115 = vld [vmem:[#allocation2 + $0x368] sm:$0xff]
        %v6116 = vld [vmem:[#allocation2 + $0x370] sm:$0xff]
        %v6117 = vld [vmem:[#allocation2 + $0x378] sm:$0xff]
        %v6118 = vld [vmem:[#allocation2 + $0x380] sm:$0xff]
        %v6119 = vld [vmem:[#allocation2 + $0x388] sm:$0xff]
        %v6120 = vld [vmem:[#allocation2 + $0x390] sm:$0xff]
        %v6121 = vld [vmem:[#allocation2 + $0x398] sm:$0xff]
        %v6122 = vld [vmem:[#allocation2 + $0x3a0] sm:$0xff]
        %v6123 = vld [vmem:[#allocation2 + $0x3a8] sm:$0xff]
        %v6124 = vld [vmem:[#allocation2 + $0x3b0] sm:$0xff]
        %v6125 = vld [vmem:[#allocation2 + $0x3b8] sm:$0xff]
        %v6126 = vld [vmem:[#allocation2 + $0x3c0] sm:$0xff]
        %v6127 = vld [vmem:[#allocation2 + $0x3c8] sm:$0xff]
        %v6128 = vld [vmem:[#allocation2 + $0x3d0] sm:$0xff]
        %v6129 = vld [vmem:[#allocation2 + $0x3d8] sm:$0xff]
        %v6130 = vld [vmem:[#allocation2 + $0x3e0] sm:$0xff]
        %v6131 = vld [vmem:[#allocation2 + $0x3e8] sm:$0xff]
        %v6132 = vld [vmem:[#allocation2 + $0x3f0] sm:$0xff]
        %v6133 = vld [vmem:[#allocation2 + $0x3f8] sm:$0xff]
        %v6134 = vld [vmem:[%s10] sm:$0xff]
        %v6135 = vld [vmem:[%s10 + $0x8] sm:$0xff]
        %v6136 = vld [vmem:[%s10 + $0x10] sm:$0xff]
        %v6137 = vld [vmem:[%s10 + $0x18] sm:$0xff]
        %v6138 = vld [vmem:[%s10 + $0x20] sm:$0xff]
        %v6139 = vld [vmem:[%s10 + $0x28] sm:$0xff]
        %v6140 = vld [vmem:[%s10 + $0x30] sm:$0xff]
        %v6141 = vld [vmem:[%s10 + $0x38] sm:$0xff]
        %v6142 = vld [vmem:[%s10 + $0x40] sm:$0xff]
        %v6143 = vld [vmem:[%s10 + $0x48] sm:$0xff]
        %v6144 = vld [vmem:[%s10 + $0x50] sm:$0xff]
        %v6145 = vld [vmem:[%s10 + $0x58] sm:$0xff]
        %v6146 = vld [vmem:[%s10 + $0x60] sm:$0xff]
        %v6147 = vld [vmem:[%s10 + $0x68] sm:$0xff]
        %v6148 = vld [vmem:[%s10 + $0x70] sm:$0xff]
        %v6149 = vld [vmem:[%s10 + $0x78] sm:$0xff]
        %v6150 = vld [vmem:[%s10 + $0x80] sm:$0xff]
        %v6151 = vld [vmem:[%s10 + $0x88] sm:$0xff]
        %v6152 = vld [vmem:[%s10 + $0x90] sm:$0xff]
        %v6153 = vld [vmem:[%s10 + $0x98] sm:$0xff]
        %v6154 = vld [vmem:[%s10 + $0xa0] sm:$0xff]
        %v6155 = vld [vmem:[%s10 + $0xa8] sm:$0xff]
        %v6156 = vld [vmem:[%s10 + $0xb0] sm:$0xff]
        %v6157 = vld [vmem:[%s10 + $0xb8] sm:$0xff]
        %v6158 = vld [vmem:[%s10 + $0xc0] sm:$0xff]
        %v6159 = vld [vmem:[%s10 + $0xc8] sm:$0xff]
        %v6160 = vld [vmem:[%s10 + $0xd0] sm:$0xff]
        %v6161 = vld [vmem:[%s10 + $0xd8] sm:$0xff]
        %v6162 = vld [vmem:[%s10 + $0xe0] sm:$0xff]
        %v6163 = vld [vmem:[%s10 + $0xe8] sm:$0xff]
        %v6164 = vld [vmem:[%s10 + $0xf0] sm:$0xff]
        %v6165 = vld [vmem:[%s10 + $0xf8] sm:$0xff]
        %v6166 = vld [vmem:[%s10 + $0x100] sm:$0xff]
        %v6167 = vld [vmem:[%s10 + $0x108] sm:$0xff]
        %v6168 = vld [vmem:[%s10 + $0x110] sm:$0xff]
        %v6169 = vld [vmem:[%s10 + $0x118] sm:$0xff]
        %v6170 = vld [vmem:[%s10 + $0x120] sm:$0xff]
        %v6171 = vld [vmem:[%s10 + $0x128] sm:$0xff]
        %v6172 = vld [vmem:[%s10 + $0x130] sm:$0xff]
        %v6173 = vld [vmem:[%s10 + $0x138] sm:$0xff]
        %v6174 = vld [vmem:[%s10 + $0x140] sm:$0xff]
        %v6175 = vld [vmem:[%s10 + $0x148] sm:$0xff]
        %v6176 = vld [vmem:[%s10 + $0x150] sm:$0xff]
        %v6177 = vld [vmem:[%s10 + $0x158] sm:$0xff]
        %v6178 = vld [vmem:[%s10 + $0x160] sm:$0xff]
        %v6179 = vld [vmem:[%s10 + $0x168] sm:$0xff]
        %v6180 = vld [vmem:[%s10 + $0x170] sm:$0xff]
        %v6181 = vld [vmem:[%s10 + $0x178] sm:$0xff]
        %v6182 = vld [vmem:[%s10 + $0x180] sm:$0xff]
        %v6183 = vld [vmem:[%s10 + $0x188] sm:$0xff]
        %v6184 = vld [vmem:[%s10 + $0x190] sm:$0xff]
        %v6185 = vld [vmem:[%s10 + $0x198] sm:$0xff]
        %v6186 = vld [vmem:[%s10 + $0x1a0] sm:$0xff]
        %v6187 = vld [vmem:[%s10 + $0x1a8] sm:$0xff]
        %v6188 = vld [vmem:[%s10 + $0x1b0] sm:$0xff]
        %v6189 = vld [vmem:[%s10 + $0x1b8] sm:$0xff]
        %v6190 = vld [vmem:[%s10 + $0x1c0] sm:$0xff]
        %v6191 = vld [vmem:[%s10 + $0x1c8] sm:$0xff]
        %v6192 = vld [vmem:[%s10 + $0x1d0] sm:$0xff]
        %v6193 = vld [vmem:[%s10 + $0x1d8] sm:$0xff]
        %v6194 = vld [vmem:[%s10 + $0x1e0] sm:$0xff]
        %v6195 = vld [vmem:[%s10 + $0x1e8] sm:$0xff]
        %v6196 = vld [vmem:[%s10 + $0x1f0] sm:$0xff]
        %v6197 = vld [vmem:[%s10 + $0x1f8] sm:$0xff]
        %v6198 = vld [vmem:[%s10 + $0x200] sm:$0xff]
        %v6199 = vld [vmem:[%s10 + $0x208] sm:$0xff]
        %v6200 = vld [vmem:[%s10 + $0x210] sm:$0xff]
        %v6201 = vld [vmem:[%s10 + $0x218] sm:$0xff]
        %v6202 = vld [vmem:[%s10 + $0x220] sm:$0xff]
        %v6203 = vld [vmem:[%s10 + $0x228] sm:$0xff]
        %v6204 = vld [vmem:[%s10 + $0x230] sm:$0xff]
        %v6205 = vld [vmem:[%s10 + $0x238] sm:$0xff]
        %v6206 = vld [vmem:[%s10 + $0x240] sm:$0xff]
        %v6207 = vld [vmem:[%s10 + $0x248] sm:$0xff]
        %v6208 = vld [vmem:[%s10 + $0x250] sm:$0xff]
        %v6209 = vld [vmem:[%s10 + $0x258] sm:$0xff]
        %v6210 = vld [vmem:[%s10 + $0x260] sm:$0xff]
        %v6211 = vld [vmem:[%s10 + $0x268] sm:$0xff]
        %v6212 = vld [vmem:[%s10 + $0x270] sm:$0xff]
        %v6213 = vld [vmem:[%s10 + $0x278] sm:$0xff]
        %v6214 = vld [vmem:[%s10 + $0x280] sm:$0xff]
        %v6215 = vld [vmem:[%s10 + $0x288] sm:$0xff]
        %v6216 = vld [vmem:[%s10 + $0x290] sm:$0xff]
        %v6217 = vld [vmem:[%s10 + $0x298] sm:$0xff]
        %v6218 = vld [vmem:[%s10 + $0x2a0] sm:$0xff]
        %v6219 = vld [vmem:[%s10 + $0x2a8] sm:$0xff]
        %v6220 = vld [vmem:[%s10 + $0x2b0] sm:$0xff]
        %v6221 = vld [vmem:[%s10 + $0x2b8] sm:$0xff]
        %v6222 = vld [vmem:[%s10 + $0x2c0] sm:$0xff]
        %v6223 = vld [vmem:[%s10 + $0x2c8] sm:$0xff]
        %v6224 = vld [vmem:[%s10 + $0x2d0] sm:$0xff]
        %v6225 = vld [vmem:[%s10 + $0x2d8] sm:$0xff]
        %v6226 = vld [vmem:[%s10 + $0x2e0] sm:$0xff]
        %v6227 = vld [vmem:[%s10 + $0x2e8] sm:$0xff]
        %v6228 = vld [vmem:[%s10 + $0x2f0] sm:$0xff]
        %v6229 = vld [vmem:[%s10 + $0x2f8] sm:$0xff]
        %v6230 = vld [vmem:[%s10 + $0x300] sm:$0xff]
        %v6231 = vld [vmem:[%s10 + $0x308] sm:$0xff]
        %v6232 = vld [vmem:[%s10 + $0x310] sm:$0xff]
        %v6233 = vld [vmem:[%s10 + $0x318] sm:$0xff]
        %v6234 = vld [vmem:[%s10 + $0x320] sm:$0xff]
        %v6235 = vld [vmem:[%s10 + $0x328] sm:$0xff]
        %v6236 = vld [vmem:[%s10 + $0x330] sm:$0xff]
        %v6237 = vld [vmem:[%s10 + $0x338] sm:$0xff]
        %v6238 = vld [vmem:[%s10 + $0x340] sm:$0xff]
        %v6239 = vld [vmem:[%s10 + $0x348] sm:$0xff]
        %v6240 = vld [vmem:[%s10 + $0x350] sm:$0xff]
        %v6241 = vld [vmem:[%s10 + $0x358] sm:$0xff]
        %v6242 = vld [vmem:[%s10 + $0x360] sm:$0xff]
        %v6243 = vld [vmem:[%s10 + $0x368] sm:$0xff]
        %v6244 = vld [vmem:[%s10 + $0x370] sm:$0xff]
        %v6245 = vld [vmem:[%s10 + $0x378] sm:$0xff]
        %v6246 = vld [vmem:[%s10 + $0x380] sm:$0xff]
        %v6247 = vld [vmem:[%s10 + $0x388] sm:$0xff]
        %v6248 = vld [vmem:[%s10 + $0x390] sm:$0xff]
        %v6249 = vld [vmem:[%s10 + $0x398] sm:$0xff]
        %v6250 = vld [vmem:[%s10 + $0x3a0] sm:$0xff]
        %v6251 = vld [vmem:[%s10 + $0x3a8] sm:$0xff]
        %v6252 = vld [vmem:[%s10 + $0x3b0] sm:$0xff]
        %v6253 = vld [vmem:[%s10 + $0x3b8] sm:$0xff]
        %v6254 = vld [vmem:[%s10 + $0x3c0] sm:$0xff]
        %v6255 = vld [vmem:[%s10 + $0x3c8] sm:$0xff]
        %v6256 = vld [vmem:[%s10 + $0x3d0] sm:$0xff]
        %v6257 = vld [vmem:[%s10 + $0x3d8] sm:$0xff]
        %v6258 = vld [vmem:[%s10 + $0x3e0] sm:$0xff]
        %v6259 = vld [vmem:[%s10 + $0x3e8] sm:$0xff]
        %v6260 = vld [vmem:[%s10 + $0x3f0] sm:$0xff]
        %v6261 = vld [vmem:[%s10 + $0x3f8] sm:$0xff]
        %v6262 = vld [vmem:[%s10 + $0x400] sm:$0xff]
        %v6263 = vld [vmem:[%s10 + $0x408] sm:$0xff]
        %v6264 = vld [vmem:[%s10 + $0x410] sm:$0xff]
        %v6265 = vld [vmem:[%s10 + $0x418] sm:$0xff]
        %v6266 = vld [vmem:[%s10 + $0x420] sm:$0xff]
        %v6267 = vld [vmem:[%s10 + $0x428] sm:$0xff]
        %v6268 = vld [vmem:[%s10 + $0x430] sm:$0xff]
        %v6269 = vld [vmem:[%s10 + $0x438] sm:$0xff]
        %v6270 = vld [vmem:[%s10 + $0x440] sm:$0xff]
        %v6271 = vld [vmem:[%s10 + $0x448] sm:$0xff]
        %v6272 = vld [vmem:[%s10 + $0x450] sm:$0xff]
        %v6273 = vld [vmem:[%s10 + $0x458] sm:$0xff]
        %v6274 = vld [vmem:[%s10 + $0x460] sm:$0xff]
        %v6275 = vld [vmem:[%s10 + $0x468] sm:$0xff]
        %v6276 = vld [vmem:[%s10 + $0x470] sm:$0xff]
        %v6277 = vld [vmem:[%s10 + $0x478] sm:$0xff]
        %v6278 = vld [vmem:[%s10 + $0x480] sm:$0xff]
        %v6279 = vld [vmem:[%s10 + $0x488] sm:$0xff]
        %v6280 = vld [vmem:[%s10 + $0x490] sm:$0xff]
        %v6281 = vld [vmem:[%s10 + $0x498] sm:$0xff]
        %v6282 = vld [vmem:[%s10 + $0x4a0] sm:$0xff]
        %v6283 = vld [vmem:[%s10 + $0x4a8] sm:$0xff]
        %v6284 = vld [vmem:[%s10 + $0x4b0] sm:$0xff]
        %v6285 = vld [vmem:[%s10 + $0x4b8] sm:$0xff]
        %v6286 = vld [vmem:[%s10 + $0x4c0] sm:$0xff]
        %v6287 = vld [vmem:[%s10 + $0x4c8] sm:$0xff]
        %v6288 = vld [vmem:[%s10 + $0x4d0] sm:$0xff]
        %v6289 = vld [vmem:[%s10 + $0x4d8] sm:$0xff]
        %v6290 = vld [vmem:[%s10 + $0x4e0] sm:$0xff]
        %v6291 = vld [vmem:[%s10 + $0x4e8] sm:$0xff]
        %v6292 = vld [vmem:[%s10 + $0x4f0] sm:$0xff]
        %v6293 = vld [vmem:[%s10 + $0x4f8] sm:$0xff]
        %v6294 = vld [vmem:[%s10 + $0x500] sm:$0xff]
        %v6295 = vld [vmem:[%s10 + $0x508] sm:$0xff]
        %v6296 = vld [vmem:[%s10 + $0x510] sm:$0xff]
        %v6297 = vld [vmem:[%s10 + $0x518] sm:$0xff]
        %v6298 = vld [vmem:[%s10 + $0x520] sm:$0xff]
        %v6299 = vld [vmem:[%s10 + $0x528] sm:$0xff]
        %v6300 = vld [vmem:[%s10 + $0x530] sm:$0xff]
        %v6301 = vld [vmem:[%s10 + $0x538] sm:$0xff]
        %v6302 = vld [vmem:[%s10 + $0x540] sm:$0xff]
        %v6303 = vld [vmem:[%s10 + $0x548] sm:$0xff]
        %v6304 = vld [vmem:[%s10 + $0x550] sm:$0xff]
        %v6305 = vld [vmem:[%s10 + $0x558] sm:$0xff]
        %v6306 = vld [vmem:[%s10 + $0x560] sm:$0xff]
        %v6307 = vld [vmem:[%s10 + $0x568] sm:$0xff]
        %v6308 = vld [vmem:[%s10 + $0x570] sm:$0xff]
        %v6309 = vld [vmem:[%s10 + $0x578] sm:$0xff]
        %v6310 = vld [vmem:[%s10 + $0x580] sm:$0xff]
        %v6311 = vld [vmem:[%s10 + $0x588] sm:$0xff]
        %v6312 = vld [vmem:[%s10 + $0x590] sm:$0xff]
        %v6313 = vld [vmem:[%s10 + $0x598] sm:$0xff]
        %v6314 = vld [vmem:[%s10 + $0x5a0] sm:$0xff]
        %v6315 = vld [vmem:[%s10 + $0x5a8] sm:$0xff]
        %v6316 = vld [vmem:[%s10 + $0x5b0] sm:$0xff]
        %v6317 = vld [vmem:[%s10 + $0x5b8] sm:$0xff]
        %v6318 = vld [vmem:[%s10 + $0x5c0] sm:$0xff]
        %v6319 = vld [vmem:[%s10 + $0x5c8] sm:$0xff]
        %v6320 = vld [vmem:[%s10 + $0x5d0] sm:$0xff]
        %v6321 = vld [vmem:[%s10 + $0x5d8] sm:$0xff]
        %v6322 = vld [vmem:[%s10 + $0x5e0] sm:$0xff]
        %v6323 = vld [vmem:[%s10 + $0x5e8] sm:$0xff]
        %v6324 = vld [vmem:[%s10 + $0x5f0] sm:$0xff]
        %v6325 = vld [vmem:[%s10 + $0x5f8] sm:$0xff]
        %v6326 = vld [vmem:[%s10 + $0x600] sm:$0xff]
        %v6327 = vld [vmem:[%s10 + $0x608] sm:$0xff]
        %v6328 = vld [vmem:[%s10 + $0x610] sm:$0xff]
        %v6329 = vld [vmem:[%s10 + $0x618] sm:$0xff]
        %v6330 = vld [vmem:[%s10 + $0x620] sm:$0xff]
        %v6331 = vld [vmem:[%s10 + $0x628] sm:$0xff]
        %v6332 = vld [vmem:[%s10 + $0x630] sm:$0xff]
        %v6333 = vld [vmem:[%s10 + $0x638] sm:$0xff]
        %v6334 = vld [vmem:[%s10 + $0x640] sm:$0xff]
        %v6335 = vld [vmem:[%s10 + $0x648] sm:$0xff]
        %v6336 = vld [vmem:[%s10 + $0x650] sm:$0xff]
        %v6337 = vld [vmem:[%s10 + $0x658] sm:$0xff]
        %v6338 = vld [vmem:[%s10 + $0x660] sm:$0xff]
        %v6339 = vld [vmem:[%s10 + $0x668] sm:$0xff]
        %v6340 = vld [vmem:[%s10 + $0x670] sm:$0xff]
        %v6341 = vld [vmem:[%s10 + $0x678] sm:$0xff]
        %v6342 = vld [vmem:[%s10 + $0x680] sm:$0xff]
        %v6343 = vld [vmem:[%s10 + $0x688] sm:$0xff]
        %v6344 = vld [vmem:[%s10 + $0x690] sm:$0xff]
        %v6345 = vld [vmem:[%s10 + $0x698] sm:$0xff]
        %v6346 = vld [vmem:[%s10 + $0x6a0] sm:$0xff]
        %v6347 = vld [vmem:[%s10 + $0x6a8] sm:$0xff]
        %v6348 = vld [vmem:[%s10 + $0x6b0] sm:$0xff]
        %v6349 = vld [vmem:[%s10 + $0x6b8] sm:$0xff]
        %v6350 = vld [vmem:[%s10 + $0x6c0] sm:$0xff]
        %v6351 = vld [vmem:[%s10 + $0x6c8] sm:$0xff]
        %v6352 = vld [vmem:[%s10 + $0x6d0] sm:$0xff]
        %v6353 = vld [vmem:[%s10 + $0x6d8] sm:$0xff]
        %v6354 = vld [vmem:[%s10 + $0x6e0] sm:$0xff]
        %v6355 = vld [vmem:[%s10 + $0x6e8] sm:$0xff]
        %v6356 = vld [vmem:[%s10 + $0x6f0] sm:$0xff]
        %v6357 = vld [vmem:[%s10 + $0x6f8] sm:$0xff]
        %v6358 = vld [vmem:[%s10 + $0x700] sm:$0xff]
        %v6359 = vld [vmem:[%s10 + $0x708] sm:$0xff]
        %v6360 = vld [vmem:[%s10 + $0x710] sm:$0xff]
        %v6361 = vld [vmem:[%s10 + $0x718] sm:$0xff]
        %v6362 = vld [vmem:[%s10 + $0x720] sm:$0xff]
        %v6363 = vld [vmem:[%s10 + $0x728] sm:$0xff]
        %v6364 = vld [vmem:[%s10 + $0x730] sm:$0xff]
        %v6365 = vld [vmem:[%s10 + $0x738] sm:$0xff]
        %v6366 = vld [vmem:[%s10 + $0x740] sm:$0xff]
        %v6367 = vld [vmem:[%s10 + $0x748] sm:$0xff]
        %v6368 = vld [vmem:[%s10 + $0x750] sm:$0xff]
        %v6369 = vld [vmem:[%s10 + $0x758] sm:$0xff]
        %v6370 = vld [vmem:[%s10 + $0x760] sm:$0xff]
        %v6371 = vld [vmem:[%s10 + $0x768] sm:$0xff]
        %v6372 = vld [vmem:[%s10 + $0x770] sm:$0xff]
        %v6373 = vld [vmem:[%s10 + $0x778] sm:$0xff]
        %v6374 = vld [vmem:[%s10 + $0x780] sm:$0xff]
        %v6375 = vld [vmem:[%s10 + $0x788] sm:$0xff]
        %v6376 = vld [vmem:[%s10 + $0x790] sm:$0xff]
        %v6377 = vld [vmem:[%s10 + $0x798] sm:$0xff]
        %v6378 = vld [vmem:[%s10 + $0x7a0] sm:$0xff]
        %v6379 = vld [vmem:[%s10 + $0x7a8] sm:$0xff]
        %v6380 = vld [vmem:[%s10 + $0x7b0] sm:$0xff]
        %v6381 = vld [vmem:[%s10 + $0x7b8] sm:$0xff]
        %v6382 = vld [vmem:[%s10 + $0x7c0] sm:$0xff]
        %v6383 = vld [vmem:[%s10 + $0x7c8] sm:$0xff]
        %v6384 = vld [vmem:[%s10 + $0x7d0] sm:$0xff]
        %v6385 = vld [vmem:[%s10 + $0x7d8] sm:$0xff]
        %v6386 = vld [vmem:[%s10 + $0x7e0] sm:$0xff]
        %v6387 = vld [vmem:[%s10 + $0x7e8] sm:$0xff]
        %v6388 = vld [vmem:[%s10 + $0x7f0] sm:$0xff]
        %v6389 = vld [vmem:[%s10 + $0x7f8] sm:$0xff]
        %v6390 = vpack.c.bf16 %v6007, %v6006
        %v6391 = vpack.c.bf16 %v6009, %v6008
        %v6392 = vpack.c.bf16 %v6011, %v6010
        %v6393 = vpack.c.bf16 %v6013, %v6012
        %v6394 = vpack.c.bf16 %v6015, %v6014
        %v6395 = vpack.c.bf16 %v6017, %v6016
        %v6396 = vpack.c.bf16 %v6019, %v6018
        %v6397 = vpack.c.bf16 %v6021, %v6020
        %v6398 = vpack.c.bf16 %v6023, %v6022
        %v6399 = vpack.c.bf16 %v6025, %v6024
        %v6400 = vpack.c.bf16 %v6027, %v6026
        %v6401 = vpack.c.bf16 %v6029, %v6028
        %v6402 = vpack.c.bf16 %v6031, %v6030
        %v6403 = vpack.c.bf16 %v6033, %v6032
        %v6404 = vpack.c.bf16 %v6035, %v6034
        %v6405 = vpack.c.bf16 %v6037, %v6036
        %v6406 = vpack.c.bf16 %v6039, %v6038
        %v6407 = vpack.c.bf16 %v6041, %v6040
        %v6408 = vpack.c.bf16 %v6043, %v6042
        %v6409 = vpack.c.bf16 %v6045, %v6044
        %v6410 = vpack.c.bf16 %v6047, %v6046
        %v6411 = vpack.c.bf16 %v6049, %v6048
        %v6412 = vpack.c.bf16 %v6051, %v6050
        %v6413 = vpack.c.bf16 %v6053, %v6052
        %v6414 = vpack.c.bf16 %v6055, %v6054
        %v6415 = vpack.c.bf16 %v6057, %v6056
        %v6416 = vpack.c.bf16 %v6059, %v6058
        %v6417 = vpack.c.bf16 %v6061, %v6060
        %v6418 = vpack.c.bf16 %v6063, %v6062
        %v6419 = vpack.c.bf16 %v6065, %v6064
        %v6420 = vpack.c.bf16 %v6067, %v6066
        %v6421 = vpack.c.bf16 %v6069, %v6068
        %v6422 = vpack.c.bf16 %v6071, %v6070
        %v6423 = vpack.c.bf16 %v6073, %v6072
        %v6424 = vpack.c.bf16 %v6075, %v6074
        %v6425 = vpack.c.bf16 %v6077, %v6076
        %v6426 = vpack.c.bf16 %v6079, %v6078
        %v6427 = vpack.c.bf16 %v6081, %v6080
        %v6428 = vpack.c.bf16 %v6083, %v6082
        %v6429 = vpack.c.bf16 %v6085, %v6084
        %v6430 = vpack.c.bf16 %v6087, %v6086
        %v6431 = vpack.c.bf16 %v6089, %v6088
        %v6432 = vpack.c.bf16 %v6091, %v6090
        %v6433 = vpack.c.bf16 %v6093, %v6092
        %v6434 = vpack.c.bf16 %v6095, %v6094
        %v6435 = vpack.c.bf16 %v6097, %v6096
        %v6436 = vpack.c.bf16 %v6099, %v6098
        %v6437 = vpack.c.bf16 %v6101, %v6100
        %v6438 = vpack.c.bf16 %v6103, %v6102
        %v6439 = vpack.c.bf16 %v6105, %v6104
        %v6440 = vpack.c.bf16 %v6107, %v6106
        %v6441 = vpack.c.bf16 %v6109, %v6108
        %v6442 = vpack.c.bf16 %v6111, %v6110
        %v6443 = vpack.c.bf16 %v6113, %v6112
        %v6444 = vpack.c.bf16 %v6115, %v6114
        %v6445 = vpack.c.bf16 %v6117, %v6116
        %v6446 = vpack.c.bf16 %v6119, %v6118
        %v6447 = vpack.c.bf16 %v6121, %v6120
        %v6448 = vpack.c.bf16 %v6123, %v6122
        %v6449 = vpack.c.bf16 %v6125, %v6124
        %v6450 = vpack.c.bf16 %v6127, %v6126
        %v6451 = vpack.c.bf16 %v6129, %v6128
        %v6452 = vpack.c.bf16 %v6131, %v6130
        %v6453 = vpack.c.bf16 %v6133, %v6132
        %v6710 = vunpack.c.l.b16 %v6134
        %v6711 = vunpack.c.h.b16 %v6134
        %v6712 = vunpack.c.l.b16 %v6135
        %v6713 = vunpack.c.h.b16 %v6135
        %v6714 = vunpack.c.l.b16 %v6136
        %v6715 = vunpack.c.h.b16 %v6136
        %v6716 = vunpack.c.l.b16 %v6137
        %v6717 = vunpack.c.h.b16 %v6137
        %v6718 = vunpack.c.l.b16 %v6138
        %v6719 = vunpack.c.h.b16 %v6138
        %v6720 = vunpack.c.l.b16 %v6139
        %v6721 = vunpack.c.h.b16 %v6139
        %v6722 = vunpack.c.l.b16 %v6140
        %v6723 = vunpack.c.h.b16 %v6140
        %v6724 = vunpack.c.l.b16 %v6141
        %v6725 = vunpack.c.h.b16 %v6141
        %v6726 = vunpack.c.l.b16 %v6142
        %v6727 = vunpack.c.h.b16 %v6142
        %v6728 = vunpack.c.l.b16 %v6143
        %v6729 = vunpack.c.h.b16 %v6143
        %v6730 = vunpack.c.l.b16 %v6144
        %v6731 = vunpack.c.h.b16 %v6144
        %v6732 = vunpack.c.l.b16 %v6145
        %v6733 = vunpack.c.h.b16 %v6145
        %v6734 = vunpack.c.l.b16 %v6146
        %v6735 = vunpack.c.h.b16 %v6146
        %v6736 = vunpack.c.l.b16 %v6147
        %v6737 = vunpack.c.h.b16 %v6147
        %v6738 = vunpack.c.l.b16 %v6148
        %v6739 = vunpack.c.h.b16 %v6148
        %v6740 = vunpack.c.l.b16 %v6149
        %v6741 = vunpack.c.h.b16 %v6149
        %v6742 = vunpack.c.l.b16 %v6150
        %v6743 = vunpack.c.h.b16 %v6150
        %v6744 = vunpack.c.l.b16 %v6151
        %v6745 = vunpack.c.h.b16 %v6151
        %v6746 = vunpack.c.l.b16 %v6152
        %v6747 = vunpack.c.h.b16 %v6152
        %v6748 = vunpack.c.l.b16 %v6153
        %v6749 = vunpack.c.h.b16 %v6153
        %v6750 = vunpack.c.l.b16 %v6154
        %v6751 = vunpack.c.h.b16 %v6154
        %v6752 = vunpack.c.l.b16 %v6155
        %v6753 = vunpack.c.h.b16 %v6155
        %v6754 = vunpack.c.l.b16 %v6156
        %v6755 = vunpack.c.h.b16 %v6156
        %v6756 = vunpack.c.l.b16 %v6157
        %v6757 = vunpack.c.h.b16 %v6157
        %v6758 = vunpack.c.l.b16 %v6158
        %v6759 = vunpack.c.h.b16 %v6158
        %v6760 = vunpack.c.l.b16 %v6159
        %v6761 = vunpack.c.h.b16 %v6159
        %v6762 = vunpack.c.l.b16 %v6160
        %v6763 = vunpack.c.h.b16 %v6160
        %v6764 = vunpack.c.l.b16 %v6161
        %v6765 = vunpack.c.h.b16 %v6161
        %v6766 = vunpack.c.l.b16 %v6162
        %v6767 = vunpack.c.h.b16 %v6162
        %v6768 = vunpack.c.l.b16 %v6163
        %v6769 = vunpack.c.h.b16 %v6163
        %v6770 = vunpack.c.l.b16 %v6164
        %v6771 = vunpack.c.h.b16 %v6164
        %v6772 = vunpack.c.l.b16 %v6165
        %v6773 = vunpack.c.h.b16 %v6165
        %v6774 = vunpack.c.l.b16 %v6166
        %v6775 = vunpack.c.h.b16 %v6166
        %v6776 = vunpack.c.l.b16 %v6167
        %v6777 = vunpack.c.h.b16 %v6167
        %v6778 = vunpack.c.l.b16 %v6168
        %v6779 = vunpack.c.h.b16 %v6168
        %v6780 = vunpack.c.l.b16 %v6169
        %v6781 = vunpack.c.h.b16 %v6169
        %v6782 = vunpack.c.l.b16 %v6170
        %v6783 = vunpack.c.h.b16 %v6170
        %v6784 = vunpack.c.l.b16 %v6171
        %v6785 = vunpack.c.h.b16 %v6171
        %v6786 = vunpack.c.l.b16 %v6172
        %v6787 = vunpack.c.h.b16 %v6172
        %v6788 = vunpack.c.l.b16 %v6173
        %v6789 = vunpack.c.h.b16 %v6173
        %v6790 = vunpack.c.l.b16 %v6174
        %v6791 = vunpack.c.h.b16 %v6174
        %v6792 = vunpack.c.l.b16 %v6175
        %v6793 = vunpack.c.h.b16 %v6175
        %v6794 = vunpack.c.l.b16 %v6176
        %v6795 = vunpack.c.h.b16 %v6176
        %v6796 = vunpack.c.l.b16 %v6177
        %v6797 = vunpack.c.h.b16 %v6177
        %v6798 = vunpack.c.l.b16 %v6178
        %v6799 = vunpack.c.h.b16 %v6178
        %v6800 = vunpack.c.l.b16 %v6179
        %v6801 = vunpack.c.h.b16 %v6179
        %v6802 = vunpack.c.l.b16 %v6180
        %v6803 = vunpack.c.h.b16 %v6180
        %v6804 = vunpack.c.l.b16 %v6181
        %v6805 = vunpack.c.h.b16 %v6181
        %v6806 = vunpack.c.l.b16 %v6182
        %v6807 = vunpack.c.h.b16 %v6182
        %v6808 = vunpack.c.l.b16 %v6183
        %v6809 = vunpack.c.h.b16 %v6183
        %v6810 = vunpack.c.l.b16 %v6184
        %v6811 = vunpack.c.h.b16 %v6184
        %v6812 = vunpack.c.l.b16 %v6185
        %v6813 = vunpack.c.h.b16 %v6185
        %v6814 = vunpack.c.l.b16 %v6186
        %v6815 = vunpack.c.h.b16 %v6186
        %v6816 = vunpack.c.l.b16 %v6187
        %v6817 = vunpack.c.h.b16 %v6187
        %v6818 = vunpack.c.l.b16 %v6188
        %v6819 = vunpack.c.h.b16 %v6188
        %v6820 = vunpack.c.l.b16 %v6189
        %v6821 = vunpack.c.h.b16 %v6189
        %v6822 = vunpack.c.l.b16 %v6190
        %v6823 = vunpack.c.h.b16 %v6190
        %v6824 = vunpack.c.l.b16 %v6191
        %v6825 = vunpack.c.h.b16 %v6191
        %v6826 = vunpack.c.l.b16 %v6192
        %v6827 = vunpack.c.h.b16 %v6192
        %v6828 = vunpack.c.l.b16 %v6193
        %v6829 = vunpack.c.h.b16 %v6193
        %v6830 = vunpack.c.l.b16 %v6194
        %v6831 = vunpack.c.h.b16 %v6194
        %v6832 = vunpack.c.l.b16 %v6195
        %v6833 = vunpack.c.h.b16 %v6195
        %v6834 = vunpack.c.l.b16 %v6196
        %v6835 = vunpack.c.h.b16 %v6196
        %v6836 = vunpack.c.l.b16 %v6197
        %v6837 = vunpack.c.h.b16 %v6197
        %v6838 = vunpack.c.l.b16 %v6198
        %v6839 = vunpack.c.h.b16 %v6198
        %v6840 = vunpack.c.l.b16 %v6199
        %v6841 = vunpack.c.h.b16 %v6199
        %v6842 = vunpack.c.l.b16 %v6200
        %v6843 = vunpack.c.h.b16 %v6200
        %v6844 = vunpack.c.l.b16 %v6201
        %v6845 = vunpack.c.h.b16 %v6201
        %v6846 = vunpack.c.l.b16 %v6202
        %v6847 = vunpack.c.h.b16 %v6202
        %v6848 = vunpack.c.l.b16 %v6203
        %v6849 = vunpack.c.h.b16 %v6203
        %v6850 = vunpack.c.l.b16 %v6204
        %v6851 = vunpack.c.h.b16 %v6204
        %v6852 = vunpack.c.l.b16 %v6205
        %v6853 = vunpack.c.h.b16 %v6205
        %v6854 = vunpack.c.l.b16 %v6206
        %v6855 = vunpack.c.h.b16 %v6206
        %v6856 = vunpack.c.l.b16 %v6207
        %v6857 = vunpack.c.h.b16 %v6207
        %v6858 = vunpack.c.l.b16 %v6208
        %v6859 = vunpack.c.h.b16 %v6208
        %v6860 = vunpack.c.l.b16 %v6209
        %v6861 = vunpack.c.h.b16 %v6209
        %v6862 = vunpack.c.l.b16 %v6210
        %v6863 = vunpack.c.h.b16 %v6210
        %v6864 = vunpack.c.l.b16 %v6211
        %v6865 = vunpack.c.h.b16 %v6211
        %v6866 = vunpack.c.l.b16 %v6212
        %v6867 = vunpack.c.h.b16 %v6212
        %v6868 = vunpack.c.l.b16 %v6213
        %v6869 = vunpack.c.h.b16 %v6213
        %v6870 = vunpack.c.l.b16 %v6214
        %v6871 = vunpack.c.h.b16 %v6214
        %v6872 = vunpack.c.l.b16 %v6215
        %v6873 = vunpack.c.h.b16 %v6215
        %v6874 = vunpack.c.l.b16 %v6216
        %v6875 = vunpack.c.h.b16 %v6216
        %v6876 = vunpack.c.l.b16 %v6217
        %v6877 = vunpack.c.h.b16 %v6217
        %v6878 = vunpack.c.l.b16 %v6218
        %v6879 = vunpack.c.h.b16 %v6218
        %v6880 = vunpack.c.l.b16 %v6219
        %v6881 = vunpack.c.h.b16 %v6219
        %v6882 = vunpack.c.l.b16 %v6220
        %v6883 = vunpack.c.h.b16 %v6220
        %v6884 = vunpack.c.l.b16 %v6221
        %v6885 = vunpack.c.h.b16 %v6221
        %v6886 = vunpack.c.l.b16 %v6222
        %v6887 = vunpack.c.h.b16 %v6222
        %v6888 = vunpack.c.l.b16 %v6223
        %v6889 = vunpack.c.h.b16 %v6223
        %v6890 = vunpack.c.l.b16 %v6224
        %v6891 = vunpack.c.h.b16 %v6224
        %v6892 = vunpack.c.l.b16 %v6225
        %v6893 = vunpack.c.h.b16 %v6225
        %v6894 = vunpack.c.l.b16 %v6226
        %v6895 = vunpack.c.h.b16 %v6226
        %v6896 = vunpack.c.l.b16 %v6227
        %v6897 = vunpack.c.h.b16 %v6227
        %v6898 = vunpack.c.l.b16 %v6228
        %v6899 = vunpack.c.h.b16 %v6228
        %v6900 = vunpack.c.l.b16 %v6229
        %v6901 = vunpack.c.h.b16 %v6229
        %v6902 = vunpack.c.l.b16 %v6230
        %v6903 = vunpack.c.h.b16 %v6230
        %v6904 = vunpack.c.l.b16 %v6231
        %v6905 = vunpack.c.h.b16 %v6231
        %v6906 = vunpack.c.l.b16 %v6232
        %v6907 = vunpack.c.h.b16 %v6232
        %v6908 = vunpack.c.l.b16 %v6233
        %v6909 = vunpack.c.h.b16 %v6233
        %v6910 = vunpack.c.l.b16 %v6234
        %v6911 = vunpack.c.h.b16 %v6234
        %v6912 = vunpack.c.l.b16 %v6235
        %v6913 = vunpack.c.h.b16 %v6235
        %v6914 = vunpack.c.l.b16 %v6236
        %v6915 = vunpack.c.h.b16 %v6236
        %v6916 = vunpack.c.l.b16 %v6237
        %v6917 = vunpack.c.h.b16 %v6237
        %v6918 = vunpack.c.l.b16 %v6238
        %v6919 = vunpack.c.h.b16 %v6238
        %v6920 = vunpack.c.l.b16 %v6239
        %v6921 = vunpack.c.h.b16 %v6239
        %v6922 = vunpack.c.l.b16 %v6240
        %v6923 = vunpack.c.h.b16 %v6240
        %v6924 = vunpack.c.l.b16 %v6241
        %v6925 = vunpack.c.h.b16 %v6241
        %v6926 = vunpack.c.l.b16 %v6242
        %v6927 = vunpack.c.h.b16 %v6242
        %v6928 = vunpack.c.l.b16 %v6243
        %v6929 = vunpack.c.h.b16 %v6243
        %v6930 = vunpack.c.l.b16 %v6244
        %v6931 = vunpack.c.h.b16 %v6244
        %v6932 = vunpack.c.l.b16 %v6245
        %v6933 = vunpack.c.h.b16 %v6245
        %v6934 = vunpack.c.l.b16 %v6246
        %v6935 = vunpack.c.h.b16 %v6246
        %v6936 = vunpack.c.l.b16 %v6247
        %v6937 = vunpack.c.h.b16 %v6247
        %v6938 = vunpack.c.l.b16 %v6248
        %v6939 = vunpack.c.h.b16 %v6248
        %v6940 = vunpack.c.l.b16 %v6249
        %v6941 = vunpack.c.h.b16 %v6249
        %v6942 = vunpack.c.l.b16 %v6250
        %v6943 = vunpack.c.h.b16 %v6250
        %v6944 = vunpack.c.l.b16 %v6251
        %v6945 = vunpack.c.h.b16 %v6251
        %v6946 = vunpack.c.l.b16 %v6252
        %v6947 = vunpack.c.h.b16 %v6252
        %v6948 = vunpack.c.l.b16 %v6253
        %v6949 = vunpack.c.h.b16 %v6253
        %v6950 = vunpack.c.l.b16 %v6254
        %v6951 = vunpack.c.h.b16 %v6254
        %v6952 = vunpack.c.l.b16 %v6255
        %v6953 = vunpack.c.h.b16 %v6255
        %v6954 = vunpack.c.l.b16 %v6256
        %v6955 = vunpack.c.h.b16 %v6256
        %v6956 = vunpack.c.l.b16 %v6257
        %v6957 = vunpack.c.h.b16 %v6257
        %v6958 = vunpack.c.l.b16 %v6258
        %v6959 = vunpack.c.h.b16 %v6258
        %v6960 = vunpack.c.l.b16 %v6259
        %v6961 = vunpack.c.h.b16 %v6259
        %v6962 = vunpack.c.l.b16 %v6260
        %v6963 = vunpack.c.h.b16 %v6260
        %v6964 = vunpack.c.l.b16 %v6261
        %v6965 = vunpack.c.h.b16 %v6261
        %v6966 = vunpack.c.l.b16 %v6262
        %v6967 = vunpack.c.h.b16 %v6262
        %v6968 = vunpack.c.l.b16 %v6263
        %v6969 = vunpack.c.h.b16 %v6263
        %v6970 = vunpack.c.l.b16 %v6264
        %v6971 = vunpack.c.h.b16 %v6264
        %v6972 = vunpack.c.l.b16 %v6265
        %v6973 = vunpack.c.h.b16 %v6265
        %v6974 = vunpack.c.l.b16 %v6266
        %v6975 = vunpack.c.h.b16 %v6266
        %v6976 = vunpack.c.l.b16 %v6267
        %v6977 = vunpack.c.h.b16 %v6267
        %v6978 = vunpack.c.l.b16 %v6268
        %v6979 = vunpack.c.h.b16 %v6268
        %v6980 = vunpack.c.l.b16 %v6269
        %v6981 = vunpack.c.h.b16 %v6269
        %v6982 = vunpack.c.l.b16 %v6270
        %v6983 = vunpack.c.h.b16 %v6270
        %v6984 = vunpack.c.l.b16 %v6271
        %v6985 = vunpack.c.h.b16 %v6271
        %v6986 = vunpack.c.l.b16 %v6272
        %v6987 = vunpack.c.h.b16 %v6272
        %v6988 = vunpack.c.l.b16 %v6273
        %v6989 = vunpack.c.h.b16 %v6273
        %v6990 = vunpack.c.l.b16 %v6274
        %v6991 = vunpack.c.h.b16 %v6274
        %v6992 = vunpack.c.l.b16 %v6275
        %v6993 = vunpack.c.h.b16 %v6275
        %v6994 = vunpack.c.l.b16 %v6276
        %v6995 = vunpack.c.h.b16 %v6276
        %v6996 = vunpack.c.l.b16 %v6277
        %v6997 = vunpack.c.h.b16 %v6277
        %v6998 = vunpack.c.l.b16 %v6278
        %v6999 = vunpack.c.h.b16 %v6278
        %v7000 = vunpack.c.l.b16 %v6279
        %v7001 = vunpack.c.h.b16 %v6279
        %v7002 = vunpack.c.l.b16 %v6280
        %v7003 = vunpack.c.h.b16 %v6280
        %v7004 = vunpack.c.l.b16 %v6281
        %v7005 = vunpack.c.h.b16 %v6281
        %v7006 = vunpack.c.l.b16 %v6282
        %v7007 = vunpack.c.h.b16 %v6282
        %v7008 = vunpack.c.l.b16 %v6283
        %v7009 = vunpack.c.h.b16 %v6283
        %v7010 = vunpack.c.l.b16 %v6284
        %v7011 = vunpack.c.h.b16 %v6284
        %v7012 = vunpack.c.l.b16 %v6285
        %v7013 = vunpack.c.h.b16 %v6285
        %v7014 = vunpack.c.l.b16 %v6286
        %v7015 = vunpack.c.h.b16 %v6286
        %v7016 = vunpack.c.l.b16 %v6287
        %v7017 = vunpack.c.h.b16 %v6287
        %v7018 = vunpack.c.l.b16 %v6288
        %v7019 = vunpack.c.h.b16 %v6288
        %v7020 = vunpack.c.l.b16 %v6289
        %v7021 = vunpack.c.h.b16 %v6289
        %v7022 = vunpack.c.l.b16 %v6290
        %v7023 = vunpack.c.h.b16 %v6290
        %v7024 = vunpack.c.l.b16 %v6291
        %v7025 = vunpack.c.h.b16 %v6291
        %v7026 = vunpack.c.l.b16 %v6292
        %v7027 = vunpack.c.h.b16 %v6292
        %v7028 = vunpack.c.l.b16 %v6293
        %v7029 = vunpack.c.h.b16 %v6293
        %v7030 = vunpack.c.l.b16 %v6294
        %v7031 = vunpack.c.h.b16 %v6294
        %v7032 = vunpack.c.l.b16 %v6295
        %v7033 = vunpack.c.h.b16 %v6295
        %v7034 = vunpack.c.l.b16 %v6296
        %v7035 = vunpack.c.h.b16 %v6296
        %v7036 = vunpack.c.l.b16 %v6297
        %v7037 = vunpack.c.h.b16 %v6297
        %v7038 = vunpack.c.l.b16 %v6298
        %v7039 = vunpack.c.h.b16 %v6298
        %v7040 = vunpack.c.l.b16 %v6299
        %v7041 = vunpack.c.h.b16 %v6299
        %v7042 = vunpack.c.l.b16 %v6300
        %v7043 = vunpack.c.h.b16 %v6300
        %v7044 = vunpack.c.l.b16 %v6301
        %v7045 = vunpack.c.h.b16 %v6301
        %v7046 = vunpack.c.l.b16 %v6302
        %v7047 = vunpack.c.h.b16 %v6302
        %v7048 = vunpack.c.l.b16 %v6303
        %v7049 = vunpack.c.h.b16 %v6303
        %v7050 = vunpack.c.l.b16 %v6304
        %v7051 = vunpack.c.h.b16 %v6304
        %v7052 = vunpack.c.l.b16 %v6305
        %v7053 = vunpack.c.h.b16 %v6305
        %v7054 = vunpack.c.l.b16 %v6306
        %v7055 = vunpack.c.h.b16 %v6306
        %v7056 = vunpack.c.l.b16 %v6307
        %v7057 = vunpack.c.h.b16 %v6307
        %v7058 = vunpack.c.l.b16 %v6308
        %v7059 = vunpack.c.h.b16 %v6308
        %v7060 = vunpack.c.l.b16 %v6309
        %v7061 = vunpack.c.h.b16 %v6309
        %v7062 = vunpack.c.l.b16 %v6310
        %v7063 = vunpack.c.h.b16 %v6310
        %v7064 = vunpack.c.l.b16 %v6311
        %v7065 = vunpack.c.h.b16 %v6311
        %v7066 = vunpack.c.l.b16 %v6312
        %v7067 = vunpack.c.h.b16 %v6312
        %v7068 = vunpack.c.l.b16 %v6313
        %v7069 = vunpack.c.h.b16 %v6313
        %v7070 = vunpack.c.l.b16 %v6314
        %v7071 = vunpack.c.h.b16 %v6314
        %v7072 = vunpack.c.l.b16 %v6315
        %v7073 = vunpack.c.h.b16 %v6315
        %v7074 = vunpack.c.l.b16 %v6316
        %v7075 = vunpack.c.h.b16 %v6316
        %v7076 = vunpack.c.l.b16 %v6317
        %v7077 = vunpack.c.h.b16 %v6317
        %v7078 = vunpack.c.l.b16 %v6318
        %v7079 = vunpack.c.h.b16 %v6318
        %v7080 = vunpack.c.l.b16 %v6319
        %v7081 = vunpack.c.h.b16 %v6319
        %v7082 = vunpack.c.l.b16 %v6320
        %v7083 = vunpack.c.h.b16 %v6320
        %v7084 = vunpack.c.l.b16 %v6321
        %v7085 = vunpack.c.h.b16 %v6321
        %v7086 = vunpack.c.l.b16 %v6322
        %v7087 = vunpack.c.h.b16 %v6322
        %v7088 = vunpack.c.l.b16 %v6323
        %v7089 = vunpack.c.h.b16 %v6323
        %v7090 = vunpack.c.l.b16 %v6324
        %v7091 = vunpack.c.h.b16 %v6324
        %v7092 = vunpack.c.l.b16 %v6325
        %v7093 = vunpack.c.h.b16 %v6325
        %v7094 = vunpack.c.l.b16 %v6326
        %v7095 = vunpack.c.h.b16 %v6326
        %v7096 = vunpack.c.l.b16 %v6327
        %v7097 = vunpack.c.h.b16 %v6327
        %v7098 = vunpack.c.l.b16 %v6328
        %v7099 = vunpack.c.h.b16 %v6328
        %v7100 = vunpack.c.l.b16 %v6329
        %v7101 = vunpack.c.h.b16 %v6329
        %v7102 = vunpack.c.l.b16 %v6330
        %v7103 = vunpack.c.h.b16 %v6330
        %v7104 = vunpack.c.l.b16 %v6331
        %v7105 = vunpack.c.h.b16 %v6331
        %v7106 = vunpack.c.l.b16 %v6332
        %v7107 = vunpack.c.h.b16 %v6332
        %v7108 = vunpack.c.l.b16 %v6333
        %v7109 = vunpack.c.h.b16 %v6333
        %v7110 = vunpack.c.l.b16 %v6334
        %v7111 = vunpack.c.h.b16 %v6334
        %v7112 = vunpack.c.l.b16 %v6335
        %v7113 = vunpack.c.h.b16 %v6335
        %v7114 = vunpack.c.l.b16 %v6336
        %v7115 = vunpack.c.h.b16 %v6336
        %v7116 = vunpack.c.l.b16 %v6337
        %v7117 = vunpack.c.h.b16 %v6337
        %v7118 = vunpack.c.l.b16 %v6338
        %v7119 = vunpack.c.h.b16 %v6338
        %v7120 = vunpack.c.l.b16 %v6339
        %v7121 = vunpack.c.h.b16 %v6339
        %v7122 = vunpack.c.l.b16 %v6340
        %v7123 = vunpack.c.h.b16 %v6340
        %v7124 = vunpack.c.l.b16 %v6341
        %v7125 = vunpack.c.h.b16 %v6341
        %v7126 = vunpack.c.l.b16 %v6342
        %v7127 = vunpack.c.h.b16 %v6342
        %v7128 = vunpack.c.l.b16 %v6343
        %v7129 = vunpack.c.h.b16 %v6343
        %v7130 = vunpack.c.l.b16 %v6344
        %v7131 = vunpack.c.h.b16 %v6344
        %v7132 = vunpack.c.l.b16 %v6345
        %v7133 = vunpack.c.h.b16 %v6345
        %v7134 = vunpack.c.l.b16 %v6346
        %v7135 = vunpack.c.h.b16 %v6346
        %v7136 = vunpack.c.l.b16 %v6347
        %v7137 = vunpack.c.h.b16 %v6347
        %v7138 = vunpack.c.l.b16 %v6348
        %v7139 = vunpack.c.h.b16 %v6348
        %v7140 = vunpack.c.l.b16 %v6349
        %v7141 = vunpack.c.h.b16 %v6349
        %v7142 = vunpack.c.l.b16 %v6350
        %v7143 = vunpack.c.h.b16 %v6350
        %v7144 = vunpack.c.l.b16 %v6351
        %v7145 = vunpack.c.h.b16 %v6351
        %v7146 = vunpack.c.l.b16 %v6352
        %v7147 = vunpack.c.h.b16 %v6352
        %v7148 = vunpack.c.l.b16 %v6353
        %v7149 = vunpack.c.h.b16 %v6353
        %v7150 = vunpack.c.l.b16 %v6354
        %v7151 = vunpack.c.h.b16 %v6354
        %v7152 = vunpack.c.l.b16 %v6355
        %v7153 = vunpack.c.h.b16 %v6355
        %v7154 = vunpack.c.l.b16 %v6356
        %v7155 = vunpack.c.h.b16 %v6356
        %v7156 = vunpack.c.l.b16 %v6357
        %v7157 = vunpack.c.h.b16 %v6357
        %v7158 = vunpack.c.l.b16 %v6358
        %v7159 = vunpack.c.h.b16 %v6358
        %v7160 = vunpack.c.l.b16 %v6359
        %v7161 = vunpack.c.h.b16 %v6359
        %v7162 = vunpack.c.l.b16 %v6360
        %v7163 = vunpack.c.h.b16 %v6360
        %v7164 = vunpack.c.l.b16 %v6361
        %v7165 = vunpack.c.h.b16 %v6361
        %v7166 = vunpack.c.l.b16 %v6362
        %v7167 = vunpack.c.h.b16 %v6362
        %v7168 = vunpack.c.l.b16 %v6363
        %v7169 = vunpack.c.h.b16 %v6363
        %v7170 = vunpack.c.l.b16 %v6364
        %v7171 = vunpack.c.h.b16 %v6364
        %v7172 = vunpack.c.l.b16 %v6365
        %v7173 = vunpack.c.h.b16 %v6365
        %v7174 = vunpack.c.l.b16 %v6366
        %v7175 = vunpack.c.h.b16 %v6366
        %v7176 = vunpack.c.l.b16 %v6367
        %v7177 = vunpack.c.h.b16 %v6367
        %v7178 = vunpack.c.l.b16 %v6368
        %v7179 = vunpack.c.h.b16 %v6368
        %v7180 = vunpack.c.l.b16 %v6369
        %v7181 = vunpack.c.h.b16 %v6369
        %v7182 = vunpack.c.l.b16 %v6370
        %v7183 = vunpack.c.h.b16 %v6370
        %v7184 = vunpack.c.l.b16 %v6371
        %v7185 = vunpack.c.h.b16 %v6371
        %v7186 = vunpack.c.l.b16 %v6372
        %v7187 = vunpack.c.h.b16 %v6372
        %v7188 = vunpack.c.l.b16 %v6373
        %v7189 = vunpack.c.h.b16 %v6373
        %v7190 = vunpack.c.l.b16 %v6374
        %v7191 = vunpack.c.h.b16 %v6374
        %v7192 = vunpack.c.l.b16 %v6375
        %v7193 = vunpack.c.h.b16 %v6375
        %v7194 = vunpack.c.l.b16 %v6376
        %v7195 = vunpack.c.h.b16 %v6376
        %v7196 = vunpack.c.l.b16 %v6377
        %v7197 = vunpack.c.h.b16 %v6377
        %v7198 = vunpack.c.l.b16 %v6378
        %v7199 = vunpack.c.h.b16 %v6378
        %v7200 = vunpack.c.l.b16 %v6379
        %v7201 = vunpack.c.h.b16 %v6379
        %v7202 = vunpack.c.l.b16 %v6380
        %v7203 = vunpack.c.h.b16 %v6380
        %v7204 = vunpack.c.l.b16 %v6381
        %v7205 = vunpack.c.h.b16 %v6381
        %v7206 = vunpack.c.l.b16 %v6382
        %v7207 = vunpack.c.h.b16 %v6382
        %v7208 = vunpack.c.l.b16 %v6383
        %v7209 = vunpack.c.h.b16 %v6383
        %v7210 = vunpack.c.l.b16 %v6384
        %v7211 = vunpack.c.h.b16 %v6384
        %v7212 = vunpack.c.l.b16 %v6385
        %v7213 = vunpack.c.h.b16 %v6385
        %v7214 = vunpack.c.l.b16 %v6386
        %v7215 = vunpack.c.h.b16 %v6386
        %v7216 = vunpack.c.l.b16 %v6387
        %v7217 = vunpack.c.h.b16 %v6387
        %v7218 = vunpack.c.l.b16 %v6388
        %v7219 = vunpack.c.h.b16 %v6388
        %v7220 = vunpack.c.l.b16 %v6389
        %v7221 = vunpack.c.h.b16 %v6389
        %v7222 = vpack.c.b16 %v6718, %v6710
        %v7223 = vpack.c.b16 %v6719, %v6711
        %v7224 = vpack.c.b16 %v6720, %v6712
        %v7225 = vpack.c.b16 %v6721, %v6713
        %v7226 = vpack.c.b16 %v6722, %v6714
        %v7227 = vpack.c.b16 %v6723, %v6715
        %v7228 = vpack.c.b16 %v6724, %v6716
        %v7229 = vpack.c.b16 %v6725, %v6717
        %v7230 = vpack.c.b16 %v6734, %v6726
        %v7231 = vpack.c.b16 %v6735, %v6727
        %v7232 = vpack.c.b16 %v6736, %v6728
        %v7233 = vpack.c.b16 %v6737, %v6729
        %v7234 = vpack.c.b16 %v6738, %v6730
        %v7235 = vpack.c.b16 %v6739, %v6731
        %v7236 = vpack.c.b16 %v6740, %v6732
        %v7237 = vpack.c.b16 %v6741, %v6733
        %v7238 = vpack.c.b16 %v6750, %v6742
        %v7239 = vpack.c.b16 %v6751, %v6743
        %v7240 = vpack.c.b16 %v6752, %v6744
        %v7241 = vpack.c.b16 %v6753, %v6745
        %v7242 = vpack.c.b16 %v6754, %v6746
        %v7243 = vpack.c.b16 %v6755, %v6747
        %v7244 = vpack.c.b16 %v6756, %v6748
        %v7245 = vpack.c.b16 %v6757, %v6749
        %v7246 = vpack.c.b16 %v6766, %v6758
        %v7247 = vpack.c.b16 %v6767, %v6759
        %v7248 = vpack.c.b16 %v6768, %v6760
        %v7249 = vpack.c.b16 %v6769, %v6761
        %v7250 = vpack.c.b16 %v6770, %v6762
        %v7251 = vpack.c.b16 %v6771, %v6763
        %v7252 = vpack.c.b16 %v6772, %v6764
        %v7253 = vpack.c.b16 %v6773, %v6765
        %v7254 = vpack.c.b16 %v6782, %v6774
        %v7255 = vpack.c.b16 %v6783, %v6775
        %v7256 = vpack.c.b16 %v6784, %v6776
        %v7257 = vpack.c.b16 %v6785, %v6777
        %v7258 = vpack.c.b16 %v6786, %v6778
        %v7259 = vpack.c.b16 %v6787, %v6779
        %v7260 = vpack.c.b16 %v6788, %v6780
        %v7261 = vpack.c.b16 %v6789, %v6781
        %v7262 = vpack.c.b16 %v6798, %v6790
        %v7263 = vpack.c.b16 %v6799, %v6791
        %v7264 = vpack.c.b16 %v6800, %v6792
        %v7265 = vpack.c.b16 %v6801, %v6793
        %v7266 = vpack.c.b16 %v6802, %v6794
        %v7267 = vpack.c.b16 %v6803, %v6795
        %v7268 = vpack.c.b16 %v6804, %v6796
        %v7269 = vpack.c.b16 %v6805, %v6797
        %v7270 = vpack.c.b16 %v6814, %v6806
        %v7271 = vpack.c.b16 %v6815, %v6807
        %v7272 = vpack.c.b16 %v6816, %v6808
        %v7273 = vpack.c.b16 %v6817, %v6809
        %v7274 = vpack.c.b16 %v6818, %v6810
        %v7275 = vpack.c.b16 %v6819, %v6811
        %v7276 = vpack.c.b16 %v6820, %v6812
        %v7277 = vpack.c.b16 %v6821, %v6813
        %v7278 = vpack.c.b16 %v6830, %v6822
        %v7279 = vpack.c.b16 %v6831, %v6823
        %v7280 = vpack.c.b16 %v6832, %v6824
        %v7281 = vpack.c.b16 %v6833, %v6825
        %v7282 = vpack.c.b16 %v6834, %v6826
        %v7283 = vpack.c.b16 %v6835, %v6827
        %v7284 = vpack.c.b16 %v6836, %v6828
        %v7285 = vpack.c.b16 %v6837, %v6829
        %v7286 = vpack.c.b16 %v6846, %v6838
        %v7287 = vpack.c.b16 %v6847, %v6839
        %v7288 = vpack.c.b16 %v6848, %v6840
        %v7289 = vpack.c.b16 %v6849, %v6841
        %v7290 = vpack.c.b16 %v6850, %v6842
        %v7291 = vpack.c.b16 %v6851, %v6843
        %v7292 = vpack.c.b16 %v6852, %v6844
        %v7293 = vpack.c.b16 %v6853, %v6845
        %v7294 = vpack.c.b16 %v6862, %v6854
        %v7295 = vpack.c.b16 %v6863, %v6855
        %v7296 = vpack.c.b16 %v6864, %v6856
        %v7297 = vpack.c.b16 %v6865, %v6857
        %v7298 = vpack.c.b16 %v6866, %v6858
        %v7299 = vpack.c.b16 %v6867, %v6859
        %v7300 = vpack.c.b16 %v6868, %v6860
        %v7301 = vpack.c.b16 %v6869, %v6861
        %v7302 = vpack.c.b16 %v6878, %v6870
        %v7303 = vpack.c.b16 %v6879, %v6871
        %v7304 = vpack.c.b16 %v6880, %v6872
        %v7305 = vpack.c.b16 %v6881, %v6873
        %v7306 = vpack.c.b16 %v6882, %v6874
        %v7307 = vpack.c.b16 %v6883, %v6875
        %v7308 = vpack.c.b16 %v6884, %v6876
        %v7309 = vpack.c.b16 %v6885, %v6877
        %v7310 = vpack.c.b16 %v6894, %v6886
        %v7311 = vpack.c.b16 %v6895, %v6887
        %v7312 = vpack.c.b16 %v6896, %v6888
        %v7313 = vpack.c.b16 %v6897, %v6889
        %v7314 = vpack.c.b16 %v6898, %v6890
        %v7315 = vpack.c.b16 %v6899, %v6891
        %v7316 = vpack.c.b16 %v6900, %v6892
        %v7317 = vpack.c.b16 %v6901, %v6893
        %v7318 = vpack.c.b16 %v6910, %v6902
        %v7319 = vpack.c.b16 %v6911, %v6903
        %v7320 = vpack.c.b16 %v6912, %v6904
        %v7321 = vpack.c.b16 %v6913, %v6905
        %v7322 = vpack.c.b16 %v6914, %v6906
        %v7323 = vpack.c.b16 %v6915, %v6907
        %v7324 = vpack.c.b16 %v6916, %v6908
        %v7325 = vpack.c.b16 %v6917, %v6909
        %v7326 = vpack.c.b16 %v6926, %v6918
        %v7327 = vpack.c.b16 %v6927, %v6919
        %v7328 = vpack.c.b16 %v6928, %v6920
        %v7329 = vpack.c.b16 %v6929, %v6921
        %v7330 = vpack.c.b16 %v6930, %v6922
        %v7331 = vpack.c.b16 %v6931, %v6923
        %v7332 = vpack.c.b16 %v6932, %v6924
        %v7333 = vpack.c.b16 %v6933, %v6925
        %v7334 = vpack.c.b16 %v6942, %v6934
        %v7335 = vpack.c.b16 %v6943, %v6935
        %v7336 = vpack.c.b16 %v6944, %v6936
        %v7337 = vpack.c.b16 %v6945, %v6937
        %v7338 = vpack.c.b16 %v6946, %v6938
        %v7339 = vpack.c.b16 %v6947, %v6939
        %v7340 = vpack.c.b16 %v6948, %v6940
        %v7341 = vpack.c.b16 %v6949, %v6941
        %v7342 = vpack.c.b16 %v6958, %v6950
        %v7343 = vpack.c.b16 %v6959, %v6951
        %v7344 = vpack.c.b16 %v6960, %v6952
        %v7345 = vpack.c.b16 %v6961, %v6953
        %v7346 = vpack.c.b16 %v6962, %v6954
        %v7347 = vpack.c.b16 %v6963, %v6955
        %v7348 = vpack.c.b16 %v6964, %v6956
        %v7349 = vpack.c.b16 %v6965, %v6957
        %v7350 = vpack.c.b16 %v6974, %v6966
        %v7351 = vpack.c.b16 %v6975, %v6967
        %v7352 = vpack.c.b16 %v6976, %v6968
        %v7353 = vpack.c.b16 %v6977, %v6969
        %v7354 = vpack.c.b16 %v6978, %v6970
        %v7355 = vpack.c.b16 %v6979, %v6971
        %v7356 = vpack.c.b16 %v6980, %v6972
        %v7357 = vpack.c.b16 %v6981, %v6973
        %v7358 = vpack.c.b16 %v6990, %v6982
        %v7359 = vpack.c.b16 %v6991, %v6983
        %v7360 = vpack.c.b16 %v6992, %v6984
        %v7361 = vpack.c.b16 %v6993, %v6985
        %v7362 = vpack.c.b16 %v6994, %v6986
        %v7363 = vpack.c.b16 %v6995, %v6987
        %v7364 = vpack.c.b16 %v6996, %v6988
        %v7365 = vpack.c.b16 %v6997, %v6989
        %v7366 = vpack.c.b16 %v7006, %v6998
        %v7367 = vpack.c.b16 %v7007, %v6999
        %v7368 = vpack.c.b16 %v7008, %v7000
        %v7369 = vpack.c.b16 %v7009, %v7001
        %v7370 = vpack.c.b16 %v7010, %v7002
        %v7371 = vpack.c.b16 %v7011, %v7003
        %v7372 = vpack.c.b16 %v7012, %v7004
        %v7373 = vpack.c.b16 %v7013, %v7005
        %v7374 = vpack.c.b16 %v7022, %v7014
        %v7375 = vpack.c.b16 %v7023, %v7015
        %v7376 = vpack.c.b16 %v7024, %v7016
        %v7377 = vpack.c.b16 %v7025, %v7017
        %v7378 = vpack.c.b16 %v7026, %v7018
        %v7379 = vpack.c.b16 %v7027, %v7019
        %v7380 = vpack.c.b16 %v7028, %v7020
        %v7381 = vpack.c.b16 %v7029, %v7021
        %v7382 = vpack.c.b16 %v7038, %v7030
        %v7383 = vpack.c.b16 %v7039, %v7031
        %v7384 = vpack.c.b16 %v7040, %v7032
        %v7385 = vpack.c.b16 %v7041, %v7033
        %v7386 = vpack.c.b16 %v7042, %v7034
        %v7387 = vpack.c.b16 %v7043, %v7035
        %v7388 = vpack.c.b16 %v7044, %v7036
        %v7389 = vpack.c.b16 %v7045, %v7037
        %v7390 = vpack.c.b16 %v7054, %v7046
        %v7391 = vpack.c.b16 %v7055, %v7047
        %v7392 = vpack.c.b16 %v7056, %v7048
        %v7393 = vpack.c.b16 %v7057, %v7049
        %v7394 = vpack.c.b16 %v7058, %v7050
        %v7395 = vpack.c.b16 %v7059, %v7051
        %v7396 = vpack.c.b16 %v7060, %v7052
        %v7397 = vpack.c.b16 %v7061, %v7053
        %v7398 = vpack.c.b16 %v7070, %v7062
        %v7399 = vpack.c.b16 %v7071, %v7063
        %v7400 = vpack.c.b16 %v7072, %v7064
        %v7401 = vpack.c.b16 %v7073, %v7065
        %v7402 = vpack.c.b16 %v7074, %v7066
        %v7403 = vpack.c.b16 %v7075, %v7067
        %v7404 = vpack.c.b16 %v7076, %v7068
        %v7405 = vpack.c.b16 %v7077, %v7069
        %v7406 = vpack.c.b16 %v7086, %v7078
        %v7407 = vpack.c.b16 %v7087, %v7079
        %v7408 = vpack.c.b16 %v7088, %v7080
        %v7409 = vpack.c.b16 %v7089, %v7081
        %v7410 = vpack.c.b16 %v7090, %v7082
        %v7411 = vpack.c.b16 %v7091, %v7083
        %v7412 = vpack.c.b16 %v7092, %v7084
        %v7413 = vpack.c.b16 %v7093, %v7085
        %v7414 = vpack.c.b16 %v7102, %v7094
        %v7415 = vpack.c.b16 %v7103, %v7095
        %v7416 = vpack.c.b16 %v7104, %v7096
        %v7417 = vpack.c.b16 %v7105, %v7097
        %v7418 = vpack.c.b16 %v7106, %v7098
        %v7419 = vpack.c.b16 %v7107, %v7099
        %v7420 = vpack.c.b16 %v7108, %v7100
        %v7421 = vpack.c.b16 %v7109, %v7101
        %v7422 = vpack.c.b16 %v7118, %v7110
        %v7423 = vpack.c.b16 %v7119, %v7111
        %v7424 = vpack.c.b16 %v7120, %v7112
        %v7425 = vpack.c.b16 %v7121, %v7113
        %v7426 = vpack.c.b16 %v7122, %v7114
        %v7427 = vpack.c.b16 %v7123, %v7115
        %v7428 = vpack.c.b16 %v7124, %v7116
        %v7429 = vpack.c.b16 %v7125, %v7117
        %v7430 = vpack.c.b16 %v7134, %v7126
        %v7431 = vpack.c.b16 %v7135, %v7127
        %v7432 = vpack.c.b16 %v7136, %v7128
        %v7433 = vpack.c.b16 %v7137, %v7129
        %v7434 = vpack.c.b16 %v7138, %v7130
        %v7435 = vpack.c.b16 %v7139, %v7131
        %v7436 = vpack.c.b16 %v7140, %v7132
        %v7437 = vpack.c.b16 %v7141, %v7133
        %v7438 = vpack.c.b16 %v7150, %v7142
        %v7439 = vpack.c.b16 %v7151, %v7143
        %v7440 = vpack.c.b16 %v7152, %v7144
        %v7441 = vpack.c.b16 %v7153, %v7145
        %v7442 = vpack.c.b16 %v7154, %v7146
        %v7443 = vpack.c.b16 %v7155, %v7147
        %v7444 = vpack.c.b16 %v7156, %v7148
        %v7445 = vpack.c.b16 %v7157, %v7149
        %v7446 = vpack.c.b16 %v7166, %v7158
        %v7447 = vpack.c.b16 %v7167, %v7159
        %v7448 = vpack.c.b16 %v7168, %v7160
        %v7449 = vpack.c.b16 %v7169, %v7161
        %v7450 = vpack.c.b16 %v7170, %v7162
        %v7451 = vpack.c.b16 %v7171, %v7163
        %v7452 = vpack.c.b16 %v7172, %v7164
        %v7453 = vpack.c.b16 %v7173, %v7165
        %v7454 = vpack.c.b16 %v7182, %v7174
        %v7455 = vpack.c.b16 %v7183, %v7175
        %v7456 = vpack.c.b16 %v7184, %v7176
        %v7457 = vpack.c.b16 %v7185, %v7177
        %v7458 = vpack.c.b16 %v7186, %v7178
        %v7459 = vpack.c.b16 %v7187, %v7179
        %v7460 = vpack.c.b16 %v7188, %v7180
        %v7461 = vpack.c.b16 %v7189, %v7181
        %v7462 = vpack.c.b16 %v7198, %v7190
        %v7463 = vpack.c.b16 %v7199, %v7191
        %v7464 = vpack.c.b16 %v7200, %v7192
        %v7465 = vpack.c.b16 %v7201, %v7193
        %v7466 = vpack.c.b16 %v7202, %v7194
        %v7467 = vpack.c.b16 %v7203, %v7195
        %v7468 = vpack.c.b16 %v7204, %v7196
        %v7469 = vpack.c.b16 %v7205, %v7197
        %v7470 = vpack.c.b16 %v7214, %v7206
        %v7471 = vpack.c.b16 %v7215, %v7207
        %v7472 = vpack.c.b16 %v7216, %v7208
        %v7473 = vpack.c.b16 %v7217, %v7209
        %v7474 = vpack.c.b16 %v7218, %v7210
        %v7475 = vpack.c.b16 %v7219, %v7211
        %v7476 = vpack.c.b16 %v7220, %v7212
        %v7477 = vpack.c.b16 %v7221, %v7213
        %7734 = vmatprep.subr.bf16.mxu0 0
        %7735 = vmatpush1.bf16.msra.mxu0 %v6397
        %7736 = vmatprep.subr.bf16.mxu0 0
        %7737 = vmatpush1.bf16.msra.mxu0 %v6396
        %7738 = vmatprep.subr.bf16.mxu0 0
        %7739 = vmatpush1.bf16.msra.mxu0 %v6395
        %7740 = vmatprep.subr.bf16.mxu0 0
        %7741 = vmatpush1.bf16.msra.mxu0 %v6394
        %7742 = vmatprep.subr.bf16.mxu0 0
        %7743 = vmatpush1.bf16.msra.mxu0 %v6393
        %7744 = vmatprep.subr.bf16.mxu0 0
        %7745 = vmatpush1.bf16.msra.mxu0 %v6392
        %7746 = vmatprep.subr.bf16.mxu0 0
        %7747 = vmatpush1.bf16.msra.mxu0 %v6391
        %7748 = vmatprep.subr.bf16.mxu0 0
        %7749 = vmatpush1.bf16.msra.mxu0 %v6390
        %7750 = vmatprep.subr.bf16.mxu0 0
        %7751 = vmatpush2.bf16.msra.mxu0 %v6405
        %7752 = vmatprep.subr.bf16.mxu0 0
        %7753 = vmatpush2.bf16.msra.mxu0 %v6404
        %7754 = vmatprep.subr.bf16.mxu0 0
        %7755 = vmatpush2.bf16.msra.mxu0 %v6403
        %7756 = vmatprep.subr.bf16.mxu0 0
        %7757 = vmatpush2.bf16.msra.mxu0 %v6402
        %7758 = vmatprep.subr.bf16.mxu0 0
        %7759 = vmatpush2.bf16.msra.mxu0 %v6401
        %7760 = vmatprep.subr.bf16.mxu0 0
        %7761 = vmatpush2.bf16.msra.mxu0 %v6400
        %7762 = vmatprep.subr.bf16.mxu0 0
        %7763 = vmatpush2.bf16.msra.mxu0 %v6399
        %7764 = vmatprep.subr.bf16.mxu0 0
        %7765 = vmatpush2.bf16.msra.mxu0 %v6398
        %7766 = vmatprep.mubr.bf16.mxu0 %v7223
        %7767 = vmatmul.mubr.bf16.gmra.mxu0 %v7222
        %v7768 = vpop.f32.mrf.mxu0
        %v7769 = vadd.f32 0.0, %v7768
        %v7770 = vpop.f32.mrf.mxu0
        %v7771 = vpop.f32.mrf.mxu0
        %v7772 = vadd.f32 0.0, %v7771
        %v7773 = vpop.f32.mrf.mxu0
        %7774 = vmatprep.mubr.bf16.mxu0 %v7231
        %7775 = vmatmul.mubr.bf16.gmra.mxu0 %v7230
        %v7776 = vpop.f32.mrf.mxu0
        %v7777 = vadd.f32 0.0, %v7776
        %v7778 = vpop.f32.mrf.mxu0
        %v7779 = vpop.f32.mrf.mxu0
        %v7780 = vadd.f32 0.0, %v7779
        %v7781 = vpop.f32.mrf.mxu0
        %7782 = vmatprep.mubr.bf16.mxu0 %v7239
        %7783 = vmatmul.mubr.bf16.gmra.mxu0 %v7238
        %v7784 = vpop.f32.mrf.mxu0
        %v7785 = vadd.f32 0.0, %v7784
        %v7786 = vpop.f32.mrf.mxu0
        %v7787 = vpop.f32.mrf.mxu0
        %v7788 = vadd.f32 0.0, %v7787
        %v7789 = vpop.f32.mrf.mxu0
        %7790 = vmatprep.mubr.bf16.mxu0 %v7247
        %7791 = vmatmul.mubr.bf16.gmra.mxu0 %v7246
        %v7792 = vpop.f32.mrf.mxu0
        %v7793 = vadd.f32 0.0, %v7792
        %v7794 = vpop.f32.mrf.mxu0
        %v7795 = vpop.f32.mrf.mxu0
        %v7796 = vadd.f32 0.0, %v7795
        %v7797 = vpop.f32.mrf.mxu0
        %7798 = vmatprep.mubr.bf16.mxu0 %v7255
        %7799 = vmatmul.mubr.bf16.gmra.mxu0 %v7254
        %v7800 = vpop.f32.mrf.mxu0
        %v7801 = vadd.f32 0.0, %v7800
        %v7802 = vpop.f32.mrf.mxu0
        %v7803 = vpop.f32.mrf.mxu0
        %v7804 = vadd.f32 0.0, %v7803
        %v7805 = vpop.f32.mrf.mxu0
        %7806 = vmatprep.mubr.bf16.mxu0 %v7263
        %7807 = vmatmul.mubr.bf16.gmra.mxu0 %v7262
        %v7808 = vpop.f32.mrf.mxu0
        %v7809 = vadd.f32 0.0, %v7808
        %v7810 = vpop.f32.mrf.mxu0
        %v7811 = vpop.f32.mrf.mxu0
        %v7812 = vadd.f32 0.0, %v7811
        %v7813 = vpop.f32.mrf.mxu0
        %7814 = vmatprep.mubr.bf16.mxu0 %v7271
        %7815 = vmatmul.mubr.bf16.gmra.mxu0 %v7270
        %v7816 = vpop.f32.mrf.mxu0
        %v7817 = vadd.f32 0.0, %v7816
        %v7818 = vpop.f32.mrf.mxu0
        %v7819 = vpop.f32.mrf.mxu0
        %v7820 = vadd.f32 0.0, %v7819
        %v7821 = vpop.f32.mrf.mxu0
        %7822 = vmatprep.mubr.bf16.mxu0 %v7279
        %7823 = vmatmul.mubr.bf16.gmra.mxu0 %v7278
        %v7824 = vpop.f32.mrf.mxu0
        %v7825 = vadd.f32 0.0, %v7824
        %v7826 = vpop.f32.mrf.mxu0
        %v7827 = vpop.f32.mrf.mxu0
        %v7828 = vadd.f32 0.0, %v7827
        %v7829 = vpop.f32.mrf.mxu0
        %7830 = vmatprep.mubr.bf16.mxu0 %v7287
        %7831 = vmatmul.mubr.bf16.gmra.mxu0 %v7286
        %v7832 = vpop.f32.mrf.mxu0
        %v7833 = vadd.f32 0.0, %v7832
        %v7834 = vpop.f32.mrf.mxu0
        %v7835 = vpop.f32.mrf.mxu0
        %v7836 = vadd.f32 0.0, %v7835
        %v7837 = vpop.f32.mrf.mxu0
        %7838 = vmatprep.mubr.bf16.mxu0 %v7295
        %7839 = vmatmul.mubr.bf16.gmra.mxu0 %v7294
        %v7840 = vpop.f32.mrf.mxu0
        %v7841 = vadd.f32 0.0, %v7840
        %v7842 = vpop.f32.mrf.mxu0
        %v7843 = vpop.f32.mrf.mxu0
        %v7844 = vadd.f32 0.0, %v7843
        %v7845 = vpop.f32.mrf.mxu0
        %7846 = vmatprep.mubr.bf16.mxu0 %v7303
        %7847 = vmatmul.mubr.bf16.gmra.mxu0 %v7302
        %v7848 = vpop.f32.mrf.mxu0
        %v7849 = vadd.f32 0.0, %v7848
        %v7850 = vpop.f32.mrf.mxu0
        %v7851 = vpop.f32.mrf.mxu0
        %v7852 = vadd.f32 0.0, %v7851
        %v7853 = vpop.f32.mrf.mxu0
        %7854 = vmatprep.mubr.bf16.mxu0 %v7311
        %7855 = vmatmul.mubr.bf16.gmra.mxu0 %v7310
        %v7856 = vpop.f32.mrf.mxu0
        %v7857 = vadd.f32 0.0, %v7856
        %v7858 = vpop.f32.mrf.mxu0
        %v7859 = vpop.f32.mrf.mxu0
        %v7860 = vadd.f32 0.0, %v7859
        %v7861 = vpop.f32.mrf.mxu0
        %7862 = vmatprep.mubr.bf16.mxu0 %v7319
        %7863 = vmatmul.mubr.bf16.gmra.mxu0 %v7318
        %v7864 = vpop.f32.mrf.mxu0
        %v7865 = vadd.f32 0.0, %v7864
        %v7866 = vpop.f32.mrf.mxu0
        %v7867 = vpop.f32.mrf.mxu0
        %v7868 = vadd.f32 0.0, %v7867
        %v7869 = vpop.f32.mrf.mxu0
        %7870 = vmatprep.mubr.bf16.mxu0 %v7327
        %7871 = vmatmul.mubr.bf16.gmra.mxu0 %v7326
        %v7872 = vpop.f32.mrf.mxu0
        %v7873 = vadd.f32 0.0, %v7872
        %v7874 = vpop.f32.mrf.mxu0
        %v7875 = vpop.f32.mrf.mxu0
        %v7876 = vadd.f32 0.0, %v7875
        %v7877 = vpop.f32.mrf.mxu0
        %7878 = vmatprep.mubr.bf16.mxu0 %v7335
        %7879 = vmatmul.mubr.bf16.gmra.mxu0 %v7334
        %v7880 = vpop.f32.mrf.mxu0
        %v7881 = vadd.f32 0.0, %v7880
        %v7882 = vpop.f32.mrf.mxu0
        %v7883 = vpop.f32.mrf.mxu0
        %v7884 = vadd.f32 0.0, %v7883
        %v7885 = vpop.f32.mrf.mxu0
        %7886 = vmatprep.mubr.bf16.mxu0 %v7343
        %7887 = vmatmul.mubr.bf16.gmra.mxu0 %v7342
        %v7888 = vpop.f32.mrf.mxu0
        %v7889 = vadd.f32 0.0, %v7888
        %v7890 = vpop.f32.mrf.mxu0
        %v7891 = vpop.f32.mrf.mxu0
        %v7892 = vadd.f32 0.0, %v7891
        %v7893 = vpop.f32.mrf.mxu0
        %7894 = vmatprep.mubr.bf16.mxu0 %v7351
        %7895 = vmatmul.mubr.bf16.gmra.mxu0 %v7350
        %v7896 = vpop.f32.mrf.mxu0
        %v7897 = vadd.f32 0.0, %v7896
        %v7898 = vpop.f32.mrf.mxu0
        %v7899 = vpop.f32.mrf.mxu0
        %v7900 = vadd.f32 0.0, %v7899
        %v7901 = vpop.f32.mrf.mxu0
        %7902 = vmatprep.mubr.bf16.mxu0 %v7359
        %7903 = vmatmul.mubr.bf16.gmra.mxu0 %v7358
        %v7904 = vpop.f32.mrf.mxu0
        %v7905 = vadd.f32 0.0, %v7904
        %v7906 = vpop.f32.mrf.mxu0
        %v7907 = vpop.f32.mrf.mxu0
        %v7908 = vadd.f32 0.0, %v7907
        %v7909 = vpop.f32.mrf.mxu0
        %7910 = vmatprep.mubr.bf16.mxu0 %v7367
        %7911 = vmatmul.mubr.bf16.gmra.mxu0 %v7366
        %v7912 = vpop.f32.mrf.mxu0
        %v7913 = vadd.f32 0.0, %v7912
        %v7914 = vpop.f32.mrf.mxu0
        %v7915 = vpop.f32.mrf.mxu0
        %v7916 = vadd.f32 0.0, %v7915
        %v7917 = vpop.f32.mrf.mxu0
        %7918 = vmatprep.mubr.bf16.mxu0 %v7375
        %7919 = vmatmul.mubr.bf16.gmra.mxu0 %v7374
        %v7920 = vpop.f32.mrf.mxu0
        %v7921 = vadd.f32 0.0, %v7920
        %v7922 = vpop.f32.mrf.mxu0
        %v7923 = vpop.f32.mrf.mxu0
        %v7924 = vadd.f32 0.0, %v7923
        %v7925 = vpop.f32.mrf.mxu0
        %7926 = vmatprep.mubr.bf16.mxu0 %v7383
        %7927 = vmatmul.mubr.bf16.gmra.mxu0 %v7382
        %v7928 = vpop.f32.mrf.mxu0
        %v7929 = vadd.f32 0.0, %v7928
        %v7930 = vpop.f32.mrf.mxu0
        %v7931 = vpop.f32.mrf.mxu0
        %v7932 = vadd.f32 0.0, %v7931
        %v7933 = vpop.f32.mrf.mxu0
        %7934 = vmatprep.mubr.bf16.mxu0 %v7391
        %7935 = vmatmul.mubr.bf16.gmra.mxu0 %v7390
        %v7936 = vpop.f32.mrf.mxu0
        %v7937 = vadd.f32 0.0, %v7936
        %v7938 = vpop.f32.mrf.mxu0
        %v7939 = vpop.f32.mrf.mxu0
        %v7940 = vadd.f32 0.0, %v7939
        %v7941 = vpop.f32.mrf.mxu0
        %7942 = vmatprep.mubr.bf16.mxu0 %v7399
        %7943 = vmatmul.mubr.bf16.gmra.mxu0 %v7398
        %v7944 = vpop.f32.mrf.mxu0
        %v7945 = vadd.f32 0.0, %v7944
        %v7946 = vpop.f32.mrf.mxu0
        %v7947 = vpop.f32.mrf.mxu0
        %v7948 = vadd.f32 0.0, %v7947
        %v7949 = vpop.f32.mrf.mxu0
        %7950 = vmatprep.mubr.bf16.mxu0 %v7407
        %7951 = vmatmul.mubr.bf16.gmra.mxu0 %v7406
        %v7952 = vpop.f32.mrf.mxu0
        %v7953 = vadd.f32 0.0, %v7952
        %v7954 = vpop.f32.mrf.mxu0
        %v7955 = vpop.f32.mrf.mxu0
        %v7956 = vadd.f32 0.0, %v7955
        %v7957 = vpop.f32.mrf.mxu0
        %7958 = vmatprep.mubr.bf16.mxu0 %v7415
        %7959 = vmatmul.mubr.bf16.gmra.mxu0 %v7414
        %v7960 = vpop.f32.mrf.mxu0
        %v7961 = vadd.f32 0.0, %v7960
        %v7962 = vpop.f32.mrf.mxu0
        %v7963 = vpop.f32.mrf.mxu0
        %v7964 = vadd.f32 0.0, %v7963
        %v7965 = vpop.f32.mrf.mxu0
        %7966 = vmatprep.mubr.bf16.mxu0 %v7423
        %7967 = vmatmul.mubr.bf16.gmra.mxu0 %v7422
        %v7968 = vpop.f32.mrf.mxu0
        %v7969 = vadd.f32 0.0, %v7968
        %v7970 = vpop.f32.mrf.mxu0
        %v7971 = vpop.f32.mrf.mxu0
        %v7972 = vadd.f32 0.0, %v7971
        %v7973 = vpop.f32.mrf.mxu0
        %7974 = vmatprep.mubr.bf16.mxu0 %v7431
        %7975 = vmatmul.mubr.bf16.gmra.mxu0 %v7430
        %v7976 = vpop.f32.mrf.mxu0
        %v7977 = vadd.f32 0.0, %v7976
        %v7978 = vpop.f32.mrf.mxu0
        %v7979 = vpop.f32.mrf.mxu0
        %v7980 = vadd.f32 0.0, %v7979
        %v7981 = vpop.f32.mrf.mxu0
        %7982 = vmatprep.mubr.bf16.mxu0 %v7439
        %7983 = vmatmul.mubr.bf16.gmra.mxu0 %v7438
        %v7984 = vpop.f32.mrf.mxu0
        %v7985 = vadd.f32 0.0, %v7984
        %v7986 = vpop.f32.mrf.mxu0
        %v7987 = vpop.f32.mrf.mxu0
        %v7988 = vadd.f32 0.0, %v7987
        %v7989 = vpop.f32.mrf.mxu0
        %7990 = vmatprep.mubr.bf16.mxu0 %v7447
        %7991 = vmatmul.mubr.bf16.gmra.mxu0 %v7446
        %v7992 = vpop.f32.mrf.mxu0
        %v7993 = vadd.f32 0.0, %v7992
        %v7994 = vpop.f32.mrf.mxu0
        %v7995 = vpop.f32.mrf.mxu0
        %v7996 = vadd.f32 0.0, %v7995
        %v7997 = vpop.f32.mrf.mxu0
        %7998 = vmatprep.mubr.bf16.mxu0 %v7455
        %7999 = vmatmul.mubr.bf16.gmra.mxu0 %v7454
        %v8000 = vpop.f32.mrf.mxu0
        %v8001 = vadd.f32 0.0, %v8000
        %v8002 = vpop.f32.mrf.mxu0
        %v8003 = vpop.f32.mrf.mxu0
        %v8004 = vadd.f32 0.0, %v8003
        %v8005 = vpop.f32.mrf.mxu0
        %8006 = vmatprep.mubr.bf16.mxu0 %v7463
        %8007 = vmatmul.mubr.bf16.gmra.mxu0 %v7462
        %v8008 = vpop.f32.mrf.mxu0
        %v8009 = vadd.f32 0.0, %v8008
        %v8010 = vpop.f32.mrf.mxu0
        %v8011 = vpop.f32.mrf.mxu0
        %v8012 = vadd.f32 0.0, %v8011
        %v8013 = vpop.f32.mrf.mxu0
        %8014 = vmatprep.mubr.bf16.mxu0 %v7471
        %8015 = vmatmul.mubr.bf16.gmra.mxu0 %v7470
        %v8016 = vpop.f32.mrf.mxu0
        %v8017 = vadd.f32 0.0, %v8016
        %v8018 = vpop.f32.mrf.mxu0
        %v8019 = vpop.f32.mrf.mxu0
        %v8020 = vadd.f32 0.0, %v8019
        %v8021 = vpop.f32.mrf.mxu0
        %8022 = vdwg.mxu0
        %8023 = vmatprep.subr.bf16.mxu0 0
        %8024 = vmatpush1.bf16.msra.mxu0 %v6413
        %8025 = vmatprep.subr.bf16.mxu0 0
        %8026 = vmatpush1.bf16.msra.mxu0 %v6412
        %8027 = vmatprep.subr.bf16.mxu0 0
        %8028 = vmatpush1.bf16.msra.mxu0 %v6411
        %8029 = vmatprep.subr.bf16.mxu0 0
        %8030 = vmatpush1.bf16.msra.mxu0 %v6410
        %8031 = vmatprep.subr.bf16.mxu0 0
        %8032 = vmatpush1.bf16.msra.mxu0 %v6409
        %8033 = vmatprep.subr.bf16.mxu0 0
        %8034 = vmatpush1.bf16.msra.mxu0 %v6408
        %8035 = vmatprep.subr.bf16.mxu0 0
        %8036 = vmatpush1.bf16.msra.mxu0 %v6407
        %8037 = vmatprep.subr.bf16.mxu0 0
        %8038 = vmatpush1.bf16.msra.mxu0 %v6406
        %8039 = vmatprep.subr.bf16.mxu0 0
        %8040 = vmatpush2.bf16.msra.mxu0 %v6421
        %8041 = vmatprep.subr.bf16.mxu0 0
        %8042 = vmatpush2.bf16.msra.mxu0 %v6420
        %8043 = vmatprep.subr.bf16.mxu0 0
        %8044 = vmatpush2.bf16.msra.mxu0 %v6419
        %8045 = vmatprep.subr.bf16.mxu0 0
        %8046 = vmatpush2.bf16.msra.mxu0 %v6418
        %8047 = vmatprep.subr.bf16.mxu0 0
        %8048 = vmatpush2.bf16.msra.mxu0 %v6417
        %8049 = vmatprep.subr.bf16.mxu0 0
        %8050 = vmatpush2.bf16.msra.mxu0 %v6416
        %8051 = vmatprep.subr.bf16.mxu0 0
        %8052 = vmatpush2.bf16.msra.mxu0 %v6415
        %8053 = vmatprep.subr.bf16.mxu0 0
        %8054 = vmatpush2.bf16.msra.mxu0 %v6414
        %8055 = vmatprep.mubr.bf16.mxu0 %v7225
        %8056 = vmatmul.mubr.bf16.gmra.mxu0 %v7224
        %v8057 = vpop.f32.mrf.mxu0
        %v8058 = vadd.f32 %v7769, %v8057
        %v8059 = vpop.f32.mrf.mxu0
        %v8060 = vpop.f32.mrf.mxu0
        %v8061 = vadd.f32 %v7772, %v8060
        %v8062 = vpop.f32.mrf.mxu0
        %8063 = vmatprep.mubr.bf16.mxu0 %v7233
        %8064 = vmatmul.mubr.bf16.gmra.mxu0 %v7232
        %v8065 = vpop.f32.mrf.mxu0
        %v8066 = vadd.f32 %v7777, %v8065
        %v8067 = vpop.f32.mrf.mxu0
        %v8068 = vpop.f32.mrf.mxu0
        %v8069 = vadd.f32 %v7780, %v8068
        %v8070 = vpop.f32.mrf.mxu0
        %8071 = vmatprep.mubr.bf16.mxu0 %v7241
        %8072 = vmatmul.mubr.bf16.gmra.mxu0 %v7240
        %v8073 = vpop.f32.mrf.mxu0
        %v8074 = vadd.f32 %v7785, %v8073
        %v8075 = vpop.f32.mrf.mxu0
        %v8076 = vpop.f32.mrf.mxu0
        %v8077 = vadd.f32 %v7788, %v8076
        %v8078 = vpop.f32.mrf.mxu0
        %8079 = vmatprep.mubr.bf16.mxu0 %v7249
        %8080 = vmatmul.mubr.bf16.gmra.mxu0 %v7248
        %v8081 = vpop.f32.mrf.mxu0
        %v8082 = vadd.f32 %v7793, %v8081
        %v8083 = vpop.f32.mrf.mxu0
        %v8084 = vpop.f32.mrf.mxu0
        %v8085 = vadd.f32 %v7796, %v8084
        %v8086 = vpop.f32.mrf.mxu0
        %8087 = vmatprep.mubr.bf16.mxu0 %v7257
        %8088 = vmatmul.mubr.bf16.gmra.mxu0 %v7256
        %v8089 = vpop.f32.mrf.mxu0
        %v8090 = vadd.f32 %v7801, %v8089
        %v8091 = vpop.f32.mrf.mxu0
        %v8092 = vpop.f32.mrf.mxu0
        %v8093 = vadd.f32 %v7804, %v8092
        %v8094 = vpop.f32.mrf.mxu0
        %8095 = vmatprep.mubr.bf16.mxu0 %v7265
        %8096 = vmatmul.mubr.bf16.gmra.mxu0 %v7264
        %v8097 = vpop.f32.mrf.mxu0
        %v8098 = vadd.f32 %v7809, %v8097
        %v8099 = vpop.f32.mrf.mxu0
        %v8100 = vpop.f32.mrf.mxu0
        %v8101 = vadd.f32 %v7812, %v8100
        %v8102 = vpop.f32.mrf.mxu0
        %8103 = vmatprep.mubr.bf16.mxu0 %v7273
        %8104 = vmatmul.mubr.bf16.gmra.mxu0 %v7272
        %v8105 = vpop.f32.mrf.mxu0
        %v8106 = vadd.f32 %v7817, %v8105
        %v8107 = vpop.f32.mrf.mxu0
        %v8108 = vpop.f32.mrf.mxu0
        %v8109 = vadd.f32 %v7820, %v8108
        %v8110 = vpop.f32.mrf.mxu0
        %8111 = vmatprep.mubr.bf16.mxu0 %v7281
        %8112 = vmatmul.mubr.bf16.gmra.mxu0 %v7280
        %v8113 = vpop.f32.mrf.mxu0
        %v8114 = vadd.f32 %v7825, %v8113
        %v8115 = vpop.f32.mrf.mxu0
        %v8116 = vpop.f32.mrf.mxu0
        %v8117 = vadd.f32 %v7828, %v8116
        %v8118 = vpop.f32.mrf.mxu0
        %8119 = vmatprep.mubr.bf16.mxu0 %v7289
        %8120 = vmatmul.mubr.bf16.gmra.mxu0 %v7288
        %v8121 = vpop.f32.mrf.mxu0
        %v8122 = vadd.f32 %v7833, %v8121
        %v8123 = vpop.f32.mrf.mxu0
        %v8124 = vpop.f32.mrf.mxu0
        %v8125 = vadd.f32 %v7836, %v8124
        %v8126 = vpop.f32.mrf.mxu0
        %8127 = vmatprep.mubr.bf16.mxu0 %v7297
        %8128 = vmatmul.mubr.bf16.gmra.mxu0 %v7296
        %v8129 = vpop.f32.mrf.mxu0
        %v8130 = vadd.f32 %v7841, %v8129
        %v8131 = vpop.f32.mrf.mxu0
        %v8132 = vpop.f32.mrf.mxu0
        %v8133 = vadd.f32 %v7844, %v8132
        %v8134 = vpop.f32.mrf.mxu0
        %8135 = vmatprep.mubr.bf16.mxu0 %v7305
        %8136 = vmatmul.mubr.bf16.gmra.mxu0 %v7304
        %v8137 = vpop.f32.mrf.mxu0
        %v8138 = vadd.f32 %v7849, %v8137
        %v8139 = vpop.f32.mrf.mxu0
        %v8140 = vpop.f32.mrf.mxu0
        %v8141 = vadd.f32 %v7852, %v8140
        %v8142 = vpop.f32.mrf.mxu0
        %8143 = vmatprep.mubr.bf16.mxu0 %v7313
        %8144 = vmatmul.mubr.bf16.gmra.mxu0 %v7312
        %v8145 = vpop.f32.mrf.mxu0
        %v8146 = vadd.f32 %v7857, %v8145
        %v8147 = vpop.f32.mrf.mxu0
        %v8148 = vpop.f32.mrf.mxu0
        %v8149 = vadd.f32 %v7860, %v8148
        %v8150 = vpop.f32.mrf.mxu0
        %8151 = vmatprep.mubr.bf16.mxu0 %v7321
        %8152 = vmatmul.mubr.bf16.gmra.mxu0 %v7320
        %v8153 = vpop.f32.mrf.mxu0
        %v8154 = vadd.f32 %v7865, %v8153
        %v8155 = vpop.f32.mrf.mxu0
        %v8156 = vpop.f32.mrf.mxu0
        %v8157 = vadd.f32 %v7868, %v8156
        %v8158 = vpop.f32.mrf.mxu0
        %8159 = vmatprep.mubr.bf16.mxu0 %v7329
        %8160 = vmatmul.mubr.bf16.gmra.mxu0 %v7328
        %v8161 = vpop.f32.mrf.mxu0
        %v8162 = vadd.f32 %v7873, %v8161
        %v8163 = vpop.f32.mrf.mxu0
        %v8164 = vpop.f32.mrf.mxu0
        %v8165 = vadd.f32 %v7876, %v8164
        %v8166 = vpop.f32.mrf.mxu0
        %8167 = vmatprep.mubr.bf16.mxu0 %v7337
        %8168 = vmatmul.mubr.bf16.gmra.mxu0 %v7336
        %v8169 = vpop.f32.mrf.mxu0
        %v8170 = vadd.f32 %v7881, %v8169
        %v8171 = vpop.f32.mrf.mxu0
        %v8172 = vpop.f32.mrf.mxu0
        %v8173 = vadd.f32 %v7884, %v8172
        %v8174 = vpop.f32.mrf.mxu0
        %8175 = vmatprep.mubr.bf16.mxu0 %v7345
        %8176 = vmatmul.mubr.bf16.gmra.mxu0 %v7344
        %v8177 = vpop.f32.mrf.mxu0
        %v8178 = vadd.f32 %v7889, %v8177
        %v8179 = vpop.f32.mrf.mxu0
        %v8180 = vpop.f32.mrf.mxu0
        %v8181 = vadd.f32 %v7892, %v8180
        %v8182 = vpop.f32.mrf.mxu0
        %8183 = vmatprep.mubr.bf16.mxu0 %v7353
        %8184 = vmatmul.mubr.bf16.gmra.mxu0 %v7352
        %v8185 = vpop.f32.mrf.mxu0
        %v8186 = vadd.f32 %v7897, %v8185
        %v8187 = vpop.f32.mrf.mxu0
        %v8188 = vpop.f32.mrf.mxu0
        %v8189 = vadd.f32 %v7900, %v8188
        %v8190 = vpop.f32.mrf.mxu0
        %8191 = vmatprep.mubr.bf16.mxu0 %v7361
        %8192 = vmatmul.mubr.bf16.gmra.mxu0 %v7360
        %v8193 = vpop.f32.mrf.mxu0
        %v8194 = vadd.f32 %v7905, %v8193
        %v8195 = vpop.f32.mrf.mxu0
        %v8196 = vpop.f32.mrf.mxu0
        %v8197 = vadd.f32 %v7908, %v8196
        %v8198 = vpop.f32.mrf.mxu0
        %8199 = vmatprep.mubr.bf16.mxu0 %v7369
        %8200 = vmatmul.mubr.bf16.gmra.mxu0 %v7368
        %v8201 = vpop.f32.mrf.mxu0
        %v8202 = vadd.f32 %v7913, %v8201
        %v8203 = vpop.f32.mrf.mxu0
        %v8204 = vpop.f32.mrf.mxu0
        %v8205 = vadd.f32 %v7916, %v8204
        %v8206 = vpop.f32.mrf.mxu0
        %8207 = vmatprep.mubr.bf16.mxu0 %v7377
        %8208 = vmatmul.mubr.bf16.gmra.mxu0 %v7376
        %v8209 = vpop.f32.mrf.mxu0
        %v8210 = vadd.f32 %v7921, %v8209
        %v8211 = vpop.f32.mrf.mxu0
        %v8212 = vpop.f32.mrf.mxu0
        %v8213 = vadd.f32 %v7924, %v8212
        %v8214 = vpop.f32.mrf.mxu0
        %8215 = vmatprep.mubr.bf16.mxu0 %v7385
        %8216 = vmatmul.mubr.bf16.gmra.mxu0 %v7384
        %v8217 = vpop.f32.mrf.mxu0
        %v8218 = vadd.f32 %v7929, %v8217
        %v8219 = vpop.f32.mrf.mxu0
        %v8220 = vpop.f32.mrf.mxu0
        %v8221 = vadd.f32 %v7932, %v8220
        %v8222 = vpop.f32.mrf.mxu0
        %8223 = vmatprep.mubr.bf16.mxu0 %v7393
        %8224 = vmatmul.mubr.bf16.gmra.mxu0 %v7392
        %v8225 = vpop.f32.mrf.mxu0
        %v8226 = vadd.f32 %v7937, %v8225
        %v8227 = vpop.f32.mrf.mxu0
        %v8228 = vpop.f32.mrf.mxu0
        %v8229 = vadd.f32 %v7940, %v8228
        %v8230 = vpop.f32.mrf.mxu0
        %8231 = vmatprep.mubr.bf16.mxu0 %v7401
        %8232 = vmatmul.mubr.bf16.gmra.mxu0 %v7400
        %v8233 = vpop.f32.mrf.mxu0
        %v8234 = vadd.f32 %v7945, %v8233
        %v8235 = vpop.f32.mrf.mxu0
        %v8236 = vpop.f32.mrf.mxu0
        %v8237 = vadd.f32 %v7948, %v8236
        %v8238 = vpop.f32.mrf.mxu0
        %8239 = vmatprep.mubr.bf16.mxu0 %v7409
        %8240 = vmatmul.mubr.bf16.gmra.mxu0 %v7408
        %v8241 = vpop.f32.mrf.mxu0
        %v8242 = vadd.f32 %v7953, %v8241
        %v8243 = vpop.f32.mrf.mxu0
        %v8244 = vpop.f32.mrf.mxu0
        %v8245 = vadd.f32 %v7956, %v8244
        %v8246 = vpop.f32.mrf.mxu0
        %8247 = vmatprep.mubr.bf16.mxu0 %v7417
        %8248 = vmatmul.mubr.bf16.gmra.mxu0 %v7416
        %v8249 = vpop.f32.mrf.mxu0
        %v8250 = vadd.f32 %v7961, %v8249
        %v8251 = vpop.f32.mrf.mxu0
        %v8252 = vpop.f32.mrf.mxu0
        %v8253 = vadd.f32 %v7964, %v8252
        %v8254 = vpop.f32.mrf.mxu0
        %8255 = vmatprep.mubr.bf16.mxu0 %v7425
        %8256 = vmatmul.mubr.bf16.gmra.mxu0 %v7424
        %v8257 = vpop.f32.mrf.mxu0
        %v8258 = vadd.f32 %v7969, %v8257
        %v8259 = vpop.f32.mrf.mxu0
        %v8260 = vpop.f32.mrf.mxu0
        %v8261 = vadd.f32 %v7972, %v8260
        %v8262 = vpop.f32.mrf.mxu0
        %8263 = vmatprep.mubr.bf16.mxu0 %v7433
        %8264 = vmatmul.mubr.bf16.gmra.mxu0 %v7432
        %v8265 = vpop.f32.mrf.mxu0
        %v8266 = vadd.f32 %v7977, %v8265
        %v8267 = vpop.f32.mrf.mxu0
        %v8268 = vpop.f32.mrf.mxu0
        %v8269 = vadd.f32 %v7980, %v8268
        %v8270 = vpop.f32.mrf.mxu0
        %8271 = vmatprep.mubr.bf16.mxu0 %v7441
        %8272 = vmatmul.mubr.bf16.gmra.mxu0 %v7440
        %v8273 = vpop.f32.mrf.mxu0
        %v8274 = vadd.f32 %v7985, %v8273
        %v8275 = vpop.f32.mrf.mxu0
        %v8276 = vpop.f32.mrf.mxu0
        %v8277 = vadd.f32 %v7988, %v8276
        %v8278 = vpop.f32.mrf.mxu0
        %8279 = vmatprep.mubr.bf16.mxu0 %v7449
        %8280 = vmatmul.mubr.bf16.gmra.mxu0 %v7448
        %v8281 = vpop.f32.mrf.mxu0
        %v8282 = vadd.f32 %v7993, %v8281
        %v8283 = vpop.f32.mrf.mxu0
        %v8284 = vpop.f32.mrf.mxu0
        %v8285 = vadd.f32 %v7996, %v8284
        %v8286 = vpop.f32.mrf.mxu0
        %8287 = vmatprep.mubr.bf16.mxu0 %v7457
        %8288 = vmatmul.mubr.bf16.gmra.mxu0 %v7456
        %v8289 = vpop.f32.mrf.mxu0
        %v8290 = vadd.f32 %v8001, %v8289
        %v8291 = vpop.f32.mrf.mxu0
        %v8292 = vpop.f32.mrf.mxu0
        %v8293 = vadd.f32 %v8004, %v8292
        %v8294 = vpop.f32.mrf.mxu0
        %8295 = vmatprep.mubr.bf16.mxu0 %v7465
        %8296 = vmatmul.mubr.bf16.gmra.mxu0 %v7464
        %v8297 = vpop.f32.mrf.mxu0
        %v8298 = vadd.f32 %v8009, %v8297
        %v8299 = vpop.f32.mrf.mxu0
        %v8300 = vpop.f32.mrf.mxu0
        %v8301 = vadd.f32 %v8012, %v8300
        %v8302 = vpop.f32.mrf.mxu0
        %8303 = vmatprep.mubr.bf16.mxu0 %v7473
        %8304 = vmatmul.mubr.bf16.gmra.mxu0 %v7472
        %v8305 = vpop.f32.mrf.mxu0
        %v8306 = vadd.f32 %v8017, %v8305
        %v8307 = vpop.f32.mrf.mxu0
        %v8308 = vpop.f32.mrf.mxu0
        %v8309 = vadd.f32 %v8020, %v8308
        %v8310 = vpop.f32.mrf.mxu0
        %8311 = vdwg.mxu0
        %8312 = vmatprep.subr.bf16.mxu0 0
        %8313 = vmatpush1.bf16.msra.mxu0 %v6429
        %8314 = vmatprep.subr.bf16.mxu0 0
        %8315 = vmatpush1.bf16.msra.mxu0 %v6428
        %8316 = vmatprep.subr.bf16.mxu0 0
        %8317 = vmatpush1.bf16.msra.mxu0 %v6427
        %8318 = vmatprep.subr.bf16.mxu0 0
        %8319 = vmatpush1.bf16.msra.mxu0 %v6426
        %8320 = vmatprep.subr.bf16.mxu0 0
        %8321 = vmatpush1.bf16.msra.mxu0 %v6425
        %8322 = vmatprep.subr.bf16.mxu0 0
        %8323 = vmatpush1.bf16.msra.mxu0 %v6424
        %8324 = vmatprep.subr.bf16.mxu0 0
        %8325 = vmatpush1.bf16.msra.mxu0 %v6423
        %8326 = vmatprep.subr.bf16.mxu0 0
        %8327 = vmatpush1.bf16.msra.mxu0 %v6422
        %8328 = vmatprep.subr.bf16.mxu0 0
        %8329 = vmatpush2.bf16.msra.mxu0 %v6437
        %8330 = vmatprep.subr.bf16.mxu0 0
        %8331 = vmatpush2.bf16.msra.mxu0 %v6436
        %8332 = vmatprep.subr.bf16.mxu0 0
        %8333 = vmatpush2.bf16.msra.mxu0 %v6435
        %8334 = vmatprep.subr.bf16.mxu0 0
        %8335 = vmatpush2.bf16.msra.mxu0 %v6434
        %8336 = vmatprep.subr.bf16.mxu0 0
        %8337 = vmatpush2.bf16.msra.mxu0 %v6433
        %8338 = vmatprep.subr.bf16.mxu0 0
        %8339 = vmatpush2.bf16.msra.mxu0 %v6432
        %8340 = vmatprep.subr.bf16.mxu0 0
        %8341 = vmatpush2.bf16.msra.mxu0 %v6431
        %8342 = vmatprep.subr.bf16.mxu0 0
        %8343 = vmatpush2.bf16.msra.mxu0 %v6430
        %8344 = vmatprep.mubr.bf16.mxu0 %v7227
        %8345 = vmatmul.mubr.bf16.gmra.mxu0 %v7226
        %v8346 = vpop.f32.mrf.mxu0
        %v8347 = vadd.f32 %v8058, %v8346
        %v8348 = vpop.f32.mrf.mxu0
        %v8349 = vpop.f32.mrf.mxu0
        %v8350 = vadd.f32 %v8061, %v8349
        %v8351 = vpop.f32.mrf.mxu0
        %8352 = vmatprep.mubr.bf16.mxu0 %v7235
        %8353 = vmatmul.mubr.bf16.gmra.mxu0 %v7234
        %v8354 = vpop.f32.mrf.mxu0
        %v8355 = vadd.f32 %v8066, %v8354
        %v8356 = vpop.f32.mrf.mxu0
        %v8357 = vpop.f32.mrf.mxu0
        %v8358 = vadd.f32 %v8069, %v8357
        %v8359 = vpop.f32.mrf.mxu0
        %8360 = vmatprep.mubr.bf16.mxu0 %v7243
        %8361 = vmatmul.mubr.bf16.gmra.mxu0 %v7242
        %v8362 = vpop.f32.mrf.mxu0
        %v8363 = vadd.f32 %v8074, %v8362
        %v8364 = vpop.f32.mrf.mxu0
        %v8365 = vpop.f32.mrf.mxu0
        %v8366 = vadd.f32 %v8077, %v8365
        %v8367 = vpop.f32.mrf.mxu0
        %8368 = vmatprep.mubr.bf16.mxu0 %v7251
        %8369 = vmatmul.mubr.bf16.gmra.mxu0 %v7250
        %v8370 = vpop.f32.mrf.mxu0
        %v8371 = vadd.f32 %v8082, %v8370
        %v8372 = vpop.f32.mrf.mxu0
        %v8373 = vpop.f32.mrf.mxu0
        %v8374 = vadd.f32 %v8085, %v8373
        %v8375 = vpop.f32.mrf.mxu0
        %8376 = vmatprep.mubr.bf16.mxu0 %v7259
        %8377 = vmatmul.mubr.bf16.gmra.mxu0 %v7258
        %v8378 = vpop.f32.mrf.mxu0
        %v8379 = vadd.f32 %v8090, %v8378
        %v8380 = vpop.f32.mrf.mxu0
        %v8381 = vpop.f32.mrf.mxu0
        %v8382 = vadd.f32 %v8093, %v8381
        %v8383 = vpop.f32.mrf.mxu0
        %8384 = vmatprep.mubr.bf16.mxu0 %v7267
        %8385 = vmatmul.mubr.bf16.gmra.mxu0 %v7266
        %v8386 = vpop.f32.mrf.mxu0
        %v8387 = vadd.f32 %v8098, %v8386
        %v8388 = vpop.f32.mrf.mxu0
        %v8389 = vpop.f32.mrf.mxu0
        %v8390 = vadd.f32 %v8101, %v8389
        %v8391 = vpop.f32.mrf.mxu0
        %8392 = vmatprep.mubr.bf16.mxu0 %v7275
        %8393 = vmatmul.mubr.bf16.gmra.mxu0 %v7274
        %v8394 = vpop.f32.mrf.mxu0
        %v8395 = vadd.f32 %v8106, %v8394
        %v8396 = vpop.f32.mrf.mxu0
        %v8397 = vpop.f32.mrf.mxu0
        %v8398 = vadd.f32 %v8109, %v8397
        %v8399 = vpop.f32.mrf.mxu0
        %8400 = vmatprep.mubr.bf16.mxu0 %v7283
        %8401 = vmatmul.mubr.bf16.gmra.mxu0 %v7282
        %v8402 = vpop.f32.mrf.mxu0
        %v8403 = vadd.f32 %v8114, %v8402
        %v8404 = vpop.f32.mrf.mxu0
        %v8405 = vpop.f32.mrf.mxu0
        %v8406 = vadd.f32 %v8117, %v8405
        %v8407 = vpop.f32.mrf.mxu0
        %8408 = vmatprep.mubr.bf16.mxu0 %v7291
        %8409 = vmatmul.mubr.bf16.gmra.mxu0 %v7290
        %v8410 = vpop.f32.mrf.mxu0
        %v8411 = vadd.f32 %v8122, %v8410
        %v8412 = vpop.f32.mrf.mxu0
        %v8413 = vpop.f32.mrf.mxu0
        %v8414 = vadd.f32 %v8125, %v8413
        %v8415 = vpop.f32.mrf.mxu0
        %8416 = vmatprep.mubr.bf16.mxu0 %v7299
        %8417 = vmatmul.mubr.bf16.gmra.mxu0 %v7298
        %v8418 = vpop.f32.mrf.mxu0
        %v8419 = vadd.f32 %v8130, %v8418
        %v8420 = vpop.f32.mrf.mxu0
        %v8421 = vpop.f32.mrf.mxu0
        %v8422 = vadd.f32 %v8133, %v8421
        %v8423 = vpop.f32.mrf.mxu0
        %8424 = vmatprep.mubr.bf16.mxu0 %v7307
        %8425 = vmatmul.mubr.bf16.gmra.mxu0 %v7306
        %v8426 = vpop.f32.mrf.mxu0
        %v8427 = vadd.f32 %v8138, %v8426
        %v8428 = vpop.f32.mrf.mxu0
        %v8429 = vpop.f32.mrf.mxu0
        %v8430 = vadd.f32 %v8141, %v8429
        %v8431 = vpop.f32.mrf.mxu0
        %8432 = vmatprep.mubr.bf16.mxu0 %v7315
        %8433 = vmatmul.mubr.bf16.gmra.mxu0 %v7314
        %v8434 = vpop.f32.mrf.mxu0
        %v8435 = vadd.f32 %v8146, %v8434
        %v8436 = vpop.f32.mrf.mxu0
        %v8437 = vpop.f32.mrf.mxu0
        %v8438 = vadd.f32 %v8149, %v8437
        %v8439 = vpop.f32.mrf.mxu0
        %8440 = vmatprep.mubr.bf16.mxu0 %v7323
        %8441 = vmatmul.mubr.bf16.gmra.mxu0 %v7322
        %v8442 = vpop.f32.mrf.mxu0
        %v8443 = vadd.f32 %v8154, %v8442
        %v8444 = vpop.f32.mrf.mxu0
        %v8445 = vpop.f32.mrf.mxu0
        %v8446 = vadd.f32 %v8157, %v8445
        %v8447 = vpop.f32.mrf.mxu0
        %8448 = vmatprep.mubr.bf16.mxu0 %v7331
        %8449 = vmatmul.mubr.bf16.gmra.mxu0 %v7330
        %v8450 = vpop.f32.mrf.mxu0
        %v8451 = vadd.f32 %v8162, %v8450
        %v8452 = vpop.f32.mrf.mxu0
        %v8453 = vpop.f32.mrf.mxu0
        %v8454 = vadd.f32 %v8165, %v8453
        %v8455 = vpop.f32.mrf.mxu0
        %8456 = vmatprep.mubr.bf16.mxu0 %v7339
        %8457 = vmatmul.mubr.bf16.gmra.mxu0 %v7338
        %v8458 = vpop.f32.mrf.mxu0
        %v8459 = vadd.f32 %v8170, %v8458
        %v8460 = vpop.f32.mrf.mxu0
        %v8461 = vpop.f32.mrf.mxu0
        %v8462 = vadd.f32 %v8173, %v8461
        %v8463 = vpop.f32.mrf.mxu0
        %8464 = vmatprep.mubr.bf16.mxu0 %v7347
        %8465 = vmatmul.mubr.bf16.gmra.mxu0 %v7346
        %v8466 = vpop.f32.mrf.mxu0
        %v8467 = vadd.f32 %v8178, %v8466
        %v8468 = vpop.f32.mrf.mxu0
        %v8469 = vpop.f32.mrf.mxu0
        %v8470 = vadd.f32 %v8181, %v8469
        %v8471 = vpop.f32.mrf.mxu0
        %8472 = vmatprep.mubr.bf16.mxu0 %v7355
        %8473 = vmatmul.mubr.bf16.gmra.mxu0 %v7354
        %v8474 = vpop.f32.mrf.mxu0
        %v8475 = vadd.f32 %v8186, %v8474
        %v8476 = vpop.f32.mrf.mxu0
        %v8477 = vpop.f32.mrf.mxu0
        %v8478 = vadd.f32 %v8189, %v8477
        %v8479 = vpop.f32.mrf.mxu0
        %8480 = vmatprep.mubr.bf16.mxu0 %v7363
        %8481 = vmatmul.mubr.bf16.gmra.mxu0 %v7362
        %v8482 = vpop.f32.mrf.mxu0
        %v8483 = vadd.f32 %v8194, %v8482
        %v8484 = vpop.f32.mrf.mxu0
        %v8485 = vpop.f32.mrf.mxu0
        %v8486 = vadd.f32 %v8197, %v8485
        %v8487 = vpop.f32.mrf.mxu0
        %8488 = vmatprep.mubr.bf16.mxu0 %v7371
        %8489 = vmatmul.mubr.bf16.gmra.mxu0 %v7370
        %v8490 = vpop.f32.mrf.mxu0
        %v8491 = vadd.f32 %v8202, %v8490
        %v8492 = vpop.f32.mrf.mxu0
        %v8493 = vpop.f32.mrf.mxu0
        %v8494 = vadd.f32 %v8205, %v8493
        %v8495 = vpop.f32.mrf.mxu0
        %8496 = vmatprep.mubr.bf16.mxu0 %v7379
        %8497 = vmatmul.mubr.bf16.gmra.mxu0 %v7378
        %v8498 = vpop.f32.mrf.mxu0
        %v8499 = vadd.f32 %v8210, %v8498
        %v8500 = vpop.f32.mrf.mxu0
        %v8501 = vpop.f32.mrf.mxu0
        %v8502 = vadd.f32 %v8213, %v8501
        %v8503 = vpop.f32.mrf.mxu0
        %8504 = vmatprep.mubr.bf16.mxu0 %v7387
        %8505 = vmatmul.mubr.bf16.gmra.mxu0 %v7386
        %v8506 = vpop.f32.mrf.mxu0
        %v8507 = vadd.f32 %v8218, %v8506
        %v8508 = vpop.f32.mrf.mxu0
        %v8509 = vpop.f32.mrf.mxu0
        %v8510 = vadd.f32 %v8221, %v8509
        %v8511 = vpop.f32.mrf.mxu0
        %8512 = vmatprep.mubr.bf16.mxu0 %v7395
        %8513 = vmatmul.mubr.bf16.gmra.mxu0 %v7394
        %v8514 = vpop.f32.mrf.mxu0
        %v8515 = vadd.f32 %v8226, %v8514
        %v8516 = vpop.f32.mrf.mxu0
        %v8517 = vpop.f32.mrf.mxu0
        %v8518 = vadd.f32 %v8229, %v8517
        %v8519 = vpop.f32.mrf.mxu0
        %8520 = vmatprep.mubr.bf16.mxu0 %v7403
        %8521 = vmatmul.mubr.bf16.gmra.mxu0 %v7402
        %v8522 = vpop.f32.mrf.mxu0
        %v8523 = vadd.f32 %v8234, %v8522
        %v8524 = vpop.f32.mrf.mxu0
        %v8525 = vpop.f32.mrf.mxu0
        %v8526 = vadd.f32 %v8237, %v8525
        %v8527 = vpop.f32.mrf.mxu0
        %8528 = vmatprep.mubr.bf16.mxu0 %v7411
        %8529 = vmatmul.mubr.bf16.gmra.mxu0 %v7410
        %v8530 = vpop.f32.mrf.mxu0
        %v8531 = vadd.f32 %v8242, %v8530
        %v8532 = vpop.f32.mrf.mxu0
        %v8533 = vpop.f32.mrf.mxu0
        %v8534 = vadd.f32 %v8245, %v8533
        %v8535 = vpop.f32.mrf.mxu0
        %8536 = vmatprep.mubr.bf16.mxu0 %v7419
        %8537 = vmatmul.mubr.bf16.gmra.mxu0 %v7418
        %v8538 = vpop.f32.mrf.mxu0
        %v8539 = vadd.f32 %v8250, %v8538
        %v8540 = vpop.f32.mrf.mxu0
        %v8541 = vpop.f32.mrf.mxu0
        %v8542 = vadd.f32 %v8253, %v8541
        %v8543 = vpop.f32.mrf.mxu0
        %8544 = vmatprep.mubr.bf16.mxu0 %v7427
        %8545 = vmatmul.mubr.bf16.gmra.mxu0 %v7426
        %v8546 = vpop.f32.mrf.mxu0
        %v8547 = vadd.f32 %v8258, %v8546
        %v8548 = vpop.f32.mrf.mxu0
        %v8549 = vpop.f32.mrf.mxu0
        %v8550 = vadd.f32 %v8261, %v8549
        %v8551 = vpop.f32.mrf.mxu0
        %8552 = vmatprep.mubr.bf16.mxu0 %v7435
        %8553 = vmatmul.mubr.bf16.gmra.mxu0 %v7434
        %v8554 = vpop.f32.mrf.mxu0
        %v8555 = vadd.f32 %v8266, %v8554
        %v8556 = vpop.f32.mrf.mxu0
        %v8557 = vpop.f32.mrf.mxu0
        %v8558 = vadd.f32 %v8269, %v8557
        %v8559 = vpop.f32.mrf.mxu0
        %8560 = vmatprep.mubr.bf16.mxu0 %v7443
        %8561 = vmatmul.mubr.bf16.gmra.mxu0 %v7442
        %v8562 = vpop.f32.mrf.mxu0
        %v8563 = vadd.f32 %v8274, %v8562
        %v8564 = vpop.f32.mrf.mxu0
        %v8565 = vpop.f32.mrf.mxu0
        %v8566 = vadd.f32 %v8277, %v8565
        %v8567 = vpop.f32.mrf.mxu0
        %8568 = vmatprep.mubr.bf16.mxu0 %v7451
        %8569 = vmatmul.mubr.bf16.gmra.mxu0 %v7450
        %v8570 = vpop.f32.mrf.mxu0
        %v8571 = vadd.f32 %v8282, %v8570
        %v8572 = vpop.f32.mrf.mxu0
        %v8573 = vpop.f32.mrf.mxu0
        %v8574 = vadd.f32 %v8285, %v8573
        %v8575 = vpop.f32.mrf.mxu0
        %8576 = vmatprep.mubr.bf16.mxu0 %v7459
        %8577 = vmatmul.mubr.bf16.gmra.mxu0 %v7458
        %v8578 = vpop.f32.mrf.mxu0
        %v8579 = vadd.f32 %v8290, %v8578
        %v8580 = vpop.f32.mrf.mxu0
        %v8581 = vpop.f32.mrf.mxu0
        %v8582 = vadd.f32 %v8293, %v8581
        %v8583 = vpop.f32.mrf.mxu0
        %8584 = vmatprep.mubr.bf16.mxu0 %v7467
        %8585 = vmatmul.mubr.bf16.gmra.mxu0 %v7466
        %v8586 = vpop.f32.mrf.mxu0
        %v8587 = vadd.f32 %v8298, %v8586
        %v8588 = vpop.f32.mrf.mxu0
        %v8589 = vpop.f32.mrf.mxu0
        %v8590 = vadd.f32 %v8301, %v8589
        %v8591 = vpop.f32.mrf.mxu0
        %8592 = vmatprep.mubr.bf16.mxu0 %v7475
        %8593 = vmatmul.mubr.bf16.gmra.mxu0 %v7474
        %v8594 = vpop.f32.mrf.mxu0
        %v8595 = vadd.f32 %v8306, %v8594
        %v8596 = vpop.f32.mrf.mxu0
        %v8597 = vpop.f32.mrf.mxu0
        %v8598 = vadd.f32 %v8309, %v8597
        %v8599 = vpop.f32.mrf.mxu0
        %8600 = vdwg.mxu0
        %8601 = vmatprep.subr.bf16.mxu0 0
        %8602 = vmatpush1.bf16.msra.mxu0 %v6445
        %8603 = vmatprep.subr.bf16.mxu0 0
        %8604 = vmatpush1.bf16.msra.mxu0 %v6444
        %8605 = vmatprep.subr.bf16.mxu0 0
        %8606 = vmatpush1.bf16.msra.mxu0 %v6443
        %8607 = vmatprep.subr.bf16.mxu0 0
        %8608 = vmatpush1.bf16.msra.mxu0 %v6442
        %8609 = vmatprep.subr.bf16.mxu0 0
        %8610 = vmatpush1.bf16.msra.mxu0 %v6441
        %8611 = vmatprep.subr.bf16.mxu0 0
        %8612 = vmatpush1.bf16.msra.mxu0 %v6440
        %8613 = vmatprep.subr.bf16.mxu0 0
        %8614 = vmatpush1.bf16.msra.mxu0 %v6439
        %8615 = vmatprep.subr.bf16.mxu0 0
        %8616 = vmatpush1.bf16.msra.mxu0 %v6438
        %8617 = vmatprep.subr.bf16.mxu0 0
        %8618 = vmatpush2.bf16.msra.mxu0 %v6453
        %8619 = vmatprep.subr.bf16.mxu0 0
        %8620 = vmatpush2.bf16.msra.mxu0 %v6452
        %8621 = vmatprep.subr.bf16.mxu0 0
        %8622 = vmatpush2.bf16.msra.mxu0 %v6451
        %8623 = vmatprep.subr.bf16.mxu0 0
        %8624 = vmatpush2.bf16.msra.mxu0 %v6450
        %8625 = vmatprep.subr.bf16.mxu0 0
        %8626 = vmatpush2.bf16.msra.mxu0 %v6449
        %8627 = vmatprep.subr.bf16.mxu0 0
        %8628 = vmatpush2.bf16.msra.mxu0 %v6448
        %8629 = vmatprep.subr.bf16.mxu0 0
        %8630 = vmatpush2.bf16.msra.mxu0 %v6447
        %8631 = vmatprep.subr.bf16.mxu0 0
        %8632 = vmatpush2.bf16.msra.mxu0 %v6446
        %8633 = vmatprep.mubr.bf16.mxu0 %v7229
        %8634 = vmatmul.mubr.bf16.gmra.mxu0 %v7228
        %v8635 = vpop.f32.mrf.mxu0
        %v8636 = vadd.f32 %v8347, %v8635
        %v8637 = vpop.f32.mrf.mxu0
        %v8638 = vpop.f32.mrf.mxu0
        %v8639 = vadd.f32 %v8350, %v8638
        %v8640 = vpop.f32.mrf.mxu0
        %8641 = vmatprep.mubr.bf16.mxu0 %v7237
        %8642 = vmatmul.mubr.bf16.gmra.mxu0 %v7236
        %v8643 = vpop.f32.mrf.mxu0
        %v8644 = vadd.f32 %v8355, %v8643
        %v8645 = vpop.f32.mrf.mxu0
        %v8646 = vpop.f32.mrf.mxu0
        %v8647 = vadd.f32 %v8358, %v8646
        %v8648 = vpop.f32.mrf.mxu0
        %8649 = vmatprep.mubr.bf16.mxu0 %v7245
        %8650 = vmatmul.mubr.bf16.gmra.mxu0 %v7244
        %v8651 = vpop.f32.mrf.mxu0
        %v8652 = vadd.f32 %v8363, %v8651
        %v8653 = vpop.f32.mrf.mxu0
        %v8654 = vpop.f32.mrf.mxu0
        %v8655 = vadd.f32 %v8366, %v8654
        %v8656 = vpop.f32.mrf.mxu0
        %8657 = vmatprep.mubr.bf16.mxu0 %v7253
        %8658 = vmatmul.mubr.bf16.gmra.mxu0 %v7252
        %v8659 = vpop.f32.mrf.mxu0
        %v8660 = vadd.f32 %v8371, %v8659
        %v8661 = vpop.f32.mrf.mxu0
        %v8662 = vpop.f32.mrf.mxu0
        %v8663 = vadd.f32 %v8374, %v8662
        %v8664 = vpop.f32.mrf.mxu0
        %8665 = vmatprep.mubr.bf16.mxu0 %v7261
        %8666 = vmatmul.mubr.bf16.gmra.mxu0 %v7260
        %v8667 = vpop.f32.mrf.mxu0
        %v8668 = vadd.f32 %v8379, %v8667
        %v8669 = vpop.f32.mrf.mxu0
        %v8670 = vpop.f32.mrf.mxu0
        %v8671 = vadd.f32 %v8382, %v8670
        %v8672 = vpop.f32.mrf.mxu0
        %8673 = vmatprep.mubr.bf16.mxu0 %v7269
        %8674 = vmatmul.mubr.bf16.gmra.mxu0 %v7268
        %v8675 = vpop.f32.mrf.mxu0
        %v8676 = vadd.f32 %v8387, %v8675
        %v8677 = vpop.f32.mrf.mxu0
        %v8678 = vpop.f32.mrf.mxu0
        %v8679 = vadd.f32 %v8390, %v8678
        %v8680 = vpop.f32.mrf.mxu0
        %8681 = vmatprep.mubr.bf16.mxu0 %v7277
        %8682 = vmatmul.mubr.bf16.gmra.mxu0 %v7276
        %v8683 = vpop.f32.mrf.mxu0
        %v8684 = vadd.f32 %v8395, %v8683
        %v8685 = vpop.f32.mrf.mxu0
        %v8686 = vpop.f32.mrf.mxu0
        %v8687 = vadd.f32 %v8398, %v8686
        %v8688 = vpop.f32.mrf.mxu0
        %8689 = vmatprep.mubr.bf16.mxu0 %v7285
        %8690 = vmatmul.mubr.bf16.gmra.mxu0 %v7284
        %v8691 = vpop.f32.mrf.mxu0
        %v8692 = vadd.f32 %v8403, %v8691
        %v8693 = vpop.f32.mrf.mxu0
        %v8694 = vpop.f32.mrf.mxu0
        %v8695 = vadd.f32 %v8406, %v8694
        %v8696 = vpop.f32.mrf.mxu0
        %8697 = vmatprep.mubr.bf16.mxu0 %v7293
        %8698 = vmatmul.mubr.bf16.gmra.mxu0 %v7292
        %v8699 = vpop.f32.mrf.mxu0
        %v8700 = vadd.f32 %v8411, %v8699
        %v8701 = vpop.f32.mrf.mxu0
        %v8702 = vpop.f32.mrf.mxu0
        %v8703 = vadd.f32 %v8414, %v8702
        %v8704 = vpop.f32.mrf.mxu0
        %8705 = vmatprep.mubr.bf16.mxu0 %v7301
        %8706 = vmatmul.mubr.bf16.gmra.mxu0 %v7300
        %v8707 = vpop.f32.mrf.mxu0
        %v8708 = vadd.f32 %v8419, %v8707
        %v8709 = vpop.f32.mrf.mxu0
        %v8710 = vpop.f32.mrf.mxu0
        %v8711 = vadd.f32 %v8422, %v8710
        %v8712 = vpop.f32.mrf.mxu0
        %8713 = vmatprep.mubr.bf16.mxu0 %v7309
        %8714 = vmatmul.mubr.bf16.gmra.mxu0 %v7308
        %v8715 = vpop.f32.mrf.mxu0
        %v8716 = vadd.f32 %v8427, %v8715
        %v8717 = vpop.f32.mrf.mxu0
        %v8718 = vpop.f32.mrf.mxu0
        %v8719 = vadd.f32 %v8430, %v8718
        %v8720 = vpop.f32.mrf.mxu0
        %8721 = vmatprep.mubr.bf16.mxu0 %v7317
        %8722 = vmatmul.mubr.bf16.gmra.mxu0 %v7316
        %v8723 = vpop.f32.mrf.mxu0
        %v8724 = vadd.f32 %v8435, %v8723
        %v8725 = vpop.f32.mrf.mxu0
        %v8726 = vpop.f32.mrf.mxu0
        %v8727 = vadd.f32 %v8438, %v8726
        %v8728 = vpop.f32.mrf.mxu0
        %8729 = vmatprep.mubr.bf16.mxu0 %v7325
        %8730 = vmatmul.mubr.bf16.gmra.mxu0 %v7324
        %v8731 = vpop.f32.mrf.mxu0
        %v8732 = vadd.f32 %v8443, %v8731
        %v8733 = vpop.f32.mrf.mxu0
        %v8734 = vpop.f32.mrf.mxu0
        %v8735 = vadd.f32 %v8446, %v8734
        %v8736 = vpop.f32.mrf.mxu0
        %8737 = vmatprep.mubr.bf16.mxu0 %v7333
        %8738 = vmatmul.mubr.bf16.gmra.mxu0 %v7332
        %v8739 = vpop.f32.mrf.mxu0
        %v8740 = vadd.f32 %v8451, %v8739
        %v8741 = vpop.f32.mrf.mxu0
        %v8742 = vpop.f32.mrf.mxu0
        %v8743 = vadd.f32 %v8454, %v8742
        %v8744 = vpop.f32.mrf.mxu0
        %8745 = vmatprep.mubr.bf16.mxu0 %v7341
        %8746 = vmatmul.mubr.bf16.gmra.mxu0 %v7340
        %v8747 = vpop.f32.mrf.mxu0
        %v8748 = vadd.f32 %v8459, %v8747
        %v8749 = vpop.f32.mrf.mxu0
        %v8750 = vpop.f32.mrf.mxu0
        %v8751 = vadd.f32 %v8462, %v8750
        %v8752 = vpop.f32.mrf.mxu0
        %8753 = vmatprep.mubr.bf16.mxu0 %v7349
        %8754 = vmatmul.mubr.bf16.gmra.mxu0 %v7348
        %v8755 = vpop.f32.mrf.mxu0
        %v8756 = vadd.f32 %v8467, %v8755
        %v8757 = vpop.f32.mrf.mxu0
        %v8758 = vpop.f32.mrf.mxu0
        %v8759 = vadd.f32 %v8470, %v8758
        %v8760 = vpop.f32.mrf.mxu0
        %8761 = vmatprep.mubr.bf16.mxu0 %v7357
        %8762 = vmatmul.mubr.bf16.gmra.mxu0 %v7356
        %v8763 = vpop.f32.mrf.mxu0
        %v8764 = vadd.f32 %v8475, %v8763
        %v8765 = vpop.f32.mrf.mxu0
        %v8766 = vpop.f32.mrf.mxu0
        %v8767 = vadd.f32 %v8478, %v8766
        %v8768 = vpop.f32.mrf.mxu0
        %8769 = vmatprep.mubr.bf16.mxu0 %v7365
        %8770 = vmatmul.mubr.bf16.gmra.mxu0 %v7364
        %v8771 = vpop.f32.mrf.mxu0
        %v8772 = vadd.f32 %v8483, %v8771
        %v8773 = vpop.f32.mrf.mxu0
        %v8774 = vpop.f32.mrf.mxu0
        %v8775 = vadd.f32 %v8486, %v8774
        %v8776 = vpop.f32.mrf.mxu0
        %8777 = vmatprep.mubr.bf16.mxu0 %v7373
        %8778 = vmatmul.mubr.bf16.gmra.mxu0 %v7372
        %v8779 = vpop.f32.mrf.mxu0
        %v8780 = vadd.f32 %v8491, %v8779
        %v8781 = vpop.f32.mrf.mxu0
        %v8782 = vpop.f32.mrf.mxu0
        %v8783 = vadd.f32 %v8494, %v8782
        %v8784 = vpop.f32.mrf.mxu0
        %8785 = vmatprep.mubr.bf16.mxu0 %v7381
        %8786 = vmatmul.mubr.bf16.gmra.mxu0 %v7380
        %v8787 = vpop.f32.mrf.mxu0
        %v8788 = vadd.f32 %v8499, %v8787
        %v8789 = vpop.f32.mrf.mxu0
        %v8790 = vpop.f32.mrf.mxu0
        %v8791 = vadd.f32 %v8502, %v8790
        %v8792 = vpop.f32.mrf.mxu0
        %8793 = vmatprep.mubr.bf16.mxu0 %v7389
        %8794 = vmatmul.mubr.bf16.gmra.mxu0 %v7388
        %v8795 = vpop.f32.mrf.mxu0
        %v8796 = vadd.f32 %v8507, %v8795
        %v8797 = vpop.f32.mrf.mxu0
        %v8798 = vpop.f32.mrf.mxu0
        %v8799 = vadd.f32 %v8510, %v8798
        %v8800 = vpop.f32.mrf.mxu0
        %8801 = vmatprep.mubr.bf16.mxu0 %v7397
        %8802 = vmatmul.mubr.bf16.gmra.mxu0 %v7396
        %v8803 = vpop.f32.mrf.mxu0
        %v8804 = vadd.f32 %v8515, %v8803
        %v8805 = vpop.f32.mrf.mxu0
        %v8806 = vpop.f32.mrf.mxu0
        %v8807 = vadd.f32 %v8518, %v8806
        %v8808 = vpop.f32.mrf.mxu0
        %8809 = vmatprep.mubr.bf16.mxu0 %v7405
        %8810 = vmatmul.mubr.bf16.gmra.mxu0 %v7404
        %v8811 = vpop.f32.mrf.mxu0
        %v8812 = vadd.f32 %v8523, %v8811
        %v8813 = vpop.f32.mrf.mxu0
        %v8814 = vpop.f32.mrf.mxu0
        %v8815 = vadd.f32 %v8526, %v8814
        %v8816 = vpop.f32.mrf.mxu0
        %8817 = vmatprep.mubr.bf16.mxu0 %v7413
        %8818 = vmatmul.mubr.bf16.gmra.mxu0 %v7412
        %v8819 = vpop.f32.mrf.mxu0
        %v8820 = vadd.f32 %v8531, %v8819
        %v8821 = vpop.f32.mrf.mxu0
        %v8822 = vpop.f32.mrf.mxu0
        %v8823 = vadd.f32 %v8534, %v8822
        %v8824 = vpop.f32.mrf.mxu0
        %8825 = vmatprep.mubr.bf16.mxu0 %v7421
        %8826 = vmatmul.mubr.bf16.gmra.mxu0 %v7420
        %v8827 = vpop.f32.mrf.mxu0
        %v8828 = vadd.f32 %v8539, %v8827
        %v8829 = vpop.f32.mrf.mxu0
        %v8830 = vpop.f32.mrf.mxu0
        %v8831 = vadd.f32 %v8542, %v8830
        %v8832 = vpop.f32.mrf.mxu0
        %8833 = vmatprep.mubr.bf16.mxu0 %v7429
        %8834 = vmatmul.mubr.bf16.gmra.mxu0 %v7428
        %v8835 = vpop.f32.mrf.mxu0
        %v8836 = vadd.f32 %v8547, %v8835
        %v8837 = vpop.f32.mrf.mxu0
        %v8838 = vpop.f32.mrf.mxu0
        %v8839 = vadd.f32 %v8550, %v8838
        %v8840 = vpop.f32.mrf.mxu0
        %8841 = vmatprep.mubr.bf16.mxu0 %v7437
        %8842 = vmatmul.mubr.bf16.gmra.mxu0 %v7436
        %v8843 = vpop.f32.mrf.mxu0
        %v8844 = vadd.f32 %v8555, %v8843
        %v8845 = vpop.f32.mrf.mxu0
        %v8846 = vpop.f32.mrf.mxu0
        %v8847 = vadd.f32 %v8558, %v8846
        %v8848 = vpop.f32.mrf.mxu0
        %8849 = vmatprep.mubr.bf16.mxu0 %v7445
        %8850 = vmatmul.mubr.bf16.gmra.mxu0 %v7444
        %v8851 = vpop.f32.mrf.mxu0
        %v8852 = vadd.f32 %v8563, %v8851
        %v8853 = vpop.f32.mrf.mxu0
        %v8854 = vpop.f32.mrf.mxu0
        %v8855 = vadd.f32 %v8566, %v8854
        %v8856 = vpop.f32.mrf.mxu0
        %8857 = vmatprep.mubr.bf16.mxu0 %v7453
        %8858 = vmatmul.mubr.bf16.gmra.mxu0 %v7452
        %v8859 = vpop.f32.mrf.mxu0
        %v8860 = vadd.f32 %v8571, %v8859
        %v8861 = vpop.f32.mrf.mxu0
        %v8862 = vpop.f32.mrf.mxu0
        %v8863 = vadd.f32 %v8574, %v8862
        %v8864 = vpop.f32.mrf.mxu0
        %8865 = vmatprep.mubr.bf16.mxu0 %v7461
        %8866 = vmatmul.mubr.bf16.gmra.mxu0 %v7460
        %v8867 = vpop.f32.mrf.mxu0
        %v8868 = vadd.f32 %v8579, %v8867
        %v8869 = vpop.f32.mrf.mxu0
        %v8870 = vpop.f32.mrf.mxu0
        %v8871 = vadd.f32 %v8582, %v8870
        %v8872 = vpop.f32.mrf.mxu0
        %8873 = vmatprep.mubr.bf16.mxu0 %v7469
        %8874 = vmatmul.mubr.bf16.gmra.mxu0 %v7468
        %v8875 = vpop.f32.mrf.mxu0
        %v8876 = vadd.f32 %v8587, %v8875
        %v8877 = vpop.f32.mrf.mxu0
        %v8878 = vpop.f32.mrf.mxu0
        %v8879 = vadd.f32 %v8590, %v8878
        %v8880 = vpop.f32.mrf.mxu0
        %8881 = vmatprep.mubr.bf16.mxu0 %v7477
        %8882 = vmatmul.mubr.bf16.gmra.mxu0 %v7476
        %v8883 = vpop.f32.mrf.mxu0
        %v8884 = vadd.f32 %v8595, %v8883
        %v8885 = vpop.f32.mrf.mxu0
        %v8886 = vpop.f32.mrf.mxu0
        %v8887 = vadd.f32 %v8598, %v8886
        %v8888 = vpop.f32.mrf.mxu0
        %8889 = vdwg.mxu0
        %v8890 = vld [vmem:[%s11] sm:$0xff]
        %v8891 = vld [vmem:[%s11 + $0x8] sm:$0xff]
        %v8892 = vld [vmem:[%s11 + $0x10] sm:$0xff]
        %v8893 = vld [vmem:[%s11 + $0x18] sm:$0xff]
        %v8894 = vld [vmem:[%s11 + $0x20] sm:$0xff]
        %v8895 = vld [vmem:[%s11 + $0x28] sm:$0xff]
        %v8896 = vld [vmem:[%s11 + $0x30] sm:$0xff]
        %v8897 = vld [vmem:[%s11 + $0x38] sm:$0xff]
        %v8898 = vld [vmem:[%s11 + $0x40] sm:$0xff]
        %v8899 = vld [vmem:[%s11 + $0x48] sm:$0xff]
        %v8900 = vld [vmem:[%s11 + $0x50] sm:$0xff]
        %v8901 = vld [vmem:[%s11 + $0x58] sm:$0xff]
        %v8902 = vld [vmem:[%s11 + $0x60] sm:$0xff]
        %v8903 = vld [vmem:[%s11 + $0x68] sm:$0xff]
        %v8904 = vld [vmem:[%s11 + $0x70] sm:$0xff]
        %v8905 = vld [vmem:[%s11 + $0x78] sm:$0xff]
        %v8906 = vld [vmem:[%s11 + $0x80] sm:$0xff]
        %v8907 = vld [vmem:[%s11 + $0x88] sm:$0xff]
        %v8908 = vld [vmem:[%s11 + $0x90] sm:$0xff]
        %v8909 = vld [vmem:[%s11 + $0x98] sm:$0xff]
        %v8910 = vld [vmem:[%s11 + $0xa0] sm:$0xff]
        %v8911 = vld [vmem:[%s11 + $0xa8] sm:$0xff]
        %v8912 = vld [vmem:[%s11 + $0xb0] sm:$0xff]
        %v8913 = vld [vmem:[%s11 + $0xb8] sm:$0xff]
        %v8914 = vld [vmem:[%s11 + $0xc0] sm:$0xff]
        %v8915 = vld [vmem:[%s11 + $0xc8] sm:$0xff]
        %v8916 = vld [vmem:[%s11 + $0xd0] sm:$0xff]
        %v8917 = vld [vmem:[%s11 + $0xd8] sm:$0xff]
        %v8918 = vld [vmem:[%s11 + $0xe0] sm:$0xff]
        %v8919 = vld [vmem:[%s11 + $0xe8] sm:$0xff]
        %v8920 = vld [vmem:[%s11 + $0xf0] sm:$0xff]
        %v8921 = vld [vmem:[%s11 + $0xf8] sm:$0xff]
        %v8922 = vld [vmem:[%s11 + $0x100] sm:$0xff]
        %v8923 = vld [vmem:[%s11 + $0x108] sm:$0xff]
        %v8924 = vld [vmem:[%s11 + $0x110] sm:$0xff]
        %v8925 = vld [vmem:[%s11 + $0x118] sm:$0xff]
        %v8926 = vld [vmem:[%s11 + $0x120] sm:$0xff]
        %v8927 = vld [vmem:[%s11 + $0x128] sm:$0xff]
        %v8928 = vld [vmem:[%s11 + $0x130] sm:$0xff]
        %v8929 = vld [vmem:[%s11 + $0x138] sm:$0xff]
        %v8930 = vld [vmem:[%s11 + $0x140] sm:$0xff]
        %v8931 = vld [vmem:[%s11 + $0x148] sm:$0xff]
        %v8932 = vld [vmem:[%s11 + $0x150] sm:$0xff]
        %v8933 = vld [vmem:[%s11 + $0x158] sm:$0xff]
        %v8934 = vld [vmem:[%s11 + $0x160] sm:$0xff]
        %v8935 = vld [vmem:[%s11 + $0x168] sm:$0xff]
        %v8936 = vld [vmem:[%s11 + $0x170] sm:$0xff]
        %v8937 = vld [vmem:[%s11 + $0x178] sm:$0xff]
        %v8938 = vld [vmem:[%s11 + $0x180] sm:$0xff]
        %v8939 = vld [vmem:[%s11 + $0x188] sm:$0xff]
        %v8940 = vld [vmem:[%s11 + $0x190] sm:$0xff]
        %v8941 = vld [vmem:[%s11 + $0x198] sm:$0xff]
        %v8942 = vld [vmem:[%s11 + $0x1a0] sm:$0xff]
        %v8943 = vld [vmem:[%s11 + $0x1a8] sm:$0xff]
        %v8944 = vld [vmem:[%s11 + $0x1b0] sm:$0xff]
        %v8945 = vld [vmem:[%s11 + $0x1b8] sm:$0xff]
        %v8946 = vld [vmem:[%s11 + $0x1c0] sm:$0xff]
        %v8947 = vld [vmem:[%s11 + $0x1c8] sm:$0xff]
        %v8948 = vld [vmem:[%s11 + $0x1d0] sm:$0xff]
        %v8949 = vld [vmem:[%s11 + $0x1d8] sm:$0xff]
        %v8950 = vld [vmem:[%s11 + $0x1e0] sm:$0xff]
        %v8951 = vld [vmem:[%s11 + $0x1e8] sm:$0xff]
        %v8952 = vld [vmem:[%s11 + $0x1f0] sm:$0xff]
        %v8953 = vld [vmem:[%s11 + $0x1f8] sm:$0xff]
        %v8954 = vmul.f32 %v8636, %v8890
        %v8955 = vmul.f32 %v8639, %v8891
        %v8956 = vmul.f32 %v8644, %v8892
        %v8957 = vmul.f32 %v8647, %v8893
        %v8958 = vmul.f32 %v8652, %v8894
        %v8959 = vmul.f32 %v8655, %v8895
        %v8960 = vmul.f32 %v8660, %v8896
        %v8961 = vmul.f32 %v8663, %v8897
        %v8962 = vmul.f32 %v8668, %v8898
        %v8963 = vmul.f32 %v8671, %v8899
        %v8964 = vmul.f32 %v8676, %v8900
        %v8965 = vmul.f32 %v8679, %v8901
        %v8966 = vmul.f32 %v8684, %v8902
        %v8967 = vmul.f32 %v8687, %v8903
        %v8968 = vmul.f32 %v8692, %v8904
        %v8969 = vmul.f32 %v8695, %v8905
        %v8970 = vmul.f32 %v8700, %v8906
        %v8971 = vmul.f32 %v8703, %v8907
        %v8972 = vmul.f32 %v8708, %v8908
        %v8973 = vmul.f32 %v8711, %v8909
        %v8974 = vmul.f32 %v8716, %v8910
        %v8975 = vmul.f32 %v8719, %v8911
        %v8976 = vmul.f32 %v8724, %v8912
        %v8977 = vmul.f32 %v8727, %v8913
        %v8978 = vmul.f32 %v8732, %v8914
        %v8979 = vmul.f32 %v8735, %v8915
        %v8980 = vmul.f32 %v8740, %v8916
        %v8981 = vmul.f32 %v8743, %v8917
        %v8982 = vmul.f32 %v8748, %v8918
        %v8983 = vmul.f32 %v8751, %v8919
        %v8984 = vmul.f32 %v8756, %v8920
        %v8985 = vmul.f32 %v8759, %v8921
        %v8986 = vmul.f32 %v8764, %v8922
        %v8987 = vmul.f32 %v8767, %v8923
        %v8988 = vmul.f32 %v8772, %v8924
        %v8989 = vmul.f32 %v8775, %v8925
        %v8990 = vmul.f32 %v8780, %v8926
        %v8991 = vmul.f32 %v8783, %v8927
        %v8992 = vmul.f32 %v8788, %v8928
        %v8993 = vmul.f32 %v8791, %v8929
        %v8994 = vmul.f32 %v8796, %v8930
        %v8995 = vmul.f32 %v8799, %v8931
        %v8996 = vmul.f32 %v8804, %v8932
        %v8997 = vmul.f32 %v8807, %v8933
        %v8998 = vmul.f32 %v8812, %v8934
        %v8999 = vmul.f32 %v8815, %v8935
        %v9000 = vmul.f32 %v8820, %v8936
        %v9001 = vmul.f32 %v8823, %v8937
        %v9002 = vmul.f32 %v8828, %v8938
        %v9003 = vmul.f32 %v8831, %v8939
        %v9004 = vmul.f32 %v8836, %v8940
        %v9005 = vmul.f32 %v8839, %v8941
        %v9006 = vmul.f32 %v8844, %v8942
        %v9007 = vmul.f32 %v8847, %v8943
        %v9008 = vmul.f32 %v8852, %v8944
        %v9009 = vmul.f32 %v8855, %v8945
        %v9010 = vmul.f32 %v8860, %v8946
        %v9011 = vmul.f32 %v8863, %v8947
        %v9012 = vmul.f32 %v8868, %v8948
        %v9013 = vmul.f32 %v8871, %v8949
        %v9014 = vmul.f32 %v8876, %v8950
        %v9015 = vmul.f32 %v8879, %v8951
        %v9016 = vmul.f32 %v8884, %v8952
        %v9017 = vmul.f32 %v8887, %v8953
        %v9018 = vld [vmem:[%s12] sm:$0xff]
        %v9019 = vld [vmem:[%s12 + $0x8] sm:$0xff]
        %v9020 = vld [vmem:[%s12 + $0x10] sm:$0xff]
        %v9021 = vld [vmem:[%s12 + $0x18] sm:$0xff]
        %v9022 = vld [vmem:[%s12 + $0x20] sm:$0xff]
        %v9023 = vld [vmem:[%s12 + $0x28] sm:$0xff]
        %v9024 = vld [vmem:[%s12 + $0x30] sm:$0xff]
        %v9025 = vld [vmem:[%s12 + $0x38] sm:$0xff]
        %v9026 = vld [vmem:[%s12 + $0x40] sm:$0xff]
        %v9027 = vld [vmem:[%s12 + $0x48] sm:$0xff]
        %v9028 = vld [vmem:[%s12 + $0x50] sm:$0xff]
        %v9029 = vld [vmem:[%s12 + $0x58] sm:$0xff]
        %v9030 = vld [vmem:[%s12 + $0x60] sm:$0xff]
        %v9031 = vld [vmem:[%s12 + $0x68] sm:$0xff]
        %v9032 = vld [vmem:[%s12 + $0x70] sm:$0xff]
        %v9033 = vld [vmem:[%s12 + $0x78] sm:$0xff]
        %v9034 = vld [vmem:[%s12 + $0x80] sm:$0xff]
        %v9035 = vld [vmem:[%s12 + $0x88] sm:$0xff]
        %v9036 = vld [vmem:[%s12 + $0x90] sm:$0xff]
        %v9037 = vld [vmem:[%s12 + $0x98] sm:$0xff]
        %v9038 = vld [vmem:[%s12 + $0xa0] sm:$0xff]
        %v9039 = vld [vmem:[%s12 + $0xa8] sm:$0xff]
        %v9040 = vld [vmem:[%s12 + $0xb0] sm:$0xff]
        %v9041 = vld [vmem:[%s12 + $0xb8] sm:$0xff]
        %v9042 = vld [vmem:[%s12 + $0xc0] sm:$0xff]
        %v9043 = vld [vmem:[%s12 + $0xc8] sm:$0xff]
        %v9044 = vld [vmem:[%s12 + $0xd0] sm:$0xff]
        %v9045 = vld [vmem:[%s12 + $0xd8] sm:$0xff]
        %v9046 = vld [vmem:[%s12 + $0xe0] sm:$0xff]
        %v9047 = vld [vmem:[%s12 + $0xe8] sm:$0xff]
        %v9048 = vld [vmem:[%s12 + $0xf0] sm:$0xff]
        %v9049 = vld [vmem:[%s12 + $0xf8] sm:$0xff]
        %v9050 = vld [vmem:[%s12 + $0x100] sm:$0xff]
        %v9051 = vld [vmem:[%s12 + $0x108] sm:$0xff]
        %v9052 = vld [vmem:[%s12 + $0x110] sm:$0xff]
        %v9053 = vld [vmem:[%s12 + $0x118] sm:$0xff]
        %v9054 = vld [vmem:[%s12 + $0x120] sm:$0xff]
        %v9055 = vld [vmem:[%s12 + $0x128] sm:$0xff]
        %v9056 = vld [vmem:[%s12 + $0x130] sm:$0xff]
        %v9057 = vld [vmem:[%s12 + $0x138] sm:$0xff]
        %v9058 = vld [vmem:[%s12 + $0x140] sm:$0xff]
        %v9059 = vld [vmem:[%s12 + $0x148] sm:$0xff]
        %v9060 = vld [vmem:[%s12 + $0x150] sm:$0xff]
        %v9061 = vld [vmem:[%s12 + $0x158] sm:$0xff]
        %v9062 = vld [vmem:[%s12 + $0x160] sm:$0xff]
        %v9063 = vld [vmem:[%s12 + $0x168] sm:$0xff]
        %v9064 = vld [vmem:[%s12 + $0x170] sm:$0xff]
        %v9065 = vld [vmem:[%s12 + $0x178] sm:$0xff]
        %v9066 = vld [vmem:[%s12 + $0x180] sm:$0xff]
        %v9067 = vld [vmem:[%s12 + $0x188] sm:$0xff]
        %v9068 = vld [vmem:[%s12 + $0x190] sm:$0xff]
        %v9069 = vld [vmem:[%s12 + $0x198] sm:$0xff]
        %v9070 = vld [vmem:[%s12 + $0x1a0] sm:$0xff]
        %v9071 = vld [vmem:[%s12 + $0x1a8] sm:$0xff]
        %v9072 = vld [vmem:[%s12 + $0x1b0] sm:$0xff]
        %v9073 = vld [vmem:[%s12 + $0x1b8] sm:$0xff]
        %v9074 = vld [vmem:[%s12 + $0x1c0] sm:$0xff]
        %v9075 = vld [vmem:[%s12 + $0x1c8] sm:$0xff]
        %v9076 = vld [vmem:[%s12 + $0x1d0] sm:$0xff]
        %v9077 = vld [vmem:[%s12 + $0x1d8] sm:$0xff]
        %v9078 = vld [vmem:[%s12 + $0x1e0] sm:$0xff]
        %v9079 = vld [vmem:[%s12 + $0x1e8] sm:$0xff]
        %v9080 = vld [vmem:[%s12 + $0x1f0] sm:$0xff]
        %v9081 = vld [vmem:[%s12 + $0x1f8] sm:$0xff]
        %v9082 = vadd.f32 %v8954, %v9018
        %v9083 = vadd.f32 %v8955, %v9019
        %v9084 = vadd.f32 %v8956, %v9020
        %v9085 = vadd.f32 %v8957, %v9021
        %v9086 = vadd.f32 %v8958, %v9022
        %v9087 = vadd.f32 %v8959, %v9023
        %v9088 = vadd.f32 %v8960, %v9024
        %v9089 = vadd.f32 %v8961, %v9025
        %v9090 = vadd.f32 %v8962, %v9026
        %v9091 = vadd.f32 %v8963, %v9027
        %v9092 = vadd.f32 %v8964, %v9028
        %v9093 = vadd.f32 %v8965, %v9029
        %v9094 = vadd.f32 %v8966, %v9030
        %v9095 = vadd.f32 %v8967, %v9031
        %v9096 = vadd.f32 %v8968, %v9032
        %v9097 = vadd.f32 %v8969, %v9033
        %v9098 = vadd.f32 %v8970, %v9034
        %v9099 = vadd.f32 %v8971, %v9035
        %v9100 = vadd.f32 %v8972, %v9036
        %v9101 = vadd.f32 %v8973, %v9037
        %v9102 = vadd.f32 %v8974, %v9038
        %v9103 = vadd.f32 %v8975, %v9039
        %v9104 = vadd.f32 %v8976, %v9040
        %v9105 = vadd.f32 %v8977, %v9041
        %v9106 = vadd.f32 %v8978, %v9042
        %v9107 = vadd.f32 %v8979, %v9043
        %v9108 = vadd.f32 %v8980, %v9044
        %v9109 = vadd.f32 %v8981, %v9045
        %v9110 = vadd.f32 %v8982, %v9046
        %v9111 = vadd.f32 %v8983, %v9047
        %v9112 = vadd.f32 %v8984, %v9048
        %v9113 = vadd.f32 %v8985, %v9049
        %v9114 = vadd.f32 %v8986, %v9050
        %v9115 = vadd.f32 %v8987, %v9051
        %v9116 = vadd.f32 %v8988, %v9052
        %v9117 = vadd.f32 %v8989, %v9053
        %v9118 = vadd.f32 %v8990, %v9054
        %v9119 = vadd.f32 %v8991, %v9055
        %v9120 = vadd.f32 %v8992, %v9056
        %v9121 = vadd.f32 %v8993, %v9057
        %v9122 = vadd.f32 %v8994, %v9058
        %v9123 = vadd.f32 %v8995, %v9059
        %v9124 = vadd.f32 %v8996, %v9060
        %v9125 = vadd.f32 %v8997, %v9061
        %v9126 = vadd.f32 %v8998, %v9062
        %v9127 = vadd.f32 %v8999, %v9063
        %v9128 = vadd.f32 %v9000, %v9064
        %v9129 = vadd.f32 %v9001, %v9065
        %v9130 = vadd.f32 %v9002, %v9066
        %v9131 = vadd.f32 %v9003, %v9067
        %v9132 = vadd.f32 %v9004, %v9068
        %v9133 = vadd.f32 %v9005, %v9069
        %v9134 = vadd.f32 %v9006, %v9070
        %v9135 = vadd.f32 %v9007, %v9071
        %v9136 = vadd.f32 %v9008, %v9072
        %v9137 = vadd.f32 %v9009, %v9073
        %v9138 = vadd.f32 %v9010, %v9074
        %v9139 = vadd.f32 %v9011, %v9075
        %v9140 = vadd.f32 %v9012, %v9076
        %v9141 = vadd.f32 %v9013, %v9077
        %v9142 = vadd.f32 %v9014, %v9078
        %v9143 = vadd.f32 %v9015, %v9079
        %v9144 = vadd.f32 %v9016, %v9080
        %v9145 = vadd.f32 %v9017, %v9081
        %v9146 = vmax.f32 %v9082, 0.0
        %v9147 = vmax.f32 %v9083, 0.0
        %v9148 = vmax.f32 %v9084, 0.0
        %v9149 = vmax.f32 %v9085, 0.0
        %v9150 = vmax.f32 %v9086, 0.0
        %v9151 = vmax.f32 %v9087, 0.0
        %v9152 = vmax.f32 %v9088, 0.0
        %v9153 = vmax.f32 %v9089, 0.0
        %v9154 = vmax.f32 %v9090, 0.0
        %v9155 = vmax.f32 %v9091, 0.0
        %v9156 = vmax.f32 %v9092, 0.0
        %v9157 = vmax.f32 %v9093, 0.0
        %v9158 = vmax.f32 %v9094, 0.0
        %v9159 = vmax.f32 %v9095, 0.0
        %v9160 = vmax.f32 %v9096, 0.0
        %v9161 = vmax.f32 %v9097, 0.0
        %v9162 = vmax.f32 %v9098, 0.0
        %v9163 = vmax.f32 %v9099, 0.0
        %v9164 = vmax.f32 %v9100, 0.0
        %v9165 = vmax.f32 %v9101, 0.0
        %v9166 = vmax.f32 %v9102, 0.0
        %v9167 = vmax.f32 %v9103, 0.0
        %v9168 = vmax.f32 %v9104, 0.0
        %v9169 = vmax.f32 %v9105, 0.0
        %v9170 = vmax.f32 %v9106, 0.0
        %v9171 = vmax.f32 %v9107, 0.0
        %v9172 = vmax.f32 %v9108, 0.0
        %v9173 = vmax.f32 %v9109, 0.0
        %v9174 = vmax.f32 %v9110, 0.0
        %v9175 = vmax.f32 %v9111, 0.0
        %v9176 = vmax.f32 %v9112, 0.0
        %v9177 = vmax.f32 %v9113, 0.0
        %v9178 = vmax.f32 %v9114, 0.0
        %v9179 = vmax.f32 %v9115, 0.0
        %v9180 = vmax.f32 %v9116, 0.0
        %v9181 = vmax.f32 %v9117, 0.0
        %v9182 = vmax.f32 %v9118, 0.0
        %v9183 = vmax.f32 %v9119, 0.0
        %v9184 = vmax.f32 %v9120, 0.0
        %v9185 = vmax.f32 %v9121, 0.0
        %v9186 = vmax.f32 %v9122, 0.0
        %v9187 = vmax.f32 %v9123, 0.0
        %v9188 = vmax.f32 %v9124, 0.0
        %v9189 = vmax.f32 %v9125, 0.0
        %v9190 = vmax.f32 %v9126, 0.0
        %v9191 = vmax.f32 %v9127, 0.0
        %v9192 = vmax.f32 %v9128, 0.0
        %v9193 = vmax.f32 %v9129, 0.0
        %v9194 = vmax.f32 %v9130, 0.0
        %v9195 = vmax.f32 %v9131, 0.0
        %v9196 = vmax.f32 %v9132, 0.0
        %v9197 = vmax.f32 %v9133, 0.0
        %v9198 = vmax.f32 %v9134, 0.0
        %v9199 = vmax.f32 %v9135, 0.0
        %v9200 = vmax.f32 %v9136, 0.0
        %v9201 = vmax.f32 %v9137, 0.0
        %v9202 = vmax.f32 %v9138, 0.0
        %v9203 = vmax.f32 %v9139, 0.0
        %v9204 = vmax.f32 %v9140, 0.0
        %v9205 = vmax.f32 %v9141, 0.0
        %v9206 = vmax.f32 %v9142, 0.0
        %v9207 = vmax.f32 %v9143, 0.0
        %v9208 = vmax.f32 %v9144, 0.0
        %v9209 = vmax.f32 %v9145, 0.0
        %v9210 = vld [vmem:[%s13] sm:$0xff]
        %v9211 = vld [vmem:[%s13 + $0x8] sm:$0xff]
        %v9212 = vld [vmem:[%s13 + $0x10] sm:$0xff]
        %v9213 = vld [vmem:[%s13 + $0x18] sm:$0xff]
        %v9214 = vld [vmem:[%s13 + $0x20] sm:$0xff]
        %v9215 = vld [vmem:[%s13 + $0x28] sm:$0xff]
        %v9216 = vld [vmem:[%s13 + $0x30] sm:$0xff]
        %v9217 = vld [vmem:[%s13 + $0x38] sm:$0xff]
        %v9218 = vld [vmem:[%s13 + $0x40] sm:$0xff]
        %v9219 = vld [vmem:[%s13 + $0x48] sm:$0xff]
        %v9220 = vld [vmem:[%s13 + $0x50] sm:$0xff]
        %v9221 = vld [vmem:[%s13 + $0x58] sm:$0xff]
        %v9222 = vld [vmem:[%s13 + $0x60] sm:$0xff]
        %v9223 = vld [vmem:[%s13 + $0x68] sm:$0xff]
        %v9224 = vld [vmem:[%s13 + $0x70] sm:$0xff]
        %v9225 = vld [vmem:[%s13 + $0x78] sm:$0xff]
        %v9226 = vld [vmem:[%s13 + $0x80] sm:$0xff]
        %v9227 = vld [vmem:[%s13 + $0x88] sm:$0xff]
        %v9228 = vld [vmem:[%s13 + $0x90] sm:$0xff]
        %v9229 = vld [vmem:[%s13 + $0x98] sm:$0xff]
        %v9230 = vld [vmem:[%s13 + $0xa0] sm:$0xff]
        %v9231 = vld [vmem:[%s13 + $0xa8] sm:$0xff]
        %v9232 = vld [vmem:[%s13 + $0xb0] sm:$0xff]
        %v9233 = vld [vmem:[%s13 + $0xb8] sm:$0xff]
        %v9234 = vld [vmem:[%s13 + $0xc0] sm:$0xff]
        %v9235 = vld [vmem:[%s13 + $0xc8] sm:$0xff]
        %v9236 = vld [vmem:[%s13 + $0xd0] sm:$0xff]
        %v9237 = vld [vmem:[%s13 + $0xd8] sm:$0xff]
        %v9238 = vld [vmem:[%s13 + $0xe0] sm:$0xff]
        %v9239 = vld [vmem:[%s13 + $0xe8] sm:$0xff]
        %v9240 = vld [vmem:[%s13 + $0xf0] sm:$0xff]
        %v9241 = vld [vmem:[%s13 + $0xf8] sm:$0xff]
        %v9242 = vld [vmem:[%s13 + $0x100] sm:$0xff]
        %v9243 = vld [vmem:[%s13 + $0x108] sm:$0xff]
        %v9244 = vld [vmem:[%s13 + $0x110] sm:$0xff]
        %v9245 = vld [vmem:[%s13 + $0x118] sm:$0xff]
        %v9246 = vld [vmem:[%s13 + $0x120] sm:$0xff]
        %v9247 = vld [vmem:[%s13 + $0x128] sm:$0xff]
        %v9248 = vld [vmem:[%s13 + $0x130] sm:$0xff]
        %v9249 = vld [vmem:[%s13 + $0x138] sm:$0xff]
        %v9250 = vld [vmem:[%s13 + $0x140] sm:$0xff]
        %v9251 = vld [vmem:[%s13 + $0x148] sm:$0xff]
        %v9252 = vld [vmem:[%s13 + $0x150] sm:$0xff]
        %v9253 = vld [vmem:[%s13 + $0x158] sm:$0xff]
        %v9254 = vld [vmem:[%s13 + $0x160] sm:$0xff]
        %v9255 = vld [vmem:[%s13 + $0x168] sm:$0xff]
        %v9256 = vld [vmem:[%s13 + $0x170] sm:$0xff]
        %v9257 = vld [vmem:[%s13 + $0x178] sm:$0xff]
        %v9258 = vld [vmem:[%s13 + $0x180] sm:$0xff]
        %v9259 = vld [vmem:[%s13 + $0x188] sm:$0xff]
        %v9260 = vld [vmem:[%s13 + $0x190] sm:$0xff]
        %v9261 = vld [vmem:[%s13 + $0x198] sm:$0xff]
        %v9262 = vld [vmem:[%s13 + $0x1a0] sm:$0xff]
        %v9263 = vld [vmem:[%s13 + $0x1a8] sm:$0xff]
        %v9264 = vld [vmem:[%s13 + $0x1b0] sm:$0xff]
        %v9265 = vld [vmem:[%s13 + $0x1b8] sm:$0xff]
        %v9266 = vld [vmem:[%s13 + $0x1c0] sm:$0xff]
        %v9267 = vld [vmem:[%s13 + $0x1c8] sm:$0xff]
        %v9268 = vld [vmem:[%s13 + $0x1d0] sm:$0xff]
        %v9269 = vld [vmem:[%s13 + $0x1d8] sm:$0xff]
        %v9270 = vld [vmem:[%s13 + $0x1e0] sm:$0xff]
        %v9271 = vld [vmem:[%s13 + $0x1e8] sm:$0xff]
        %v9272 = vld [vmem:[%s13 + $0x1f0] sm:$0xff]
        %v9273 = vld [vmem:[%s13 + $0x1f8] sm:$0xff]
        %v9274 = vpack.c.bf16 %v9147, %v9146
        %v9275 = vpack.c.bf16 %v9149, %v9148
        %v9276 = vpack.c.bf16 %v9151, %v9150
        %v9277 = vpack.c.bf16 %v9153, %v9152
        %v9278 = vpack.c.bf16 %v9155, %v9154
        %v9279 = vpack.c.bf16 %v9157, %v9156
        %v9280 = vpack.c.bf16 %v9159, %v9158
        %v9281 = vpack.c.bf16 %v9161, %v9160
        %v9282 = vpack.c.bf16 %v9163, %v9162
        %v9283 = vpack.c.bf16 %v9165, %v9164
        %v9284 = vpack.c.bf16 %v9167, %v9166
        %v9285 = vpack.c.bf16 %v9169, %v9168
        %v9286 = vpack.c.bf16 %v9171, %v9170
        %v9287 = vpack.c.bf16 %v9173, %v9172
        %v9288 = vpack.c.bf16 %v9175, %v9174
        %v9289 = vpack.c.bf16 %v9177, %v9176
        %v9290 = vpack.c.bf16 %v9179, %v9178
        %v9291 = vpack.c.bf16 %v9181, %v9180
        %v9292 = vpack.c.bf16 %v9183, %v9182
        %v9293 = vpack.c.bf16 %v9185, %v9184
        %v9294 = vpack.c.bf16 %v9187, %v9186
        %v9295 = vpack.c.bf16 %v9189, %v9188
        %v9296 = vpack.c.bf16 %v9191, %v9190
        %v9297 = vpack.c.bf16 %v9193, %v9192
        %v9298 = vpack.c.bf16 %v9195, %v9194
        %v9299 = vpack.c.bf16 %v9197, %v9196
        %v9300 = vpack.c.bf16 %v9199, %v9198
        %v9301 = vpack.c.bf16 %v9201, %v9200
        %v9302 = vpack.c.bf16 %v9203, %v9202
        %v9303 = vpack.c.bf16 %v9205, %v9204
        %v9304 = vpack.c.bf16 %v9207, %v9206
        %v9305 = vpack.c.bf16 %v9209, %v9208
        %v9370 = vunpack.c.l.b16 %v9210
        %v9371 = vunpack.c.h.b16 %v9210
        %v9372 = vunpack.c.l.b16 %v9211
        %v9373 = vunpack.c.h.b16 %v9211
        %v9374 = vunpack.c.l.b16 %v9212
        %v9375 = vunpack.c.h.b16 %v9212
        %v9376 = vunpack.c.l.b16 %v9213
        %v9377 = vunpack.c.h.b16 %v9213
        %v9378 = vunpack.c.l.b16 %v9214
        %v9379 = vunpack.c.h.b16 %v9214
        %v9380 = vunpack.c.l.b16 %v9215
        %v9381 = vunpack.c.h.b16 %v9215
        %v9382 = vunpack.c.l.b16 %v9216
        %v9383 = vunpack.c.h.b16 %v9216
        %v9384 = vunpack.c.l.b16 %v9217
        %v9385 = vunpack.c.h.b16 %v9217
        %v9386 = vunpack.c.l.b16 %v9218
        %v9387 = vunpack.c.h.b16 %v9218
        %v9388 = vunpack.c.l.b16 %v9219
        %v9389 = vunpack.c.h.b16 %v9219
        %v9390 = vunpack.c.l.b16 %v9220
        %v9391 = vunpack.c.h.b16 %v9220
        %v9392 = vunpack.c.l.b16 %v9221
        %v9393 = vunpack.c.h.b16 %v9221
        %v9394 = vunpack.c.l.b16 %v9222
        %v9395 = vunpack.c.h.b16 %v9222
        %v9396 = vunpack.c.l.b16 %v9223
        %v9397 = vunpack.c.h.b16 %v9223
        %v9398 = vunpack.c.l.b16 %v9224
        %v9399 = vunpack.c.h.b16 %v9224
        %v9400 = vunpack.c.l.b16 %v9225
        %v9401 = vunpack.c.h.b16 %v9225
        %v9402 = vunpack.c.l.b16 %v9226
        %v9403 = vunpack.c.h.b16 %v9226
        %v9404 = vunpack.c.l.b16 %v9227
        %v9405 = vunpack.c.h.b16 %v9227
        %v9406 = vunpack.c.l.b16 %v9228
        %v9407 = vunpack.c.h.b16 %v9228
        %v9408 = vunpack.c.l.b16 %v9229
        %v9409 = vunpack.c.h.b16 %v9229
        %v9410 = vunpack.c.l.b16 %v9230
        %v9411 = vunpack.c.h.b16 %v9230
        %v9412 = vunpack.c.l.b16 %v9231
        %v9413 = vunpack.c.h.b16 %v9231
        %v9414 = vunpack.c.l.b16 %v9232
        %v9415 = vunpack.c.h.b16 %v9232
        %v9416 = vunpack.c.l.b16 %v9233
        %v9417 = vunpack.c.h.b16 %v9233
        %v9418 = vunpack.c.l.b16 %v9234
        %v9419 = vunpack.c.h.b16 %v9234
        %v9420 = vunpack.c.l.b16 %v9235
        %v9421 = vunpack.c.h.b16 %v9235
        %v9422 = vunpack.c.l.b16 %v9236
        %v9423 = vunpack.c.h.b16 %v9236
        %v9424 = vunpack.c.l.b16 %v9237
        %v9425 = vunpack.c.h.b16 %v9237
        %v9426 = vunpack.c.l.b16 %v9238
        %v9427 = vunpack.c.h.b16 %v9238
        %v9428 = vunpack.c.l.b16 %v9239
        %v9429 = vunpack.c.h.b16 %v9239
        %v9430 = vunpack.c.l.b16 %v9240
        %v9431 = vunpack.c.h.b16 %v9240
        %v9432 = vunpack.c.l.b16 %v9241
        %v9433 = vunpack.c.h.b16 %v9241
        %v9434 = vunpack.c.l.b16 %v9242
        %v9435 = vunpack.c.h.b16 %v9242
        %v9436 = vunpack.c.l.b16 %v9243
        %v9437 = vunpack.c.h.b16 %v9243
        %v9438 = vunpack.c.l.b16 %v9244
        %v9439 = vunpack.c.h.b16 %v9244
        %v9440 = vunpack.c.l.b16 %v9245
        %v9441 = vunpack.c.h.b16 %v9245
        %v9442 = vunpack.c.l.b16 %v9246
        %v9443 = vunpack.c.h.b16 %v9246
        %v9444 = vunpack.c.l.b16 %v9247
        %v9445 = vunpack.c.h.b16 %v9247
        %v9446 = vunpack.c.l.b16 %v9248
        %v9447 = vunpack.c.h.b16 %v9248
        %v9448 = vunpack.c.l.b16 %v9249
        %v9449 = vunpack.c.h.b16 %v9249
        %v9450 = vunpack.c.l.b16 %v9250
        %v9451 = vunpack.c.h.b16 %v9250
        %v9452 = vunpack.c.l.b16 %v9251
        %v9453 = vunpack.c.h.b16 %v9251
        %v9454 = vunpack.c.l.b16 %v9252
        %v9455 = vunpack.c.h.b16 %v9252
        %v9456 = vunpack.c.l.b16 %v9253
        %v9457 = vunpack.c.h.b16 %v9253
        %v9458 = vunpack.c.l.b16 %v9254
        %v9459 = vunpack.c.h.b16 %v9254
        %v9460 = vunpack.c.l.b16 %v9255
        %v9461 = vunpack.c.h.b16 %v9255
        %v9462 = vunpack.c.l.b16 %v9256
        %v9463 = vunpack.c.h.b16 %v9256
        %v9464 = vunpack.c.l.b16 %v9257
        %v9465 = vunpack.c.h.b16 %v9257
        %v9466 = vunpack.c.l.b16 %v9258
        %v9467 = vunpack.c.h.b16 %v9258
        %v9468 = vunpack.c.l.b16 %v9259
        %v9469 = vunpack.c.h.b16 %v9259
        %v9470 = vunpack.c.l.b16 %v9260
        %v9471 = vunpack.c.h.b16 %v9260
        %v9472 = vunpack.c.l.b16 %v9261
        %v9473 = vunpack.c.h.b16 %v9261
        %v9474 = vunpack.c.l.b16 %v9262
        %v9475 = vunpack.c.h.b16 %v9262
        %v9476 = vunpack.c.l.b16 %v9263
        %v9477 = vunpack.c.h.b16 %v9263
        %v9478 = vunpack.c.l.b16 %v9264
        %v9479 = vunpack.c.h.b16 %v9264
        %v9480 = vunpack.c.l.b16 %v9265
        %v9481 = vunpack.c.h.b16 %v9265
        %v9482 = vunpack.c.l.b16 %v9266
        %v9483 = vunpack.c.h.b16 %v9266
        %v9484 = vunpack.c.l.b16 %v9267
        %v9485 = vunpack.c.h.b16 %v9267
        %v9486 = vunpack.c.l.b16 %v9268
        %v9487 = vunpack.c.h.b16 %v9268
        %v9488 = vunpack.c.l.b16 %v9269
        %v9489 = vunpack.c.h.b16 %v9269
        %v9490 = vunpack.c.l.b16 %v9270
        %v9491 = vunpack.c.h.b16 %v9270
        %v9492 = vunpack.c.l.b16 %v9271
        %v9493 = vunpack.c.h.b16 %v9271
        %v9494 = vunpack.c.l.b16 %v9272
        %v9495 = vunpack.c.h.b16 %v9272
        %v9496 = vunpack.c.l.b16 %v9273
        %v9497 = vunpack.c.h.b16 %v9273
        %v9498 = vpack.c.b16 %v9374, %v9370
        %v9499 = vpack.c.b16 %v9375, %v9371
        %v9500 = vpack.c.b16 %v9376, %v9372
        %v9501 = vpack.c.b16 %v9377, %v9373
        %v9502 = vpack.c.b16 %v9382, %v9378
        %v9503 = vpack.c.b16 %v9383, %v9379
        %v9504 = vpack.c.b16 %v9384, %v9380
        %v9505 = vpack.c.b16 %v9385, %v9381
        %v9506 = vpack.c.b16 %v9390, %v9386
        %v9507 = vpack.c.b16 %v9391, %v9387
        %v9508 = vpack.c.b16 %v9392, %v9388
        %v9509 = vpack.c.b16 %v9393, %v9389
        %v9510 = vpack.c.b16 %v9398, %v9394
        %v9511 = vpack.c.b16 %v9399, %v9395
        %v9512 = vpack.c.b16 %v9400, %v9396
        %v9513 = vpack.c.b16 %v9401, %v9397
        %v9514 = vpack.c.b16 %v9406, %v9402
        %v9515 = vpack.c.b16 %v9407, %v9403
        %v9516 = vpack.c.b16 %v9408, %v9404
        %v9517 = vpack.c.b16 %v9409, %v9405
        %v9518 = vpack.c.b16 %v9414, %v9410
        %v9519 = vpack.c.b16 %v9415, %v9411
        %v9520 = vpack.c.b16 %v9416, %v9412
        %v9521 = vpack.c.b16 %v9417, %v9413
        %v9522 = vpack.c.b16 %v9422, %v9418
        %v9523 = vpack.c.b16 %v9423, %v9419
        %v9524 = vpack.c.b16 %v9424, %v9420
        %v9525 = vpack.c.b16 %v9425, %v9421
        %v9526 = vpack.c.b16 %v9430, %v9426
        %v9527 = vpack.c.b16 %v9431, %v9427
        %v9528 = vpack.c.b16 %v9432, %v9428
        %v9529 = vpack.c.b16 %v9433, %v9429
        %v9530 = vpack.c.b16 %v9438, %v9434
        %v9531 = vpack.c.b16 %v9439, %v9435
        %v9532 = vpack.c.b16 %v9440, %v9436
        %v9533 = vpack.c.b16 %v9441, %v9437
        %v9534 = vpack.c.b16 %v9446, %v9442
        %v9535 = vpack.c.b16 %v9447, %v9443
        %v9536 = vpack.c.b16 %v9448, %v9444
        %v9537 = vpack.c.b16 %v9449, %v9445
        %v9538 = vpack.c.b16 %v9454, %v9450
        %v9539 = vpack.c.b16 %v9455, %v9451
        %v9540 = vpack.c.b16 %v9456, %v9452
        %v9541 = vpack.c.b16 %v9457, %v9453
        %v9542 = vpack.c.b16 %v9462, %v9458
        %v9543 = vpack.c.b16 %v9463, %v9459
        %v9544 = vpack.c.b16 %v9464, %v9460
        %v9545 = vpack.c.b16 %v9465, %v9461
        %v9546 = vpack.c.b16 %v9470, %v9466
        %v9547 = vpack.c.b16 %v9471, %v9467
        %v9548 = vpack.c.b16 %v9472, %v9468
        %v9549 = vpack.c.b16 %v9473, %v9469
        %v9550 = vpack.c.b16 %v9478, %v9474
        %v9551 = vpack.c.b16 %v9479, %v9475
        %v9552 = vpack.c.b16 %v9480, %v9476
        %v9553 = vpack.c.b16 %v9481, %v9477
        %v9554 = vpack.c.b16 %v9486, %v9482
        %v9555 = vpack.c.b16 %v9487, %v9483
        %v9556 = vpack.c.b16 %v9488, %v9484
        %v9557 = vpack.c.b16 %v9489, %v9485
        %v9558 = vpack.c.b16 %v9494, %v9490
        %v9559 = vpack.c.b16 %v9495, %v9491
        %v9560 = vpack.c.b16 %v9496, %v9492
        %v9561 = vpack.c.b16 %v9497, %v9493
        %9626 = vmatprep.subr.bf16.mxu0 0
        %9627 = vmatpush1.bf16.msra.mxu0 %v9281
        %9628 = vmatprep.subr.bf16.mxu0 0
        %9629 = vmatpush1.bf16.msra.mxu0 %v9280
        %9630 = vmatprep.subr.bf16.mxu0 0
        %9631 = vmatpush1.bf16.msra.mxu0 %v9279
        %9632 = vmatprep.subr.bf16.mxu0 0
        %9633 = vmatpush1.bf16.msra.mxu0 %v9278
        %9634 = vmatprep.subr.bf16.mxu0 0
        %9635 = vmatpush1.bf16.msra.mxu0 %v9277
        %9636 = vmatprep.subr.bf16.mxu0 0
        %9637 = vmatpush1.bf16.msra.mxu0 %v9276
        %9638 = vmatprep.subr.bf16.mxu0 0
        %9639 = vmatpush1.bf16.msra.mxu0 %v9275
        %9640 = vmatprep.subr.bf16.mxu0 0
        %9641 = vmatpush1.bf16.msra.mxu0 %v9274
        %9642 = vmatprep.subr.bf16.mxu0 0
        %9643 = vmatpush2.bf16.msra.mxu0 %v9289
        %9644 = vmatprep.subr.bf16.mxu0 0
        %9645 = vmatpush2.bf16.msra.mxu0 %v9288
        %9646 = vmatprep.subr.bf16.mxu0 0
        %9647 = vmatpush2.bf16.msra.mxu0 %v9287
        %9648 = vmatprep.subr.bf16.mxu0 0
        %9649 = vmatpush2.bf16.msra.mxu0 %v9286
        %9650 = vmatprep.subr.bf16.mxu0 0
        %9651 = vmatpush2.bf16.msra.mxu0 %v9285
        %9652 = vmatprep.subr.bf16.mxu0 0
        %9653 = vmatpush2.bf16.msra.mxu0 %v9284
        %9654 = vmatprep.subr.bf16.mxu0 0
        %9655 = vmatpush2.bf16.msra.mxu0 %v9283
        %9656 = vmatprep.subr.bf16.mxu0 0
        %9657 = vmatpush2.bf16.msra.mxu0 %v9282
        %9658 = vmatprep.mubr.bf16.mxu0 %v9499
        %9659 = vmatmul.mubr.bf16.gmra.mxu0 %v9498
        %v9660 = vpop.f32.mrf.mxu0
        %v9661 = vadd.f32 0.0, %v9660
        %v9662 = vpop.f32.mrf.mxu0
        %v9663 = vpop.f32.mrf.mxu0
        %v9664 = vadd.f32 0.0, %v9663
        %v9665 = vpop.f32.mrf.mxu0
        %9666 = vmatprep.mubr.bf16.mxu0 %v9503
        %9667 = vmatmul.mubr.bf16.gmra.mxu0 %v9502
        %v9668 = vpop.f32.mrf.mxu0
        %v9669 = vadd.f32 0.0, %v9668
        %v9670 = vpop.f32.mrf.mxu0
        %v9671 = vpop.f32.mrf.mxu0
        %v9672 = vadd.f32 0.0, %v9671
        %v9673 = vpop.f32.mrf.mxu0
        %9674 = vmatprep.mubr.bf16.mxu0 %v9507
        %9675 = vmatmul.mubr.bf16.gmra.mxu0 %v9506
        %v9676 = vpop.f32.mrf.mxu0
        %v9677 = vadd.f32 0.0, %v9676
        %v9678 = vpop.f32.mrf.mxu0
        %v9679 = vpop.f32.mrf.mxu0
        %v9680 = vadd.f32 0.0, %v9679
        %v9681 = vpop.f32.mrf.mxu0
        %9682 = vmatprep.mubr.bf16.mxu0 %v9511
        %9683 = vmatmul.mubr.bf16.gmra.mxu0 %v9510
        %v9684 = vpop.f32.mrf.mxu0
        %v9685 = vadd.f32 0.0, %v9684
        %v9686 = vpop.f32.mrf.mxu0
        %v9687 = vpop.f32.mrf.mxu0
        %v9688 = vadd.f32 0.0, %v9687
        %v9689 = vpop.f32.mrf.mxu0
        %9690 = vmatprep.mubr.bf16.mxu0 %v9515
        %9691 = vmatmul.mubr.bf16.gmra.mxu0 %v9514
        %v9692 = vpop.f32.mrf.mxu0
        %v9693 = vadd.f32 0.0, %v9692
        %v9694 = vpop.f32.mrf.mxu0
        %v9695 = vpop.f32.mrf.mxu0
        %v9696 = vadd.f32 0.0, %v9695
        %v9697 = vpop.f32.mrf.mxu0
        %9698 = vmatprep.mubr.bf16.mxu0 %v9519
        %9699 = vmatmul.mubr.bf16.gmra.mxu0 %v9518
        %v9700 = vpop.f32.mrf.mxu0
        %v9701 = vadd.f32 0.0, %v9700
        %v9702 = vpop.f32.mrf.mxu0
        %v9703 = vpop.f32.mrf.mxu0
        %v9704 = vadd.f32 0.0, %v9703
        %v9705 = vpop.f32.mrf.mxu0
        %9706 = vmatprep.mubr.bf16.mxu0 %v9523
        %9707 = vmatmul.mubr.bf16.gmra.mxu0 %v9522
        %v9708 = vpop.f32.mrf.mxu0
        %v9709 = vadd.f32 0.0, %v9708
        %v9710 = vpop.f32.mrf.mxu0
        %v9711 = vpop.f32.mrf.mxu0
        %v9712 = vadd.f32 0.0, %v9711
        %v9713 = vpop.f32.mrf.mxu0
        %9714 = vmatprep.mubr.bf16.mxu0 %v9527
        %9715 = vmatmul.mubr.bf16.gmra.mxu0 %v9526
        %v9716 = vpop.f32.mrf.mxu0
        %v9717 = vadd.f32 0.0, %v9716
        %v9718 = vpop.f32.mrf.mxu0
        %v9719 = vpop.f32.mrf.mxu0
        %v9720 = vadd.f32 0.0, %v9719
        %v9721 = vpop.f32.mrf.mxu0
        %9722 = vmatprep.mubr.bf16.mxu0 %v9531
        %9723 = vmatmul.mubr.bf16.gmra.mxu0 %v9530
        %v9724 = vpop.f32.mrf.mxu0
        %v9725 = vadd.f32 0.0, %v9724
        %v9726 = vpop.f32.mrf.mxu0
        %v9727 = vpop.f32.mrf.mxu0
        %v9728 = vadd.f32 0.0, %v9727
        %v9729 = vpop.f32.mrf.mxu0
        %9730 = vmatprep.mubr.bf16.mxu0 %v9535
        %9731 = vmatmul.mubr.bf16.gmra.mxu0 %v9534
        %v9732 = vpop.f32.mrf.mxu0
        %v9733 = vadd.f32 0.0, %v9732
        %v9734 = vpop.f32.mrf.mxu0
        %v9735 = vpop.f32.mrf.mxu0
        %v9736 = vadd.f32 0.0, %v9735
        %v9737 = vpop.f32.mrf.mxu0
        %9738 = vmatprep.mubr.bf16.mxu0 %v9539
        %9739 = vmatmul.mubr.bf16.gmra.mxu0 %v9538
        %v9740 = vpop.f32.mrf.mxu0
        %v9741 = vadd.f32 0.0, %v9740
        %v9742 = vpop.f32.mrf.mxu0
        %v9743 = vpop.f32.mrf.mxu0
        %v9744 = vadd.f32 0.0, %v9743
        %v9745 = vpop.f32.mrf.mxu0
        %9746 = vmatprep.mubr.bf16.mxu0 %v9543
        %9747 = vmatmul.mubr.bf16.gmra.mxu0 %v9542
        %v9748 = vpop.f32.mrf.mxu0
        %v9749 = vadd.f32 0.0, %v9748
        %v9750 = vpop.f32.mrf.mxu0
        %v9751 = vpop.f32.mrf.mxu0
        %v9752 = vadd.f32 0.0, %v9751
        %v9753 = vpop.f32.mrf.mxu0
        %9754 = vmatprep.mubr.bf16.mxu0 %v9547
        %9755 = vmatmul.mubr.bf16.gmra.mxu0 %v9546
        %v9756 = vpop.f32.mrf.mxu0
        %v9757 = vadd.f32 0.0, %v9756
        %v9758 = vpop.f32.mrf.mxu0
        %v9759 = vpop.f32.mrf.mxu0
        %v9760 = vadd.f32 0.0, %v9759
        %v9761 = vpop.f32.mrf.mxu0
        %9762 = vmatprep.mubr.bf16.mxu0 %v9551
        %9763 = vmatmul.mubr.bf16.gmra.mxu0 %v9550
        %v9764 = vpop.f32.mrf.mxu0
        %v9765 = vadd.f32 0.0, %v9764
        %v9766 = vpop.f32.mrf.mxu0
        %v9767 = vpop.f32.mrf.mxu0
        %v9768 = vadd.f32 0.0, %v9767
        %v9769 = vpop.f32.mrf.mxu0
        %9770 = vmatprep.mubr.bf16.mxu0 %v9555
        %9771 = vmatmul.mubr.bf16.gmra.mxu0 %v9554
        %v9772 = vpop.f32.mrf.mxu0
        %v9773 = vadd.f32 0.0, %v9772
        %v9774 = vpop.f32.mrf.mxu0
        %v9775 = vpop.f32.mrf.mxu0
        %v9776 = vadd.f32 0.0, %v9775
        %v9777 = vpop.f32.mrf.mxu0
        %9778 = vmatprep.mubr.bf16.mxu0 %v9559
        %9779 = vmatmul.mubr.bf16.gmra.mxu0 %v9558
        %v9780 = vpop.f32.mrf.mxu0
        %v9781 = vadd.f32 0.0, %v9780
        %v9782 = vpop.f32.mrf.mxu0
        %v9783 = vpop.f32.mrf.mxu0
        %v9784 = vadd.f32 0.0, %v9783
        %v9785 = vpop.f32.mrf.mxu0
        %9786 = vdwg.mxu0
        %9787 = vmatprep.subr.bf16.mxu0 0
        %9788 = vmatpush1.bf16.msra.mxu0 %v9297
        %9789 = vmatprep.subr.bf16.mxu0 0
        %9790 = vmatpush1.bf16.msra.mxu0 %v9296
        %9791 = vmatprep.subr.bf16.mxu0 0
        %9792 = vmatpush1.bf16.msra.mxu0 %v9295
        %9793 = vmatprep.subr.bf16.mxu0 0
        %9794 = vmatpush1.bf16.msra.mxu0 %v9294
        %9795 = vmatprep.subr.bf16.mxu0 0
        %9796 = vmatpush1.bf16.msra.mxu0 %v9293
        %9797 = vmatprep.subr.bf16.mxu0 0
        %9798 = vmatpush1.bf16.msra.mxu0 %v9292
        %9799 = vmatprep.subr.bf16.mxu0 0
        %9800 = vmatpush1.bf16.msra.mxu0 %v9291
        %9801 = vmatprep.subr.bf16.mxu0 0
        %9802 = vmatpush1.bf16.msra.mxu0 %v9290
        %9803 = vmatprep.subr.bf16.mxu0 0
        %9804 = vmatpush2.bf16.msra.mxu0 %v9305
        %9805 = vmatprep.subr.bf16.mxu0 0
        %9806 = vmatpush2.bf16.msra.mxu0 %v9304
        %9807 = vmatprep.subr.bf16.mxu0 0
        %9808 = vmatpush2.bf16.msra.mxu0 %v9303
        %9809 = vmatprep.subr.bf16.mxu0 0
        %9810 = vmatpush2.bf16.msra.mxu0 %v9302
        %9811 = vmatprep.subr.bf16.mxu0 0
        %9812 = vmatpush2.bf16.msra.mxu0 %v9301
        %9813 = vmatprep.subr.bf16.mxu0 0
        %9814 = vmatpush2.bf16.msra.mxu0 %v9300
        %9815 = vmatprep.subr.bf16.mxu0 0
        %9816 = vmatpush2.bf16.msra.mxu0 %v9299
        %9817 = vmatprep.subr.bf16.mxu0 0
        %9818 = vmatpush2.bf16.msra.mxu0 %v9298
        %9819 = vmatprep.mubr.bf16.mxu0 %v9501
        %9820 = vmatmul.mubr.bf16.gmra.mxu0 %v9500
        %v9821 = vpop.f32.mrf.mxu0
        %v9822 = vadd.f32 %v9661, %v9821
        %v9823 = vpop.f32.mrf.mxu0
        %v9824 = vpop.f32.mrf.mxu0
        %v9825 = vadd.f32 %v9664, %v9824
        %v9826 = vpop.f32.mrf.mxu0
        %9827 = vmatprep.mubr.bf16.mxu0 %v9505
        %9828 = vmatmul.mubr.bf16.gmra.mxu0 %v9504
        %v9829 = vpop.f32.mrf.mxu0
        %v9830 = vadd.f32 %v9669, %v9829
        %v9831 = vpop.f32.mrf.mxu0
        %v9832 = vpop.f32.mrf.mxu0
        %v9833 = vadd.f32 %v9672, %v9832
        %v9834 = vpop.f32.mrf.mxu0
        %9835 = vmatprep.mubr.bf16.mxu0 %v9509
        %9836 = vmatmul.mubr.bf16.gmra.mxu0 %v9508
        %v9837 = vpop.f32.mrf.mxu0
        %v9838 = vadd.f32 %v9677, %v9837
        %v9839 = vpop.f32.mrf.mxu0
        %v9840 = vpop.f32.mrf.mxu0
        %v9841 = vadd.f32 %v9680, %v9840
        %v9842 = vpop.f32.mrf.mxu0
        %9843 = vmatprep.mubr.bf16.mxu0 %v9513
        %9844 = vmatmul.mubr.bf16.gmra.mxu0 %v9512
        %v9845 = vpop.f32.mrf.mxu0
        %v9846 = vadd.f32 %v9685, %v9845
        %v9847 = vpop.f32.mrf.mxu0
        %v9848 = vpop.f32.mrf.mxu0
        %v9849 = vadd.f32 %v9688, %v9848
        %v9850 = vpop.f32.mrf.mxu0
        %9851 = vmatprep.mubr.bf16.mxu0 %v9517
        %9852 = vmatmul.mubr.bf16.gmra.mxu0 %v9516
        %v9853 = vpop.f32.mrf.mxu0
        %v9854 = vadd.f32 %v9693, %v9853
        %v9855 = vpop.f32.mrf.mxu0
        %v9856 = vpop.f32.mrf.mxu0
        %v9857 = vadd.f32 %v9696, %v9856
        %v9858 = vpop.f32.mrf.mxu0
        %9859 = vmatprep.mubr.bf16.mxu0 %v9521
        %9860 = vmatmul.mubr.bf16.gmra.mxu0 %v9520
        %v9861 = vpop.f32.mrf.mxu0
        %v9862 = vadd.f32 %v9701, %v9861
        %v9863 = vpop.f32.mrf.mxu0
        %v9864 = vpop.f32.mrf.mxu0
        %v9865 = vadd.f32 %v9704, %v9864
        %v9866 = vpop.f32.mrf.mxu0
        %9867 = vmatprep.mubr.bf16.mxu0 %v9525
        %9868 = vmatmul.mubr.bf16.gmra.mxu0 %v9524
        %v9869 = vpop.f32.mrf.mxu0
        %v9870 = vadd.f32 %v9709, %v9869
        %v9871 = vpop.f32.mrf.mxu0
        %v9872 = vpop.f32.mrf.mxu0
        %v9873 = vadd.f32 %v9712, %v9872
        %v9874 = vpop.f32.mrf.mxu0
        %9875 = vmatprep.mubr.bf16.mxu0 %v9529
        %9876 = vmatmul.mubr.bf16.gmra.mxu0 %v9528
        %v9877 = vpop.f32.mrf.mxu0
        %v9878 = vadd.f32 %v9717, %v9877
        %v9879 = vpop.f32.mrf.mxu0
        %v9880 = vpop.f32.mrf.mxu0
        %v9881 = vadd.f32 %v9720, %v9880
        %v9882 = vpop.f32.mrf.mxu0
        %9883 = vmatprep.mubr.bf16.mxu0 %v9533
        %9884 = vmatmul.mubr.bf16.gmra.mxu0 %v9532
        %v9885 = vpop.f32.mrf.mxu0
        %v9886 = vadd.f32 %v9725, %v9885
        %v9887 = vpop.f32.mrf.mxu0
        %v9888 = vpop.f32.mrf.mxu0
        %v9889 = vadd.f32 %v9728, %v9888
        %v9890 = vpop.f32.mrf.mxu0
        %9891 = vmatprep.mubr.bf16.mxu0 %v9537
        %9892 = vmatmul.mubr.bf16.gmra.mxu0 %v9536
        %v9893 = vpop.f32.mrf.mxu0
        %v9894 = vadd.f32 %v9733, %v9893
        %v9895 = vpop.f32.mrf.mxu0
        %v9896 = vpop.f32.mrf.mxu0
        %v9897 = vadd.f32 %v9736, %v9896
        %v9898 = vpop.f32.mrf.mxu0
        %9899 = vmatprep.mubr.bf16.mxu0 %v9541
        %9900 = vmatmul.mubr.bf16.gmra.mxu0 %v9540
        %v9901 = vpop.f32.mrf.mxu0
        %v9902 = vadd.f32 %v9741, %v9901
        %v9903 = vpop.f32.mrf.mxu0
        %v9904 = vpop.f32.mrf.mxu0
        %v9905 = vadd.f32 %v9744, %v9904
        %v9906 = vpop.f32.mrf.mxu0
        %9907 = vmatprep.mubr.bf16.mxu0 %v9545
        %9908 = vmatmul.mubr.bf16.gmra.mxu0 %v9544
        %v9909 = vpop.f32.mrf.mxu0
        %v9910 = vadd.f32 %v9749, %v9909
        %v9911 = vpop.f32.mrf.mxu0
        %v9912 = vpop.f32.mrf.mxu0
        %v9913 = vadd.f32 %v9752, %v9912
        %v9914 = vpop.f32.mrf.mxu0
        %9915 = vmatprep.mubr.bf16.mxu0 %v9549
        %9916 = vmatmul.mubr.bf16.gmra.mxu0 %v9548
        %v9917 = vpop.f32.mrf.mxu0
        %v9918 = vadd.f32 %v9757, %v9917
        %v9919 = vpop.f32.mrf.mxu0
        %v9920 = vpop.f32.mrf.mxu0
        %v9921 = vadd.f32 %v9760, %v9920
        %v9922 = vpop.f32.mrf.mxu0
        %9923 = vmatprep.mubr.bf16.mxu0 %v9553
        %9924 = vmatmul.mubr.bf16.gmra.mxu0 %v9552
        %v9925 = vpop.f32.mrf.mxu0
        %v9926 = vadd.f32 %v9765, %v9925
        %v9927 = vpop.f32.mrf.mxu0
        %v9928 = vpop.f32.mrf.mxu0
        %v9929 = vadd.f32 %v9768, %v9928
        %v9930 = vpop.f32.mrf.mxu0
        %9931 = vmatprep.mubr.bf16.mxu0 %v9557
        %9932 = vmatmul.mubr.bf16.gmra.mxu0 %v9556
        %v9933 = vpop.f32.mrf.mxu0
        %v9934 = vadd.f32 %v9773, %v9933
        %v9935 = vpop.f32.mrf.mxu0
        %v9936 = vpop.f32.mrf.mxu0
        %v9937 = vadd.f32 %v9776, %v9936
        %v9938 = vpop.f32.mrf.mxu0
        %9939 = vmatprep.mubr.bf16.mxu0 %v9561
        %9940 = vmatmul.mubr.bf16.gmra.mxu0 %v9560
        %v9941 = vpop.f32.mrf.mxu0
        %v9942 = vadd.f32 %v9781, %v9941
        %v9943 = vpop.f32.mrf.mxu0
        %v9944 = vpop.f32.mrf.mxu0
        %v9945 = vadd.f32 %v9784, %v9944
        %v9946 = vpop.f32.mrf.mxu0
        %9947 = vdwg.mxu0
        %v9948 = vld [vmem:[%s14] sm:$0xff]
        %v9949 = vld [vmem:[%s14 + $0x8] sm:$0xff]
        %v9950 = vld [vmem:[%s14 + $0x10] sm:$0xff]
        %v9951 = vld [vmem:[%s14 + $0x18] sm:$0xff]
        %v9952 = vld [vmem:[%s14 + $0x20] sm:$0xff]
        %v9953 = vld [vmem:[%s14 + $0x28] sm:$0xff]
        %v9954 = vld [vmem:[%s14 + $0x30] sm:$0xff]
        %v9955 = vld [vmem:[%s14 + $0x38] sm:$0xff]
        %v9956 = vld [vmem:[%s14 + $0x40] sm:$0xff]
        %v9957 = vld [vmem:[%s14 + $0x48] sm:$0xff]
        %v9958 = vld [vmem:[%s14 + $0x50] sm:$0xff]
        %v9959 = vld [vmem:[%s14 + $0x58] sm:$0xff]
        %v9960 = vld [vmem:[%s14 + $0x60] sm:$0xff]
        %v9961 = vld [vmem:[%s14 + $0x68] sm:$0xff]
        %v9962 = vld [vmem:[%s14 + $0x70] sm:$0xff]
        %v9963 = vld [vmem:[%s14 + $0x78] sm:$0xff]
        %v9964 = vld [vmem:[%s14 + $0x80] sm:$0xff]
        %v9965 = vld [vmem:[%s14 + $0x88] sm:$0xff]
        %v9966 = vld [vmem:[%s14 + $0x90] sm:$0xff]
        %v9967 = vld [vmem:[%s14 + $0x98] sm:$0xff]
        %v9968 = vld [vmem:[%s14 + $0xa0] sm:$0xff]
        %v9969 = vld [vmem:[%s14 + $0xa8] sm:$0xff]
        %v9970 = vld [vmem:[%s14 + $0xb0] sm:$0xff]
        %v9971 = vld [vmem:[%s14 + $0xb8] sm:$0xff]
        %v9972 = vld [vmem:[%s14 + $0xc0] sm:$0xff]
        %v9973 = vld [vmem:[%s14 + $0xc8] sm:$0xff]
        %v9974 = vld [vmem:[%s14 + $0xd0] sm:$0xff]
        %v9975 = vld [vmem:[%s14 + $0xd8] sm:$0xff]
        %v9976 = vld [vmem:[%s14 + $0xe0] sm:$0xff]
        %v9977 = vld [vmem:[%s14 + $0xe8] sm:$0xff]
        %v9978 = vld [vmem:[%s14 + $0xf0] sm:$0xff]
        %v9979 = vld [vmem:[%s14 + $0xf8] sm:$0xff]
        %v9980 = vmul.f32 %v9822, %v9948
        %v9981 = vmul.f32 %v9825, %v9949
        %v9982 = vmul.f32 %v9830, %v9950
        %v9983 = vmul.f32 %v9833, %v9951
        %v9984 = vmul.f32 %v9838, %v9952
        %v9985 = vmul.f32 %v9841, %v9953
        %v9986 = vmul.f32 %v9846, %v9954
        %v9987 = vmul.f32 %v9849, %v9955
        %v9988 = vmul.f32 %v9854, %v9956
        %v9989 = vmul.f32 %v9857, %v9957
        %v9990 = vmul.f32 %v9862, %v9958
        %v9991 = vmul.f32 %v9865, %v9959
        %v9992 = vmul.f32 %v9870, %v9960
        %v9993 = vmul.f32 %v9873, %v9961
        %v9994 = vmul.f32 %v9878, %v9962
        %v9995 = vmul.f32 %v9881, %v9963
        %v9996 = vmul.f32 %v9886, %v9964
        %v9997 = vmul.f32 %v9889, %v9965
        %v9998 = vmul.f32 %v9894, %v9966
        %v9999 = vmul.f32 %v9897, %v9967
        %v10000 = vmul.f32 %v9902, %v9968
        %v10001 = vmul.f32 %v9905, %v9969
        %v10002 = vmul.f32 %v9910, %v9970
        %v10003 = vmul.f32 %v9913, %v9971
        %v10004 = vmul.f32 %v9918, %v9972
        %v10005 = vmul.f32 %v9921, %v9973
        %v10006 = vmul.f32 %v9926, %v9974
        %v10007 = vmul.f32 %v9929, %v9975
        %v10008 = vmul.f32 %v9934, %v9976
        %v10009 = vmul.f32 %v9937, %v9977
        %v10010 = vmul.f32 %v9942, %v9978
        %v10011 = vmul.f32 %v9945, %v9979
        %v10012 = vld [vmem:[%s15] sm:$0xff]
        %v10013 = vld [vmem:[%s15 + $0x8] sm:$0xff]
        %v10014 = vld [vmem:[%s15 + $0x10] sm:$0xff]
        %v10015 = vld [vmem:[%s15 + $0x18] sm:$0xff]
        %v10016 = vld [vmem:[%s15 + $0x20] sm:$0xff]
        %v10017 = vld [vmem:[%s15 + $0x28] sm:$0xff]
        %v10018 = vld [vmem:[%s15 + $0x30] sm:$0xff]
        %v10019 = vld [vmem:[%s15 + $0x38] sm:$0xff]
        %v10020 = vld [vmem:[%s15 + $0x40] sm:$0xff]
        %v10021 = vld [vmem:[%s15 + $0x48] sm:$0xff]
        %v10022 = vld [vmem:[%s15 + $0x50] sm:$0xff]
        %v10023 = vld [vmem:[%s15 + $0x58] sm:$0xff]
        %v10024 = vld [vmem:[%s15 + $0x60] sm:$0xff]
        %v10025 = vld [vmem:[%s15 + $0x68] sm:$0xff]
        %v10026 = vld [vmem:[%s15 + $0x70] sm:$0xff]
        %v10027 = vld [vmem:[%s15 + $0x78] sm:$0xff]
        %v10028 = vld [vmem:[%s15 + $0x80] sm:$0xff]
        %v10029 = vld [vmem:[%s15 + $0x88] sm:$0xff]
        %v10030 = vld [vmem:[%s15 + $0x90] sm:$0xff]
        %v10031 = vld [vmem:[%s15 + $0x98] sm:$0xff]
        %v10032 = vld [vmem:[%s15 + $0xa0] sm:$0xff]
        %v10033 = vld [vmem:[%s15 + $0xa8] sm:$0xff]
        %v10034 = vld [vmem:[%s15 + $0xb0] sm:$0xff]
        %v10035 = vld [vmem:[%s15 + $0xb8] sm:$0xff]
        %v10036 = vld [vmem:[%s15 + $0xc0] sm:$0xff]
        %v10037 = vld [vmem:[%s15 + $0xc8] sm:$0xff]
        %v10038 = vld [vmem:[%s15 + $0xd0] sm:$0xff]
        %v10039 = vld [vmem:[%s15 + $0xd8] sm:$0xff]
        %v10040 = vld [vmem:[%s15 + $0xe0] sm:$0xff]
        %v10041 = vld [vmem:[%s15 + $0xe8] sm:$0xff]
        %v10042 = vld [vmem:[%s15 + $0xf0] sm:$0xff]
        %v10043 = vld [vmem:[%s15 + $0xf8] sm:$0xff]
        %v10044 = vadd.f32 %v9980, %v10012
        %v10045 = vadd.f32 %v9981, %v10013
        %v10046 = vadd.f32 %v9982, %v10014
        %v10047 = vadd.f32 %v9983, %v10015
        %v10048 = vadd.f32 %v9984, %v10016
        %v10049 = vadd.f32 %v9985, %v10017
        %v10050 = vadd.f32 %v9986, %v10018
        %v10051 = vadd.f32 %v9987, %v10019
        %v10052 = vadd.f32 %v9988, %v10020
        %v10053 = vadd.f32 %v9989, %v10021
        %v10054 = vadd.f32 %v9990, %v10022
        %v10055 = vadd.f32 %v9991, %v10023
        %v10056 = vadd.f32 %v9992, %v10024
        %v10057 = vadd.f32 %v9993, %v10025
        %v10058 = vadd.f32 %v9994, %v10026
        %v10059 = vadd.f32 %v9995, %v10027
        %v10060 = vadd.f32 %v9996, %v10028
        %v10061 = vadd.f32 %v9997, %v10029
        %v10062 = vadd.f32 %v9998, %v10030
        %v10063 = vadd.f32 %v9999, %v10031
        %v10064 = vadd.f32 %v10000, %v10032
        %v10065 = vadd.f32 %v10001, %v10033
        %v10066 = vadd.f32 %v10002, %v10034
        %v10067 = vadd.f32 %v10003, %v10035
        %v10068 = vadd.f32 %v10004, %v10036
        %v10069 = vadd.f32 %v10005, %v10037
        %v10070 = vadd.f32 %v10006, %v10038
        %v10071 = vadd.f32 %v10007, %v10039
        %v10072 = vadd.f32 %v10008, %v10040
        %v10073 = vadd.f32 %v10009, %v10041
        %v10074 = vadd.f32 %v10010, %v10042
        %v10075 = vadd.f32 %v10011, %v10043
        %v10076 = vmax.f32 %v10044, 0.0
        %v10077 = vmax.f32 %v10045, 0.0
        %v10078 = vmax.f32 %v10046, 0.0
        %v10079 = vmax.f32 %v10047, 0.0
        %v10080 = vmax.f32 %v10048, 0.0
        %v10081 = vmax.f32 %v10049, 0.0
        %v10082 = vmax.f32 %v10050, 0.0
        %v10083 = vmax.f32 %v10051, 0.0
        %v10084 = vmax.f32 %v10052, 0.0
        %v10085 = vmax.f32 %v10053, 0.0
        %v10086 = vmax.f32 %v10054, 0.0
        %v10087 = vmax.f32 %v10055, 0.0
        %v10088 = vmax.f32 %v10056, 0.0
        %v10089 = vmax.f32 %v10057, 0.0
        %v10090 = vmax.f32 %v10058, 0.0
        %v10091 = vmax.f32 %v10059, 0.0
        %v10092 = vmax.f32 %v10060, 0.0
        %v10093 = vmax.f32 %v10061, 0.0
        %v10094 = vmax.f32 %v10062, 0.0
        %v10095 = vmax.f32 %v10063, 0.0
        %v10096 = vmax.f32 %v10064, 0.0
        %v10097 = vmax.f32 %v10065, 0.0
        %v10098 = vmax.f32 %v10066, 0.0
        %v10099 = vmax.f32 %v10067, 0.0
        %v10100 = vmax.f32 %v10068, 0.0
        %v10101 = vmax.f32 %v10069, 0.0
        %v10102 = vmax.f32 %v10070, 0.0
        %v10103 = vmax.f32 %v10071, 0.0
        %v10104 = vmax.f32 %v10072, 0.0
        %v10105 = vmax.f32 %v10073, 0.0
        %v10106 = vmax.f32 %v10074, 0.0
        %v10107 = vmax.f32 %v10075, 0.0
        %v10108 = vld [vmem:[%s16] sm:$0xff]
        %v10109 = vld [vmem:[%s16 + $0x8] sm:$0xff]
        %v10110 = vpack.c.bf16 %v10077, %v10076
        %v10111 = vpack.c.bf16 %v10079, %v10078
        %v10112 = vpack.c.bf16 %v10081, %v10080
        %v10113 = vpack.c.bf16 %v10083, %v10082
        %v10114 = vpack.c.bf16 %v10085, %v10084
        %v10115 = vpack.c.bf16 %v10087, %v10086
        %v10116 = vpack.c.bf16 %v10089, %v10088
        %v10117 = vpack.c.bf16 %v10091, %v10090
        %v10118 = vpack.c.bf16 %v10093, %v10092
        %v10119 = vpack.c.bf16 %v10095, %v10094
        %v10120 = vpack.c.bf16 %v10097, %v10096
        %v10121 = vpack.c.bf16 %v10099, %v10098
        %v10122 = vpack.c.bf16 %v10101, %v10100
        %v10123 = vpack.c.bf16 %v10103, %v10102
        %v10124 = vpack.c.bf16 %v10105, %v10104
        %v10125 = vpack.c.bf16 %v10107, %v10106
        %v10126 = vld [vmem:[%s17] sm:$0xff]
        %v10127 = vld [vmem:[%s17 + $0x8] sm:$0xff]
        %v10130 = vunpack.c.l.b16 %v10108
        %v10131 = vunpack.c.h.b16 %v10108
        %v10132 = vunpack.c.l.b16 %v10109
        %v10133 = vunpack.c.h.b16 %v10109
        %v10134 = vpack.c.b16 %v10132, %v10130
        %v10135 = vpack.c.b16 %v10133, %v10131
        %10138 = vmatprep.subr.bf16.mxu0 0
        %10139 = vmatpush1.bf16.msra.mxu0 %v10117
        %10140 = vmatprep.subr.bf16.mxu0 0
        %10141 = vmatpush1.bf16.msra.mxu0 %v10116
        %10142 = vmatprep.subr.bf16.mxu0 0
        %10143 = vmatpush1.bf16.msra.mxu0 %v10115
        %10144 = vmatprep.subr.bf16.mxu0 0
        %10145 = vmatpush1.bf16.msra.mxu0 %v10114
        %10146 = vmatprep.subr.bf16.mxu0 0
        %10147 = vmatpush1.bf16.msra.mxu0 %v10113
        %10148 = vmatprep.subr.bf16.mxu0 0
        %10149 = vmatpush1.bf16.msra.mxu0 %v10112
        %10150 = vmatprep.subr.bf16.mxu0 0
        %10151 = vmatpush1.bf16.msra.mxu0 %v10111
        %10152 = vmatprep.subr.bf16.mxu0 0
        %10153 = vmatpush1.bf16.msra.mxu0 %v10110
        %10154 = vmatprep.subr.bf16.mxu0 0
        %10155 = vmatpush2.bf16.msra.mxu0 %v10125
        %10156 = vmatprep.subr.bf16.mxu0 0
        %10157 = vmatpush2.bf16.msra.mxu0 %v10124
        %10158 = vmatprep.subr.bf16.mxu0 0
        %10159 = vmatpush2.bf16.msra.mxu0 %v10123
        %10160 = vmatprep.subr.bf16.mxu0 0
        %10161 = vmatpush2.bf16.msra.mxu0 %v10122
        %10162 = vmatprep.subr.bf16.mxu0 0
        %10163 = vmatpush2.bf16.msra.mxu0 %v10121
        %10164 = vmatprep.subr.bf16.mxu0 0
        %10165 = vmatpush2.bf16.msra.mxu0 %v10120
        %10166 = vmatprep.subr.bf16.mxu0 0
        %10167 = vmatpush2.bf16.msra.mxu0 %v10119
        %10168 = vmatprep.subr.bf16.mxu0 0
        %10169 = vmatpush2.bf16.msra.mxu0 %v10118
        %10170 = vmatprep.mubr.bf16.mxu0 %v10135
        %10171 = vmatmul.mubr.bf16.gmra.mxu0 %v10134
        %v10172 = vpop.f32.mrf.mxu0
        %v10173 = vadd.f32 %v10126, %v10172
        %v10174 = vpop.f32.mrf.mxu0
        %v10175 = vpop.f32.mrf.mxu0
        %v10176 = vadd.f32 %v10127, %v10175
        %v10177 = vpop.f32.mrf.mxu0
        %10178 = vdwg.mxu0
        %v10179 = vld [vmem:[%s18] sm:$0xff]
        %v10180 = vld [vmem:[%s18 + $0x8] sm:$0xff]
        %v10181 = vadd.f32 %v10173, %v10179
        %v10182 = vadd.f32 %v10176, %v10180
        %10183 = vst.msk [vmem:[%s630] sm:$0xff] %vm5874, %v10181
        %10184 = vst.msk [vmem:[%s630 + $0x8] sm:$0xff] %vm5874, %v10182
      $region104: #{stnkd_forward.1} parent=95 // pred_fallthru
        _
      %p10185 = scmp.lt.s32.totalorder %s34, 1
      %s10186 = scalar_select %p10185, %s34, 1
      %s10187 = smul.addr %s10186, 2
      %s10188 = smul.addr %s10187, 8
      %s10189 = scalar_lea.vmem %s19, %s10188
      // Predicated region
      $region105: #{stnkd_forward.1} parent=95 // pred_check
        %p10190 = pneg %p466
      $region106: #{stnkd_forward.1} parent=95 // pred_check_branch
        %10192 = sbr.rel (%p10190) target = $region108
      $region107: #{stnkd_forward.1} parent=95 // pred_region
        _
      $region108: #{stnkd_forward.1} parent=95 // pred_fallthru
        _
    $region96: #{stnkd_forward.1} parent=5 // pred_fallthru
      _
    %p10193 = scmp.le.s32.totalorder 2, %s25
    // Predicated region
    $region109: #{stnkd_forward.1} parent=5 // pred_check
      %p10194 = pneg %p10193
    $region110: #{stnkd_forward.1} parent=5 // pred_check_branch
      %10196 = sbr.rel (%p10194) target = $region112
    $region111: #{stnkd_forward.1} parent=5 // pred_region
      %s10197 = ssub.s32 %s25, 2
      // Predicated region
      $region113: #{stnkd_forward.1} parent=111 // pred_check
        %p10198 = pneg %p472
      $region114: #{stnkd_forward.1} parent=111 // pred_check_branch
        %10200 = sbr.rel (%p10198) target = $region116
      $region115: #{stnkd_forward.1} parent=111 // pred_region
        %p10201 = scmp.lt.s32.totalorder %s36, 1
        %s10202 = scalar_select %p10201, %s36, 1
        %s10203 = smul.addr %s10202, 2
        %s10204 = smul.addr %s10203, 8
        %s10205 = scalar_lea.vmem %s19, %s10204
      $region116: #{stnkd_forward.1} parent=111 // pred_fallthru
        _
    $region112: #{stnkd_forward.1} parent=5 // pred_fallthru
      _
  $region6: #{stnkd_forward.1} parent=0 // loop_footer
    %s29 = sadd.s32 1, %s25
  $region7: #{stnkd_forward.1} parent=0 // loop_footer_branch
    %24 = sbr.rel target = $region3
  $region8: #{stnkd_forward.1} parent=0 // loop_exit
    _

</llo_original>
